<compile_context>
chip_gen: v6e
topology: v6e:2x2x1
jax: 0.10.0
libtpu: 0.0.40
codegen_flags: <defaults>
</compile_context>

<pallas_src>
import functools

import numpy as np
import jax
import jax.numpy as jnp
from jax import lax
from jax.experimental import pallas as pl
from jax.experimental.pallas import tpu as pltpu


# Lane offsets inside the packed bias array (all vreg-aligned where it matters).
_OB1, _OB2, _OBFC1, _OBFC2, _OBB2, _OBB3 = 0, 128, 256, 768, 896, 1024
_BIAS_W = 1152


# ----------------------------------------------------------------------------
# Fused forward kernel: one batch tile of TB images per grid step.
# ----------------------------------------------------------------------------
def fused_kernel(cols1_ref, y_ref, yd_ref,
                 w1_ref, w2_ref, wfc1_ref, wfc2_ref, smallw_ref, bias_ref,
                 o_ref,
                 p1_ref, cols2_ref, acc2_ref, p2_ref, *, tb):
    f32 = jnp.float32
    cdt = cols2_ref.dtype                # matmul-operand dtype (f32 or bf16)
    R1 = 144 * tb                        # valid p1 rows (12x12 map, batch minor)

    # ---- conv1: 4 pool-candidate matmuls (lane slices of cols1) + max + ReLU ---
    # cols1 rows are (h, w, b); lanes are (dy, dx, k): candidate c = dy*2+dx
    # occupies lanes [c*25, c*25+25).  Result written straight into p1 scratch
    # (the ~4 x (144*tb, 20) f32 dot temporaries are covered by vmem_limit_bytes).
    cols1 = cols1_ref[...]
    cand = [jnp.dot(cols1[:, c * 25:(c + 1) * 25], w1_ref[...],
                    preferred_element_type=f32) for c in range(4)]
    p1_ref[0:R1, :] = jnp.maximum(
        jnp.maximum(jnp.maximum(cand[0], cand[1]), jnp.maximum(cand[2], cand[3]))
        + bias_ref[:, _OB1:_OB1 + 20], 0.0)                       # pool -> relu
    # zero padding rows: shifted conv2 windows may read (but never use) them
    p1_ref[R1:R1 + 8 * tb, :] = jnp.zeros((8 * tb, 20), f32)

    # ---- conv2: build im2col in VMEM (never touches HBM), one MXU matmul ----
    # p1 rows are (h, w, b); the window of tap (kh, kw) over all conv2 rows
    # (h2, v, b) is the single contiguous slice starting at (kh*12 + kw)*tb.
    # Rows with v in 8..11 are junk and are simply never read back.
    for kh in range(5):
        for kw in range(5):
            t = kh * 5 + kw
            off = (kh * 12 + kw) * tb
            cols2_ref[:, t * 20:(t + 1) * 20] = \
                p1_ref[off:off + 96 * tb, :].astype(cdt)
    acc2_ref[...] = (jnp.dot(cols2_ref[...], w2_ref[...],
                             preferred_element_type=f32)
                     + bias_ref[:, _OB2:_OB2 + 50])               # (96*tb, 50)

    # ---- 2x2 maxpool + ReLU staged into (tb, 800), then ONE K=800 FC1 matmul --
    for hp in range(4):
        for wp in range(4):
            s = hp * 4 + wp
            r00 = ((2 * hp + 0) * 12 + 2 * wp + 0) * tb
            r01 = ((2 * hp + 0) * 12 + 2 * wp + 1) * tb
            r10 = ((2 * hp + 1) * 12 + 2 * wp + 0) * tb
            r11 = ((2 * hp + 1) * 12 + 2 * wp + 1) * tb
            m = jnp.maximum(
                jnp.maximum(acc2_ref[r00:r00 + tb, :], acc2_ref[r01:r01 + tb, :]),
                jnp.maximum(acc2_ref[r10:r10 + tb, :], acc2_ref[r11:r11 + tb, :]))
            p2_ref[:, s * 50:(s + 1) * 50] = jnp.maximum(m, 0.0).astype(cdt)

    h1 = jnp.maximum(jnp.dot(p2_ref[...], wfc1_ref[...],
                             preferred_element_type=f32)
                     + bias_ref[:, _OBFC1:_OBFC1 + 500], 0.0)     # Linear(800,500)
    h2 = jnp.maximum(jnp.dot(h1, wfc2_ref[...], preferred_element_type=f32)
                     + bias_ref[:, _OBFC2:_OBFC2 + 10], 0.0)      # Linear(500,10)

    # block_2: Linear(20,10) on cat([h2, y])   (exact column split of the weight)
    h3 = jnp.maximum(
        jnp.dot(h2, smallw_ref[:, 0:10], preferred_element_type=f32)
        + jnp.dot(y_ref[...], smallw_ref[:, 10:20], preferred_element_type=f32)
        + bias_ref[:, _OBB2:_OBB2 + 10], 0.0)
    # block_3: Linear(20,1) on cat([h3, y_hat_diff]) -> sigmoid
    z = (jnp.dot(h3, smallw_ref[:, 20:21], preferred_element_type=f32)
         + jnp.dot(yd_ref[...], smallw_ref[:, 21:22], preferred_element_type=f32)
         + bias_ref[:, _OBB3:_OBB3 + 1])
    o_ref[...] = jax.nn.sigmoid(z)


# ----------------------------------------------------------------------------
# JAX-side glue
# ----------------------------------------------------------------------------
def _im2col_conv1(x, tb, dtype):
    """(Bp, 28, 28) -> (Bp*144, 100) lane-dense patch matrix.

    Rows are (tile, h, w, b) so every conv2 tap downstream is ONE contiguous
    row window of the pooled map; lanes are (dy, dx, k) so the four 2x2-pool
    candidates are the four 25-lane groups.  Emitted in the compute dtype
    (bf16 when requested) to halve the only HBM-resident intermediate.
    """
    Bp = x.shape[0]
    nb = Bp // tb
    pats = jnp.stack([x[:, kh:kh + 24, kw:kw + 24]
                      for kh in range(5) for kw in range(5)], axis=-1)  # (Bp,24,24,25)
    pats = pats.reshape(nb, tb, 12, 2, 12, 2, 25)     # (t, b, h, dy, w, dx, k)
    pats = pats.transpose(0, 2, 4, 1, 3, 5, 6)        # (t, h, w, b, dy, dx, k)
    return pats.reshape(Bp * 144, 100).astype(dtype)


def prepare_params(p, use_bf16=False):
    """One-time weight re-layout (hoisted out of the per-call path).

    use_bf16=True stores the MXU operands (w1/w2/wfc1 and, via forward(),
    cols1/cols2/p2) in bf16 for v6e/v7x; accumulation stays f32.
    """
    cdt = jnp.bfloat16 if use_bf16 else jnp.float32

    biases = jnp.zeros((1, _BIAS_W), jnp.float32)
    biases = biases.at[0, _OB1:_OB1 + 20].set(p["b1"])
    biases = biases.at[0, _OB2:_OB2 + 50].set(p["b2"])
    biases = biases.at[0, _OBFC1:_OBFC1 + 500].set(p["bfc1"])
    biases = biases.at[0, _OBFC2:_OBFC2 + 10].set(p["bfc2"])
    biases = biases.at[0, _OBB2:_OBB2 + 10].set(p["bb2"])
    biases = biases.at[0, _OBB3:_OBB3 + 1].set(p["bb3"])

    smallw = jnp.concatenate([p["wb2"][:, :10].T, p["wb2"][:, 10:].T,
                              p["wb3"][:, :10].T, p["wb3"][:, 10:].T],
                             axis=1).astype(jnp.float32)           # (10, 22)

    return {
        "w1": p["w1"].reshape(20, 25).T.astype(cdt),               # (25, 20)
        "w2": p["w2"].transpose(2, 3, 1, 0).reshape(500, 50).astype(cdt),  # (kh,kw,cin)
        # rows (spatial s, channel c) to match the (tb, 800) staging layout
        "wfc1": p["wfc1"].reshape(500, 50, 16).transpose(2, 1, 0)
                        .reshape(800, 500).astype(cdt),
        "wfc2": p["wfc2"].T.astype(jnp.float32),                   # (500, 10)
        "smallw": smallw,                                          # (10, 22)
        "biases": biases,                                          # (1, 1152)
    }


def forward(params, x, y, y_hat_diff, *, tb=32):
    """Matches LeVestimatorMNIST.forward: x (B,1,28,28), y / y_hat_diff (B,10).

    tb=32 fits v7x (64 MiB VMEM) with headroom; raise to 64 on v5e/v6e.
    The compute dtype (f32 or bf16) is inferred from the prepared weights.
    """
    cdt = params["w1"].dtype
    B = x.shape[0]
    tb = max(1, min(tb, B))
    if B > tb and tb % 8:                 # multi-tile: keep row blocks 8-aligned
        tb = min(B, ((tb + 7) // 8) * 8)
    nb = -(-B // tb)
    Bp = nb * tb

    x = x.astype(jnp.float32).reshape(B, 28, 28)      # x.float(); C_in == 1
    y = y.astype(jnp.float32)
    yd = y_hat_diff.astype(jnp.float32)
    if Bp != B:                                        # pad batch to a tile multiple
        pad = Bp - B
        x = jnp.concatenate([x, jnp.zeros((pad, 28, 28), jnp.float32)], axis=0)
        y = jnp.concatenate([y, jnp.zeros((pad, 10), jnp.float32)], axis=0)
        yd = jnp.concatenate([yd, jnp.zeros((pad, 10), jnp.float32)], axis=0)

    cols1 = _im2col_conv1(x, tb, cdt)                 # (Bp*144, 100) — only HBM interm.

    def const_spec(a):
        return pl.BlockSpec(a.shape, lambda i, _nd=a.ndim: (0,) * _nd)

    weights = [params[k] for k in ("w1", "w2", "wfc1", "wfc2", "smallw", "biases")]

    out = pl.pallas_call(
        functools.partial(fused_kernel, tb=tb),
        out_shape=jax.ShapeDtypeStruct((Bp, 1), jnp.float32),
        grid=(nb,),
        in_specs=[pl.BlockSpec((144 * tb, 100), lambda i: (i, 0)),
                  pl.BlockSpec((tb, 10), lambda i: (i, 0)),
                  pl.BlockSpec((tb, 10), lambda i: (i, 0))]
                 + [const_spec(w) for w in weights],
        out_specs=pl.BlockSpec((tb, 1), lambda i: (i, 0)),
        scratch_shapes=[pltpu.VMEM((152 * tb, 20), jnp.float32),   # p1 (+pad rows)
                        pltpu.VMEM((96 * tb, 500), cdt),           # conv2 im2col
                        pltpu.VMEM((96 * tb, 50), jnp.float32),    # conv2 output
                        pltpu.VMEM((tb, 800), cdt)],               # pooled FC1 input
        compiler_params=pltpu.CompilerParams(
            dimension_semantics=("parallel",),
            # ~30 MiB actual use at tb=32/f32 (incl. conv1 temporaries);
            # 56 MiB leaves margin and still fits v7x's 64 MiB physical VMEM.
            vmem_limit_bytes=56 * 1024 * 1024),
    )(cols1, y, yd, *weights)
    return out[:B]


# ----------------------------------------------------------------------------
# Deterministic parameter init (PyTorch shapes).  The 'adapter' Linear exists
# in the torch module but is unused by forward(); kept here for parity.
# ----------------------------------------------------------------------------
def init_params(key):
    def uinit(k, shape, fan_in):
        bound = 1.0 / np.sqrt(fan_in)
        return jax.random.uniform(k, shape, jnp.float32, -bound, bound)

    ks = jax.random.split(key, 14)
    return {
        "w1": uinit(ks[0], (20, 1, 5, 5), 25),   "b1": uinit(ks[1], (20,), 25),
        "w2": uinit(ks[2], (50, 20, 5, 5), 500), "b2": uinit(ks[3], (50,), 500),
        "wfc1": uinit(ks[4], (500, 800), 800),   "bfc1": uinit(ks[5], (500,), 800),
        "wfc2": uinit(ks[6], (10, 500), 500),    "bfc2": uinit(ks[7], (10,), 500),
        "wad": uinit(ks[8], (10, 10), 10),       "bad": uinit(ks[9], (10,), 10),
        "wb2": uinit(ks[10], (10, 20), 20),      "bb2": uinit(ks[11], (10,), 20),
        "wb3": uinit(ks[12], (1, 20), 20),       "bb3": uinit(ks[13], (1,), 20),
    }


# ----------------------------------------------------------------------------
# Pure-JAX reference (NCHW, same semantics as the torch module) for validation
# ----------------------------------------------------------------------------
def reference_forward(x, y, yd, p):
    x = x.astype(jnp.float32)
    dn = ("NCHW", "OIHW", "NCHW")
    c1 = lax.conv_general_dilated(x, p["w1"], (1, 1), "VALID",
                                  dimension_numbers=dn) + p["b1"][None, :, None, None]
    p1 = lax.reduce_window(c1, -jnp.inf, lax.max, (1, 1, 2, 2), (1, 1, 2, 2), "VALID")
    a1 = jnp.maximum(p1, 0.0)
    c2 = lax.conv_general_dilated(a1, p["w2"], (1, 1), "VALID",
                                  dimension_numbers=dn) + p["b2"][None, :, None, None]
    p2 = lax.reduce_window(c2, -jnp.inf, lax.max, (1, 1, 2, 2), (1, 1, 2, 2), "VALID")
    a2 = jnp.maximum(p2, 0.0)
    f = a2.reshape(x.shape[0], 800)
    h1 = jnp.maximum(f @ p["wfc1"].T + p["bfc1"], 0.0)
    h2 = jnp.maximum(h1 @ p["wfc2"].T + p["bfc2"], 0.0)
    h3 = jnp.maximum(jnp.concatenate([h2, y], axis=1) @ p["wb2"].T + p["bb2"], 0.0)
    return jax.nn.sigmoid(jnp.concatenate([h3, yd], axis=1) @ p["wb3"].T + p["bb3"])


if __name__ == "__main__":
    key = jax.random.PRNGKey(0)
    kp, kdata = jax.random.split(key, 2)
    raw_params = init_params(kp)
    params_f32 = prepare_params(raw_params, use_bf16=False)   # reference-accurate path
    params_bf16 = prepare_params(raw_params, use_bf16=True)   # v6e/v7x fast path

    fwd = jax.jit(forward)

    x = y = y_hat_diff = ref = None
    for B in (2, 70):                     # tiny batch + multi-tile / padded batch
        kx, ky, kd = jax.random.split(jax.random.fold_in(kdata, B), 3)
        x = jax.random.uniform(kx, (B, 1, 28, 28), jnp.float32)  # MNIST-sized NCHW input
        y = jax.random.uniform(ky, (B, 10), jnp.float32)
        y_hat_diff = jax.random.normal(kd, (B, 10), jnp.float32)
        ref = reference_forward(x, y, y_hat_diff, raw_params)

        out = jax.block_until_ready(fwd(params_f32, x, y, y_hat_diff))
        assert out.shape == (B, 1) and out.dtype == jnp.float32
        np.testing.assert_allclose(np.asarray(out), np.asarray(ref),
                                   rtol=5e-4, atol=1e-4)

    # bf16 MXU-operand path (same kernel structure, f32 accumulation/VPU math).
    out_bf16 = jax.block_until_ready(fwd(params_bf16, x, y, y_hat_diff))
    np.testing.assert_allclose(np.asarray(out_bf16), np.asarray(ref),
                               rtol=2e-2, atol=2e-2)

    print("KERNEL_OK")
</pallas_src>

<mosaic_0001>
module attributes {stable_mosaic.version = 11 : i64} {
  func.func @fused_kernel(%arg0: i32, %arg1: memref<288x100xf32, #tpu.memory_space<vmem>>, %arg2: memref<2x10xf32, #tpu.memory_space<vmem>>, %arg3: memref<2x10xf32, #tpu.memory_space<vmem>>, %arg4: memref<25x20xf32, #tpu.memory_space<vmem>>, %arg5: memref<500x50xf32, #tpu.memory_space<vmem>>, %arg6: memref<800x500xf32, #tpu.memory_space<vmem>>, %arg7: memref<500x10xf32, #tpu.memory_space<vmem>>, %arg8: memref<10x22xf32, #tpu.memory_space<vmem>>, %arg9: memref<1x1152xf32, #tpu.memory_space<vmem>>, %arg10: memref<2x1xf32, #tpu.memory_space<vmem>>, %arg11: memref<304x20xf32, #tpu.memory_space<vmem>>, %arg12: memref<192x500xf32, #tpu.memory_space<vmem>>, %arg13: memref<192x50xf32, #tpu.memory_space<vmem>>, %arg14: memref<2x800xf32, #tpu.memory_space<vmem>>) attributes {dimension_semantics = [#tpu.dimension_semantics<parallel>], iteration_bounds = array<i64: 1>, scalar_prefetch = 0 : i64, scratch_operands = 4 : i64, tpu.core_type = #tpu.core_type<tc>, window_params = [{transform_indices = @transform_0, window_bounds = array<i64: 288, 100>}, {transform_indices = @transform_1, window_bounds = array<i64: 2, 10>}, {transform_indices = @transform_2, window_bounds = array<i64: 2, 10>}, {pipeline_mode = #tpu.pipeline_mode<synchronous>, transform_indices = @transform_3, window_bounds = array<i64: 25, 20>}, {pipeline_mode = #tpu.pipeline_mode<synchronous>, transform_indices = @transform_4, window_bounds = array<i64: 500, 50>}, {pipeline_mode = #tpu.pipeline_mode<synchronous>, transform_indices = @transform_5, window_bounds = array<i64: 800, 500>}, {pipeline_mode = #tpu.pipeline_mode<synchronous>, transform_indices = @transform_6, window_bounds = array<i64: 500, 10>}, {pipeline_mode = #tpu.pipeline_mode<synchronous>, transform_indices = @transform_7, window_bounds = array<i64: 10, 22>}, {pipeline_mode = #tpu.pipeline_mode<synchronous>, transform_indices = @transform_8, window_bounds = array<i64: 1, 1152>}, {transform_indices = @transform_9, window_bounds = array<i64: 2, 1>}]} {
    %c0 = arith.constant 0 : index
    %c0_0 = arith.constant 0 : index
    %0 = vector.load %arg1[%c0, %c0_0] : memref<288x100xf32, #tpu.memory_space<vmem>>, vector<288x100xf32>
    %1 = vector.extract_strided_slice %0 {offsets = [0, 0], sizes = [288, 25], strides = [1, 1]} : vector<288x100xf32> to vector<288x25xf32>
    %c0_1 = arith.constant 0 : index
    %c0_2 = arith.constant 0 : index
    %2 = vector.load %arg4[%c0_1, %c0_2] : memref<25x20xf32, #tpu.memory_space<vmem>>, vector<25x20xf32>
    %cst = arith.constant dense<0.000000e+00> : vector<288x20xf32>
    %3 = tpu.matmul %1, %2, %cst {dimension_numbers = #tpu.dot_dimension_numbers<[1], [0], [0], [1], [0, 0, 1, 1], [], []>} : vector<288x25xf32>, vector<25x20xf32>, vector<288x20xf32> -> vector<288x20xf32>
    %4 = vector.extract_strided_slice %0 {offsets = [0, 25], sizes = [288, 25], strides = [1, 1]} : vector<288x100xf32> to vector<288x25xf32>
    %c0_3 = arith.constant 0 : index
    %c0_4 = arith.constant 0 : index
    %5 = vector.load %arg4[%c0_3, %c0_4] : memref<25x20xf32, #tpu.memory_space<vmem>>, vector<25x20xf32>
    %cst_5 = arith.constant dense<0.000000e+00> : vector<288x20xf32>
    %6 = tpu.matmul %4, %5, %cst_5 {dimension_numbers = #tpu.dot_dimension_numbers<[1], [0], [0], [1], [0, 0, 1, 1], [], []>} : vector<288x25xf32>, vector<25x20xf32>, vector<288x20xf32> -> vector<288x20xf32>
    %7 = vector.extract_strided_slice %0 {offsets = [0, 50], sizes = [288, 25], strides = [1, 1]} : vector<288x100xf32> to vector<288x25xf32>
    %c0_6 = arith.constant 0 : index
    %c0_7 = arith.constant 0 : index
    %8 = vector.load %arg4[%c0_6, %c0_7] : memref<25x20xf32, #tpu.memory_space<vmem>>, vector<25x20xf32>
    %cst_8 = arith.constant dense<0.000000e+00> : vector<288x20xf32>
    %9 = tpu.matmul %7, %8, %cst_8 {dimension_numbers = #tpu.dot_dimension_numbers<[1], [0], [0], [1], [0, 0, 1, 1], [], []>} : vector<288x25xf32>, vector<25x20xf32>, vector<288x20xf32> -> vector<288x20xf32>
    %10 = vector.extract_strided_slice %0 {offsets = [0, 75], sizes = [288, 25], strides = [1, 1]} : vector<288x100xf32> to vector<288x25xf32>
    %c0_9 = arith.constant 0 : index
    %c0_10 = arith.constant 0 : index
    %11 = vector.load %arg4[%c0_9, %c0_10] : memref<25x20xf32, #tpu.memory_space<vmem>>, vector<25x20xf32>
    %cst_11 = arith.constant dense<0.000000e+00> : vector<288x20xf32>
    %12 = tpu.matmul %10, %11, %cst_11 {dimension_numbers = #tpu.dot_dimension_numbers<[1], [0], [0], [1], [0, 0, 1, 1], [], []>} : vector<288x25xf32>, vector<25x20xf32>, vector<288x20xf32> -> vector<288x20xf32>
    %13 = arith.maximumf %3, %6 : vector<288x20xf32>
    %14 = arith.maximumf %9, %12 : vector<288x20xf32>
    %15 = arith.maximumf %13, %14 : vector<288x20xf32>
    %c0_12 = arith.constant 0 : index
    %c0_13 = arith.constant 0 : index
    %16 = vector.load %arg9[%c0_12, %c0_13] : memref<1x1152xf32, #tpu.memory_space<vmem>>, vector<1x20xf32>
    %17 = vector.broadcast %16 : vector<1x20xf32> to vector<288x20xf32>
    %18 = arith.addf %15, %17 : vector<288x20xf32>
    %cst_14 = arith.constant 0.000000e+00 : f32
    %19 = vector.broadcast %cst_14 : f32 to vector<288x20xf32>
    %20 = arith.maximumf %18, %19 : vector<288x20xf32>
    %c0_15 = arith.constant 0 : index
    %c0_16 = arith.constant 0 : index
    %21 = vector.load %arg11[%c0_15, %c0_16] : memref<304x20xf32, #tpu.memory_space<vmem>>, vector<288x20xf32>
    tpu.vector_store %arg11[%c0_15, %c0_16], %20 {strides = array<i32>} : memref<304x20xf32, #tpu.memory_space<vmem>>, vector<288x20xf32>,
    %cst_17 = arith.constant 0.000000e+00 : f32
    %22 = vector.broadcast %cst_17 : f32 to vector<16x20xf32>
    %c288 = arith.constant 288 : index
    %c0_18 = arith.constant 0 : index
    %23 = vector.load %arg11[%c288, %c0_18] : memref<304x20xf32, #tpu.memory_space<vmem>>, vector<16x20xf32>
    tpu.vector_store %arg11[%c288, %c0_18], %22 {strides = array<i32>} : memref<304x20xf32, #tpu.memory_space<vmem>>, vector<16x20xf32>,
    %c0_19 = arith.constant 0 : index
    %c0_20 = arith.constant 0 : index
    %24 = vector.load %arg11[%c0_19, %c0_20] : memref<304x20xf32, #tpu.memory_space<vmem>>, vector<192x20xf32>
    %c0_21 = arith.constant 0 : index
    %c0_22 = arith.constant 0 : index
    %25 = vector.load %arg12[%c0_21, %c0_22] : memref<192x500xf32, #tpu.memory_space<vmem>>, vector<192x20xf32>
    tpu.vector_store %arg12[%c0_21, %c0_22], %24 {strides = array<i32>} : memref<192x500xf32, #tpu.memory_space<vmem>>, vector<192x20xf32>,
    %c2 = arith.constant 2 : index
    %c0_23 = arith.constant 0 : index
    %26 = vector.load %arg11[%c2, %c0_23] : memref<304x20xf32, #tpu.memory_space<vmem>>, vector<192x20xf32>
    %c0_24 = arith.constant 0 : index
    %c20 = arith.constant 20 : index
    %27 = vector.load %arg12[%c0_24, %c20] : memref<192x500xf32, #tpu.memory_space<vmem>>, vector<192x20xf32>
    tpu.vector_store %arg12[%c0_24, %c20], %26 {strides = array<i32>} : memref<192x500xf32, #tpu.memory_space<vmem>>, vector<192x20xf32>,
    %c4 = arith.constant 4 : index
    %c0_25 = arith.constant 0 : index
    %28 = vector.load %arg11[%c4, %c0_25] : memref<304x20xf32, #tpu.memory_space<vmem>>, vector<192x20xf32>
    %c0_26 = arith.constant 0 : index
    %c40 = arith.constant 40 : index
    %29 = vector.load %arg12[%c0_26, %c40] : memref<192x500xf32, #tpu.memory_space<vmem>>, vector<192x20xf32>
    tpu.vector_store %arg12[%c0_26, %c40], %28 {strides = array<i32>} : memref<192x500xf32, #tpu.memory_space<vmem>>, vector<192x20xf32>,
    %c6 = arith.constant 6 : index
    %c0_27 = arith.constant 0 : index
    %30 = vector.load %arg11[%c6, %c0_27] : memref<304x20xf32, #tpu.memory_space<vmem>>, vector<192x20xf32>
    %c0_28 = arith.constant 0 : index
    %c60 = arith.constant 60 : index
    %31 = vector.load %arg12[%c0_28, %c60] : memref<192x500xf32, #tpu.memory_space<vmem>>, vector<192x20xf32>
    tpu.vector_store %arg12[%c0_28, %c60], %30 {strides = array<i32>} : memref<192x500xf32, #tpu.memory_space<vmem>>, vector<192x20xf32>,
    %c8 = arith.constant 8 : index
    %c0_29 = arith.constant 0 : index
    %32 = vector.load %arg11[%c8, %c0_29] : memref<304x20xf32, #tpu.memory_space<vmem>>, vector<192x20xf32>
    %c0_30 = arith.constant 0 : index
    %c80 = arith.constant 80 : index
    %33 = vector.load %arg12[%c0_30, %c80] : memref<192x500xf32, #tpu.memory_space<vmem>>, vector<192x20xf32>
    tpu.vector_store %arg12[%c0_30, %c80], %32 {strides = array<i32>} : memref<192x500xf32, #tpu.memory_space<vmem>>, vector<192x20xf32>,
    %c24 = arith.constant 24 : index
    %c0_31 = arith.constant 0 : index
    %34 = vector.load %arg11[%c24, %c0_31] : memref<304x20xf32, #tpu.memory_space<vmem>>, vector<192x20xf32>
    %c0_32 = arith.constant 0 : index
    %c100 = arith.constant 100 : index
    %35 = vector.load %arg12[%c0_32, %c100] : memref<192x500xf32, #tpu.memory_space<vmem>>, vector<192x20xf32>
    tpu.vector_store %arg12[%c0_32, %c100], %34 {strides = array<i32>} : memref<192x500xf32, #tpu.memory_space<vmem>>, vector<192x20xf32>,
    %c26 = arith.constant 26 : index
    %c0_33 = arith.constant 0 : index
    %36 = vector.load %arg11[%c26, %c0_33] : memref<304x20xf32, #tpu.memory_space<vmem>>, vector<192x20xf32>
    %c0_34 = arith.constant 0 : index
    %c120 = arith.constant 120 : index
    %37 = vector.load %arg12[%c0_34, %c120] : memref<192x500xf32, #tpu.memory_space<vmem>>, vector<192x20xf32>
    tpu.vector_store %arg12[%c0_34, %c120], %36 {strides = array<i32>} : memref<192x500xf32, #tpu.memory_space<vmem>>, vector<192x20xf32>,
    %c28 = arith.constant 28 : index
    %c0_35 = arith.constant 0 : index
    %38 = vector.load %arg11[%c28, %c0_35] : memref<304x20xf32, #tpu.memory_space<vmem>>, vector<192x20xf32>
    %c0_36 = arith.constant 0 : index
    %c140 = arith.constant 140 : index
    %39 = vector.load %arg12[%c0_36, %c140] : memref<192x500xf32, #tpu.memory_space<vmem>>, vector<192x20xf32>
    tpu.vector_store %arg12[%c0_36, %c140], %38 {strides = array<i32>} : memref<192x500xf32, #tpu.memory_space<vmem>>, vector<192x20xf32>,
    %c30 = arith.constant 30 : index
    %c0_37 = arith.constant 0 : index
    %40 = vector.load %arg11[%c30, %c0_37] : memref<304x20xf32, #tpu.memory_space<vmem>>, vector<192x20xf32>
    %c0_38 = arith.constant 0 : index
    %c160 = arith.constant 160 : index
    %41 = vector.load %arg12[%c0_38, %c160] : memref<192x500xf32, #tpu.memory_space<vmem>>, vector<192x20xf32>
    tpu.vector_store %arg12[%c0_38, %c160], %40 {strides = array<i32>} : memref<192x500xf32, #tpu.memory_space<vmem>>, vector<192x20xf32>,
    %c32 = arith.constant 32 : index
    %c0_39 = arith.constant 0 : index
    %42 = vector.load %arg11[%c32, %c0_39] : memref<304x20xf32, #tpu.memory_space<vmem>>, vector<192x20xf32>
    %c0_40 = arith.constant 0 : index
    %c180 = arith.constant 180 : index
    %43 = vector.load %arg12[%c0_40, %c180] : memref<192x500xf32, #tpu.memory_space<vmem>>, vector<192x20xf32>
    tpu.vector_store %arg12[%c0_40, %c180], %42 {strides = array<i32>} : memref<192x500xf32, #tpu.memory_space<vmem>>, vector<192x20xf32>,
    %c48 = arith.constant 48 : index
    %c0_41 = arith.constant 0 : index
    %44 = vector.load %arg11[%c48, %c0_41] : memref<304x20xf32, #tpu.memory_space<vmem>>, vector<192x20xf32>
    %c0_42 = arith.constant 0 : index
    %c200 = arith.constant 200 : index
    %45 = vector.load %arg12[%c0_42, %c200] : memref<192x500xf32, #tpu.memory_space<vmem>>, vector<192x20xf32>
    tpu.vector_store %arg12[%c0_42, %c200], %44 {strides = array<i32>} : memref<192x500xf32, #tpu.memory_space<vmem>>, vector<192x20xf32>,
    %c50 = arith.constant 50 : index
    %c0_43 = arith.constant 0 : index
    %46 = vector.load %arg11[%c50, %c0_43] : memref<304x20xf32, #tpu.memory_space<vmem>>, vector<192x20xf32>
    %c0_44 = arith.constant 0 : index
    %c220 = arith.constant 220 : index
    %47 = vector.load %arg12[%c0_44, %c220] : memref<192x500xf32, #tpu.memory_space<vmem>>, vector<192x20xf32>
    tpu.vector_store %arg12[%c0_44, %c220], %46 {strides = array<i32>} : memref<192x500xf32, #tpu.memory_space<vmem>>, vector<192x20xf32>,
    %c52 = arith.constant 52 : index
    %c0_45 = arith.constant 0 : index
    %48 = vector.load %arg11[%c52, %c0_45] : memref<304x20xf32, #tpu.memory_space<vmem>>, vector<192x20xf32>
    %c0_46 = arith.constant 0 : index
    %c240 = arith.constant 240 : index
    %49 = vector.load %arg12[%c0_46, %c240] : memref<192x500xf32, #tpu.memory_space<vmem>>, vector<192x20xf32>
    tpu.vector_store %arg12[%c0_46, %c240], %48 {strides = array<i32>} : memref<192x500xf32, #tpu.memory_space<vmem>>, vector<192x20xf32>,
    %c54 = arith.constant 54 : index
    %c0_47 = arith.constant 0 : index
    %50 = vector.load %arg11[%c54, %c0_47] : memref<304x20xf32, #tpu.memory_space<vmem>>, vector<192x20xf32>
    %c0_48 = arith.constant 0 : index
    %c260 = arith.constant 260 : index
    %51 = vector.load %arg12[%c0_48, %c260] : memref<192x500xf32, #tpu.memory_space<vmem>>, vector<192x20xf32>
    tpu.vector_store %arg12[%c0_48, %c260], %50 {strides = array<i32>} : memref<192x500xf32, #tpu.memory_space<vmem>>, vector<192x20xf32>,
    %c56 = arith.constant 56 : index
    %c0_49 = arith.constant 0 : index
    %52 = vector.load %arg11[%c56, %c0_49] : memref<304x20xf32, #tpu.memory_space<vmem>>, vector<192x20xf32>
    %c0_50 = arith.constant 0 : index
    %c280 = arith.constant 280 : index
    %53 = vector.load %arg12[%c0_50, %c280] : memref<192x500xf32, #tpu.memory_space<vmem>>, vector<192x20xf32>
    tpu.vector_store %arg12[%c0_50, %c280], %52 {strides = array<i32>} : memref<192x500xf32, #tpu.memory_space<vmem>>, vector<192x20xf32>,
    %c72 = arith.constant 72 : index
    %c0_51 = arith.constant 0 : index
    %54 = vector.load %arg11[%c72, %c0_51] : memref<304x20xf32, #tpu.memory_space<vmem>>, vector<192x20xf32>
    %c0_52 = arith.constant 0 : index
    %c300 = arith.constant 300 : index
    %55 = vector.load %arg12[%c0_52, %c300] : memref<192x500xf32, #tpu.memory_space<vmem>>, vector<192x20xf32>
    tpu.vector_store %arg12[%c0_52, %c300], %54 {strides = array<i32>} : memref<192x500xf32, #tpu.memory_space<vmem>>, vector<192x20xf32>,
    %c74 = arith.constant 74 : index
    %c0_53 = arith.constant 0 : index
    %56 = vector.load %arg11[%c74, %c0_53] : memref<304x20xf32, #tpu.memory_space<vmem>>, vector<192x20xf32>
    %c0_54 = arith.constant 0 : index
    %c320 = arith.constant 320 : index
    %57 = vector.load %arg12[%c0_54, %c320] : memref<192x500xf32, #tpu.memory_space<vmem>>, vector<192x20xf32>
    tpu.vector_store %arg12[%c0_54, %c320], %56 {strides = array<i32>} : memref<192x500xf32, #tpu.memory_space<vmem>>, vector<192x20xf32>,
    %c76 = arith.constant 76 : index
    %c0_55 = arith.constant 0 : index
    %58 = vector.load %arg11[%c76, %c0_55] : memref<304x20xf32, #tpu.memory_space<vmem>>, vector<192x20xf32>
    %c0_56 = arith.constant 0 : index
    %c340 = arith.constant 340 : index
    %59 = vector.load %arg12[%c0_56, %c340] : memref<192x500xf32, #tpu.memory_space<vmem>>, vector<192x20xf32>
    tpu.vector_store %arg12[%c0_56, %c340], %58 {strides = array<i32>} : memref<192x500xf32, #tpu.memory_space<vmem>>, vector<192x20xf32>,
    %c78 = arith.constant 78 : index
    %c0_57 = arith.constant 0 : index
    %60 = vector.load %arg11[%c78, %c0_57] : memref<304x20xf32, #tpu.memory_space<vmem>>, vector<192x20xf32>
    %c0_58 = arith.constant 0 : index
    %c360 = arith.constant 360 : index
    %61 = vector.load %arg12[%c0_58, %c360] : memref<192x500xf32, #tpu.memory_space<vmem>>, vector<192x20xf32>
    tpu.vector_store %arg12[%c0_58, %c360], %60 {strides = array<i32>} : memref<192x500xf32, #tpu.memory_space<vmem>>, vector<192x20xf32>,
    %c80_59 = arith.constant 80 : index
    %c0_60 = arith.constant 0 : index
    %62 = vector.load %arg11[%c80_59, %c0_60] : memref<304x20xf32, #tpu.memory_space<vmem>>, vector<192x20xf32>
    %c0_61 = arith.constant 0 : index
    %c380 = arith.constant 380 : index
    %63 = vector.load %arg12[%c0_61, %c380] : memref<192x500xf32, #tpu.memory_space<vmem>>, vector<192x20xf32>
    tpu.vector_store %arg12[%c0_61, %c380], %62 {strides = array<i32>} : memref<192x500xf32, #tpu.memory_space<vmem>>, vector<192x20xf32>,
    %c96 = arith.constant 96 : index
    %c0_62 = arith.constant 0 : index
    %64 = vector.load %arg11[%c96, %c0_62] : memref<304x20xf32, #tpu.memory_space<vmem>>, vector<192x20xf32>
    %c0_63 = arith.constant 0 : index
    %c400 = arith.constant 400 : index
    %65 = vector.load %arg12[%c0_63, %c400] : memref<192x500xf32, #tpu.memory_space<vmem>>, vector<192x20xf32>
    tpu.vector_store %arg12[%c0_63, %c400], %64 {strides = array<i32>} : memref<192x500xf32, #tpu.memory_space<vmem>>, vector<192x20xf32>,
    %c98 = arith.constant 98 : index
    %c0_64 = arith.constant 0 : index
    %66 = vector.load %arg11[%c98, %c0_64] : memref<304x20xf32, #tpu.memory_space<vmem>>, vector<192x20xf32>
    %c0_65 = arith.constant 0 : index
    %c420 = arith.constant 420 : index
    %67 = vector.load %arg12[%c0_65, %c420] : memref<192x500xf32, #tpu.memory_space<vmem>>, vector<192x20xf32>
    tpu.vector_store %arg12[%c0_65, %c420], %66 {strides = array<i32>} : memref<192x500xf32, #tpu.memory_space<vmem>>, vector<192x20xf32>,
    %c100_66 = arith.constant 100 : index
    %c0_67 = arith.constant 0 : index
    %68 = vector.load %arg11[%c100_66, %c0_67] : memref<304x20xf32, #tpu.memory_space<vmem>>, vector<192x20xf32>
    %c0_68 = arith.constant 0 : index
    %c440 = arith.constant 440 : index
    %69 = vector.load %arg12[%c0_68, %c440] : memref<192x500xf32, #tpu.memory_space<vmem>>, vector<192x20xf32>
    tpu.vector_store %arg12[%c0_68, %c440], %68 {strides = array<i32>} : memref<192x500xf32, #tpu.memory_space<vmem>>, vector<192x20xf32>,
    %c102 = arith.constant 102 : index
    %c0_69 = arith.constant 0 : index
    %70 = vector.load %arg11[%c102, %c0_69] : memref<304x20xf32, #tpu.memory_space<vmem>>, vector<192x20xf32>
    %c0_70 = arith.constant 0 : index
    %c460 = arith.constant 460 : index
    %71 = vector.load %arg12[%c0_70, %c460] : memref<192x500xf32, #tpu.memory_space<vmem>>, vector<192x20xf32>
    tpu.vector_store %arg12[%c0_70, %c460], %70 {strides = array<i32>} : memref<192x500xf32, #tpu.memory_space<vmem>>, vector<192x20xf32>,
    %c104 = arith.constant 104 : index
    %c0_71 = arith.constant 0 : index
    %72 = vector.load %arg11[%c104, %c0_71] : memref<304x20xf32, #tpu.memory_space<vmem>>, vector<192x20xf32>
    %c0_72 = arith.constant 0 : index
    %c480 = arith.constant 480 : index
    %73 = vector.load %arg12[%c0_72, %c480] : memref<192x500xf32, #tpu.memory_space<vmem>>, vector<192x20xf32>
    tpu.vector_store %arg12[%c0_72, %c480], %72 {strides = array<i32>} : memref<192x500xf32, #tpu.memory_space<vmem>>, vector<192x20xf32>,
    %c0_73 = arith.constant 0 : index
    %c0_74 = arith.constant 0 : index
    %74 = vector.load %arg12[%c0_73, %c0_74] : memref<192x500xf32, #tpu.memory_space<vmem>>, vector<192x500xf32>
    %c0_75 = arith.constant 0 : index
    %c0_76 = arith.constant 0 : index
    %75 = vector.load %arg5[%c0_75, %c0_76] : memref<500x50xf32, #tpu.memory_space<vmem>>, vector<500x50xf32>
    %cst_77 = arith.constant dense<0.000000e+00> : vector<192x50xf32>
    %76 = tpu.matmul %74, %75, %cst_77 {dimension_numbers = #tpu.dot_dimension_numbers<[1], [0], [0], [1], [0, 0, 1, 1], [], []>} : vector<192x500xf32>, vector<500x50xf32>, vector<192x50xf32> -> vector<192x50xf32>
    %c0_78 = arith.constant 0 : index
    %c128 = arith.constant 128 : index
    %77 = vector.load %arg9[%c0_78, %c128] : memref<1x1152xf32, #tpu.memory_space<vmem>>, vector<1x50xf32>
    %78 = vector.broadcast %77 : vector<1x50xf32> to vector<192x50xf32>
    %79 = arith.addf %76, %78 : vector<192x50xf32>
    %c0_79 = arith.constant 0 : index
    %c0_80 = arith.constant 0 : index
    %80 = vector.load %arg13[%c0_79, %c0_80] : memref<192x50xf32, #tpu.memory_space<vmem>>, vector<192x50xf32>
    tpu.vector_store %arg13[%c0_79, %c0_80], %79 {strides = array<i32>} : memref<192x50xf32, #tpu.memory_space<vmem>>, vector<192x50xf32>,
    %c0_81 = arith.constant 0 : index
    %c0_82 = arith.constant 0 : index
    %81 = vector.load %arg13[%c0_81, %c0_82] : memref<192x50xf32, #tpu.memory_space<vmem>>, vector<2x50xf32>
    %c2_83 = arith.constant 2 : index
    %c0_84 = arith.constant 0 : index
    %82 = vector.load %arg13[%c2_83, %c0_84] : memref<192x50xf32, #tpu.memory_space<vmem>>, vector<2x50xf32>
    %83 = arith.maximumf %81, %82 : vector<2x50xf32>
    %c24_85 = arith.constant 24 : index
    %c0_86 = arith.constant 0 : index
    %84 = vector.load %arg13[%c24_85, %c0_86] : memref<192x50xf32, #tpu.memory_space<vmem>>, vector<2x50xf32>
    %c26_87 = arith.constant 26 : index
    %c0_88 = arith.constant 0 : index
    %85 = vector.load %arg13[%c26_87, %c0_88] : memref<192x50xf32, #tpu.memory_space<vmem>>, vector<2x50xf32>
    %86 = arith.maximumf %84, %85 : vector<2x50xf32>
    %87 = arith.maximumf %83, %86 : vector<2x50xf32>
    %cst_89 = arith.constant 0.000000e+00 : f32
    %88 = vector.broadcast %cst_89 : f32 to vector<2x50xf32>
    %89 = arith.maximumf %87, %88 : vector<2x50xf32>
    %c0_90 = arith.constant 0 : index
    %c0_91 = arith.constant 0 : index
    %90 = vector.load %arg14[%c0_90, %c0_91] : memref<2x800xf32, #tpu.memory_space<vmem>>, vector<2x50xf32>
    tpu.vector_store %arg14[%c0_90, %c0_91], %89 {strides = array<i32>} : memref<2x800xf32, #tpu.memory_space<vmem>>, vector<2x50xf32>,
    %c4_92 = arith.constant 4 : index
    %c0_93 = arith.constant 0 : index
    %91 = vector.load %arg13[%c4_92, %c0_93] : memref<192x50xf32, #tpu.memory_space<vmem>>, vector<2x50xf32>
    %c6_94 = arith.constant 6 : index
    %c0_95 = arith.constant 0 : index
    %92 = vector.load %arg13[%c6_94, %c0_95] : memref<192x50xf32, #tpu.memory_space<vmem>>, vector<2x50xf32>
    %93 = arith.maximumf %91, %92 : vector<2x50xf32>
    %c28_96 = arith.constant 28 : index
    %c0_97 = arith.constant 0 : index
    %94 = vector.load %arg13[%c28_96, %c0_97] : memref<192x50xf32, #tpu.memory_space<vmem>>, vector<2x50xf32>
    %c30_98 = arith.constant 30 : index
    %c0_99 = arith.constant 0 : index
    %95 = vector.load %arg13[%c30_98, %c0_99] : memref<192x50xf32, #tpu.memory_space<vmem>>, vector<2x50xf32>
    %96 = arith.maximumf %94, %95 : vector<2x50xf32>
    %97 = arith.maximumf %93, %96 : vector<2x50xf32>
    %cst_100 = arith.constant 0.000000e+00 : f32
    %98 = vector.broadcast %cst_100 : f32 to vector<2x50xf32>
    %99 = arith.maximumf %97, %98 : vector<2x50xf32>
    %c0_101 = arith.constant 0 : index
    %c50_102 = arith.constant 50 : index
    %100 = vector.load %arg14[%c0_101, %c50_102] : memref<2x800xf32, #tpu.memory_space<vmem>>, vector<2x50xf32>
    tpu.vector_store %arg14[%c0_101, %c50_102], %99 {strides = array<i32>} : memref<2x800xf32, #tpu.memory_space<vmem>>, vector<2x50xf32>,
    %c8_103 = arith.constant 8 : index
    %c0_104 = arith.constant 0 : index
    %101 = vector.load %arg13[%c8_103, %c0_104] : memref<192x50xf32, #tpu.memory_space<vmem>>, vector<2x50xf32>
    %c10 = arith.constant 10 : index
    %c0_105 = arith.constant 0 : index
    %102 = vector.load %arg13[%c10, %c0_105] : memref<192x50xf32, #tpu.memory_space<vmem>>, vector<2x50xf32>
    %103 = arith.maximumf %101, %102 : vector<2x50xf32>
    %c32_106 = arith.constant 32 : index
    %c0_107 = arith.constant 0 : index
    %104 = vector.load %arg13[%c32_106, %c0_107] : memref<192x50xf32, #tpu.memory_space<vmem>>, vector<2x50xf32>
    %c34 = arith.constant 34 : index
    %c0_108 = arith.constant 0 : index
    %105 = vector.load %arg13[%c34, %c0_108] : memref<192x50xf32, #tpu.memory_space<vmem>>, vector<2x50xf32>
    %106 = arith.maximumf %104, %105 : vector<2x50xf32>
    %107 = arith.maximumf %103, %106 : vector<2x50xf32>
    %cst_109 = arith.constant 0.000000e+00 : f32
    %108 = vector.broadcast %cst_109 : f32 to vector<2x50xf32>
    %109 = arith.maximumf %107, %108 : vector<2x50xf32>
    %c0_110 = arith.constant 0 : index
    %c100_111 = arith.constant 100 : index
    %110 = vector.load %arg14[%c0_110, %c100_111] : memref<2x800xf32, #tpu.memory_space<vmem>>, vector<2x50xf32>
    tpu.vector_store %arg14[%c0_110, %c100_111], %109 {strides = array<i32>} : memref<2x800xf32, #tpu.memory_space<vmem>>, vector<2x50xf32>,
    %c12 = arith.constant 12 : index
    %c0_112 = arith.constant 0 : index
    %111 = vector.load %arg13[%c12, %c0_112] : memref<192x50xf32, #tpu.memory_space<vmem>>, vector<2x50xf32>
    %c14 = arith.constant 14 : index
    %c0_113 = arith.constant 0 : index
    %112 = vector.load %arg13[%c14, %c0_113] : memref<192x50xf32, #tpu.memory_space<vmem>>, vector<2x50xf32>
    %113 = arith.maximumf %111, %112 : vector<2x50xf32>
    %c36 = arith.constant 36 : index
    %c0_114 = arith.constant 0 : index
    %114 = vector.load %arg13[%c36, %c0_114] : memref<192x50xf32, #tpu.memory_space<vmem>>, vector<2x50xf32>
    %c38 = arith.constant 38 : index
    %c0_115 = arith.constant 0 : index
    %115 = vector.load %arg13[%c38, %c0_115] : memref<192x50xf32, #tpu.memory_space<vmem>>, vector<2x50xf32>
    %116 = arith.maximumf %114, %115 : vector<2x50xf32>
    %117 = arith.maximumf %113, %116 : vector<2x50xf32>
    %cst_116 = arith.constant 0.000000e+00 : f32
    %118 = vector.broadcast %cst_116 : f32 to vector<2x50xf32>
    %119 = arith.maximumf %117, %118 : vector<2x50xf32>
    %c0_117 = arith.constant 0 : index
    %c150 = arith.constant 150 : index
    %120 = vector.load %arg14[%c0_117, %c150] : memref<2x800xf32, #tpu.memory_space<vmem>>, vector<2x50xf32>
    tpu.vector_store %arg14[%c0_117, %c150], %119 {strides = array<i32>} : memref<2x800xf32, #tpu.memory_space<vmem>>, vector<2x50xf32>,
    %c48_118 = arith.constant 48 : index
    %c0_119 = arith.constant 0 : index
    %121 = vector.load %arg13[%c48_118, %c0_119] : memref<192x50xf32, #tpu.memory_space<vmem>>, vector<2x50xf32>
    %c50_120 = arith.constant 50 : index
    %c0_121 = arith.constant 0 : index
    %122 = vector.load %arg13[%c50_120, %c0_121] : memref<192x50xf32, #tpu.memory_space<vmem>>, vector<2x50xf32>
    %123 = arith.maximumf %121, %122 : vector<2x50xf32>
    %c72_122 = arith.constant 72 : index
    %c0_123 = arith.constant 0 : index
    %124 = vector.load %arg13[%c72_122, %c0_123] : memref<192x50xf32, #tpu.memory_space<vmem>>, vector<2x50xf32>
    %c74_124 = arith.constant 74 : index
    %c0_125 = arith.constant 0 : index
    %125 = vector.load %arg13[%c74_124, %c0_125] : memref<192x50xf32, #tpu.memory_space<vmem>>, vector<2x50xf32>
    %126 = arith.maximumf %124, %125 : vector<2x50xf32>
    %127 = arith.maximumf %123, %126 : vector<2x50xf32>
    %cst_126 = arith.constant 0.000000e+00 : f32
    %128 = vector.broadcast %cst_126 : f32 to vector<2x50xf32>
    %129 = arith.maximumf %127, %128 : vector<2x50xf32>
    %c0_127 = arith.constant 0 : index
    %c200_128 = arith.constant 200 : index
    %130 = vector.load %arg14[%c0_127, %c200_128] : memref<2x800xf32, #tpu.memory_space<vmem>>, vector<2x50xf32>
    tpu.vector_store %arg14[%c0_127, %c200_128], %129 {strides = array<i32>} : memref<2x800xf32, #tpu.memory_space<vmem>>, vector<2x50xf32>,
    %c52_129 = arith.constant 52 : index
    %c0_130 = arith.constant 0 : index
    %131 = vector.load %arg13[%c52_129, %c0_130] : memref<192x50xf32, #tpu.memory_space<vmem>>, vector<2x50xf32>
    %c54_131 = arith.constant 54 : index
    %c0_132 = arith.constant 0 : index
    %132 = vector.load %arg13[%c54_131, %c0_132] : memref<192x50xf32, #tpu.memory_space<vmem>>, vector<2x50xf32>
    %133 = arith.maximumf %131, %132 : vector<2x50xf32>
    %c76_133 = arith.constant 76 : index
    %c0_134 = arith.constant 0 : index
    %134 = vector.load %arg13[%c76_133, %c0_134] : memref<192x50xf32, #tpu.memory_space<vmem>>, vector<2x50xf32>
    %c78_135 = arith.constant 78 : index
    %c0_136 = arith.constant 0 : index
    %135 = vector.load %arg13[%c78_135, %c0_136] : memref<192x50xf32, #tpu.memory_space<vmem>>, vector<2x50xf32>
    %136 = arith.maximumf %134, %135 : vector<2x50xf32>
    %137 = arith.maximumf %133, %136 : vector<2x50xf32>
    %cst_137 = arith.constant 0.000000e+00 : f32
    %138 = vector.broadcast %cst_137 : f32 to vector<2x50xf32>
    %139 = arith.maximumf %137, %138 : vector<2x50xf32>
    %c0_138 = arith.constant 0 : index
    %c250 = arith.constant 250 : index
    %140 = vector.load %arg14[%c0_138, %c250] : memref<2x800xf32, #tpu.memory_space<vmem>>, vector<2x50xf32>
    tpu.vector_store %arg14[%c0_138, %c250], %139 {strides = array<i32>} : memref<2x800xf32, #tpu.memory_space<vmem>>, vector<2x50xf32>,
    %c56_139 = arith.constant 56 : index
    %c0_140 = arith.constant 0 : index
    %141 = vector.load %arg13[%c56_139, %c0_140] : memref<192x50xf32, #tpu.memory_space<vmem>>, vector<2x50xf32>
    %c58 = arith.constant 58 : index
    %c0_141 = arith.constant 0 : index
    %142 = vector.load %arg13[%c58, %c0_141] : memref<192x50xf32, #tpu.memory_space<vmem>>, vector<2x50xf32>
    %143 = arith.maximumf %141, %142 : vector<2x50xf32>
    %c80_142 = arith.constant 80 : index
    %c0_143 = arith.constant 0 : index
    %144 = vector.load %arg13[%c80_142, %c0_143] : memref<192x50xf32, #tpu.memory_space<vmem>>, vector<2x50xf32>
    %c82 = arith.constant 82 : index
    %c0_144 = arith.constant 0 : index
    %145 = vector.load %arg13[%c82, %c0_144] : memref<192x50xf32, #tpu.memory_space<vmem>>, vector<2x50xf32>
    %146 = arith.maximumf %144, %145 : vector<2x50xf32>
    %147 = arith.maximumf %143, %146 : vector<2x50xf32>
    %cst_145 = arith.constant 0.000000e+00 : f32
    %148 = vector.broadcast %cst_145 : f32 to vector<2x50xf32>
    %149 = arith.maximumf %147, %148 : vector<2x50xf32>
    %c0_146 = arith.constant 0 : index
    %c300_147 = arith.constant 300 : index
    %150 = vector.load %arg14[%c0_146, %c300_147] : memref<2x800xf32, #tpu.memory_space<vmem>>, vector<2x50xf32>
    tpu.vector_store %arg14[%c0_146, %c300_147], %149 {strides = array<i32>} : memref<2x800xf32, #tpu.memory_space<vmem>>, vector<2x50xf32>,
    %c60_148 = arith.constant 60 : index
    %c0_149 = arith.constant 0 : index
    %151 = vector.load %arg13[%c60_148, %c0_149] : memref<192x50xf32, #tpu.memory_space<vmem>>, vector<2x50xf32>
    %c62 = arith.constant 62 : index
    %c0_150 = arith.constant 0 : index
    %152 = vector.load %arg13[%c62, %c0_150] : memref<192x50xf32, #tpu.memory_space<vmem>>, vector<2x50xf32>
    %153 = arith.maximumf %151, %152 : vector<2x50xf32>
    %c84 = arith.constant 84 : index
    %c0_151 = arith.constant 0 : index
    %154 = vector.load %arg13[%c84, %c0_151] : memref<192x50xf32, #tpu.memory_space<vmem>>, vector<2x50xf32>
    %c86 = arith.constant 86 : index
    %c0_152 = arith.constant 0 : index
    %155 = vector.load %arg13[%c86, %c0_152] : memref<192x50xf32, #tpu.memory_space<vmem>>, vector<2x50xf32>
    %156 = arith.maximumf %154, %155 : vector<2x50xf32>
    %157 = arith.maximumf %153, %156 : vector<2x50xf32>
    %cst_153 = arith.constant 0.000000e+00 : f32
    %158 = vector.broadcast %cst_153 : f32 to vector<2x50xf32>
    %159 = arith.maximumf %157, %158 : vector<2x50xf32>
    %c0_154 = arith.constant 0 : index
    %c350 = arith.constant 350 : index
    %160 = vector.load %arg14[%c0_154, %c350] : memref<2x800xf32, #tpu.memory_space<vmem>>, vector<2x50xf32>
    tpu.vector_store %arg14[%c0_154, %c350], %159 {strides = array<i32>} : memref<2x800xf32, #tpu.memory_space<vmem>>, vector<2x50xf32>,
    %c96_155 = arith.constant 96 : index
    %c0_156 = arith.constant 0 : index
    %161 = vector.load %arg13[%c96_155, %c0_156] : memref<192x50xf32, #tpu.memory_space<vmem>>, vector<2x50xf32>
    %c98_157 = arith.constant 98 : index
    %c0_158 = arith.constant 0 : index
    %162 = vector.load %arg13[%c98_157, %c0_158] : memref<192x50xf32, #tpu.memory_space<vmem>>, vector<2x50xf32>
    %163 = arith.maximumf %161, %162 : vector<2x50xf32>
    %c120_159 = arith.constant 120 : index
    %c0_160 = arith.constant 0 : index
    %164 = vector.load %arg13[%c120_159, %c0_160] : memref<192x50xf32, #tpu.memory_space<vmem>>, vector<2x50xf32>
    %c122 = arith.constant 122 : index
    %c0_161 = arith.constant 0 : index
    %165 = vector.load %arg13[%c122, %c0_161] : memref<192x50xf32, #tpu.memory_space<vmem>>, vector<2x50xf32>
    %166 = arith.maximumf %164, %165 : vector<2x50xf32>
    %167 = arith.maximumf %163, %166 : vector<2x50xf32>
    %cst_162 = arith.constant 0.000000e+00 : f32
    %168 = vector.broadcast %cst_162 : f32 to vector<2x50xf32>
    %169 = arith.maximumf %167, %168 : vector<2x50xf32>
    %c0_163 = arith.constant 0 : index
    %c400_164 = arith.constant 400 : index
    %170 = vector.load %arg14[%c0_163, %c400_164] : memref<2x800xf32, #tpu.memory_space<vmem>>, vector<2x50xf32>
    tpu.vector_store %arg14[%c0_163, %c400_164], %169 {strides = array<i32>} : memref<2x800xf32, #tpu.memory_space<vmem>>, vector<2x50xf32>,
    %c100_165 = arith.constant 100 : index
    %c0_166 = arith.constant 0 : index
    %171 = vector.load %arg13[%c100_165, %c0_166] : memref<192x50xf32, #tpu.memory_space<vmem>>, vector<2x50xf32>
    %c102_167 = arith.constant 102 : index
    %c0_168 = arith.constant 0 : index
    %172 = vector.load %arg13[%c102_167, %c0_168] : memref<192x50xf32, #tpu.memory_space<vmem>>, vector<2x50xf32>
    %173 = arith.maximumf %171, %172 : vector<2x50xf32>
    %c124 = arith.constant 124 : index
    %c0_169 = arith.constant 0 : index
    %174 = vector.load %arg13[%c124, %c0_169] : memref<192x50xf32, #tpu.memory_space<vmem>>, vector<2x50xf32>
    %c126 = arith.constant 126 : index
    %c0_170 = arith.constant 0 : index
    %175 = vector.load %arg13[%c126, %c0_170] : memref<192x50xf32, #tpu.memory_space<vmem>>, vector<2x50xf32>
    %176 = arith.maximumf %174, %175 : vector<2x50xf32>
    %177 = arith.maximumf %173, %176 : vector<2x50xf32>
    %cst_171 = arith.constant 0.000000e+00 : f32
    %178 = vector.broadcast %cst_171 : f32 to vector<2x50xf32>
    %179 = arith.maximumf %177, %178 : vector<2x50xf32>
    %c0_172 = arith.constant 0 : index
    %c450 = arith.constant 450 : index
    %180 = vector.load %arg14[%c0_172, %c450] : memref<2x800xf32, #tpu.memory_space<vmem>>, vector<2x50xf32>
    tpu.vector_store %arg14[%c0_172, %c450], %179 {strides = array<i32>} : memref<2x800xf32, #tpu.memory_space<vmem>>, vector<2x50xf32>,
    %c104_173 = arith.constant 104 : index
    %c0_174 = arith.constant 0 : index
    %181 = vector.load %arg13[%c104_173, %c0_174] : memref<192x50xf32, #tpu.memory_space<vmem>>, vector<2x50xf32>
    %c106 = arith.constant 106 : index
    %c0_175 = arith.constant 0 : index
    %182 = vector.load %arg13[%c106, %c0_175] : memref<192x50xf32, #tpu.memory_space<vmem>>, vector<2x50xf32>
    %183 = arith.maximumf %181, %182 : vector<2x50xf32>
    %c128_176 = arith.constant 128 : index
    %c0_177 = arith.constant 0 : index
    %184 = vector.load %arg13[%c128_176, %c0_177] : memref<192x50xf32, #tpu.memory_space<vmem>>, vector<2x50xf32>
    %c130 = arith.constant 130 : index
    %c0_178 = arith.constant 0 : index
    %185 = vector.load %arg13[%c130, %c0_178] : memref<192x50xf32, #tpu.memory_space<vmem>>, vector<2x50xf32>
    %186 = arith.maximumf %184, %185 : vector<2x50xf32>
    %187 = arith.maximumf %183, %186 : vector<2x50xf32>
    %cst_179 = arith.constant 0.000000e+00 : f32
    %188 = vector.broadcast %cst_179 : f32 to vector<2x50xf32>
    %189 = arith.maximumf %187, %188 : vector<2x50xf32>
    %c0_180 = arith.constant 0 : index
    %c500 = arith.constant 500 : index
    %190 = vector.load %arg14[%c0_180, %c500] : memref<2x800xf32, #tpu.memory_space<vmem>>, vector<2x50xf32>
    tpu.vector_store %arg14[%c0_180, %c500], %189 {strides = array<i32>} : memref<2x800xf32, #tpu.memory_space<vmem>>, vector<2x50xf32>,
    %c108 = arith.constant 108 : index
    %c0_181 = arith.constant 0 : index
    %191 = vector.load %arg13[%c108, %c0_181] : memref<192x50xf32, #tpu.memory_space<vmem>>, vector<2x50xf32>
    %c110 = arith.constant 110 : index
    %c0_182 = arith.constant 0 : index
    %192 = vector.load %arg13[%c110, %c0_182] : memref<192x50xf32, #tpu.memory_space<vmem>>, vector<2x50xf32>
    %193 = arith.maximumf %191, %192 : vector<2x50xf32>
    %c132 = arith.constant 132 : index
    %c0_183 = arith.constant 0 : index
    %194 = vector.load %arg13[%c132, %c0_183] : memref<192x50xf32, #tpu.memory_space<vmem>>, vector<2x50xf32>
    %c134 = arith.constant 134 : index
    %c0_184 = arith.constant 0 : index
    %195 = vector.load %arg13[%c134, %c0_184] : memref<192x50xf32, #tpu.memory_space<vmem>>, vector<2x50xf32>
    %196 = arith.maximumf %194, %195 : vector<2x50xf32>
    %197 = arith.maximumf %193, %196 : vector<2x50xf32>
    %cst_185 = arith.constant 0.000000e+00 : f32
    %198 = vector.broadcast %cst_185 : f32 to vector<2x50xf32>
    %199 = arith.maximumf %197, %198 : vector<2x50xf32>
    %c0_186 = arith.constant 0 : index
    %c550 = arith.constant 550 : index
    %200 = vector.load %arg14[%c0_186, %c550] : memref<2x800xf32, #tpu.memory_space<vmem>>, vector<2x50xf32>
    tpu.vector_store %arg14[%c0_186, %c550], %199 {strides = array<i32>} : memref<2x800xf32, #tpu.memory_space<vmem>>, vector<2x50xf32>,
    %c144 = arith.constant 144 : index
    %c0_187 = arith.constant 0 : index
    %201 = vector.load %arg13[%c144, %c0_187] : memref<192x50xf32, #tpu.memory_space<vmem>>, vector<2x50xf32>
    %c146 = arith.constant 146 : index
    %c0_188 = arith.constant 0 : index
    %202 = vector.load %arg13[%c146, %c0_188] : memref<192x50xf32, #tpu.memory_space<vmem>>, vector<2x50xf32>
    %203 = arith.maximumf %201, %202 : vector<2x50xf32>
    %c168 = arith.constant 168 : index
    %c0_189 = arith.constant 0 : index
    %204 = vector.load %arg13[%c168, %c0_189] : memref<192x50xf32, #tpu.memory_space<vmem>>, vector<2x50xf32>
    %c170 = arith.constant 170 : index
    %c0_190 = arith.constant 0 : index
    %205 = vector.load %arg13[%c170, %c0_190] : memref<192x50xf32, #tpu.memory_space<vmem>>, vector<2x50xf32>
    %206 = arith.maximumf %204, %205 : vector<2x50xf32>
    %207 = arith.maximumf %203, %206 : vector<2x50xf32>
    %cst_191 = arith.constant 0.000000e+00 : f32
    %208 = vector.broadcast %cst_191 : f32 to vector<2x50xf32>
    %209 = arith.maximumf %207, %208 : vector<2x50xf32>
    %c0_192 = arith.constant 0 : index
    %c600 = arith.constant 600 : index
    %210 = vector.load %arg14[%c0_192, %c600] : memref<2x800xf32, #tpu.memory_space<vmem>>, vector<2x50xf32>
    tpu.vector_store %arg14[%c0_192, %c600], %209 {strides = array<i32>} : memref<2x800xf32, #tpu.memory_space<vmem>>, vector<2x50xf32>,
    %c148 = arith.constant 148 : index
    %c0_193 = arith.constant 0 : index
    %211 = vector.load %arg13[%c148, %c0_193] : memref<192x50xf32, #tpu.memory_space<vmem>>, vector<2x50xf32>
    %c150_194 = arith.constant 150 : index
    %c0_195 = arith.constant 0 : index
    %212 = vector.load %arg13[%c150_194, %c0_195] : memref<192x50xf32, #tpu.memory_space<vmem>>, vector<2x50xf32>
    %213 = arith.maximumf %211, %212 : vector<2x50xf32>
    %c172 = arith.constant 172 : index
    %c0_196 = arith.constant 0 : index
    %214 = vector.load %arg13[%c172, %c0_196] : memref<192x50xf32, #tpu.memory_space<vmem>>, vector<2x50xf32>
    %c174 = arith.constant 174 : index
    %c0_197 = arith.constant 0 : index
    %215 = vector.load %arg13[%c174, %c0_197] : memref<192x50xf32, #tpu.memory_space<vmem>>, vector<2x50xf32>
    %216 = arith.maximumf %214, %215 : vector<2x50xf32>
    %217 = arith.maximumf %213, %216 : vector<2x50xf32>
    %cst_198 = arith.constant 0.000000e+00 : f32
    %218 = vector.broadcast %cst_198 : f32 to vector<2x50xf32>
    %219 = arith.maximumf %217, %218 : vector<2x50xf32>
    %c0_199 = arith.constant 0 : index
    %c650 = arith.constant 650 : index
    %220 = vector.load %arg14[%c0_199, %c650] : memref<2x800xf32, #tpu.memory_space<vmem>>, vector<2x50xf32>
    tpu.vector_store %arg14[%c0_199, %c650], %219 {strides = array<i32>} : memref<2x800xf32, #tpu.memory_space<vmem>>, vector<2x50xf32>,
    %c152 = arith.constant 152 : index
    %c0_200 = arith.constant 0 : index
    %221 = vector.load %arg13[%c152, %c0_200] : memref<192x50xf32, #tpu.memory_space<vmem>>, vector<2x50xf32>
    %c154 = arith.constant 154 : index
    %c0_201 = arith.constant 0 : index
    %222 = vector.load %arg13[%c154, %c0_201] : memref<192x50xf32, #tpu.memory_space<vmem>>, vector<2x50xf32>
    %223 = arith.maximumf %221, %222 : vector<2x50xf32>
    %c176 = arith.constant 176 : index
    %c0_202 = arith.constant 0 : index
    %224 = vector.load %arg13[%c176, %c0_202] : memref<192x50xf32, #tpu.memory_space<vmem>>, vector<2x50xf32>
    %c178 = arith.constant 178 : index
    %c0_203 = arith.constant 0 : index
    %225 = vector.load %arg13[%c178, %c0_203] : memref<192x50xf32, #tpu.memory_space<vmem>>, vector<2x50xf32>
    %226 = arith.maximumf %224, %225 : vector<2x50xf32>
    %227 = arith.maximumf %223, %226 : vector<2x50xf32>
    %cst_204 = arith.constant 0.000000e+00 : f32
    %228 = vector.broadcast %cst_204 : f32 to vector<2x50xf32>
    %229 = arith.maximumf %227, %228 : vector<2x50xf32>
    %c0_205 = arith.constant 0 : index
    %c700 = arith.constant 700 : index
    %230 = vector.load %arg14[%c0_205, %c700] : memref<2x800xf32, #tpu.memory_space<vmem>>, vector<2x50xf32>
    tpu.vector_store %arg14[%c0_205, %c700], %229 {strides = array<i32>} : memref<2x800xf32, #tpu.memory_space<vmem>>, vector<2x50xf32>,
    %c156 = arith.constant 156 : index
    %c0_206 = arith.constant 0 : index
    %231 = vector.load %arg13[%c156, %c0_206] : memref<192x50xf32, #tpu.memory_space<vmem>>, vector<2x50xf32>
    %c158 = arith.constant 158 : index
    %c0_207 = arith.constant 0 : index
    %232 = vector.load %arg13[%c158, %c0_207] : memref<192x50xf32, #tpu.memory_space<vmem>>, vector<2x50xf32>
    %233 = arith.maximumf %231, %232 : vector<2x50xf32>
    %c180_208 = arith.constant 180 : index
    %c0_209 = arith.constant 0 : index
    %234 = vector.load %arg13[%c180_208, %c0_209] : memref<192x50xf32, #tpu.memory_space<vmem>>, vector<2x50xf32>
    %c182 = arith.constant 182 : index
    %c0_210 = arith.constant 0 : index
    %235 = vector.load %arg13[%c182, %c0_210] : memref<192x50xf32, #tpu.memory_space<vmem>>, vector<2x50xf32>
    %236 = arith.maximumf %234, %235 : vector<2x50xf32>
    %237 = arith.maximumf %233, %236 : vector<2x50xf32>
    %cst_211 = arith.constant 0.000000e+00 : f32
    %238 = vector.broadcast %cst_211 : f32 to vector<2x50xf32>
    %239 = arith.maximumf %237, %238 : vector<2x50xf32>
    %c0_212 = arith.constant 0 : index
    %c750 = arith.constant 750 : index
    %240 = vector.load %arg14[%c0_212, %c750] : memref<2x800xf32, #tpu.memory_space<vmem>>, vector<2x50xf32>
    tpu.vector_store %arg14[%c0_212, %c750], %239 {strides = array<i32>} : memref<2x800xf32, #tpu.memory_space<vmem>>, vector<2x50xf32>,
    %c0_213 = arith.constant 0 : index
    %c0_214 = arith.constant 0 : index
    %241 = vector.load %arg14[%c0_213, %c0_214] : memref<2x800xf32, #tpu.memory_space<vmem>>, vector<2x800xf32>
    %c0_215 = arith.constant 0 : index
    %c0_216 = arith.constant 0 : index
    %242 = vector.load %arg6[%c0_215, %c0_216] : memref<800x500xf32, #tpu.memory_space<vmem>>, vector<800x500xf32>
    %cst_217 = arith.constant dense<0.000000e+00> : vector<2x500xf32>
    %243 = tpu.matmul %241, %242, %cst_217 {dimension_numbers = #tpu.dot_dimension_numbers<[1], [0], [0], [1], [0, 0, 1, 1], [], []>} : vector<2x800xf32>, vector<800x500xf32>, vector<2x500xf32> -> vector<2x500xf32>
    %c0_218 = arith.constant 0 : index
    %c256 = arith.constant 256 : index
    %244 = vector.load %arg9[%c0_218, %c256] : memref<1x1152xf32, #tpu.memory_space<vmem>>, vector<1x500xf32>
    %245 = vector.broadcast %244 : vector<1x500xf32> to vector<2x500xf32>
    %246 = arith.addf %243, %245 : vector<2x500xf32>
    %cst_219 = arith.constant 0.000000e+00 : f32
    %247 = vector.broadcast %cst_219 : f32 to vector<2x500xf32>
    %248 = arith.maximumf %246, %247 : vector<2x500xf32>
    %c0_220 = arith.constant 0 : index
    %c0_221 = arith.constant 0 : index
    %249 = vector.load %arg7[%c0_220, %c0_221] : memref<500x10xf32, #tpu.memory_space<vmem>>, vector<500x10xf32>
    %cst_222 = arith.constant dense<0.000000e+00> : vector<2x10xf32>
    %250 = tpu.matmul %248, %249, %cst_222 {dimension_numbers = #tpu.dot_dimension_numbers<[1], [0], [0], [1], [0, 0, 1, 1], [], []>} : vector<2x500xf32>, vector<500x10xf32>, vector<2x10xf32> -> vector<2x10xf32>
    %c0_223 = arith.constant 0 : index
    %c768 = arith.constant 768 : index
    %251 = vector.load %arg9[%c0_223, %c768] : memref<1x1152xf32, #tpu.memory_space<vmem>>, vector<1x10xf32>
    %252 = vector.broadcast %251 : vector<1x10xf32> to vector<2x10xf32>
    %253 = arith.addf %250, %252 : vector<2x10xf32>
    %cst_224 = arith.constant 0.000000e+00 : f32
    %254 = vector.broadcast %cst_224 : f32 to vector<2x10xf32>
    %255 = arith.maximumf %253, %254 : vector<2x10xf32>
    %c0_225 = arith.constant 0 : index
    %c0_226 = arith.constant 0 : index
    %256 = vector.load %arg8[%c0_225, %c0_226] : memref<10x22xf32, #tpu.memory_space<vmem>>, vector<10x10xf32>
    %cst_227 = arith.constant dense<0.000000e+00> : vector<2x10xf32>
    %257 = tpu.matmul %255, %256, %cst_227 {dimension_numbers = #tpu.dot_dimension_numbers<[1], [0], [0], [1], [0, 0, 1, 1], [], []>} : vector<2x10xf32>, vector<10x10xf32>, vector<2x10xf32> -> vector<2x10xf32>
    %c0_228 = arith.constant 0 : index
    %c0_229 = arith.constant 0 : index
    %258 = vector.load %arg2[%c0_228, %c0_229] : memref<2x10xf32, #tpu.memory_space<vmem>>, vector<2x10xf32>
    %c0_230 = arith.constant 0 : index
    %c10_231 = arith.constant 10 : index
    %259 = vector.load %arg8[%c0_230, %c10_231] : memref<10x22xf32, #tpu.memory_space<vmem>>, vector<10x10xf32>
    %cst_232 = arith.constant dense<0.000000e+00> : vector<2x10xf32>
    %260 = tpu.matmul %258, %259, %cst_232 {dimension_numbers = #tpu.dot_dimension_numbers<[1], [0], [0], [1], [0, 0, 1, 1], [], []>} : vector<2x10xf32>, vector<10x10xf32>, vector<2x10xf32> -> vector<2x10xf32>
    %261 = arith.addf %257, %260 : vector<2x10xf32>
    %c0_233 = arith.constant 0 : index
    %c896 = arith.constant 896 : index
    %262 = vector.load %arg9[%c0_233, %c896] : memref<1x1152xf32, #tpu.memory_space<vmem>>, vector<1x10xf32>
    %263 = vector.broadcast %262 : vector<1x10xf32> to vector<2x10xf32>
    %264 = arith.addf %261, %263 : vector<2x10xf32>
    %cst_234 = arith.constant 0.000000e+00 : f32
    %265 = vector.broadcast %cst_234 : f32 to vector<2x10xf32>
    %266 = arith.maximumf %264, %265 : vector<2x10xf32>
    %c0_235 = arith.constant 0 : index
    %c20_236 = arith.constant 20 : index
    %267 = vector.load %arg8[%c0_235, %c20_236] : memref<10x22xf32, #tpu.memory_space<vmem>>, vector<10x1xf32>
    %cst_237 = arith.constant dense<0.000000e+00> : vector<2x1xf32>
    %268 = tpu.matmul %266, %267, %cst_237 {dimension_numbers = #tpu.dot_dimension_numbers<[1], [0], [0], [1], [0, 0, 1, 1], [], []>} : vector<2x10xf32>, vector<10x1xf32>, vector<2x1xf32> -> vector<2x1xf32>
    %c0_238 = arith.constant 0 : index
    %c0_239 = arith.constant 0 : index
    %269 = vector.load %arg3[%c0_238, %c0_239] : memref<2x10xf32, #tpu.memory_space<vmem>>, vector<2x10xf32>
    %c0_240 = arith.constant 0 : index
    %c21 = arith.constant 21 : index
    %270 = vector.load %arg8[%c0_240, %c21] : memref<10x22xf32, #tpu.memory_space<vmem>>, vector<10x1xf32>
    %cst_241 = arith.constant dense<0.000000e+00> : vector<2x1xf32>
    %271 = tpu.matmul %269, %270, %cst_241 {dimension_numbers = #tpu.dot_dimension_numbers<[1], [0], [0], [1], [0, 0, 1, 1], [], []>} : vector<2x10xf32>, vector<10x1xf32>, vector<2x1xf32> -> vector<2x1xf32>
    %272 = arith.addf %268, %271 : vector<2x1xf32>
    %c0_242 = arith.constant 0 : index
    %c1024 = arith.constant 1024 : index
    %273 = vector.load %arg9[%c0_242, %c1024] : memref<1x1152xf32, #tpu.memory_space<vmem>>, vector<1x1xf32>
    %274 = vector.broadcast %273 : vector<1x1xf32> to vector<2x1xf32>
    %275 = arith.addf %272, %274 : vector<2x1xf32>
    %276 = arith.negf %275 : vector<2x1xf32>
    %277 = math.exp %276 : vector<2x1xf32>
    %cst_243 = arith.constant 1.000000e+00 : f32
    %278 = vector.broadcast %cst_243 : f32 to vector<2x1xf32>
    %279 = arith.addf %278, %277 : vector<2x1xf32>
    %280 = arith.divf %278, %279 : vector<2x1xf32>
    %c0_244 = arith.constant 0 : index
    %c0_245 = arith.constant 0 : index
    %281 = vector.load %arg10[%c0_244, %c0_245] : memref<2x1xf32, #tpu.memory_space<vmem>>, vector<2x1xf32>
    tpu.vector_store %arg10[%c0_244, %c0_245], %280 {strides = array<i32>} : memref<2x1xf32, #tpu.memory_space<vmem>>, vector<2x1xf32>,
    return
  }
  func.func @transform_0(%arg0: i32) -> (i32, i32) {
    %c0_i32 = arith.constant 0 : i32
    %c0_i32_0 = arith.constant 0 : i32
    return %arg0, %c0_i32 : i32, i32
  }
  func.func @transform_1(%arg0: i32) -> (i32, i32) {
    %c0_i32 = arith.constant 0 : i32
    %c0_i32_0 = arith.constant 0 : i32
    return %arg0, %c0_i32 : i32, i32
  }
  func.func @transform_2(%arg0: i32) -> (i32, i32) {
    %c0_i32 = arith.constant 0 : i32
    %c0_i32_0 = arith.constant 0 : i32
    return %arg0, %c0_i32 : i32, i32
  }
  func.func @transform_3(%arg0: i32) -> (i32, i32) {
    %c0_i32 = arith.constant 0 : i32
    %c0_i32_0 = arith.constant 0 : i32
    %c0_i32_1 = arith.constant 0 : i32
    return %c0_i32, %c0_i32_0 : i32, i32
  }
  func.func @transform_4(%arg0: i32) -> (i32, i32) {
    %c0_i32 = arith.constant 0 : i32
    %c0_i32_0 = arith.constant 0 : i32
    %c0_i32_1 = arith.constant 0 : i32
    return %c0_i32, %c0_i32_0 : i32, i32
  }
  func.func @transform_5(%arg0: i32) -> (i32, i32) {
    %c0_i32 = arith.constant 0 : i32
    %c0_i32_0 = arith.constant 0 : i32
    %c0_i32_1 = arith.constant 0 : i32
    return %c0_i32, %c0_i32_0 : i32, i32
  }
  func.func @transform_6(%arg0: i32) -> (i32, i32) {
    %c0_i32 = arith.constant 0 : i32
    %c0_i32_0 = arith.constant 0 : i32
    %c0_i32_1 = arith.constant 0 : i32
    return %c0_i32, %c0_i32_0 : i32, i32
  }
  func.func @transform_7(%arg0: i32) -> (i32, i32) {
    %c0_i32 = arith.constant 0 : i32
    %c0_i32_0 = arith.constant 0 : i32
    %c0_i32_1 = arith.constant 0 : i32
    return %c0_i32, %c0_i32_0 : i32, i32
  }
  func.func @transform_8(%arg0: i32) -> (i32, i32) {
    %c0_i32 = arith.constant 0 : i32
    %c0_i32_0 = arith.constant 0 : i32
    %c0_i32_1 = arith.constant 0 : i32
    return %c0_i32, %c0_i32_0 : i32, i32
  }
  func.func @transform_9(%arg0: i32) -> (i32, i32) {
    %c0_i32 = arith.constant 0 : i32
    %c0_i32_0 = arith.constant 0 : i32
    return %arg0, %c0_i32 : i32, i32
  }
}

</mosaic_0001>

<llo_original>
// kernel: forward.1
$region0: #{forward.1}
  #allocation0 [shape = 'u32[]', space=smem, size = 0x4, offset = 0x4, fixed_abs, tag = 'smem constant byte address 0x4 - core index']
  #allocation1 [shape = 'u32[144,128]{1,0:T(1,128)}', space=vmem, size = 0x12000, scoped, tag = 'internal scratch']
  #allocation2 [shape = 'f32[304,20]{1,0:T(8,128)}', space=vmem, size = 0x26000, scoped, tag = 'scratch operand']
  #allocation3 [shape = 'f32[192,500]{1,0:T(8,128)}', space=vmem, size = 0x60000, scoped, tag = 'scratch operand']
  #allocation4 [shape = 'f32[192,50]{1,0:T(8,128)}', space=vmem, size = 0x18000, scoped, tag = 'scratch operand']
  #allocation5 [shape = 'f32[2,800]{1,0:T(2,128)}', space=vmem, size = 0x1c00, scoped, tag = 'scratch operand']
  %s0 = inlined_call_operand.vmem [shape: f32[288,100], index: 0, kind: input, shape index: {}]
  %s1 = inlined_call_operand.vmem [shape: f32[2,10], index: 1, kind: input, shape index: {}]
  %s2 = inlined_call_operand.vmem [shape: f32[2,10], index: 2, kind: input, shape index: {}]
  %s3 = inlined_call_operand.vmem [shape: f32[25,20], index: 3, kind: input, shape index: {}]
  %s4 = inlined_call_operand.vmem [shape: f32[500,50], index: 4, kind: input, shape index: {}]
  %s5 = inlined_call_operand.vmem [shape: f32[800,500], index: 5, kind: input, shape index: {}]
  %s6 = inlined_call_operand.vmem [shape: f32[500,10], index: 6, kind: input, shape index: {}]
  %s7 = inlined_call_operand.vmem [shape: f32[10,22], index: 7, kind: input, shape index: {}]
  %s8 = inlined_call_operand.vmem [shape: f32[1,1152], index: 8, kind: input, shape index: {}]
  %s9 = inlined_call_operand.vmem [shape: f32[2,1], index: 9, kind: output, shape index: {}]
  %s10 = sld [smem:[#allocation0]]
  $region46: #{forward.1} parent=0
    _
  %s12 = ssub.s32 1, %s10
  %s13 = scalar_select 0, %s12, %s10
  // Predicated region
  $region2: #{forward.1} parent=0 // pred_check
    _
  $region3: #{forward.1} parent=0 // pred_check_branch
    %15 = sbr.rel (0) target = $region5
  $region4: #{forward.1} parent=0 // pred_region
    _
  $region5: #{forward.1} parent=0 // pred_fallthru
    _
  // Predicated region
  $region6: #{forward.1} parent=0 // pred_check
    _
  $region7: #{forward.1} parent=0 // pred_check_branch
    %17 = sbr.rel (0) target = $region9
  $region8: #{forward.1} parent=0 // pred_region
    _
  $region9: #{forward.1} parent=0 // pred_fallthru
    _
  // Predicated region
  $region10: #{forward.1} parent=0 // pred_check
    _
  $region11: #{forward.1} parent=0 // pred_check_branch
    %19 = sbr.rel (0) target = $region13
  $region12: #{forward.1} parent=0 // pred_region
    _
  $region13: #{forward.1} parent=0 // pred_fallthru
    _
  // Predicated region
  $region14: #{forward.1} parent=0 // pred_check
    _
  $region15: #{forward.1} parent=0 // pred_check_branch
    %21 = sbr.rel (0) target = $region17
  $region16: #{forward.1} parent=0 // pred_region
    _
  $region17: #{forward.1} parent=0 // pred_fallthru
    _
  // Predicated region
  $region18: #{forward.1} parent=0 // pred_check
    _
  $region19: #{forward.1} parent=0 // pred_check_branch
    %23 = sbr.rel (0) target = $region21
  $region20: #{forward.1} parent=0 // pred_region
    _
  $region21: #{forward.1} parent=0 // pred_fallthru
    _
  // Predicated region
  $region22: #{forward.1} parent=0 // pred_check
    _
  $region23: #{forward.1} parent=0 // pred_check_branch
    %25 = sbr.rel (0) target = $region25
  $region24: #{forward.1} parent=0 // pred_region
    _
  $region25: #{forward.1} parent=0 // pred_fallthru
    _
  // Predicated region
  $region26: #{forward.1} parent=0 // pred_check
    _
  $region27: #{forward.1} parent=0 // pred_check_branch
    %27 = sbr.rel (0) target = $region29
  $region28: #{forward.1} parent=0 // pred_region
    _
  $region29: #{forward.1} parent=0 // pred_fallthru
    _
  // Predicated region
  $region30: #{forward.1} parent=0 // pred_check
    _
  $region31: #{forward.1} parent=0 // pred_check_branch
    %29 = sbr.rel (0) target = $region33
  $region32: #{forward.1} parent=0 // pred_region
    _
  $region33: #{forward.1} parent=0 // pred_fallthru
    _
  // Predicated region
  $region34: #{forward.1} parent=0 // pred_check
    _
  $region35: #{forward.1} parent=0 // pred_check_branch
    %31 = sbr.rel (0) target = $region37
  $region36: #{forward.1} parent=0 // pred_region
    _
  $region37: #{forward.1} parent=0 // pred_fallthru
    _
  %v32 = vld [vmem:[%s0] sm:$0xff]
  %v33 = vld [vmem:[%s0 + $0x8] sm:$0xff]
  %v34 = vld [vmem:[%s0 + $0x10] sm:$0xff]
  %v35 = vld [vmem:[%s0 + $0x18] sm:$0xff]
  %v36 = vld [vmem:[%s0 + $0x20] sm:$0xff]
  %v37 = vld [vmem:[%s0 + $0x28] sm:$0xff]
  %v38 = vld [vmem:[%s0 + $0x30] sm:$0xff]
  %v39 = vld [vmem:[%s0 + $0x38] sm:$0xff]
  %v40 = vld [vmem:[%s0 + $0x40] sm:$0xff]
  %v41 = vld [vmem:[%s0 + $0x48] sm:$0xff]
  %v42 = vld [vmem:[%s0 + $0x50] sm:$0xff]
  %v43 = vld [vmem:[%s0 + $0x58] sm:$0xff]
  %v44 = vld [vmem:[%s0 + $0x60] sm:$0xff]
  %v45 = vld [vmem:[%s0 + $0x68] sm:$0xff]
  %v46 = vld [vmem:[%s0 + $0x70] sm:$0xff]
  %v47 = vld [vmem:[%s0 + $0x78] sm:$0xff]
  %v48 = vld [vmem:[%s0 + $0x80] sm:$0xff]
  %v49 = vld [vmem:[%s0 + $0x88] sm:$0xff]
  %v50 = vld [vmem:[%s0 + $0x90] sm:$0xff]
  %v51 = vld [vmem:[%s0 + $0x98] sm:$0xff]
  %v52 = vld [vmem:[%s0 + $0xa0] sm:$0xff]
  %v53 = vld [vmem:[%s0 + $0xa8] sm:$0xff]
  %v54 = vld [vmem:[%s0 + $0xb0] sm:$0xff]
  %v55 = vld [vmem:[%s0 + $0xb8] sm:$0xff]
  %v56 = vld [vmem:[%s0 + $0xc0] sm:$0xff]
  %v57 = vld [vmem:[%s0 + $0xc8] sm:$0xff]
  %v58 = vld [vmem:[%s0 + $0xd0] sm:$0xff]
  %v59 = vld [vmem:[%s0 + $0xd8] sm:$0xff]
  %v60 = vld [vmem:[%s0 + $0xe0] sm:$0xff]
  %v61 = vld [vmem:[%s0 + $0xe8] sm:$0xff]
  %v62 = vld [vmem:[%s0 + $0xf0] sm:$0xff]
  %v63 = vld [vmem:[%s0 + $0xf8] sm:$0xff]
  %v64 = vld [vmem:[%s0 + $0x100] sm:$0xff]
  %v65 = vld [vmem:[%s0 + $0x108] sm:$0xff]
  %v66 = vld [vmem:[%s0 + $0x110] sm:$0xff]
  %v67 = vld [vmem:[%s0 + $0x118] sm:$0xff]
  %v68 = vld [vmem:[%s3] sm:$0xff]
  %v69 = vld [vmem:[%s3 + $0x8] sm:$0xff]
  %v70 = vld [vmem:[%s3 + $0x10] sm:$0xff]
  %v71 = vld [vmem:[%s3 + $0x18] sm:$0x1]
  %vm72 = vcmask 203776
  %v74 = vsel %vm72, %v32, 0
  %v77 = vsel %vm72, %v33, 0
  %v80 = vsel %vm72, %v34, 0
  %v83 = vsel %vm72, %v35, 0
  %v86 = vsel %vm72, %v36, 0
  %v89 = vsel %vm72, %v37, 0
  %v92 = vsel %vm72, %v38, 0
  %v95 = vsel %vm72, %v39, 0
  %v98 = vsel %vm72, %v40, 0
  %v101 = vsel %vm72, %v41, 0
  %v104 = vsel %vm72, %v42, 0
  %v107 = vsel %vm72, %v43, 0
  %v110 = vsel %vm72, %v44, 0
  %v113 = vsel %vm72, %v45, 0
  %v116 = vsel %vm72, %v46, 0
  %v119 = vsel %vm72, %v47, 0
  %v122 = vsel %vm72, %v48, 0
  %v125 = vsel %vm72, %v49, 0
  %v128 = vsel %vm72, %v50, 0
  %v131 = vsel %vm72, %v51, 0
  %v134 = vsel %vm72, %v52, 0
  %v137 = vsel %vm72, %v53, 0
  %v140 = vsel %vm72, %v54, 0
  %v143 = vsel %vm72, %v55, 0
  %v146 = vsel %vm72, %v56, 0
  %v149 = vsel %vm72, %v57, 0
  %v152 = vsel %vm72, %v58, 0
  %v155 = vsel %vm72, %v59, 0
  %v158 = vsel %vm72, %v60, 0
  %v161 = vsel %vm72, %v61, 0
  %v164 = vsel %vm72, %v62, 0
  %v167 = vsel %vm72, %v63, 0
  %v170 = vsel %vm72, %v64, 0
  %v173 = vsel %vm72, %v65, 0
  %v176 = vsel %vm72, %v66, 0
  %v179 = vsel %vm72, %v67, 0
  %vm181 = vcmask 1040384
  %v183 = vsel %vm181, %v71, 0
  %185 = vmatprep.subr.mxu0 0.0
  %186 = vmatpush1.msra.mxu0 0.0
  %187 = vmatprep.subr.mxu0 0.0
  %188 = vmatpush1.msra.mxu0 0.0
  %189 = vmatprep.subr.mxu0 0.0
  %190 = vmatpush1.msra.mxu0 0.0
  %191 = vmatprep.subr.mxu0 0.0
  %192 = vmatpush1.msra.mxu0 0.0
  %193 = vmatprep.subr.mxu0 0.0
  %194 = vmatpush1.msra.mxu0 0.0
  %195 = vmatprep.subr.mxu0 0.0
  %196 = vmatpush1.msra.mxu0 0.0
  %197 = vmatprep.subr.mxu0 0.0
  %198 = vmatpush1.msra.mxu0 0.0
  %199 = vmatprep.subr.mxu0 0.0
  %200 = vmatpush1.msra.mxu0 0.0
  %201 = vmatprep.subr.mxu0 0.0
  %202 = vmatpush1.msra.mxu0 0.0
  %203 = vmatprep.subr.mxu0 0.0
  %204 = vmatpush1.msra.mxu0 0.0
  %205 = vmatprep.subr.mxu0 0.0
  %206 = vmatpush1.msra.mxu0 0.0
  %207 = vmatprep.subr.mxu0 0.0
  %208 = vmatpush1.msra.mxu0 0.0
  %209 = vmatprep.subr.mxu0 0.0
  %210 = vmatpush1.msra.mxu0 %v183
  %211 = vmatprep.subr.mxu0 0.0
  %212 = vmatpush1.msra.mxu0 %v70
  %213 = vmatprep.subr.mxu0 0.0
  %214 = vmatpush1.msra.mxu0 %v69
  %215 = vmatprep.subr.mxu0 0.0
  %216 = vmatpush1.msra.mxu0 %v68
  %217 = vmatprep.subr.mxu0 0.0
  %218 = vmatpush2.msra.mxu0 0.0
  %219 = vmatprep.subr.mxu0 0.0
  %220 = vmatpush2.msra.mxu0 0.0
  %221 = vmatprep.subr.mxu0 0.0
  %222 = vmatpush2.msra.mxu0 0.0
  %223 = vmatprep.subr.mxu0 0.0
  %224 = vmatpush2.msra.mxu0 0.0
  %225 = vmatprep.subr.mxu0 0.0
  %226 = vmatpush2.msra.mxu0 0.0
  %227 = vmatprep.subr.mxu0 0.0
  %228 = vmatpush2.msra.mxu0 0.0
  %229 = vmatprep.subr.mxu0 0.0
  %230 = vmatpush2.msra.mxu0 0.0
  %231 = vmatprep.subr.mxu0 0.0
  %232 = vmatpush2.msra.mxu0 0.0
  %233 = vmatprep.subr.mxu0 0.0
  %234 = vmatpush2.msra.mxu0 0.0
  %235 = vmatprep.subr.mxu0 0.0
  %236 = vmatpush2.msra.mxu0 0.0
  %237 = vmatprep.subr.mxu0 0.0
  %238 = vmatpush2.msra.mxu0 0.0
  %239 = vmatprep.subr.mxu0 0.0
  %240 = vmatpush2.msra.mxu0 0.0
  %241 = vmatprep.subr.mxu0 0.0
  %242 = vmatpush2.msra.mxu0 0.0
  %243 = vmatprep.subr.mxu0 0.0
  %244 = vmatpush2.msra.mxu0 0.0
  %245 = vmatprep.subr.mxu0 0.0
  %246 = vmatpush2.msra.mxu0 0.0
  %247 = vmatprep.subr.mxu0 0.0
  %248 = vmatpush2.msra.mxu0 0.0
  %249 = vmatprep.mubr.f32.mxu0 0.0
  %250 = vmatmul.mubr.f32.gmra.mxu0 %v74
  %v251 = vpop.f32.mrf.mxu0
  %v252 = vadd.f32 0.0, %v251
  %v253 = vpop.f32.mrf.mxu0
  %254 = vmatprep.mubr.f32.mxu0 0.0
  %255 = vmatmul.mubr.f32.gmra.mxu0 %v77
  %v256 = vpop.f32.mrf.mxu0
  %v257 = vadd.f32 0.0, %v256
  %v258 = vpop.f32.mrf.mxu0
  %259 = vmatprep.mubr.f32.mxu0 0.0
  %260 = vmatmul.mubr.f32.gmra.mxu0 %v80
  %v261 = vpop.f32.mrf.mxu0
  %v262 = vadd.f32 0.0, %v261
  %v263 = vpop.f32.mrf.mxu0
  %264 = vmatprep.mubr.f32.mxu0 0.0
  %265 = vmatmul.mubr.f32.gmra.mxu0 %v83
  %v266 = vpop.f32.mrf.mxu0
  %v267 = vadd.f32 0.0, %v266
  %v268 = vpop.f32.mrf.mxu0
  %269 = vmatprep.mubr.f32.mxu0 0.0
  %270 = vmatmul.mubr.f32.gmra.mxu0 %v86
  %v271 = vpop.f32.mrf.mxu0
  %v272 = vadd.f32 0.0, %v271
  %v273 = vpop.f32.mrf.mxu0
  %274 = vmatprep.mubr.f32.mxu0 0.0
  %275 = vmatmul.mubr.f32.gmra.mxu0 %v89
  %v276 = vpop.f32.mrf.mxu0
  %v277 = vadd.f32 0.0, %v276
  %v278 = vpop.f32.mrf.mxu0
  %279 = vmatprep.mubr.f32.mxu0 0.0
  %280 = vmatmul.mubr.f32.gmra.mxu0 %v92
  %v281 = vpop.f32.mrf.mxu0
  %v282 = vadd.f32 0.0, %v281
  %v283 = vpop.f32.mrf.mxu0
  %284 = vmatprep.mubr.f32.mxu0 0.0
  %285 = vmatmul.mubr.f32.gmra.mxu0 %v95
  %v286 = vpop.f32.mrf.mxu0
  %v287 = vadd.f32 0.0, %v286
  %v288 = vpop.f32.mrf.mxu0
  %289 = vmatprep.mubr.f32.mxu0 0.0
  %290 = vmatmul.mubr.f32.gmra.mxu0 %v98
  %v291 = vpop.f32.mrf.mxu0
  %v292 = vadd.f32 0.0, %v291
  %v293 = vpop.f32.mrf.mxu0
  %294 = vmatprep.mubr.f32.mxu0 0.0
  %295 = vmatmul.mubr.f32.gmra.mxu0 %v101
  %v296 = vpop.f32.mrf.mxu0
  %v297 = vadd.f32 0.0, %v296
  %v298 = vpop.f32.mrf.mxu0
  %299 = vmatprep.mubr.f32.mxu0 0.0
  %300 = vmatmul.mubr.f32.gmra.mxu0 %v104
  %v301 = vpop.f32.mrf.mxu0
  %v302 = vadd.f32 0.0, %v301
  %v303 = vpop.f32.mrf.mxu0
  %304 = vmatprep.mubr.f32.mxu0 0.0
  %305 = vmatmul.mubr.f32.gmra.mxu0 %v107
  %v306 = vpop.f32.mrf.mxu0
  %v307 = vadd.f32 0.0, %v306
  %v308 = vpop.f32.mrf.mxu0
  %309 = vmatprep.mubr.f32.mxu0 0.0
  %310 = vmatmul.mubr.f32.gmra.mxu0 %v110
  %v311 = vpop.f32.mrf.mxu0
  %v312 = vadd.f32 0.0, %v311
  %v313 = vpop.f32.mrf.mxu0
  %314 = vmatprep.mubr.f32.mxu0 0.0
  %315 = vmatmul.mubr.f32.gmra.mxu0 %v113
  %v316 = vpop.f32.mrf.mxu0
  %v317 = vadd.f32 0.0, %v316
  %v318 = vpop.f32.mrf.mxu0
  %319 = vmatprep.mubr.f32.mxu0 0.0
  %320 = vmatmul.mubr.f32.gmra.mxu0 %v116
  %v321 = vpop.f32.mrf.mxu0
  %v322 = vadd.f32 0.0, %v321
  %v323 = vpop.f32.mrf.mxu0
  %324 = vmatprep.mubr.f32.mxu0 0.0
  %325 = vmatmul.mubr.f32.gmra.mxu0 %v119
  %v326 = vpop.f32.mrf.mxu0
  %v327 = vadd.f32 0.0, %v326
  %v328 = vpop.f32.mrf.mxu0
  %329 = vmatprep.mubr.f32.mxu0 0.0
  %330 = vmatmul.mubr.f32.gmra.mxu0 %v122
  %v331 = vpop.f32.mrf.mxu0
  %v332 = vadd.f32 0.0, %v331
  %v333 = vpop.f32.mrf.mxu0
  %334 = vmatprep.mubr.f32.mxu0 0.0
  %335 = vmatmul.mubr.f32.gmra.mxu0 %v125
  %v336 = vpop.f32.mrf.mxu0
  %v337 = vadd.f32 0.0, %v336
  %v338 = vpop.f32.mrf.mxu0
  %339 = vmatprep.mubr.f32.mxu0 0.0
  %340 = vmatmul.mubr.f32.gmra.mxu0 %v128
  %v341 = vpop.f32.mrf.mxu0
  %v342 = vadd.f32 0.0, %v341
  %v343 = vpop.f32.mrf.mxu0
  %344 = vmatprep.mubr.f32.mxu0 0.0
  %345 = vmatmul.mubr.f32.gmra.mxu0 %v131
  %v346 = vpop.f32.mrf.mxu0
  %v347 = vadd.f32 0.0, %v346
  %v348 = vpop.f32.mrf.mxu0
  %349 = vmatprep.mubr.f32.mxu0 0.0
  %350 = vmatmul.mubr.f32.gmra.mxu0 %v134
  %v351 = vpop.f32.mrf.mxu0
  %v352 = vadd.f32 0.0, %v351
  %v353 = vpop.f32.mrf.mxu0
  %354 = vmatprep.mubr.f32.mxu0 0.0
  %355 = vmatmul.mubr.f32.gmra.mxu0 %v137
  %v356 = vpop.f32.mrf.mxu0
  %v357 = vadd.f32 0.0, %v356
  %v358 = vpop.f32.mrf.mxu0
  %359 = vmatprep.mubr.f32.mxu0 0.0
  %360 = vmatmul.mubr.f32.gmra.mxu0 %v140
  %v361 = vpop.f32.mrf.mxu0
  %v362 = vadd.f32 0.0, %v361
  %v363 = vpop.f32.mrf.mxu0
  %364 = vmatprep.mubr.f32.mxu0 0.0
  %365 = vmatmul.mubr.f32.gmra.mxu0 %v143
  %v366 = vpop.f32.mrf.mxu0
  %v367 = vadd.f32 0.0, %v366
  %v368 = vpop.f32.mrf.mxu0
  %369 = vmatprep.mubr.f32.mxu0 0.0
  %370 = vmatmul.mubr.f32.gmra.mxu0 %v146
  %v371 = vpop.f32.mrf.mxu0
  %v372 = vadd.f32 0.0, %v371
  %v373 = vpop.f32.mrf.mxu0
  %374 = vmatprep.mubr.f32.mxu0 0.0
  %375 = vmatmul.mubr.f32.gmra.mxu0 %v149
  %v376 = vpop.f32.mrf.mxu0
  %v377 = vadd.f32 0.0, %v376
  %v378 = vpop.f32.mrf.mxu0
  %379 = vmatprep.mubr.f32.mxu0 0.0
  %380 = vmatmul.mubr.f32.gmra.mxu0 %v152
  %v381 = vpop.f32.mrf.mxu0
  %v382 = vadd.f32 0.0, %v381
  %v383 = vpop.f32.mrf.mxu0
  %384 = vmatprep.mubr.f32.mxu0 0.0
  %385 = vmatmul.mubr.f32.gmra.mxu0 %v155
  %v386 = vpop.f32.mrf.mxu0
  %v387 = vadd.f32 0.0, %v386
  %v388 = vpop.f32.mrf.mxu0
  %389 = vmatprep.mubr.f32.mxu0 0.0
  %390 = vmatmul.mubr.f32.gmra.mxu0 %v158
  %v391 = vpop.f32.mrf.mxu0
  %v392 = vadd.f32 0.0, %v391
  %v393 = vpop.f32.mrf.mxu0
  %394 = vmatprep.mubr.f32.mxu0 0.0
  %395 = vmatmul.mubr.f32.gmra.mxu0 %v161
  %v396 = vpop.f32.mrf.mxu0
  %v397 = vadd.f32 0.0, %v396
  %v398 = vpop.f32.mrf.mxu0
  %399 = vmatprep.mubr.f32.mxu0 0.0
  %400 = vmatmul.mubr.f32.gmra.mxu0 %v164
  %v401 = vpop.f32.mrf.mxu0
  %v402 = vadd.f32 0.0, %v401
  %v403 = vpop.f32.mrf.mxu0
  %404 = vmatprep.mubr.f32.mxu0 0.0
  %405 = vmatmul.mubr.f32.gmra.mxu0 %v167
  %v406 = vpop.f32.mrf.mxu0
  %v407 = vadd.f32 0.0, %v406
  %v408 = vpop.f32.mrf.mxu0
  %409 = vmatprep.mubr.f32.mxu0 0.0
  %410 = vmatmul.mubr.f32.gmra.mxu0 %v170
  %v411 = vpop.f32.mrf.mxu0
  %v412 = vadd.f32 0.0, %v411
  %v413 = vpop.f32.mrf.mxu0
  %414 = vmatprep.mubr.f32.mxu0 0.0
  %415 = vmatmul.mubr.f32.gmra.mxu0 %v173
  %v416 = vpop.f32.mrf.mxu0
  %v417 = vadd.f32 0.0, %v416
  %v418 = vpop.f32.mrf.mxu0
  %419 = vmatprep.mubr.f32.mxu0 0.0
  %420 = vmatmul.mubr.f32.gmra.mxu0 %v176
  %v421 = vpop.f32.mrf.mxu0
  %v422 = vadd.f32 0.0, %v421
  %v423 = vpop.f32.mrf.mxu0
  %424 = vmatprep.mubr.f32.mxu0 0.0
  %425 = vmatmul.mubr.f32.gmra.mxu0 %v179
  %v426 = vpop.f32.mrf.mxu0
  %v427 = vadd.f32 0.0, %v426
  %v428 = vpop.f32.mrf.mxu0
  %429 = vdwg.mxu0
  %430 = vrot.lane.b32.xlu0 %v32, 103
  %v431 = vpop.permute.xlu0 %430
  %432 = vrot.lane.b32.xlu0 %v33, 103
  %v433 = vpop.permute.xlu0 %432
  %434 = vrot.lane.b32.xlu0 %v34, 103
  %v435 = vpop.permute.xlu0 %434
  %436 = vrot.lane.b32.xlu0 %v35, 103
  %v437 = vpop.permute.xlu0 %436
  %438 = vrot.lane.b32.xlu0 %v36, 103
  %v439 = vpop.permute.xlu0 %438
  %440 = vrot.lane.b32.xlu0 %v37, 103
  %v441 = vpop.permute.xlu0 %440
  %442 = vrot.lane.b32.xlu0 %v38, 103
  %v443 = vpop.permute.xlu0 %442
  %444 = vrot.lane.b32.xlu0 %v39, 103
  %v445 = vpop.permute.xlu0 %444
  %446 = vrot.lane.b32.xlu0 %v40, 103
  %v447 = vpop.permute.xlu0 %446
  %448 = vrot.lane.b32.xlu0 %v41, 103
  %v449 = vpop.permute.xlu0 %448
  %450 = vrot.lane.b32.xlu0 %v42, 103
  %v451 = vpop.permute.xlu0 %450
  %452 = vrot.lane.b32.xlu0 %v43, 103
  %v453 = vpop.permute.xlu0 %452
  %454 = vrot.lane.b32.xlu0 %v44, 103
  %v455 = vpop.permute.xlu0 %454
  %456 = vrot.lane.b32.xlu0 %v45, 103
  %v457 = vpop.permute.xlu0 %456
  %458 = vrot.lane.b32.xlu0 %v46, 103
  %v459 = vpop.permute.xlu0 %458
  %460 = vrot.lane.b32.xlu0 %v47, 103
  %v461 = vpop.permute.xlu0 %460
  %462 = vrot.lane.b32.xlu0 %v48, 103
  %v463 = vpop.permute.xlu0 %462
  %464 = vrot.lane.b32.xlu0 %v49, 103
  %v465 = vpop.permute.xlu0 %464
  %466 = vrot.lane.b32.xlu0 %v50, 103
  %v467 = vpop.permute.xlu0 %466
  %468 = vrot.lane.b32.xlu0 %v51, 103
  %v469 = vpop.permute.xlu0 %468
  %470 = vrot.lane.b32.xlu0 %v52, 103
  %v471 = vpop.permute.xlu0 %470
  %472 = vrot.lane.b32.xlu0 %v53, 103
  %v473 = vpop.permute.xlu0 %472
  %474 = vrot.lane.b32.xlu0 %v54, 103
  %v475 = vpop.permute.xlu0 %474
  %476 = vrot.lane.b32.xlu0 %v55, 103
  %v477 = vpop.permute.xlu0 %476
  %478 = vrot.lane.b32.xlu0 %v56, 103
  %v479 = vpop.permute.xlu0 %478
  %480 = vrot.lane.b32.xlu0 %v57, 103
  %v481 = vpop.permute.xlu0 %480
  %482 = vrot.lane.b32.xlu0 %v58, 103
  %v483 = vpop.permute.xlu0 %482
  %484 = vrot.lane.b32.xlu0 %v59, 103
  %v485 = vpop.permute.xlu0 %484
  %486 = vrot.lane.b32.xlu0 %v60, 103
  %v487 = vpop.permute.xlu0 %486
  %488 = vrot.lane.b32.xlu0 %v61, 103
  %v489 = vpop.permute.xlu0 %488
  %490 = vrot.lane.b32.xlu0 %v62, 103
  %v491 = vpop.permute.xlu0 %490
  %492 = vrot.lane.b32.xlu0 %v63, 103
  %v493 = vpop.permute.xlu0 %492
  %494 = vrot.lane.b32.xlu0 %v64, 103
  %v495 = vpop.permute.xlu0 %494
  %496 = vrot.lane.b32.xlu0 %v65, 103
  %v497 = vpop.permute.xlu0 %496
  %498 = vrot.lane.b32.xlu0 %v66, 103
  %v499 = vpop.permute.xlu0 %498
  %500 = vrot.lane.b32.xlu0 %v67, 103
  %v501 = vpop.permute.xlu0 %500
  %v502 = vsel %vm72, %v431, 0
  %v504 = vsel %vm72, %v433, 0
  %v506 = vsel %vm72, %v435, 0
  %v508 = vsel %vm72, %v437, 0
  %v510 = vsel %vm72, %v439, 0
  %v512 = vsel %vm72, %v441, 0
  %v514 = vsel %vm72, %v443, 0
  %v516 = vsel %vm72, %v445, 0
  %v518 = vsel %vm72, %v447, 0
  %v520 = vsel %vm72, %v449, 0
  %v522 = vsel %vm72, %v451, 0
  %v524 = vsel %vm72, %v453, 0
  %v526 = vsel %vm72, %v455, 0
  %v528 = vsel %vm72, %v457, 0
  %v530 = vsel %vm72, %v459, 0
  %v532 = vsel %vm72, %v461, 0
  %v534 = vsel %vm72, %v463, 0
  %v536 = vsel %vm72, %v465, 0
  %v538 = vsel %vm72, %v467, 0
  %v540 = vsel %vm72, %v469, 0
  %v542 = vsel %vm72, %v471, 0
  %v544 = vsel %vm72, %v473, 0
  %v546 = vsel %vm72, %v475, 0
  %v548 = vsel %vm72, %v477, 0
  %v550 = vsel %vm72, %v479, 0
  %v552 = vsel %vm72, %v481, 0
  %v554 = vsel %vm72, %v483, 0
  %v556 = vsel %vm72, %v485, 0
  %v558 = vsel %vm72, %v487, 0
  %v560 = vsel %vm72, %v489, 0
  %v562 = vsel %vm72, %v491, 0
  %v564 = vsel %vm72, %v493, 0
  %v566 = vsel %vm72, %v495, 0
  %v568 = vsel %vm72, %v497, 0
  %v570 = vsel %vm72, %v499, 0
  %v572 = vsel %vm72, %v501, 0
  %574 = vmatprep.subr.mxu0 0.0
  %575 = vmatpush1.msra.mxu0 0.0
  %576 = vmatprep.subr.mxu0 0.0
  %577 = vmatpush1.msra.mxu0 0.0
  %578 = vmatprep.subr.mxu0 0.0
  %579 = vmatpush1.msra.mxu0 0.0
  %580 = vmatprep.subr.mxu0 0.0
  %581 = vmatpush1.msra.mxu0 0.0
  %582 = vmatprep.subr.mxu0 0.0
  %583 = vmatpush1.msra.mxu0 0.0
  %584 = vmatprep.subr.mxu0 0.0
  %585 = vmatpush1.msra.mxu0 0.0
  %586 = vmatprep.subr.mxu0 0.0
  %587 = vmatpush1.msra.mxu0 0.0
  %588 = vmatprep.subr.mxu0 0.0
  %589 = vmatpush1.msra.mxu0 0.0
  %590 = vmatprep.subr.mxu0 0.0
  %591 = vmatpush1.msra.mxu0 0.0
  %592 = vmatprep.subr.mxu0 0.0
  %593 = vmatpush1.msra.mxu0 0.0
  %594 = vmatprep.subr.mxu0 0.0
  %595 = vmatpush1.msra.mxu0 0.0
  %596 = vmatprep.subr.mxu0 0.0
  %597 = vmatpush1.msra.mxu0 0.0
  %598 = vmatprep.subr.mxu0 0.0
  %599 = vmatpush1.msra.mxu0 %v183
  %600 = vmatprep.subr.mxu0 0.0
  %601 = vmatpush1.msra.mxu0 %v70
  %602 = vmatprep.subr.mxu0 0.0
  %603 = vmatpush1.msra.mxu0 %v69
  %604 = vmatprep.subr.mxu0 0.0
  %605 = vmatpush1.msra.mxu0 %v68
  %606 = vmatprep.subr.mxu0 0.0
  %607 = vmatpush2.msra.mxu0 0.0
  %608 = vmatprep.subr.mxu0 0.0
  %609 = vmatpush2.msra.mxu0 0.0
  %610 = vmatprep.subr.mxu0 0.0
  %611 = vmatpush2.msra.mxu0 0.0
  %612 = vmatprep.subr.mxu0 0.0
  %613 = vmatpush2.msra.mxu0 0.0
  %614 = vmatprep.subr.mxu0 0.0
  %615 = vmatpush2.msra.mxu0 0.0
  %616 = vmatprep.subr.mxu0 0.0
  %617 = vmatpush2.msra.mxu0 0.0
  %618 = vmatprep.subr.mxu0 0.0
  %619 = vmatpush2.msra.mxu0 0.0
  %620 = vmatprep.subr.mxu0 0.0
  %621 = vmatpush2.msra.mxu0 0.0
  %622 = vmatprep.subr.mxu0 0.0
  %623 = vmatpush2.msra.mxu0 0.0
  %624 = vmatprep.subr.mxu0 0.0
  %625 = vmatpush2.msra.mxu0 0.0
  %626 = vmatprep.subr.mxu0 0.0
  %627 = vmatpush2.msra.mxu0 0.0
  %628 = vmatprep.subr.mxu0 0.0
  %629 = vmatpush2.msra.mxu0 0.0
  %630 = vmatprep.subr.mxu0 0.0
  %631 = vmatpush2.msra.mxu0 0.0
  %632 = vmatprep.subr.mxu0 0.0
  %633 = vmatpush2.msra.mxu0 0.0
  %634 = vmatprep.subr.mxu0 0.0
  %635 = vmatpush2.msra.mxu0 0.0
  %636 = vmatprep.subr.mxu0 0.0
  %637 = vmatpush2.msra.mxu0 0.0
  %638 = vmatprep.mubr.f32.mxu0 0.0
  %639 = vmatmul.mubr.f32.gmra.mxu0 %v502
  %v640 = vpop.f32.mrf.mxu0
  %v641 = vadd.f32 0.0, %v640
  %v642 = vpop.f32.mrf.mxu0
  %643 = vmatprep.mubr.f32.mxu0 0.0
  %644 = vmatmul.mubr.f32.gmra.mxu0 %v504
  %v645 = vpop.f32.mrf.mxu0
  %v646 = vadd.f32 0.0, %v645
  %v647 = vpop.f32.mrf.mxu0
  %648 = vmatprep.mubr.f32.mxu0 0.0
  %649 = vmatmul.mubr.f32.gmra.mxu0 %v506
  %v650 = vpop.f32.mrf.mxu0
  %v651 = vadd.f32 0.0, %v650
  %v652 = vpop.f32.mrf.mxu0
  %653 = vmatprep.mubr.f32.mxu0 0.0
  %654 = vmatmul.mubr.f32.gmra.mxu0 %v508
  %v655 = vpop.f32.mrf.mxu0
  %v656 = vadd.f32 0.0, %v655
  %v657 = vpop.f32.mrf.mxu0
  %658 = vmatprep.mubr.f32.mxu0 0.0
  %659 = vmatmul.mubr.f32.gmra.mxu0 %v510
  %v660 = vpop.f32.mrf.mxu0
  %v661 = vadd.f32 0.0, %v660
  %v662 = vpop.f32.mrf.mxu0
  %663 = vmatprep.mubr.f32.mxu0 0.0
  %664 = vmatmul.mubr.f32.gmra.mxu0 %v512
  %v665 = vpop.f32.mrf.mxu0
  %v666 = vadd.f32 0.0, %v665
  %v667 = vpop.f32.mrf.mxu0
  %668 = vmatprep.mubr.f32.mxu0 0.0
  %669 = vmatmul.mubr.f32.gmra.mxu0 %v514
  %v670 = vpop.f32.mrf.mxu0
  %v671 = vadd.f32 0.0, %v670
  %v672 = vpop.f32.mrf.mxu0
  %673 = vmatprep.mubr.f32.mxu0 0.0
  %674 = vmatmul.mubr.f32.gmra.mxu0 %v516
  %v675 = vpop.f32.mrf.mxu0
  %v676 = vadd.f32 0.0, %v675
  %v677 = vpop.f32.mrf.mxu0
  %678 = vmatprep.mubr.f32.mxu0 0.0
  %679 = vmatmul.mubr.f32.gmra.mxu0 %v518
  %v680 = vpop.f32.mrf.mxu0
  %v681 = vadd.f32 0.0, %v680
  %v682 = vpop.f32.mrf.mxu0
  %683 = vmatprep.mubr.f32.mxu0 0.0
  %684 = vmatmul.mubr.f32.gmra.mxu0 %v520
  %v685 = vpop.f32.mrf.mxu0
  %v686 = vadd.f32 0.0, %v685
  %v687 = vpop.f32.mrf.mxu0
  %688 = vmatprep.mubr.f32.mxu0 0.0
  %689 = vmatmul.mubr.f32.gmra.mxu0 %v522
  %v690 = vpop.f32.mrf.mxu0
  %v691 = vadd.f32 0.0, %v690
  %v692 = vpop.f32.mrf.mxu0
  %693 = vmatprep.mubr.f32.mxu0 0.0
  %694 = vmatmul.mubr.f32.gmra.mxu0 %v524
  %v695 = vpop.f32.mrf.mxu0
  %v696 = vadd.f32 0.0, %v695
  %v697 = vpop.f32.mrf.mxu0
  %698 = vmatprep.mubr.f32.mxu0 0.0
  %699 = vmatmul.mubr.f32.gmra.mxu0 %v526
  %v700 = vpop.f32.mrf.mxu0
  %v701 = vadd.f32 0.0, %v700
  %v702 = vpop.f32.mrf.mxu0
  %703 = vmatprep.mubr.f32.mxu0 0.0
  %704 = vmatmul.mubr.f32.gmra.mxu0 %v528
  %v705 = vpop.f32.mrf.mxu0
  %v706 = vadd.f32 0.0, %v705
  %v707 = vpop.f32.mrf.mxu0
  %708 = vmatprep.mubr.f32.mxu0 0.0
  %709 = vmatmul.mubr.f32.gmra.mxu0 %v530
  %v710 = vpop.f32.mrf.mxu0
  %v711 = vadd.f32 0.0, %v710
  %v712 = vpop.f32.mrf.mxu0
  %713 = vmatprep.mubr.f32.mxu0 0.0
  %714 = vmatmul.mubr.f32.gmra.mxu0 %v532
  %v715 = vpop.f32.mrf.mxu0
  %v716 = vadd.f32 0.0, %v715
  %v717 = vpop.f32.mrf.mxu0
  %718 = vmatprep.mubr.f32.mxu0 0.0
  %719 = vmatmul.mubr.f32.gmra.mxu0 %v534
  %v720 = vpop.f32.mrf.mxu0
  %v721 = vadd.f32 0.0, %v720
  %v722 = vpop.f32.mrf.mxu0
  %723 = vmatprep.mubr.f32.mxu0 0.0
  %724 = vmatmul.mubr.f32.gmra.mxu0 %v536
  %v725 = vpop.f32.mrf.mxu0
  %v726 = vadd.f32 0.0, %v725
  %v727 = vpop.f32.mrf.mxu0
  %728 = vmatprep.mubr.f32.mxu0 0.0
  %729 = vmatmul.mubr.f32.gmra.mxu0 %v538
  %v730 = vpop.f32.mrf.mxu0
  %v731 = vadd.f32 0.0, %v730
  %v732 = vpop.f32.mrf.mxu0
  %733 = vmatprep.mubr.f32.mxu0 0.0
  %734 = vmatmul.mubr.f32.gmra.mxu0 %v540
  %v735 = vpop.f32.mrf.mxu0
  %v736 = vadd.f32 0.0, %v735
  %v737 = vpop.f32.mrf.mxu0
  %738 = vmatprep.mubr.f32.mxu0 0.0
  %739 = vmatmul.mubr.f32.gmra.mxu0 %v542
  %v740 = vpop.f32.mrf.mxu0
  %v741 = vadd.f32 0.0, %v740
  %v742 = vpop.f32.mrf.mxu0
  %743 = vmatprep.mubr.f32.mxu0 0.0
  %744 = vmatmul.mubr.f32.gmra.mxu0 %v544
  %v745 = vpop.f32.mrf.mxu0
  %v746 = vadd.f32 0.0, %v745
  %v747 = vpop.f32.mrf.mxu0
  %748 = vmatprep.mubr.f32.mxu0 0.0
  %749 = vmatmul.mubr.f32.gmra.mxu0 %v546
  %v750 = vpop.f32.mrf.mxu0
  %v751 = vadd.f32 0.0, %v750
  %v752 = vpop.f32.mrf.mxu0
  %753 = vmatprep.mubr.f32.mxu0 0.0
  %754 = vmatmul.mubr.f32.gmra.mxu0 %v548
  %v755 = vpop.f32.mrf.mxu0
  %v756 = vadd.f32 0.0, %v755
  %v757 = vpop.f32.mrf.mxu0
  %758 = vmatprep.mubr.f32.mxu0 0.0
  %759 = vmatmul.mubr.f32.gmra.mxu0 %v550
  %v760 = vpop.f32.mrf.mxu0
  %v761 = vadd.f32 0.0, %v760
  %v762 = vpop.f32.mrf.mxu0
  %763 = vmatprep.mubr.f32.mxu0 0.0
  %764 = vmatmul.mubr.f32.gmra.mxu0 %v552
  %v765 = vpop.f32.mrf.mxu0
  %v766 = vadd.f32 0.0, %v765
  %v767 = vpop.f32.mrf.mxu0
  %768 = vmatprep.mubr.f32.mxu0 0.0
  %769 = vmatmul.mubr.f32.gmra.mxu0 %v554
  %v770 = vpop.f32.mrf.mxu0
  %v771 = vadd.f32 0.0, %v770
  %v772 = vpop.f32.mrf.mxu0
  %773 = vmatprep.mubr.f32.mxu0 0.0
  %774 = vmatmul.mubr.f32.gmra.mxu0 %v556
  %v775 = vpop.f32.mrf.mxu0
  %v776 = vadd.f32 0.0, %v775
  %v777 = vpop.f32.mrf.mxu0
  %778 = vmatprep.mubr.f32.mxu0 0.0
  %779 = vmatmul.mubr.f32.gmra.mxu0 %v558
  %v780 = vpop.f32.mrf.mxu0
  %v781 = vadd.f32 0.0, %v780
  %v782 = vpop.f32.mrf.mxu0
  %783 = vmatprep.mubr.f32.mxu0 0.0
  %784 = vmatmul.mubr.f32.gmra.mxu0 %v560
  %v785 = vpop.f32.mrf.mxu0
  %v786 = vadd.f32 0.0, %v785
  %v787 = vpop.f32.mrf.mxu0
  %788 = vmatprep.mubr.f32.mxu0 0.0
  %789 = vmatmul.mubr.f32.gmra.mxu0 %v562
  %v790 = vpop.f32.mrf.mxu0
  %v791 = vadd.f32 0.0, %v790
  %v792 = vpop.f32.mrf.mxu0
  %793 = vmatprep.mubr.f32.mxu0 0.0
  %794 = vmatmul.mubr.f32.gmra.mxu0 %v564
  %v795 = vpop.f32.mrf.mxu0
  %v796 = vadd.f32 0.0, %v795
  %v797 = vpop.f32.mrf.mxu0
  %798 = vmatprep.mubr.f32.mxu0 0.0
  %799 = vmatmul.mubr.f32.gmra.mxu0 %v566
  %v800 = vpop.f32.mrf.mxu0
  %v801 = vadd.f32 0.0, %v800
  %v802 = vpop.f32.mrf.mxu0
  %803 = vmatprep.mubr.f32.mxu0 0.0
  %804 = vmatmul.mubr.f32.gmra.mxu0 %v568
  %v805 = vpop.f32.mrf.mxu0
  %v806 = vadd.f32 0.0, %v805
  %v807 = vpop.f32.mrf.mxu0
  %808 = vmatprep.mubr.f32.mxu0 0.0
  %809 = vmatmul.mubr.f32.gmra.mxu0 %v570
  %v810 = vpop.f32.mrf.mxu0
  %v811 = vadd.f32 0.0, %v810
  %v812 = vpop.f32.mrf.mxu0
  %813 = vmatprep.mubr.f32.mxu0 0.0
  %814 = vmatmul.mubr.f32.gmra.mxu0 %v572
  %v815 = vpop.f32.mrf.mxu0
  %v816 = vadd.f32 0.0, %v815
  %v817 = vpop.f32.mrf.mxu0
  %818 = vdwg.mxu0
  %819 = vrot.lane.b32.xlu0 %v32, 78
  %v820 = vpop.permute.xlu0 %819
  %821 = vrot.lane.b32.xlu0 %v33, 78
  %v822 = vpop.permute.xlu0 %821
  %823 = vrot.lane.b32.xlu0 %v34, 78
  %v824 = vpop.permute.xlu0 %823
  %825 = vrot.lane.b32.xlu0 %v35, 78
  %v826 = vpop.permute.xlu0 %825
  %827 = vrot.lane.b32.xlu0 %v36, 78
  %v828 = vpop.permute.xlu0 %827
  %829 = vrot.lane.b32.xlu0 %v37, 78
  %v830 = vpop.permute.xlu0 %829
  %831 = vrot.lane.b32.xlu0 %v38, 78
  %v832 = vpop.permute.xlu0 %831
  %833 = vrot.lane.b32.xlu0 %v39, 78
  %v834 = vpop.permute.xlu0 %833
  %835 = vrot.lane.b32.xlu0 %v40, 78
  %v836 = vpop.permute.xlu0 %835
  %837 = vrot.lane.b32.xlu0 %v41, 78
  %v838 = vpop.permute.xlu0 %837
  %839 = vrot.lane.b32.xlu0 %v42, 78
  %v840 = vpop.permute.xlu0 %839
  %841 = vrot.lane.b32.xlu0 %v43, 78
  %v842 = vpop.permute.xlu0 %841
  %843 = vrot.lane.b32.xlu0 %v44, 78
  %v844 = vpop.permute.xlu0 %843
  %845 = vrot.lane.b32.xlu0 %v45, 78
  %v846 = vpop.permute.xlu0 %845
  %847 = vrot.lane.b32.xlu0 %v46, 78
  %v848 = vpop.permute.xlu0 %847
  %849 = vrot.lane.b32.xlu0 %v47, 78
  %v850 = vpop.permute.xlu0 %849
  %851 = vrot.lane.b32.xlu0 %v48, 78
  %v852 = vpop.permute.xlu0 %851
  %853 = vrot.lane.b32.xlu0 %v49, 78
  %v854 = vpop.permute.xlu0 %853
  %855 = vrot.lane.b32.xlu0 %v50, 78
  %v856 = vpop.permute.xlu0 %855
  %857 = vrot.lane.b32.xlu0 %v51, 78
  %v858 = vpop.permute.xlu0 %857
  %859 = vrot.lane.b32.xlu0 %v52, 78
  %v860 = vpop.permute.xlu0 %859
  %861 = vrot.lane.b32.xlu0 %v53, 78
  %v862 = vpop.permute.xlu0 %861
  %863 = vrot.lane.b32.xlu0 %v54, 78
  %v864 = vpop.permute.xlu0 %863
  %865 = vrot.lane.b32.xlu0 %v55, 78
  %v866 = vpop.permute.xlu0 %865
  %867 = vrot.lane.b32.xlu0 %v56, 78
  %v868 = vpop.permute.xlu0 %867
  %869 = vrot.lane.b32.xlu0 %v57, 78
  %v870 = vpop.permute.xlu0 %869
  %871 = vrot.lane.b32.xlu0 %v58, 78
  %v872 = vpop.permute.xlu0 %871
  %873 = vrot.lane.b32.xlu0 %v59, 78
  %v874 = vpop.permute.xlu0 %873
  %875 = vrot.lane.b32.xlu0 %v60, 78
  %v876 = vpop.permute.xlu0 %875
  %877 = vrot.lane.b32.xlu0 %v61, 78
  %v878 = vpop.permute.xlu0 %877
  %879 = vrot.lane.b32.xlu0 %v62, 78
  %v880 = vpop.permute.xlu0 %879
  %881 = vrot.lane.b32.xlu0 %v63, 78
  %v882 = vpop.permute.xlu0 %881
  %883 = vrot.lane.b32.xlu0 %v64, 78
  %v884 = vpop.permute.xlu0 %883
  %885 = vrot.lane.b32.xlu0 %v65, 78
  %v886 = vpop.permute.xlu0 %885
  %887 = vrot.lane.b32.xlu0 %v66, 78
  %v888 = vpop.permute.xlu0 %887
  %889 = vrot.lane.b32.xlu0 %v67, 78
  %v890 = vpop.permute.xlu0 %889
  %v891 = vsel %vm72, %v820, 0
  %v893 = vsel %vm72, %v822, 0
  %v895 = vsel %vm72, %v824, 0
  %v897 = vsel %vm72, %v826, 0
  %v899 = vsel %vm72, %v828, 0
  %v901 = vsel %vm72, %v830, 0
  %v903 = vsel %vm72, %v832, 0
  %v905 = vsel %vm72, %v834, 0
  %v907 = vsel %vm72, %v836, 0
  %v909 = vsel %vm72, %v838, 0
  %v911 = vsel %vm72, %v840, 0
  %v913 = vsel %vm72, %v842, 0
  %v915 = vsel %vm72, %v844, 0
  %v917 = vsel %vm72, %v846, 0
  %v919 = vsel %vm72, %v848, 0
  %v921 = vsel %vm72, %v850, 0
  %v923 = vsel %vm72, %v852, 0
  %v925 = vsel %vm72, %v854, 0
  %v927 = vsel %vm72, %v856, 0
  %v929 = vsel %vm72, %v858, 0
  %v931 = vsel %vm72, %v860, 0
  %v933 = vsel %vm72, %v862, 0
  %v935 = vsel %vm72, %v864, 0
  %v937 = vsel %vm72, %v866, 0
  %v939 = vsel %vm72, %v868, 0
  %v941 = vsel %vm72, %v870, 0
  %v943 = vsel %vm72, %v872, 0
  %v945 = vsel %vm72, %v874, 0
  %v947 = vsel %vm72, %v876, 0
  %v949 = vsel %vm72, %v878, 0
  %v951 = vsel %vm72, %v880, 0
  %v953 = vsel %vm72, %v882, 0
  %v955 = vsel %vm72, %v884, 0
  %v957 = vsel %vm72, %v886, 0
  %v959 = vsel %vm72, %v888, 0
  %v961 = vsel %vm72, %v890, 0
  %963 = vmatprep.subr.mxu0 0.0
  %964 = vmatpush1.msra.mxu0 0.0
  %965 = vmatprep.subr.mxu0 0.0
  %966 = vmatpush1.msra.mxu0 0.0
  %967 = vmatprep.subr.mxu0 0.0
  %968 = vmatpush1.msra.mxu0 0.0
  %969 = vmatprep.subr.mxu0 0.0
  %970 = vmatpush1.msra.mxu0 0.0
  %971 = vmatprep.subr.mxu0 0.0
  %972 = vmatpush1.msra.mxu0 0.0
  %973 = vmatprep.subr.mxu0 0.0
  %974 = vmatpush1.msra.mxu0 0.0
  %975 = vmatprep.subr.mxu0 0.0
  %976 = vmatpush1.msra.mxu0 0.0
  %977 = vmatprep.subr.mxu0 0.0
  %978 = vmatpush1.msra.mxu0 0.0
  %979 = vmatprep.subr.mxu0 0.0
  %980 = vmatpush1.msra.mxu0 0.0
  %981 = vmatprep.subr.mxu0 0.0
  %982 = vmatpush1.msra.mxu0 0.0
  %983 = vmatprep.subr.mxu0 0.0
  %984 = vmatpush1.msra.mxu0 0.0
  %985 = vmatprep.subr.mxu0 0.0
  %986 = vmatpush1.msra.mxu0 0.0
  %987 = vmatprep.subr.mxu0 0.0
  %988 = vmatpush1.msra.mxu0 %v183
  %989 = vmatprep.subr.mxu0 0.0
  %990 = vmatpush1.msra.mxu0 %v70
  %991 = vmatprep.subr.mxu0 0.0
  %992 = vmatpush1.msra.mxu0 %v69
  %993 = vmatprep.subr.mxu0 0.0
  %994 = vmatpush1.msra.mxu0 %v68
  %995 = vmatprep.subr.mxu0 0.0
  %996 = vmatpush2.msra.mxu0 0.0
  %997 = vmatprep.subr.mxu0 0.0
  %998 = vmatpush2.msra.mxu0 0.0
  %999 = vmatprep.subr.mxu0 0.0
  %1000 = vmatpush2.msra.mxu0 0.0
  %1001 = vmatprep.subr.mxu0 0.0
  %1002 = vmatpush2.msra.mxu0 0.0
  %1003 = vmatprep.subr.mxu0 0.0
  %1004 = vmatpush2.msra.mxu0 0.0
  %1005 = vmatprep.subr.mxu0 0.0
  %1006 = vmatpush2.msra.mxu0 0.0
  %1007 = vmatprep.subr.mxu0 0.0
  %1008 = vmatpush2.msra.mxu0 0.0
  %1009 = vmatprep.subr.mxu0 0.0
  %1010 = vmatpush2.msra.mxu0 0.0
  %1011 = vmatprep.subr.mxu0 0.0
  %1012 = vmatpush2.msra.mxu0 0.0
  %1013 = vmatprep.subr.mxu0 0.0
  %1014 = vmatpush2.msra.mxu0 0.0
  %1015 = vmatprep.subr.mxu0 0.0
  %1016 = vmatpush2.msra.mxu0 0.0
  %1017 = vmatprep.subr.mxu0 0.0
  %1018 = vmatpush2.msra.mxu0 0.0
  %1019 = vmatprep.subr.mxu0 0.0
  %1020 = vmatpush2.msra.mxu0 0.0
  %1021 = vmatprep.subr.mxu0 0.0
  %1022 = vmatpush2.msra.mxu0 0.0
  %1023 = vmatprep.subr.mxu0 0.0
  %1024 = vmatpush2.msra.mxu0 0.0
  %1025 = vmatprep.subr.mxu0 0.0
  %1026 = vmatpush2.msra.mxu0 0.0
  %1027 = vmatprep.mubr.f32.mxu0 0.0
  %1028 = vmatmul.mubr.f32.gmra.mxu0 %v891
  %v1029 = vpop.f32.mrf.mxu0
  %v1030 = vadd.f32 0.0, %v1029
  %v1031 = vpop.f32.mrf.mxu0
  %1032 = vmatprep.mubr.f32.mxu0 0.0
  %1033 = vmatmul.mubr.f32.gmra.mxu0 %v893
  %v1034 = vpop.f32.mrf.mxu0
  %v1035 = vadd.f32 0.0, %v1034
  %v1036 = vpop.f32.mrf.mxu0
  %1037 = vmatprep.mubr.f32.mxu0 0.0
  %1038 = vmatmul.mubr.f32.gmra.mxu0 %v895
  %v1039 = vpop.f32.mrf.mxu0
  %v1040 = vadd.f32 0.0, %v1039
  %v1041 = vpop.f32.mrf.mxu0
  %1042 = vmatprep.mubr.f32.mxu0 0.0
  %1043 = vmatmul.mubr.f32.gmra.mxu0 %v897
  %v1044 = vpop.f32.mrf.mxu0
  %v1045 = vadd.f32 0.0, %v1044
  %v1046 = vpop.f32.mrf.mxu0
  %1047 = vmatprep.mubr.f32.mxu0 0.0
  %1048 = vmatmul.mubr.f32.gmra.mxu0 %v899
  %v1049 = vpop.f32.mrf.mxu0
  %v1050 = vadd.f32 0.0, %v1049
  %v1051 = vpop.f32.mrf.mxu0
  %1052 = vmatprep.mubr.f32.mxu0 0.0
  %1053 = vmatmul.mubr.f32.gmra.mxu0 %v901
  %v1054 = vpop.f32.mrf.mxu0
  %v1055 = vadd.f32 0.0, %v1054
  %v1056 = vpop.f32.mrf.mxu0
  %1057 = vmatprep.mubr.f32.mxu0 0.0
  %1058 = vmatmul.mubr.f32.gmra.mxu0 %v903
  %v1059 = vpop.f32.mrf.mxu0
  %v1060 = vadd.f32 0.0, %v1059
  %v1061 = vpop.f32.mrf.mxu0
  %1062 = vmatprep.mubr.f32.mxu0 0.0
  %1063 = vmatmul.mubr.f32.gmra.mxu0 %v905
  %v1064 = vpop.f32.mrf.mxu0
  %v1065 = vadd.f32 0.0, %v1064
  %v1066 = vpop.f32.mrf.mxu0
  %1067 = vmatprep.mubr.f32.mxu0 0.0
  %1068 = vmatmul.mubr.f32.gmra.mxu0 %v907
  %v1069 = vpop.f32.mrf.mxu0
  %v1070 = vadd.f32 0.0, %v1069
  %v1071 = vpop.f32.mrf.mxu0
  %1072 = vmatprep.mubr.f32.mxu0 0.0
  %1073 = vmatmul.mubr.f32.gmra.mxu0 %v909
  %v1074 = vpop.f32.mrf.mxu0
  %v1075 = vadd.f32 0.0, %v1074
  %v1076 = vpop.f32.mrf.mxu0
  %1077 = vmatprep.mubr.f32.mxu0 0.0
  %1078 = vmatmul.mubr.f32.gmra.mxu0 %v911
  %v1079 = vpop.f32.mrf.mxu0
  %v1080 = vadd.f32 0.0, %v1079
  %v1081 = vpop.f32.mrf.mxu0
  %1082 = vmatprep.mubr.f32.mxu0 0.0
  %1083 = vmatmul.mubr.f32.gmra.mxu0 %v913
  %v1084 = vpop.f32.mrf.mxu0
  %v1085 = vadd.f32 0.0, %v1084
  %v1086 = vpop.f32.mrf.mxu0
  %1087 = vmatprep.mubr.f32.mxu0 0.0
  %1088 = vmatmul.mubr.f32.gmra.mxu0 %v915
  %v1089 = vpop.f32.mrf.mxu0
  %v1090 = vadd.f32 0.0, %v1089
  %v1091 = vpop.f32.mrf.mxu0
  %1092 = vmatprep.mubr.f32.mxu0 0.0
  %1093 = vmatmul.mubr.f32.gmra.mxu0 %v917
  %v1094 = vpop.f32.mrf.mxu0
  %v1095 = vadd.f32 0.0, %v1094
  %v1096 = vpop.f32.mrf.mxu0
  %1097 = vmatprep.mubr.f32.mxu0 0.0
  %1098 = vmatmul.mubr.f32.gmra.mxu0 %v919
  %v1099 = vpop.f32.mrf.mxu0
  %v1100 = vadd.f32 0.0, %v1099
  %v1101 = vpop.f32.mrf.mxu0
  %1102 = vmatprep.mubr.f32.mxu0 0.0
  %1103 = vmatmul.mubr.f32.gmra.mxu0 %v921
  %v1104 = vpop.f32.mrf.mxu0
  %v1105 = vadd.f32 0.0, %v1104
  %v1106 = vpop.f32.mrf.mxu0
  %1107 = vmatprep.mubr.f32.mxu0 0.0
  %1108 = vmatmul.mubr.f32.gmra.mxu0 %v923
  %v1109 = vpop.f32.mrf.mxu0
  %v1110 = vadd.f32 0.0, %v1109
  %v1111 = vpop.f32.mrf.mxu0
  %1112 = vmatprep.mubr.f32.mxu0 0.0
  %1113 = vmatmul.mubr.f32.gmra.mxu0 %v925
  %v1114 = vpop.f32.mrf.mxu0
  %v1115 = vadd.f32 0.0, %v1114
  %v1116 = vpop.f32.mrf.mxu0
  %1117 = vmatprep.mubr.f32.mxu0 0.0
  %1118 = vmatmul.mubr.f32.gmra.mxu0 %v927
  %v1119 = vpop.f32.mrf.mxu0
  %v1120 = vadd.f32 0.0, %v1119
  %v1121 = vpop.f32.mrf.mxu0
  %1122 = vmatprep.mubr.f32.mxu0 0.0
  %1123 = vmatmul.mubr.f32.gmra.mxu0 %v929
  %v1124 = vpop.f32.mrf.mxu0
  %v1125 = vadd.f32 0.0, %v1124
  %v1126 = vpop.f32.mrf.mxu0
  %1127 = vmatprep.mubr.f32.mxu0 0.0
  %1128 = vmatmul.mubr.f32.gmra.mxu0 %v931
  %v1129 = vpop.f32.mrf.mxu0
  %v1130 = vadd.f32 0.0, %v1129
  %v1131 = vpop.f32.mrf.mxu0
  %1132 = vmatprep.mubr.f32.mxu0 0.0
  %1133 = vmatmul.mubr.f32.gmra.mxu0 %v933
  %v1134 = vpop.f32.mrf.mxu0
  %v1135 = vadd.f32 0.0, %v1134
  %v1136 = vpop.f32.mrf.mxu0
  %1137 = vmatprep.mubr.f32.mxu0 0.0
  %1138 = vmatmul.mubr.f32.gmra.mxu0 %v935
  %v1139 = vpop.f32.mrf.mxu0
  %v1140 = vadd.f32 0.0, %v1139
  %v1141 = vpop.f32.mrf.mxu0
  %1142 = vmatprep.mubr.f32.mxu0 0.0
  %1143 = vmatmul.mubr.f32.gmra.mxu0 %v937
  %v1144 = vpop.f32.mrf.mxu0
  %v1145 = vadd.f32 0.0, %v1144
  %v1146 = vpop.f32.mrf.mxu0
  %1147 = vmatprep.mubr.f32.mxu0 0.0
  %1148 = vmatmul.mubr.f32.gmra.mxu0 %v939
  %v1149 = vpop.f32.mrf.mxu0
  %v1150 = vadd.f32 0.0, %v1149
  %v1151 = vpop.f32.mrf.mxu0
  %1152 = vmatprep.mubr.f32.mxu0 0.0
  %1153 = vmatmul.mubr.f32.gmra.mxu0 %v941
  %v1154 = vpop.f32.mrf.mxu0
  %v1155 = vadd.f32 0.0, %v1154
  %v1156 = vpop.f32.mrf.mxu0
  %1157 = vmatprep.mubr.f32.mxu0 0.0
  %1158 = vmatmul.mubr.f32.gmra.mxu0 %v943
  %v1159 = vpop.f32.mrf.mxu0
  %v1160 = vadd.f32 0.0, %v1159
  %v1161 = vpop.f32.mrf.mxu0
  %1162 = vmatprep.mubr.f32.mxu0 0.0
  %1163 = vmatmul.mubr.f32.gmra.mxu0 %v945
  %v1164 = vpop.f32.mrf.mxu0
  %v1165 = vadd.f32 0.0, %v1164
  %v1166 = vpop.f32.mrf.mxu0
  %1167 = vmatprep.mubr.f32.mxu0 0.0
  %1168 = vmatmul.mubr.f32.gmra.mxu0 %v947
  %v1169 = vpop.f32.mrf.mxu0
  %v1170 = vadd.f32 0.0, %v1169
  %v1171 = vpop.f32.mrf.mxu0
  %1172 = vmatprep.mubr.f32.mxu0 0.0
  %1173 = vmatmul.mubr.f32.gmra.mxu0 %v949
  %v1174 = vpop.f32.mrf.mxu0
  %v1175 = vadd.f32 0.0, %v1174
  %v1176 = vpop.f32.mrf.mxu0
  %1177 = vmatprep.mubr.f32.mxu0 0.0
  %1178 = vmatmul.mubr.f32.gmra.mxu0 %v951
  %v1179 = vpop.f32.mrf.mxu0
  %v1180 = vadd.f32 0.0, %v1179
  %v1181 = vpop.f32.mrf.mxu0
  %1182 = vmatprep.mubr.f32.mxu0 0.0
  %1183 = vmatmul.mubr.f32.gmra.mxu0 %v953
  %v1184 = vpop.f32.mrf.mxu0
  %v1185 = vadd.f32 0.0, %v1184
  %v1186 = vpop.f32.mrf.mxu0
  %1187 = vmatprep.mubr.f32.mxu0 0.0
  %1188 = vmatmul.mubr.f32.gmra.mxu0 %v955
  %v1189 = vpop.f32.mrf.mxu0
  %v1190 = vadd.f32 0.0, %v1189
  %v1191 = vpop.f32.mrf.mxu0
  %1192 = vmatprep.mubr.f32.mxu0 0.0
  %1193 = vmatmul.mubr.f32.gmra.mxu0 %v957
  %v1194 = vpop.f32.mrf.mxu0
  %v1195 = vadd.f32 0.0, %v1194
  %v1196 = vpop.f32.mrf.mxu0
  %1197 = vmatprep.mubr.f32.mxu0 0.0
  %1198 = vmatmul.mubr.f32.gmra.mxu0 %v959
  %v1199 = vpop.f32.mrf.mxu0
  %v1200 = vadd.f32 0.0, %v1199
  %v1201 = vpop.f32.mrf.mxu0
  %1202 = vmatprep.mubr.f32.mxu0 0.0
  %1203 = vmatmul.mubr.f32.gmra.mxu0 %v961
  %v1204 = vpop.f32.mrf.mxu0
  %v1205 = vadd.f32 0.0, %v1204
  %v1206 = vpop.f32.mrf.mxu0
  %1207 = vdwg.mxu0
  %1208 = vrot.lane.b32.xlu0 %v32, 53
  %v1209 = vpop.permute.xlu0 %1208
  %1210 = vrot.lane.b32.xlu0 %v33, 53
  %v1211 = vpop.permute.xlu0 %1210
  %1212 = vrot.lane.b32.xlu0 %v34, 53
  %v1213 = vpop.permute.xlu0 %1212
  %1214 = vrot.lane.b32.xlu0 %v35, 53
  %v1215 = vpop.permute.xlu0 %1214
  %1216 = vrot.lane.b32.xlu0 %v36, 53
  %v1217 = vpop.permute.xlu0 %1216
  %1218 = vrot.lane.b32.xlu0 %v37, 53
  %v1219 = vpop.permute.xlu0 %1218
  %1220 = vrot.lane.b32.xlu0 %v38, 53
  %v1221 = vpop.permute.xlu0 %1220
  %1222 = vrot.lane.b32.xlu0 %v39, 53
  %v1223 = vpop.permute.xlu0 %1222
  %1224 = vrot.lane.b32.xlu0 %v40, 53
  %v1225 = vpop.permute.xlu0 %1224
  %1226 = vrot.lane.b32.xlu0 %v41, 53
  %v1227 = vpop.permute.xlu0 %1226
  %1228 = vrot.lane.b32.xlu0 %v42, 53
  %v1229 = vpop.permute.xlu0 %1228
  %1230 = vrot.lane.b32.xlu0 %v43, 53
  %v1231 = vpop.permute.xlu0 %1230
  %1232 = vrot.lane.b32.xlu0 %v44, 53
  %v1233 = vpop.permute.xlu0 %1232
  %1234 = vrot.lane.b32.xlu0 %v45, 53
  %v1235 = vpop.permute.xlu0 %1234
  %1236 = vrot.lane.b32.xlu0 %v46, 53
  %v1237 = vpop.permute.xlu0 %1236
  %1238 = vrot.lane.b32.xlu0 %v47, 53
  %v1239 = vpop.permute.xlu0 %1238
  %1240 = vrot.lane.b32.xlu0 %v48, 53
  %v1241 = vpop.permute.xlu0 %1240
  %1242 = vrot.lane.b32.xlu0 %v49, 53
  %v1243 = vpop.permute.xlu0 %1242
  %1244 = vrot.lane.b32.xlu0 %v50, 53
  %v1245 = vpop.permute.xlu0 %1244
  %1246 = vrot.lane.b32.xlu0 %v51, 53
  %v1247 = vpop.permute.xlu0 %1246
  %1248 = vrot.lane.b32.xlu0 %v52, 53
  %v1249 = vpop.permute.xlu0 %1248
  %1250 = vrot.lane.b32.xlu0 %v53, 53
  %v1251 = vpop.permute.xlu0 %1250
  %1252 = vrot.lane.b32.xlu0 %v54, 53
  %v1253 = vpop.permute.xlu0 %1252
  %1254 = vrot.lane.b32.xlu0 %v55, 53
  %v1255 = vpop.permute.xlu0 %1254
  %1256 = vrot.lane.b32.xlu0 %v56, 53
  %v1257 = vpop.permute.xlu0 %1256
  %1258 = vrot.lane.b32.xlu0 %v57, 53
  %v1259 = vpop.permute.xlu0 %1258
  %1260 = vrot.lane.b32.xlu0 %v58, 53
  %v1261 = vpop.permute.xlu0 %1260
  %1262 = vrot.lane.b32.xlu0 %v59, 53
  %v1263 = vpop.permute.xlu0 %1262
  %1264 = vrot.lane.b32.xlu0 %v60, 53
  %v1265 = vpop.permute.xlu0 %1264
  %1266 = vrot.lane.b32.xlu0 %v61, 53
  %v1267 = vpop.permute.xlu0 %1266
  %1268 = vrot.lane.b32.xlu0 %v62, 53
  %v1269 = vpop.permute.xlu0 %1268
  %1270 = vrot.lane.b32.xlu0 %v63, 53
  %v1271 = vpop.permute.xlu0 %1270
  %1272 = vrot.lane.b32.xlu0 %v64, 53
  %v1273 = vpop.permute.xlu0 %1272
  %1274 = vrot.lane.b32.xlu0 %v65, 53
  %v1275 = vpop.permute.xlu0 %1274
  %1276 = vrot.lane.b32.xlu0 %v66, 53
  %v1277 = vpop.permute.xlu0 %1276
  %1278 = vrot.lane.b32.xlu0 %v67, 53
  %v1279 = vpop.permute.xlu0 %1278
  %v1280 = vsel %vm72, %v1209, 0
  %v1282 = vsel %vm72, %v1211, 0
  %v1284 = vsel %vm72, %v1213, 0
  %v1286 = vsel %vm72, %v1215, 0
  %v1288 = vsel %vm72, %v1217, 0
  %v1290 = vsel %vm72, %v1219, 0
  %v1292 = vsel %vm72, %v1221, 0
  %v1294 = vsel %vm72, %v1223, 0
  %v1296 = vsel %vm72, %v1225, 0
  %v1298 = vsel %vm72, %v1227, 0
  %v1300 = vsel %vm72, %v1229, 0
  %v1302 = vsel %vm72, %v1231, 0
  %v1304 = vsel %vm72, %v1233, 0
  %v1306 = vsel %vm72, %v1235, 0
  %v1308 = vsel %vm72, %v1237, 0
  %v1310 = vsel %vm72, %v1239, 0
  %v1312 = vsel %vm72, %v1241, 0
  %v1314 = vsel %vm72, %v1243, 0
  %v1316 = vsel %vm72, %v1245, 0
  %v1318 = vsel %vm72, %v1247, 0
  %v1320 = vsel %vm72, %v1249, 0
  %v1322 = vsel %vm72, %v1251, 0
  %v1324 = vsel %vm72, %v1253, 0
  %v1326 = vsel %vm72, %v1255, 0
  %v1328 = vsel %vm72, %v1257, 0
  %v1330 = vsel %vm72, %v1259, 0
  %v1332 = vsel %vm72, %v1261, 0
  %v1334 = vsel %vm72, %v1263, 0
  %v1336 = vsel %vm72, %v1265, 0
  %v1338 = vsel %vm72, %v1267, 0
  %v1340 = vsel %vm72, %v1269, 0
  %v1342 = vsel %vm72, %v1271, 0
  %v1344 = vsel %vm72, %v1273, 0
  %v1346 = vsel %vm72, %v1275, 0
  %v1348 = vsel %vm72, %v1277, 0
  %v1350 = vsel %vm72, %v1279, 0
  %1352 = vmatprep.subr.mxu0 0.0
  %1353 = vmatpush1.msra.mxu0 0.0
  %1354 = vmatprep.subr.mxu0 0.0
  %1355 = vmatpush1.msra.mxu0 0.0
  %1356 = vmatprep.subr.mxu0 0.0
  %1357 = vmatpush1.msra.mxu0 0.0
  %1358 = vmatprep.subr.mxu0 0.0
  %1359 = vmatpush1.msra.mxu0 0.0
  %1360 = vmatprep.subr.mxu0 0.0
  %1361 = vmatpush1.msra.mxu0 0.0
  %1362 = vmatprep.subr.mxu0 0.0
  %1363 = vmatpush1.msra.mxu0 0.0
  %1364 = vmatprep.subr.mxu0 0.0
  %1365 = vmatpush1.msra.mxu0 0.0
  %1366 = vmatprep.subr.mxu0 0.0
  %1367 = vmatpush1.msra.mxu0 0.0
  %1368 = vmatprep.subr.mxu0 0.0
  %1369 = vmatpush1.msra.mxu0 0.0
  %1370 = vmatprep.subr.mxu0 0.0
  %1371 = vmatpush1.msra.mxu0 0.0
  %1372 = vmatprep.subr.mxu0 0.0
  %1373 = vmatpush1.msra.mxu0 0.0
  %1374 = vmatprep.subr.mxu0 0.0
  %1375 = vmatpush1.msra.mxu0 0.0
  %1376 = vmatprep.subr.mxu0 0.0
  %1377 = vmatpush1.msra.mxu0 %v183
  %1378 = vmatprep.subr.mxu0 0.0
  %1379 = vmatpush1.msra.mxu0 %v70
  %1380 = vmatprep.subr.mxu0 0.0
  %1381 = vmatpush1.msra.mxu0 %v69
  %1382 = vmatprep.subr.mxu0 0.0
  %1383 = vmatpush1.msra.mxu0 %v68
  %1384 = vmatprep.subr.mxu0 0.0
  %1385 = vmatpush2.msra.mxu0 0.0
  %1386 = vmatprep.subr.mxu0 0.0
  %1387 = vmatpush2.msra.mxu0 0.0
  %1388 = vmatprep.subr.mxu0 0.0
  %1389 = vmatpush2.msra.mxu0 0.0
  %1390 = vmatprep.subr.mxu0 0.0
  %1391 = vmatpush2.msra.mxu0 0.0
  %1392 = vmatprep.subr.mxu0 0.0
  %1393 = vmatpush2.msra.mxu0 0.0
  %1394 = vmatprep.subr.mxu0 0.0
  %1395 = vmatpush2.msra.mxu0 0.0
  %1396 = vmatprep.subr.mxu0 0.0
  %1397 = vmatpush2.msra.mxu0 0.0
  %1398 = vmatprep.subr.mxu0 0.0
  %1399 = vmatpush2.msra.mxu0 0.0
  %1400 = vmatprep.subr.mxu0 0.0
  %1401 = vmatpush2.msra.mxu0 0.0
  %1402 = vmatprep.subr.mxu0 0.0
  %1403 = vmatpush2.msra.mxu0 0.0
  %1404 = vmatprep.subr.mxu0 0.0
  %1405 = vmatpush2.msra.mxu0 0.0
  %1406 = vmatprep.subr.mxu0 0.0
  %1407 = vmatpush2.msra.mxu0 0.0
  %1408 = vmatprep.subr.mxu0 0.0
  %1409 = vmatpush2.msra.mxu0 0.0
  %1410 = vmatprep.subr.mxu0 0.0
  %1411 = vmatpush2.msra.mxu0 0.0
  %1412 = vmatprep.subr.mxu0 0.0
  %1413 = vmatpush2.msra.mxu0 0.0
  %1414 = vmatprep.subr.mxu0 0.0
  %1415 = vmatpush2.msra.mxu0 0.0
  %1416 = vmatprep.mubr.f32.mxu0 0.0
  %1417 = vmatmul.mubr.f32.gmra.mxu0 %v1280
  %v1418 = vpop.f32.mrf.mxu0
  %v1419 = vadd.f32 0.0, %v1418
  %v1420 = vpop.f32.mrf.mxu0
  %1421 = vmatprep.mubr.f32.mxu0 0.0
  %1422 = vmatmul.mubr.f32.gmra.mxu0 %v1282
  %v1423 = vpop.f32.mrf.mxu0
  %v1424 = vadd.f32 0.0, %v1423
  %v1425 = vpop.f32.mrf.mxu0
  %1426 = vmatprep.mubr.f32.mxu0 0.0
  %1427 = vmatmul.mubr.f32.gmra.mxu0 %v1284
  %v1428 = vpop.f32.mrf.mxu0
  %v1429 = vadd.f32 0.0, %v1428
  %v1430 = vpop.f32.mrf.mxu0
  %1431 = vmatprep.mubr.f32.mxu0 0.0
  %1432 = vmatmul.mubr.f32.gmra.mxu0 %v1286
  %v1433 = vpop.f32.mrf.mxu0
  %v1434 = vadd.f32 0.0, %v1433
  %v1435 = vpop.f32.mrf.mxu0
  %1436 = vmatprep.mubr.f32.mxu0 0.0
  %1437 = vmatmul.mubr.f32.gmra.mxu0 %v1288
  %v1438 = vpop.f32.mrf.mxu0
  %v1439 = vadd.f32 0.0, %v1438
  %v1440 = vpop.f32.mrf.mxu0
  %1441 = vmatprep.mubr.f32.mxu0 0.0
  %1442 = vmatmul.mubr.f32.gmra.mxu0 %v1290
  %v1443 = vpop.f32.mrf.mxu0
  %v1444 = vadd.f32 0.0, %v1443
  %v1445 = vpop.f32.mrf.mxu0
  %1446 = vmatprep.mubr.f32.mxu0 0.0
  %1447 = vmatmul.mubr.f32.gmra.mxu0 %v1292
  %v1448 = vpop.f32.mrf.mxu0
  %v1449 = vadd.f32 0.0, %v1448
  %v1450 = vpop.f32.mrf.mxu0
  %1451 = vmatprep.mubr.f32.mxu0 0.0
  %1452 = vmatmul.mubr.f32.gmra.mxu0 %v1294
  %v1453 = vpop.f32.mrf.mxu0
  %v1454 = vadd.f32 0.0, %v1453
  %v1455 = vpop.f32.mrf.mxu0
  %1456 = vmatprep.mubr.f32.mxu0 0.0
  %1457 = vmatmul.mubr.f32.gmra.mxu0 %v1296
  %v1458 = vpop.f32.mrf.mxu0
  %v1459 = vadd.f32 0.0, %v1458
  %v1460 = vpop.f32.mrf.mxu0
  %1461 = vmatprep.mubr.f32.mxu0 0.0
  %1462 = vmatmul.mubr.f32.gmra.mxu0 %v1298
  %v1463 = vpop.f32.mrf.mxu0
  %v1464 = vadd.f32 0.0, %v1463
  %v1465 = vpop.f32.mrf.mxu0
  %1466 = vmatprep.mubr.f32.mxu0 0.0
  %1467 = vmatmul.mubr.f32.gmra.mxu0 %v1300
  %v1468 = vpop.f32.mrf.mxu0
  %v1469 = vadd.f32 0.0, %v1468
  %v1470 = vpop.f32.mrf.mxu0
  %1471 = vmatprep.mubr.f32.mxu0 0.0
  %1472 = vmatmul.mubr.f32.gmra.mxu0 %v1302
  %v1473 = vpop.f32.mrf.mxu0
  %v1474 = vadd.f32 0.0, %v1473
  %v1475 = vpop.f32.mrf.mxu0
  %1476 = vmatprep.mubr.f32.mxu0 0.0
  %1477 = vmatmul.mubr.f32.gmra.mxu0 %v1304
  %v1478 = vpop.f32.mrf.mxu0
  %v1479 = vadd.f32 0.0, %v1478
  %v1480 = vpop.f32.mrf.mxu0
  %1481 = vmatprep.mubr.f32.mxu0 0.0
  %1482 = vmatmul.mubr.f32.gmra.mxu0 %v1306
  %v1483 = vpop.f32.mrf.mxu0
  %v1484 = vadd.f32 0.0, %v1483
  %v1485 = vpop.f32.mrf.mxu0
  %1486 = vmatprep.mubr.f32.mxu0 0.0
  %1487 = vmatmul.mubr.f32.gmra.mxu0 %v1308
  %v1488 = vpop.f32.mrf.mxu0
  %v1489 = vadd.f32 0.0, %v1488
  %v1490 = vpop.f32.mrf.mxu0
  %1491 = vmatprep.mubr.f32.mxu0 0.0
  %1492 = vmatmul.mubr.f32.gmra.mxu0 %v1310
  %v1493 = vpop.f32.mrf.mxu0
  %v1494 = vadd.f32 0.0, %v1493
  %v1495 = vpop.f32.mrf.mxu0
  %1496 = vmatprep.mubr.f32.mxu0 0.0
  %1497 = vmatmul.mubr.f32.gmra.mxu0 %v1312
  %v1498 = vpop.f32.mrf.mxu0
  %v1499 = vadd.f32 0.0, %v1498
  %v1500 = vpop.f32.mrf.mxu0
  %1501 = vmatprep.mubr.f32.mxu0 0.0
  %1502 = vmatmul.mubr.f32.gmra.mxu0 %v1314
  %v1503 = vpop.f32.mrf.mxu0
  %v1504 = vadd.f32 0.0, %v1503
  %v1505 = vpop.f32.mrf.mxu0
  %1506 = vmatprep.mubr.f32.mxu0 0.0
  %1507 = vmatmul.mubr.f32.gmra.mxu0 %v1316
  %v1508 = vpop.f32.mrf.mxu0
  %v1509 = vadd.f32 0.0, %v1508
  %v1510 = vpop.f32.mrf.mxu0
  %1511 = vmatprep.mubr.f32.mxu0 0.0
  %1512 = vmatmul.mubr.f32.gmra.mxu0 %v1318
  %v1513 = vpop.f32.mrf.mxu0
  %v1514 = vadd.f32 0.0, %v1513
  %v1515 = vpop.f32.mrf.mxu0
  %1516 = vmatprep.mubr.f32.mxu0 0.0
  %1517 = vmatmul.mubr.f32.gmra.mxu0 %v1320
  %v1518 = vpop.f32.mrf.mxu0
  %v1519 = vadd.f32 0.0, %v1518
  %v1520 = vpop.f32.mrf.mxu0
  %1521 = vmatprep.mubr.f32.mxu0 0.0
  %1522 = vmatmul.mubr.f32.gmra.mxu0 %v1322
  %v1523 = vpop.f32.mrf.mxu0
  %v1524 = vadd.f32 0.0, %v1523
  %v1525 = vpop.f32.mrf.mxu0
  %1526 = vmatprep.mubr.f32.mxu0 0.0
  %1527 = vmatmul.mubr.f32.gmra.mxu0 %v1324
  %v1528 = vpop.f32.mrf.mxu0
  %v1529 = vadd.f32 0.0, %v1528
  %v1530 = vpop.f32.mrf.mxu0
  %1531 = vmatprep.mubr.f32.mxu0 0.0
  %1532 = vmatmul.mubr.f32.gmra.mxu0 %v1326
  %v1533 = vpop.f32.mrf.mxu0
  %v1534 = vadd.f32 0.0, %v1533
  %v1535 = vpop.f32.mrf.mxu0
  %1536 = vmatprep.mubr.f32.mxu0 0.0
  %1537 = vmatmul.mubr.f32.gmra.mxu0 %v1328
  %v1538 = vpop.f32.mrf.mxu0
  %v1539 = vadd.f32 0.0, %v1538
  %v1540 = vpop.f32.mrf.mxu0
  %1541 = vmatprep.mubr.f32.mxu0 0.0
  %1542 = vmatmul.mubr.f32.gmra.mxu0 %v1330
  %v1543 = vpop.f32.mrf.mxu0
  %v1544 = vadd.f32 0.0, %v1543
  %v1545 = vpop.f32.mrf.mxu0
  %1546 = vmatprep.mubr.f32.mxu0 0.0
  %1547 = vmatmul.mubr.f32.gmra.mxu0 %v1332
  %v1548 = vpop.f32.mrf.mxu0
  %v1549 = vadd.f32 0.0, %v1548
  %v1550 = vpop.f32.mrf.mxu0
  %1551 = vmatprep.mubr.f32.mxu0 0.0
  %1552 = vmatmul.mubr.f32.gmra.mxu0 %v1334
  %v1553 = vpop.f32.mrf.mxu0
  %v1554 = vadd.f32 0.0, %v1553
  %v1555 = vpop.f32.mrf.mxu0
  %1556 = vmatprep.mubr.f32.mxu0 0.0
  %1557 = vmatmul.mubr.f32.gmra.mxu0 %v1336
  %v1558 = vpop.f32.mrf.mxu0
  %v1559 = vadd.f32 0.0, %v1558
  %v1560 = vpop.f32.mrf.mxu0
  %1561 = vmatprep.mubr.f32.mxu0 0.0
  %1562 = vmatmul.mubr.f32.gmra.mxu0 %v1338
  %v1563 = vpop.f32.mrf.mxu0
  %v1564 = vadd.f32 0.0, %v1563
  %v1565 = vpop.f32.mrf.mxu0
  %1566 = vmatprep.mubr.f32.mxu0 0.0
  %1567 = vmatmul.mubr.f32.gmra.mxu0 %v1340
  %v1568 = vpop.f32.mrf.mxu0
  %v1569 = vadd.f32 0.0, %v1568
  %v1570 = vpop.f32.mrf.mxu0
  %1571 = vmatprep.mubr.f32.mxu0 0.0
  %1572 = vmatmul.mubr.f32.gmra.mxu0 %v1342
  %v1573 = vpop.f32.mrf.mxu0
  %v1574 = vadd.f32 0.0, %v1573
  %v1575 = vpop.f32.mrf.mxu0
  %1576 = vmatprep.mubr.f32.mxu0 0.0
  %1577 = vmatmul.mubr.f32.gmra.mxu0 %v1344
  %v1578 = vpop.f32.mrf.mxu0
  %v1579 = vadd.f32 0.0, %v1578
  %v1580 = vpop.f32.mrf.mxu0
  %1581 = vmatprep.mubr.f32.mxu0 0.0
  %1582 = vmatmul.mubr.f32.gmra.mxu0 %v1346
  %v1583 = vpop.f32.mrf.mxu0
  %v1584 = vadd.f32 0.0, %v1583
  %v1585 = vpop.f32.mrf.mxu0
  %1586 = vmatprep.mubr.f32.mxu0 0.0
  %1587 = vmatmul.mubr.f32.gmra.mxu0 %v1348
  %v1588 = vpop.f32.mrf.mxu0
  %v1589 = vadd.f32 0.0, %v1588
  %v1590 = vpop.f32.mrf.mxu0
  %1591 = vmatprep.mubr.f32.mxu0 0.0
  %1592 = vmatmul.mubr.f32.gmra.mxu0 %v1350
  %v1593 = vpop.f32.mrf.mxu0
  %v1594 = vadd.f32 0.0, %v1593
  %v1595 = vpop.f32.mrf.mxu0
  %1596 = vdwg.mxu0
  %v1597 = vmax.f32 %v252, %v641
  %v1598 = vmax.f32 %v257, %v646
  %v1599 = vmax.f32 %v262, %v651
  %v1600 = vmax.f32 %v267, %v656
  %v1601 = vmax.f32 %v272, %v661
  %v1602 = vmax.f32 %v277, %v666
  %v1603 = vmax.f32 %v282, %v671
  %v1604 = vmax.f32 %v287, %v676
  %v1605 = vmax.f32 %v292, %v681
  %v1606 = vmax.f32 %v297, %v686
  %v1607 = vmax.f32 %v302, %v691
  %v1608 = vmax.f32 %v307, %v696
  %v1609 = vmax.f32 %v312, %v701
  %v1610 = vmax.f32 %v317, %v706
  %v1611 = vmax.f32 %v322, %v711
  %v1612 = vmax.f32 %v327, %v716
  %v1613 = vmax.f32 %v332, %v721
  %v1614 = vmax.f32 %v337, %v726
  %v1615 = vmax.f32 %v342, %v731
  %v1616 = vmax.f32 %v347, %v736
  %v1617 = vmax.f32 %v352, %v741
  %v1618 = vmax.f32 %v357, %v746
  %v1619 = vmax.f32 %v362, %v751
  %v1620 = vmax.f32 %v367, %v756
  %v1621 = vmax.f32 %v372, %v761
  %v1622 = vmax.f32 %v377, %v766
  %v1623 = vmax.f32 %v382, %v771
  %v1624 = vmax.f32 %v387, %v776
  %v1625 = vmax.f32 %v392, %v781
  %v1626 = vmax.f32 %v397, %v786
  %v1627 = vmax.f32 %v402, %v791
  %v1628 = vmax.f32 %v407, %v796
  %v1629 = vmax.f32 %v412, %v801
  %v1630 = vmax.f32 %v417, %v806
  %v1631 = vmax.f32 %v422, %v811
  %v1632 = vmax.f32 %v427, %v816
  %v1633 = vmax.f32 %v1030, %v1419
  %v1634 = vmax.f32 %v1035, %v1424
  %v1635 = vmax.f32 %v1040, %v1429
  %v1636 = vmax.f32 %v1045, %v1434
  %v1637 = vmax.f32 %v1050, %v1439
  %v1638 = vmax.f32 %v1055, %v1444
  %v1639 = vmax.f32 %v1060, %v1449
  %v1640 = vmax.f32 %v1065, %v1454
  %v1641 = vmax.f32 %v1070, %v1459
  %v1642 = vmax.f32 %v1075, %v1464
  %v1643 = vmax.f32 %v1080, %v1469
  %v1644 = vmax.f32 %v1085, %v1474
  %v1645 = vmax.f32 %v1090, %v1479
  %v1646 = vmax.f32 %v1095, %v1484
  %v1647 = vmax.f32 %v1100, %v1489
  %v1648 = vmax.f32 %v1105, %v1494
  %v1649 = vmax.f32 %v1110, %v1499
  %v1650 = vmax.f32 %v1115, %v1504
  %v1651 = vmax.f32 %v1120, %v1509
  %v1652 = vmax.f32 %v1125, %v1514
  %v1653 = vmax.f32 %v1130, %v1519
  %v1654 = vmax.f32 %v1135, %v1524
  %v1655 = vmax.f32 %v1140, %v1529
  %v1656 = vmax.f32 %v1145, %v1534
  %v1657 = vmax.f32 %v1150, %v1539
  %v1658 = vmax.f32 %v1155, %v1544
  %v1659 = vmax.f32 %v1160, %v1549
  %v1660 = vmax.f32 %v1165, %v1554
  %v1661 = vmax.f32 %v1170, %v1559
  %v1662 = vmax.f32 %v1175, %v1564
  %v1663 = vmax.f32 %v1180, %v1569
  %v1664 = vmax.f32 %v1185, %v1574
  %v1665 = vmax.f32 %v1190, %v1579
  %v1666 = vmax.f32 %v1195, %v1584
  %v1667 = vmax.f32 %v1200, %v1589
  %v1668 = vmax.f32 %v1205, %v1594
  %v1669 = vmax.f32 %v1597, %v1633
  %v1670 = vmax.f32 %v1598, %v1634
  %v1671 = vmax.f32 %v1599, %v1635
  %v1672 = vmax.f32 %v1600, %v1636
  %v1673 = vmax.f32 %v1601, %v1637
  %v1674 = vmax.f32 %v1602, %v1638
  %v1675 = vmax.f32 %v1603, %v1639
  %v1676 = vmax.f32 %v1604, %v1640
  %v1677 = vmax.f32 %v1605, %v1641
  %v1678 = vmax.f32 %v1606, %v1642
  %v1679 = vmax.f32 %v1607, %v1643
  %v1680 = vmax.f32 %v1608, %v1644
  %v1681 = vmax.f32 %v1609, %v1645
  %v1682 = vmax.f32 %v1610, %v1646
  %v1683 = vmax.f32 %v1611, %v1647
  %v1684 = vmax.f32 %v1612, %v1648
  %v1685 = vmax.f32 %v1613, %v1649
  %v1686 = vmax.f32 %v1614, %v1650
  %v1687 = vmax.f32 %v1615, %v1651
  %v1688 = vmax.f32 %v1616, %v1652
  %v1689 = vmax.f32 %v1617, %v1653
  %v1690 = vmax.f32 %v1618, %v1654
  %v1691 = vmax.f32 %v1619, %v1655
  %v1692 = vmax.f32 %v1620, %v1656
  %v1693 = vmax.f32 %v1621, %v1657
  %v1694 = vmax.f32 %v1622, %v1658
  %v1695 = vmax.f32 %v1623, %v1659
  %v1696 = vmax.f32 %v1624, %v1660
  %v1697 = vmax.f32 %v1625, %v1661
  %v1698 = vmax.f32 %v1626, %v1662
  %v1699 = vmax.f32 %v1627, %v1663
  %v1700 = vmax.f32 %v1628, %v1664
  %v1701 = vmax.f32 %v1629, %v1665
  %v1702 = vmax.f32 %v1630, %v1666
  %v1703 = vmax.f32 %v1631, %v1667
  %v1704 = vmax.f32 %v1632, %v1668
  %v1705 = vld [vmem:[%s8] sm:$0x1]
  %v1707 = vlaneseq
  %v1708 = vshrl.u32 %v1707, 7
  %v1709 = vsub.s32 0, %v1708
  %v1710 = vrot.slane %v1705, %v1709
  %v1712 = vadd.f32 %v1669, %v1710
  %v1713 = vadd.f32 %v1670, %v1710
  %v1714 = vadd.f32 %v1671, %v1710
  %v1715 = vadd.f32 %v1672, %v1710
  %v1716 = vadd.f32 %v1673, %v1710
  %v1717 = vadd.f32 %v1674, %v1710
  %v1718 = vadd.f32 %v1675, %v1710
  %v1719 = vadd.f32 %v1676, %v1710
  %v1720 = vadd.f32 %v1677, %v1710
  %v1721 = vadd.f32 %v1678, %v1710
  %v1722 = vadd.f32 %v1679, %v1710
  %v1723 = vadd.f32 %v1680, %v1710
  %v1724 = vadd.f32 %v1681, %v1710
  %v1725 = vadd.f32 %v1682, %v1710
  %v1726 = vadd.f32 %v1683, %v1710
  %v1727 = vadd.f32 %v1684, %v1710
  %v1728 = vadd.f32 %v1685, %v1710
  %v1729 = vadd.f32 %v1686, %v1710
  %v1730 = vadd.f32 %v1687, %v1710
  %v1731 = vadd.f32 %v1688, %v1710
  %v1732 = vadd.f32 %v1689, %v1710
  %v1733 = vadd.f32 %v1690, %v1710
  %v1734 = vadd.f32 %v1691, %v1710
  %v1735 = vadd.f32 %v1692, %v1710
  %v1736 = vadd.f32 %v1693, %v1710
  %v1737 = vadd.f32 %v1694, %v1710
  %v1738 = vadd.f32 %v1695, %v1710
  %v1739 = vadd.f32 %v1696, %v1710
  %v1740 = vadd.f32 %v1697, %v1710
  %v1741 = vadd.f32 %v1698, %v1710
  %v1742 = vadd.f32 %v1699, %v1710
  %v1743 = vadd.f32 %v1700, %v1710
  %v1744 = vadd.f32 %v1701, %v1710
  %v1745 = vadd.f32 %v1702, %v1710
  %v1746 = vadd.f32 %v1703, %v1710
  %v1747 = vadd.f32 %v1704, %v1710
  %v1748 = vmax.f32 %v1712, 0.0
  %v1749 = vmax.f32 %v1713, 0.0
  %v1750 = vmax.f32 %v1714, 0.0
  %v1751 = vmax.f32 %v1715, 0.0
  %v1752 = vmax.f32 %v1716, 0.0
  %v1753 = vmax.f32 %v1717, 0.0
  %v1754 = vmax.f32 %v1718, 0.0
  %v1755 = vmax.f32 %v1719, 0.0
  %v1756 = vmax.f32 %v1720, 0.0
  %v1757 = vmax.f32 %v1721, 0.0
  %v1758 = vmax.f32 %v1722, 0.0
  %v1759 = vmax.f32 %v1723, 0.0
  %v1760 = vmax.f32 %v1724, 0.0
  %v1761 = vmax.f32 %v1725, 0.0
  %v1762 = vmax.f32 %v1726, 0.0
  %v1763 = vmax.f32 %v1727, 0.0
  %v1764 = vmax.f32 %v1728, 0.0
  %v1765 = vmax.f32 %v1729, 0.0
  %v1766 = vmax.f32 %v1730, 0.0
  %v1767 = vmax.f32 %v1731, 0.0
  %v1768 = vmax.f32 %v1732, 0.0
  %v1769 = vmax.f32 %v1733, 0.0
  %v1770 = vmax.f32 %v1734, 0.0
  %v1771 = vmax.f32 %v1735, 0.0
  %v1772 = vmax.f32 %v1736, 0.0
  %v1773 = vmax.f32 %v1737, 0.0
  %v1774 = vmax.f32 %v1738, 0.0
  %v1775 = vmax.f32 %v1739, 0.0
  %v1776 = vmax.f32 %v1740, 0.0
  %v1777 = vmax.f32 %v1741, 0.0
  %v1778 = vmax.f32 %v1742, 0.0
  %v1779 = vmax.f32 %v1743, 0.0
  %v1780 = vmax.f32 %v1744, 0.0
  %v1781 = vmax.f32 %v1745, 0.0
  %v1782 = vmax.f32 %v1746, 0.0
  %v1783 = vmax.f32 %v1747, 0.0
  %vm1784 = vcmask 162816
  %1785 = vst.msk [vmem:[#allocation2] sm:$0xff] %vm1784, %v1748
  %1786 = vst.msk [vmem:[#allocation2 + $0x8] sm:$0xff] %vm1784, %v1749
  %1787 = vst.msk [vmem:[#allocation2 + $0x10] sm:$0xff] %vm1784, %v1750
  %1788 = vst.msk [vmem:[#allocation2 + $0x18] sm:$0xff] %vm1784, %v1751
  %1789 = vst.msk [vmem:[#allocation2 + $0x20] sm:$0xff] %vm1784, %v1752
  %1790 = vst.msk [vmem:[#allocation2 + $0x28] sm:$0xff] %vm1784, %v1753
  %1791 = vst.msk [vmem:[#allocation2 + $0x30] sm:$0xff] %vm1784, %v1754
  %1792 = vst.msk [vmem:[#allocation2 + $0x38] sm:$0xff] %vm1784, %v1755
  %1793 = vst.msk [vmem:[#allocation2 + $0x40] sm:$0xff] %vm1784, %v1756
  %1794 = vst.msk [vmem:[#allocation2 + $0x48] sm:$0xff] %vm1784, %v1757
  %1795 = vst.msk [vmem:[#allocation2 + $0x50] sm:$0xff] %vm1784, %v1758
  %1796 = vst.msk [vmem:[#allocation2 + $0x58] sm:$0xff] %vm1784, %v1759
  %1797 = vst.msk [vmem:[#allocation2 + $0x60] sm:$0xff] %vm1784, %v1760
  %1798 = vst.msk [vmem:[#allocation2 + $0x68] sm:$0xff] %vm1784, %v1761
  %1799 = vst.msk [vmem:[#allocation2 + $0x70] sm:$0xff] %vm1784, %v1762
  %1800 = vst.msk [vmem:[#allocation2 + $0x78] sm:$0xff] %vm1784, %v1763
  %1801 = vst.msk [vmem:[#allocation2 + $0x80] sm:$0xff] %vm1784, %v1764
  %1802 = vst.msk [vmem:[#allocation2 + $0x88] sm:$0xff] %vm1784, %v1765
  %1803 = vst.msk [vmem:[#allocation2 + $0x90] sm:$0xff] %vm1784, %v1766
  %1804 = vst.msk [vmem:[#allocation2 + $0x98] sm:$0xff] %vm1784, %v1767
  %1805 = vst.msk [vmem:[#allocation2 + $0xa0] sm:$0xff] %vm1784, %v1768
  %1806 = vst.msk [vmem:[#allocation2 + $0xa8] sm:$0xff] %vm1784, %v1769
  %1807 = vst.msk [vmem:[#allocation2 + $0xb0] sm:$0xff] %vm1784, %v1770
  %1808 = vst.msk [vmem:[#allocation2 + $0xb8] sm:$0xff] %vm1784, %v1771
  %1809 = vst.msk [vmem:[#allocation2 + $0xc0] sm:$0xff] %vm1784, %v1772
  %1810 = vst.msk [vmem:[#allocation2 + $0xc8] sm:$0xff] %vm1784, %v1773
  %1811 = vst.msk [vmem:[#allocation2 + $0xd0] sm:$0xff] %vm1784, %v1774
  %1812 = vst.msk [vmem:[#allocation2 + $0xd8] sm:$0xff] %vm1784, %v1775
  %1813 = vst.msk [vmem:[#allocation2 + $0xe0] sm:$0xff] %vm1784, %v1776
  %1814 = vst.msk [vmem:[#allocation2 + $0xe8] sm:$0xff] %vm1784, %v1777
  %1815 = vst.msk [vmem:[#allocation2 + $0xf0] sm:$0xff] %vm1784, %v1778
  %1816 = vst.msk [vmem:[#allocation2 + $0xf8] sm:$0xff] %vm1784, %v1779
  %1817 = vst.msk [vmem:[#allocation2 + $0x100] sm:$0xff] %vm1784, %v1780
  %1818 = vst.msk [vmem:[#allocation2 + $0x108] sm:$0xff] %vm1784, %v1781
  %1819 = vst.msk [vmem:[#allocation2 + $0x110] sm:$0xff] %vm1784, %v1782
  %1820 = vst.msk [vmem:[#allocation2 + $0x118] sm:$0xff] %vm1784, %v1783
  %1821 = vst.msk [vmem:[#allocation2 + $0x120] sm:$0xff] %vm1784, 0.0
  %1822 = vst.msk [vmem:[#allocation2 + $0x128] sm:$0xff] %vm1784, 0.0
  %v1823 = vld [vmem:[#allocation2] sm:$0xff]
  %v1824 = vld [vmem:[#allocation2 + $0x8] sm:$0xff]
  %v1825 = vld [vmem:[#allocation2 + $0x10] sm:$0xff]
  %v1826 = vld [vmem:[#allocation2 + $0x18] sm:$0xff]
  %v1827 = vld [vmem:[#allocation2 + $0x20] sm:$0xff]
  %v1828 = vld [vmem:[#allocation2 + $0x28] sm:$0xff]
  %v1829 = vld [vmem:[#allocation2 + $0x30] sm:$0xff]
  %v1830 = vld [vmem:[#allocation2 + $0x38] sm:$0xff]
  %v1831 = vld [vmem:[#allocation2 + $0x40] sm:$0xff]
  %v1832 = vld [vmem:[#allocation2 + $0x48] sm:$0xff]
  %v1833 = vld [vmem:[#allocation2 + $0x50] sm:$0xff]
  %v1834 = vld [vmem:[#allocation2 + $0x58] sm:$0xff]
  %v1835 = vld [vmem:[#allocation2 + $0x60] sm:$0xff]
  %v1836 = vld [vmem:[#allocation2 + $0x68] sm:$0xff]
  %v1837 = vld [vmem:[#allocation2 + $0x70] sm:$0xff]
  %v1838 = vld [vmem:[#allocation2 + $0x78] sm:$0xff]
  %v1839 = vld [vmem:[#allocation2 + $0x80] sm:$0xff]
  %v1840 = vld [vmem:[#allocation2 + $0x88] sm:$0xff]
  %v1841 = vld [vmem:[#allocation2 + $0x90] sm:$0xff]
  %v1842 = vld [vmem:[#allocation2 + $0x98] sm:$0xff]
  %v1843 = vld [vmem:[#allocation2 + $0xa0] sm:$0xff]
  %v1844 = vld [vmem:[#allocation2 + $0xa8] sm:$0xff]
  %v1845 = vld [vmem:[#allocation2 + $0xb0] sm:$0xff]
  %v1846 = vld [vmem:[#allocation2 + $0xb8] sm:$0xff]
  %1847 = vst.msk [vmem:[#allocation3] sm:$0xff] %vm1784, %v1823
  %1848 = vst.msk [vmem:[#allocation3 + $0x20] sm:$0xff] %vm1784, %v1824
  %1849 = vst.msk [vmem:[#allocation3 + $0x40] sm:$0xff] %vm1784, %v1825
  %1850 = vst.msk [vmem:[#allocation3 + $0x60] sm:$0xff] %vm1784, %v1826
  %1851 = vst.msk [vmem:[#allocation3 + $0x80] sm:$0xff] %vm1784, %v1827
  %1852 = vst.msk [vmem:[#allocation3 + $0xa0] sm:$0xff] %vm1784, %v1828
  %1853 = vst.msk [vmem:[#allocation3 + $0xc0] sm:$0xff] %vm1784, %v1829
  %1854 = vst.msk [vmem:[#allocation3 + $0xe0] sm:$0xff] %vm1784, %v1830
  %1855 = vst.msk [vmem:[#allocation3 + $0x100] sm:$0xff] %vm1784, %v1831
  %1856 = vst.msk [vmem:[#allocation3 + $0x120] sm:$0xff] %vm1784, %v1832
  %1857 = vst.msk [vmem:[#allocation3 + $0x140] sm:$0xff] %vm1784, %v1833
  %1858 = vst.msk [vmem:[#allocation3 + $0x160] sm:$0xff] %vm1784, %v1834
  %1859 = vst.msk [vmem:[#allocation3 + $0x180] sm:$0xff] %vm1784, %v1835
  %1860 = vst.msk [vmem:[#allocation3 + $0x1a0] sm:$0xff] %vm1784, %v1836
  %1861 = vst.msk [vmem:[#allocation3 + $0x1c0] sm:$0xff] %vm1784, %v1837
  %1862 = vst.msk [vmem:[#allocation3 + $0x1e0] sm:$0xff] %vm1784, %v1838
  %1863 = vst.msk [vmem:[#allocation3 + $0x200] sm:$0xff] %vm1784, %v1839
  %1864 = vst.msk [vmem:[#allocation3 + $0x220] sm:$0xff] %vm1784, %v1840
  %1865 = vst.msk [vmem:[#allocation3 + $0x240] sm:$0xff] %vm1784, %v1841
  %1866 = vst.msk [vmem:[#allocation3 + $0x260] sm:$0xff] %vm1784, %v1842
  %1867 = vst.msk [vmem:[#allocation3 + $0x280] sm:$0xff] %vm1784, %v1843
  %1868 = vst.msk [vmem:[#allocation3 + $0x2a0] sm:$0xff] %vm1784, %v1844
  %1869 = vst.msk [vmem:[#allocation3 + $0x2c0] sm:$0xff] %vm1784, %v1845
  %1870 = vst.msk [vmem:[#allocation3 + $0x2e0] sm:$0xff] %vm1784, %v1846
  %v1871 = vld [vmem:[#allocation2 + $0x2] sm:$0xff]
  %v1872 = vld [vmem:[#allocation2 + $0xa] sm:$0xff]
  %v1873 = vld [vmem:[#allocation2 + $0x12] sm:$0xff]
  %v1874 = vld [vmem:[#allocation2 + $0x1a] sm:$0xff]
  %v1875 = vld [vmem:[#allocation2 + $0x22] sm:$0xff]
  %v1876 = vld [vmem:[#allocation2 + $0x2a] sm:$0xff]
  %v1877 = vld [vmem:[#allocation2 + $0x32] sm:$0xff]
  %v1878 = vld [vmem:[#allocation2 + $0x3a] sm:$0xff]
  %v1879 = vld [vmem:[#allocation2 + $0x42] sm:$0xff]
  %v1880 = vld [vmem:[#allocation2 + $0x4a] sm:$0xff]
  %v1881 = vld [vmem:[#allocation2 + $0x52] sm:$0xff]
  %v1882 = vld [vmem:[#allocation2 + $0x5a] sm:$0xff]
  %v1883 = vld [vmem:[#allocation2 + $0x62] sm:$0xff]
  %v1884 = vld [vmem:[#allocation2 + $0x6a] sm:$0xff]
  %v1885 = vld [vmem:[#allocation2 + $0x72] sm:$0xff]
  %v1886 = vld [vmem:[#allocation2 + $0x7a] sm:$0xff]
  %v1887 = vld [vmem:[#allocation2 + $0x82] sm:$0xff]
  %v1888 = vld [vmem:[#allocation2 + $0x8a] sm:$0xff]
  %v1889 = vld [vmem:[#allocation2 + $0x92] sm:$0xff]
  %v1890 = vld [vmem:[#allocation2 + $0x9a] sm:$0xff]
  %v1891 = vld [vmem:[#allocation2 + $0xa2] sm:$0xff]
  %v1892 = vld [vmem:[#allocation2 + $0xaa] sm:$0xff]
  %v1893 = vld [vmem:[#allocation2 + $0xb2] sm:$0xff]
  %v1894 = vld [vmem:[#allocation2 + $0xba] sm:$0xff]
  %1919 = vrot.lane.b32.xlu0 %v1871, 20
  %v1920 = vpop.permute.xlu0 %1919
  %1921 = vrot.lane.b32.xlu0 %v1872, 20
  %v1922 = vpop.permute.xlu0 %1921
  %1923 = vrot.lane.b32.xlu0 %v1873, 20
  %v1924 = vpop.permute.xlu0 %1923
  %1925 = vrot.lane.b32.xlu0 %v1874, 20
  %v1926 = vpop.permute.xlu0 %1925
  %1927 = vrot.lane.b32.xlu0 %v1875, 20
  %v1928 = vpop.permute.xlu0 %1927
  %1929 = vrot.lane.b32.xlu0 %v1876, 20
  %v1930 = vpop.permute.xlu0 %1929
  %1931 = vrot.lane.b32.xlu0 %v1877, 20
  %v1932 = vpop.permute.xlu0 %1931
  %1933 = vrot.lane.b32.xlu0 %v1878, 20
  %v1934 = vpop.permute.xlu0 %1933
  %1935 = vrot.lane.b32.xlu0 %v1879, 20
  %v1936 = vpop.permute.xlu0 %1935
  %1937 = vrot.lane.b32.xlu0 %v1880, 20
  %v1938 = vpop.permute.xlu0 %1937
  %1939 = vrot.lane.b32.xlu0 %v1881, 20
  %v1940 = vpop.permute.xlu0 %1939
  %1941 = vrot.lane.b32.xlu0 %v1882, 20
  %v1942 = vpop.permute.xlu0 %1941
  %1943 = vrot.lane.b32.xlu0 %v1883, 20
  %v1944 = vpop.permute.xlu0 %1943
  %1945 = vrot.lane.b32.xlu0 %v1884, 20
  %v1946 = vpop.permute.xlu0 %1945
  %1947 = vrot.lane.b32.xlu0 %v1885, 20
  %v1948 = vpop.permute.xlu0 %1947
  %1949 = vrot.lane.b32.xlu0 %v1886, 20
  %v1950 = vpop.permute.xlu0 %1949
  %1951 = vrot.lane.b32.xlu0 %v1887, 20
  %v1952 = vpop.permute.xlu0 %1951
  %1953 = vrot.lane.b32.xlu0 %v1888, 20
  %v1954 = vpop.permute.xlu0 %1953
  %1955 = vrot.lane.b32.xlu0 %v1889, 20
  %v1956 = vpop.permute.xlu0 %1955
  %1957 = vrot.lane.b32.xlu0 %v1890, 20
  %v1958 = vpop.permute.xlu0 %1957
  %1959 = vrot.lane.b32.xlu0 %v1891, 20
  %v1960 = vpop.permute.xlu0 %1959
  %1961 = vrot.lane.b32.xlu0 %v1892, 20
  %v1962 = vpop.permute.xlu0 %1961
  %1963 = vrot.lane.b32.xlu0 %v1893, 20
  %v1964 = vpop.permute.xlu0 %1963
  %1965 = vrot.lane.b32.xlu0 %v1894, 20
  %v1966 = vpop.permute.xlu0 %1965
  %vm1991 = vcmask 326816
  %1992 = vst.msk [vmem:[#allocation3] sm:$0xff] %vm1991, %v1920
  %1993 = vst.msk [vmem:[#allocation3 + $0x20] sm:$0xff] %vm1991, %v1922
  %1994 = vst.msk [vmem:[#allocation3 + $0x40] sm:$0xff] %vm1991, %v1924
  %1995 = vst.msk [vmem:[#allocation3 + $0x60] sm:$0xff] %vm1991, %v1926
  %1996 = vst.msk [vmem:[#allocation3 + $0x80] sm:$0xff] %vm1991, %v1928
  %1997 = vst.msk [vmem:[#allocation3 + $0xa0] sm:$0xff] %vm1991, %v1930
  %1998 = vst.msk [vmem:[#allocation3 + $0xc0] sm:$0xff] %vm1991, %v1932
  %1999 = vst.msk [vmem:[#allocation3 + $0xe0] sm:$0xff] %vm1991, %v1934
  %2000 = vst.msk [vmem:[#allocation3 + $0x100] sm:$0xff] %vm1991, %v1936
  %2001 = vst.msk [vmem:[#allocation3 + $0x120] sm:$0xff] %vm1991, %v1938
  %2002 = vst.msk [vmem:[#allocation3 + $0x140] sm:$0xff] %vm1991, %v1940
  %2003 = vst.msk [vmem:[#allocation3 + $0x160] sm:$0xff] %vm1991, %v1942
  %2004 = vst.msk [vmem:[#allocation3 + $0x180] sm:$0xff] %vm1991, %v1944
  %2005 = vst.msk [vmem:[#allocation3 + $0x1a0] sm:$0xff] %vm1991, %v1946
  %2006 = vst.msk [vmem:[#allocation3 + $0x1c0] sm:$0xff] %vm1991, %v1948
  %2007 = vst.msk [vmem:[#allocation3 + $0x1e0] sm:$0xff] %vm1991, %v1950
  %2008 = vst.msk [vmem:[#allocation3 + $0x200] sm:$0xff] %vm1991, %v1952
  %2009 = vst.msk [vmem:[#allocation3 + $0x220] sm:$0xff] %vm1991, %v1954
  %2010 = vst.msk [vmem:[#allocation3 + $0x240] sm:$0xff] %vm1991, %v1956
  %2011 = vst.msk [vmem:[#allocation3 + $0x260] sm:$0xff] %vm1991, %v1958
  %2012 = vst.msk [vmem:[#allocation3 + $0x280] sm:$0xff] %vm1991, %v1960
  %2013 = vst.msk [vmem:[#allocation3 + $0x2a0] sm:$0xff] %vm1991, %v1962
  %2014 = vst.msk [vmem:[#allocation3 + $0x2c0] sm:$0xff] %vm1991, %v1964
  %2015 = vst.msk [vmem:[#allocation3 + $0x2e0] sm:$0xff] %vm1991, %v1966
  %v2016 = vld [vmem:[#allocation2 + $0x4] sm:$0xff]
  %v2017 = vld [vmem:[#allocation2 + $0xc] sm:$0xff]
  %v2018 = vld [vmem:[#allocation2 + $0x14] sm:$0xff]
  %v2019 = vld [vmem:[#allocation2 + $0x1c] sm:$0xff]
  %v2020 = vld [vmem:[#allocation2 + $0x24] sm:$0xff]
  %v2021 = vld [vmem:[#allocation2 + $0x2c] sm:$0xff]
  %v2022 = vld [vmem:[#allocation2 + $0x34] sm:$0xff]
  %v2023 = vld [vmem:[#allocation2 + $0x3c] sm:$0xff]
  %v2024 = vld [vmem:[#allocation2 + $0x44] sm:$0xff]
  %v2025 = vld [vmem:[#allocation2 + $0x4c] sm:$0xff]
  %v2026 = vld [vmem:[#allocation2 + $0x54] sm:$0xff]
  %v2027 = vld [vmem:[#allocation2 + $0x5c] sm:$0xff]
  %v2028 = vld [vmem:[#allocation2 + $0x64] sm:$0xff]
  %v2029 = vld [vmem:[#allocation2 + $0x6c] sm:$0xff]
  %v2030 = vld [vmem:[#allocation2 + $0x74] sm:$0xff]
  %v2031 = vld [vmem:[#allocation2 + $0x7c] sm:$0xff]
  %v2032 = vld [vmem:[#allocation2 + $0x84] sm:$0xff]
  %v2033 = vld [vmem:[#allocation2 + $0x8c] sm:$0xff]
  %v2034 = vld [vmem:[#allocation2 + $0x94] sm:$0xff]
  %v2035 = vld [vmem:[#allocation2 + $0x9c] sm:$0xff]
  %v2036 = vld [vmem:[#allocation2 + $0xa4] sm:$0xff]
  %v2037 = vld [vmem:[#allocation2 + $0xac] sm:$0xff]
  %v2038 = vld [vmem:[#allocation2 + $0xb4] sm:$0xff]
  %v2039 = vld [vmem:[#allocation2 + $0xbc] sm:$0xff]
  %2064 = vrot.lane.b32.xlu0 %v2016, 40
  %v2065 = vpop.permute.xlu0 %2064
  %2066 = vrot.lane.b32.xlu0 %v2017, 40
  %v2067 = vpop.permute.xlu0 %2066
  %2068 = vrot.lane.b32.xlu0 %v2018, 40
  %v2069 = vpop.permute.xlu0 %2068
  %2070 = vrot.lane.b32.xlu0 %v2019, 40
  %v2071 = vpop.permute.xlu0 %2070
  %2072 = vrot.lane.b32.xlu0 %v2020, 40
  %v2073 = vpop.permute.xlu0 %2072
  %2074 = vrot.lane.b32.xlu0 %v2021, 40
  %v2075 = vpop.permute.xlu0 %2074
  %2076 = vrot.lane.b32.xlu0 %v2022, 40
  %v2077 = vpop.permute.xlu0 %2076
  %2078 = vrot.lane.b32.xlu0 %v2023, 40
  %v2079 = vpop.permute.xlu0 %2078
  %2080 = vrot.lane.b32.xlu0 %v2024, 40
  %v2081 = vpop.permute.xlu0 %2080
  %2082 = vrot.lane.b32.xlu0 %v2025, 40
  %v2083 = vpop.permute.xlu0 %2082
  %2084 = vrot.lane.b32.xlu0 %v2026, 40
  %v2085 = vpop.permute.xlu0 %2084
  %2086 = vrot.lane.b32.xlu0 %v2027, 40
  %v2087 = vpop.permute.xlu0 %2086
  %2088 = vrot.lane.b32.xlu0 %v2028, 40
  %v2089 = vpop.permute.xlu0 %2088
  %2090 = vrot.lane.b32.xlu0 %v2029, 40
  %v2091 = vpop.permute.xlu0 %2090
  %2092 = vrot.lane.b32.xlu0 %v2030, 40
  %v2093 = vpop.permute.xlu0 %2092
  %2094 = vrot.lane.b32.xlu0 %v2031, 40
  %v2095 = vpop.permute.xlu0 %2094
  %2096 = vrot.lane.b32.xlu0 %v2032, 40
  %v2097 = vpop.permute.xlu0 %2096
  %2098 = vrot.lane.b32.xlu0 %v2033, 40
  %v2099 = vpop.permute.xlu0 %2098
  %2100 = vrot.lane.b32.xlu0 %v2034, 40
  %v2101 = vpop.permute.xlu0 %2100
  %2102 = vrot.lane.b32.xlu0 %v2035, 40
  %v2103 = vpop.permute.xlu0 %2102
  %2104 = vrot.lane.b32.xlu0 %v2036, 40
  %v2105 = vpop.permute.xlu0 %2104
  %2106 = vrot.lane.b32.xlu0 %v2037, 40
  %v2107 = vpop.permute.xlu0 %2106
  %2108 = vrot.lane.b32.xlu0 %v2038, 40
  %v2109 = vpop.permute.xlu0 %2108
  %2110 = vrot.lane.b32.xlu0 %v2039, 40
  %v2111 = vpop.permute.xlu0 %2110
  %vm2136 = vcmask 490816
  %2137 = vst.msk [vmem:[#allocation3] sm:$0xff] %vm2136, %v2065
  %2138 = vst.msk [vmem:[#allocation3 + $0x20] sm:$0xff] %vm2136, %v2067
  %2139 = vst.msk [vmem:[#allocation3 + $0x40] sm:$0xff] %vm2136, %v2069
  %2140 = vst.msk [vmem:[#allocation3 + $0x60] sm:$0xff] %vm2136, %v2071
  %2141 = vst.msk [vmem:[#allocation3 + $0x80] sm:$0xff] %vm2136, %v2073
  %2142 = vst.msk [vmem:[#allocation3 + $0xa0] sm:$0xff] %vm2136, %v2075
  %2143 = vst.msk [vmem:[#allocation3 + $0xc0] sm:$0xff] %vm2136, %v2077
  %2144 = vst.msk [vmem:[#allocation3 + $0xe0] sm:$0xff] %vm2136, %v2079
  %2145 = vst.msk [vmem:[#allocation3 + $0x100] sm:$0xff] %vm2136, %v2081
  %2146 = vst.msk [vmem:[#allocation3 + $0x120] sm:$0xff] %vm2136, %v2083
  %2147 = vst.msk [vmem:[#allocation3 + $0x140] sm:$0xff] %vm2136, %v2085
  %2148 = vst.msk [vmem:[#allocation3 + $0x160] sm:$0xff] %vm2136, %v2087
  %2149 = vst.msk [vmem:[#allocation3 + $0x180] sm:$0xff] %vm2136, %v2089
  %2150 = vst.msk [vmem:[#allocation3 + $0x1a0] sm:$0xff] %vm2136, %v2091
  %2151 = vst.msk [vmem:[#allocation3 + $0x1c0] sm:$0xff] %vm2136, %v2093
  %2152 = vst.msk [vmem:[#allocation3 + $0x1e0] sm:$0xff] %vm2136, %v2095
  %2153 = vst.msk [vmem:[#allocation3 + $0x200] sm:$0xff] %vm2136, %v2097
  %2154 = vst.msk [vmem:[#allocation3 + $0x220] sm:$0xff] %vm2136, %v2099
  %2155 = vst.msk [vmem:[#allocation3 + $0x240] sm:$0xff] %vm2136, %v2101
  %2156 = vst.msk [vmem:[#allocation3 + $0x260] sm:$0xff] %vm2136, %v2103
  %2157 = vst.msk [vmem:[#allocation3 + $0x280] sm:$0xff] %vm2136, %v2105
  %2158 = vst.msk [vmem:[#allocation3 + $0x2a0] sm:$0xff] %vm2136, %v2107
  %2159 = vst.msk [vmem:[#allocation3 + $0x2c0] sm:$0xff] %vm2136, %v2109
  %2160 = vst.msk [vmem:[#allocation3 + $0x2e0] sm:$0xff] %vm2136, %v2111
  %v2161 = vld [vmem:[#allocation2 + $0x6] sm:$0xff]
  %v2162 = vld [vmem:[#allocation2 + $0xe] sm:$0xff]
  %v2163 = vld [vmem:[#allocation2 + $0x16] sm:$0xff]
  %v2164 = vld [vmem:[#allocation2 + $0x1e] sm:$0xff]
  %v2165 = vld [vmem:[#allocation2 + $0x26] sm:$0xff]
  %v2166 = vld [vmem:[#allocation2 + $0x2e] sm:$0xff]
  %v2167 = vld [vmem:[#allocation2 + $0x36] sm:$0xff]
  %v2168 = vld [vmem:[#allocation2 + $0x3e] sm:$0xff]
  %v2169 = vld [vmem:[#allocation2 + $0x46] sm:$0xff]
  %v2170 = vld [vmem:[#allocation2 + $0x4e] sm:$0xff]
  %v2171 = vld [vmem:[#allocation2 + $0x56] sm:$0xff]
  %v2172 = vld [vmem:[#allocation2 + $0x5e] sm:$0xff]
  %v2173 = vld [vmem:[#allocation2 + $0x66] sm:$0xff]
  %v2174 = vld [vmem:[#allocation2 + $0x6e] sm:$0xff]
  %v2175 = vld [vmem:[#allocation2 + $0x76] sm:$0xff]
  %v2176 = vld [vmem:[#allocation2 + $0x7e] sm:$0xff]
  %v2177 = vld [vmem:[#allocation2 + $0x86] sm:$0xff]
  %v2178 = vld [vmem:[#allocation2 + $0x8e] sm:$0xff]
  %v2179 = vld [vmem:[#allocation2 + $0x96] sm:$0xff]
  %v2180 = vld [vmem:[#allocation2 + $0x9e] sm:$0xff]
  %v2181 = vld [vmem:[#allocation2 + $0xa6] sm:$0xff]
  %v2182 = vld [vmem:[#allocation2 + $0xae] sm:$0xff]
  %v2183 = vld [vmem:[#allocation2 + $0xb6] sm:$0xff]
  %v2184 = vld [vmem:[#allocation2 + $0xbe] sm:$0xff]
  %2209 = vrot.lane.b32.xlu0 %v2161, 60
  %v2210 = vpop.permute.xlu0 %2209
  %2211 = vrot.lane.b32.xlu0 %v2162, 60
  %v2212 = vpop.permute.xlu0 %2211
  %2213 = vrot.lane.b32.xlu0 %v2163, 60
  %v2214 = vpop.permute.xlu0 %2213
  %2215 = vrot.lane.b32.xlu0 %v2164, 60
  %v2216 = vpop.permute.xlu0 %2215
  %2217 = vrot.lane.b32.xlu0 %v2165, 60
  %v2218 = vpop.permute.xlu0 %2217
  %2219 = vrot.lane.b32.xlu0 %v2166, 60
  %v2220 = vpop.permute.xlu0 %2219
  %2221 = vrot.lane.b32.xlu0 %v2167, 60
  %v2222 = vpop.permute.xlu0 %2221
  %2223 = vrot.lane.b32.xlu0 %v2168, 60
  %v2224 = vpop.permute.xlu0 %2223
  %2225 = vrot.lane.b32.xlu0 %v2169, 60
  %v2226 = vpop.permute.xlu0 %2225
  %2227 = vrot.lane.b32.xlu0 %v2170, 60
  %v2228 = vpop.permute.xlu0 %2227
  %2229 = vrot.lane.b32.xlu0 %v2171, 60
  %v2230 = vpop.permute.xlu0 %2229
  %2231 = vrot.lane.b32.xlu0 %v2172, 60
  %v2232 = vpop.permute.xlu0 %2231
  %2233 = vrot.lane.b32.xlu0 %v2173, 60
  %v2234 = vpop.permute.xlu0 %2233
  %2235 = vrot.lane.b32.xlu0 %v2174, 60
  %v2236 = vpop.permute.xlu0 %2235
  %2237 = vrot.lane.b32.xlu0 %v2175, 60
  %v2238 = vpop.permute.xlu0 %2237
  %2239 = vrot.lane.b32.xlu0 %v2176, 60
  %v2240 = vpop.permute.xlu0 %2239
  %2241 = vrot.lane.b32.xlu0 %v2177, 60
  %v2242 = vpop.permute.xlu0 %2241
  %2243 = vrot.lane.b32.xlu0 %v2178, 60
  %v2244 = vpop.permute.xlu0 %2243
  %2245 = vrot.lane.b32.xlu0 %v2179, 60
  %v2246 = vpop.permute.xlu0 %2245
  %2247 = vrot.lane.b32.xlu0 %v2180, 60
  %v2248 = vpop.permute.xlu0 %2247
  %2249 = vrot.lane.b32.xlu0 %v2181, 60
  %v2250 = vpop.permute.xlu0 %2249
  %2251 = vrot.lane.b32.xlu0 %v2182, 60
  %v2252 = vpop.permute.xlu0 %2251
  %2253 = vrot.lane.b32.xlu0 %v2183, 60
  %v2254 = vpop.permute.xlu0 %2253
  %2255 = vrot.lane.b32.xlu0 %v2184, 60
  %v2256 = vpop.permute.xlu0 %2255
  %vm2281 = vcmask 654816
  %2282 = vst.msk [vmem:[#allocation3] sm:$0xff] %vm2281, %v2210
  %2283 = vst.msk [vmem:[#allocation3 + $0x20] sm:$0xff] %vm2281, %v2212
  %2284 = vst.msk [vmem:[#allocation3 + $0x40] sm:$0xff] %vm2281, %v2214
  %2285 = vst.msk [vmem:[#allocation3 + $0x60] sm:$0xff] %vm2281, %v2216
  %2286 = vst.msk [vmem:[#allocation3 + $0x80] sm:$0xff] %vm2281, %v2218
  %2287 = vst.msk [vmem:[#allocation3 + $0xa0] sm:$0xff] %vm2281, %v2220
  %2288 = vst.msk [vmem:[#allocation3 + $0xc0] sm:$0xff] %vm2281, %v2222
  %2289 = vst.msk [vmem:[#allocation3 + $0xe0] sm:$0xff] %vm2281, %v2224
  %2290 = vst.msk [vmem:[#allocation3 + $0x100] sm:$0xff] %vm2281, %v2226
  %2291 = vst.msk [vmem:[#allocation3 + $0x120] sm:$0xff] %vm2281, %v2228
  %2292 = vst.msk [vmem:[#allocation3 + $0x140] sm:$0xff] %vm2281, %v2230
  %2293 = vst.msk [vmem:[#allocation3 + $0x160] sm:$0xff] %vm2281, %v2232
  %2294 = vst.msk [vmem:[#allocation3 + $0x180] sm:$0xff] %vm2281, %v2234
  %2295 = vst.msk [vmem:[#allocation3 + $0x1a0] sm:$0xff] %vm2281, %v2236
  %2296 = vst.msk [vmem:[#allocation3 + $0x1c0] sm:$0xff] %vm2281, %v2238
  %2297 = vst.msk [vmem:[#allocation3 + $0x1e0] sm:$0xff] %vm2281, %v2240
  %2298 = vst.msk [vmem:[#allocation3 + $0x200] sm:$0xff] %vm2281, %v2242
  %2299 = vst.msk [vmem:[#allocation3 + $0x220] sm:$0xff] %vm2281, %v2244
  %2300 = vst.msk [vmem:[#allocation3 + $0x240] sm:$0xff] %vm2281, %v2246
  %2301 = vst.msk [vmem:[#allocation3 + $0x260] sm:$0xff] %vm2281, %v2248
  %2302 = vst.msk [vmem:[#allocation3 + $0x280] sm:$0xff] %vm2281, %v2250
  %2303 = vst.msk [vmem:[#allocation3 + $0x2a0] sm:$0xff] %vm2281, %v2252
  %2304 = vst.msk [vmem:[#allocation3 + $0x2c0] sm:$0xff] %vm2281, %v2254
  %2305 = vst.msk [vmem:[#allocation3 + $0x2e0] sm:$0xff] %vm2281, %v2256
  %v2306 = vld [vmem:[#allocation2 + $0x8] sm:$0xff]
  %v2307 = vld [vmem:[#allocation2 + $0x10] sm:$0xff]
  %v2308 = vld [vmem:[#allocation2 + $0x18] sm:$0xff]
  %v2309 = vld [vmem:[#allocation2 + $0x20] sm:$0xff]
  %v2310 = vld [vmem:[#allocation2 + $0x28] sm:$0xff]
  %v2311 = vld [vmem:[#allocation2 + $0x30] sm:$0xff]
  %v2312 = vld [vmem:[#allocation2 + $0x38] sm:$0xff]
  %v2313 = vld [vmem:[#allocation2 + $0x40] sm:$0xff]
  %v2314 = vld [vmem:[#allocation2 + $0x48] sm:$0xff]
  %v2315 = vld [vmem:[#allocation2 + $0x50] sm:$0xff]
  %v2316 = vld [vmem:[#allocation2 + $0x58] sm:$0xff]
  %v2317 = vld [vmem:[#allocation2 + $0x60] sm:$0xff]
  %v2318 = vld [vmem:[#allocation2 + $0x68] sm:$0xff]
  %v2319 = vld [vmem:[#allocation2 + $0x70] sm:$0xff]
  %v2320 = vld [vmem:[#allocation2 + $0x78] sm:$0xff]
  %v2321 = vld [vmem:[#allocation2 + $0x80] sm:$0xff]
  %v2322 = vld [vmem:[#allocation2 + $0x88] sm:$0xff]
  %v2323 = vld [vmem:[#allocation2 + $0x90] sm:$0xff]
  %v2324 = vld [vmem:[#allocation2 + $0x98] sm:$0xff]
  %v2325 = vld [vmem:[#allocation2 + $0xa0] sm:$0xff]
  %v2326 = vld [vmem:[#allocation2 + $0xa8] sm:$0xff]
  %v2327 = vld [vmem:[#allocation2 + $0xb0] sm:$0xff]
  %v2328 = vld [vmem:[#allocation2 + $0xb8] sm:$0xff]
  %v2329 = vld [vmem:[#allocation2 + $0xc0] sm:$0xff]
  %2354 = vrot.lane.b32.xlu0 %v2306, 80
  %v2355 = vpop.permute.xlu0 %2354
  %2356 = vrot.lane.b32.xlu0 %v2307, 80
  %v2357 = vpop.permute.xlu0 %2356
  %2358 = vrot.lane.b32.xlu0 %v2308, 80
  %v2359 = vpop.permute.xlu0 %2358
  %2360 = vrot.lane.b32.xlu0 %v2309, 80
  %v2361 = vpop.permute.xlu0 %2360
  %2362 = vrot.lane.b32.xlu0 %v2310, 80
  %v2363 = vpop.permute.xlu0 %2362
  %2364 = vrot.lane.b32.xlu0 %v2311, 80
  %v2365 = vpop.permute.xlu0 %2364
  %2366 = vrot.lane.b32.xlu0 %v2312, 80
  %v2367 = vpop.permute.xlu0 %2366
  %2368 = vrot.lane.b32.xlu0 %v2313, 80
  %v2369 = vpop.permute.xlu0 %2368
  %2370 = vrot.lane.b32.xlu0 %v2314, 80
  %v2371 = vpop.permute.xlu0 %2370
  %2372 = vrot.lane.b32.xlu0 %v2315, 80
  %v2373 = vpop.permute.xlu0 %2372
  %2374 = vrot.lane.b32.xlu0 %v2316, 80
  %v2375 = vpop.permute.xlu0 %2374
  %2376 = vrot.lane.b32.xlu0 %v2317, 80
  %v2377 = vpop.permute.xlu0 %2376
  %2378 = vrot.lane.b32.xlu0 %v2318, 80
  %v2379 = vpop.permute.xlu0 %2378
  %2380 = vrot.lane.b32.xlu0 %v2319, 80
  %v2381 = vpop.permute.xlu0 %2380
  %2382 = vrot.lane.b32.xlu0 %v2320, 80
  %v2383 = vpop.permute.xlu0 %2382
  %2384 = vrot.lane.b32.xlu0 %v2321, 80
  %v2385 = vpop.permute.xlu0 %2384
  %2386 = vrot.lane.b32.xlu0 %v2322, 80
  %v2387 = vpop.permute.xlu0 %2386
  %2388 = vrot.lane.b32.xlu0 %v2323, 80
  %v2389 = vpop.permute.xlu0 %2388
  %2390 = vrot.lane.b32.xlu0 %v2324, 80
  %v2391 = vpop.permute.xlu0 %2390
  %2392 = vrot.lane.b32.xlu0 %v2325, 80
  %v2393 = vpop.permute.xlu0 %2392
  %2394 = vrot.lane.b32.xlu0 %v2326, 80
  %v2395 = vpop.permute.xlu0 %2394
  %2396 = vrot.lane.b32.xlu0 %v2327, 80
  %v2397 = vpop.permute.xlu0 %2396
  %2398 = vrot.lane.b32.xlu0 %v2328, 80
  %v2399 = vpop.permute.xlu0 %2398
  %2400 = vrot.lane.b32.xlu0 %v2329, 80
  %v2401 = vpop.permute.xlu0 %2400
  %vm2426 = vcmask 818816
  %2427 = vst.msk [vmem:[#allocation3] sm:$0xff] %vm2426, %v2355
  %2428 = vst.msk [vmem:[#allocation3 + $0x20] sm:$0xff] %vm2426, %v2357
  %2429 = vst.msk [vmem:[#allocation3 + $0x40] sm:$0xff] %vm2426, %v2359
  %2430 = vst.msk [vmem:[#allocation3 + $0x60] sm:$0xff] %vm2426, %v2361
  %2431 = vst.msk [vmem:[#allocation3 + $0x80] sm:$0xff] %vm2426, %v2363
  %2432 = vst.msk [vmem:[#allocation3 + $0xa0] sm:$0xff] %vm2426, %v2365
  %2433 = vst.msk [vmem:[#allocation3 + $0xc0] sm:$0xff] %vm2426, %v2367
  %2434 = vst.msk [vmem:[#allocation3 + $0xe0] sm:$0xff] %vm2426, %v2369
  %2435 = vst.msk [vmem:[#allocation3 + $0x100] sm:$0xff] %vm2426, %v2371
  %2436 = vst.msk [vmem:[#allocation3 + $0x120] sm:$0xff] %vm2426, %v2373
  %2437 = vst.msk [vmem:[#allocation3 + $0x140] sm:$0xff] %vm2426, %v2375
  %2438 = vst.msk [vmem:[#allocation3 + $0x160] sm:$0xff] %vm2426, %v2377
  %2439 = vst.msk [vmem:[#allocation3 + $0x180] sm:$0xff] %vm2426, %v2379
  %2440 = vst.msk [vmem:[#allocation3 + $0x1a0] sm:$0xff] %vm2426, %v2381
  %2441 = vst.msk [vmem:[#allocation3 + $0x1c0] sm:$0xff] %vm2426, %v2383
  %2442 = vst.msk [vmem:[#allocation3 + $0x1e0] sm:$0xff] %vm2426, %v2385
  %2443 = vst.msk [vmem:[#allocation3 + $0x200] sm:$0xff] %vm2426, %v2387
  %2444 = vst.msk [vmem:[#allocation3 + $0x220] sm:$0xff] %vm2426, %v2389
  %2445 = vst.msk [vmem:[#allocation3 + $0x240] sm:$0xff] %vm2426, %v2391
  %2446 = vst.msk [vmem:[#allocation3 + $0x260] sm:$0xff] %vm2426, %v2393
  %2447 = vst.msk [vmem:[#allocation3 + $0x280] sm:$0xff] %vm2426, %v2395
  %2448 = vst.msk [vmem:[#allocation3 + $0x2a0] sm:$0xff] %vm2426, %v2397
  %2449 = vst.msk [vmem:[#allocation3 + $0x2c0] sm:$0xff] %vm2426, %v2399
  %2450 = vst.msk [vmem:[#allocation3 + $0x2e0] sm:$0xff] %vm2426, %v2401
  %v2451 = vld [vmem:[#allocation2 + $0x18] sm:$0xff]
  %v2452 = vld [vmem:[#allocation2 + $0x20] sm:$0xff]
  %v2453 = vld [vmem:[#allocation2 + $0x28] sm:$0xff]
  %v2454 = vld [vmem:[#allocation2 + $0x30] sm:$0xff]
  %v2455 = vld [vmem:[#allocation2 + $0x38] sm:$0xff]
  %v2456 = vld [vmem:[#allocation2 + $0x40] sm:$0xff]
  %v2457 = vld [vmem:[#allocation2 + $0x48] sm:$0xff]
  %v2458 = vld [vmem:[#allocation2 + $0x50] sm:$0xff]
  %v2459 = vld [vmem:[#allocation2 + $0x58] sm:$0xff]
  %v2460 = vld [vmem:[#allocation2 + $0x60] sm:$0xff]
  %v2461 = vld [vmem:[#allocation2 + $0x68] sm:$0xff]
  %v2462 = vld [vmem:[#allocation2 + $0x70] sm:$0xff]
  %v2463 = vld [vmem:[#allocation2 + $0x78] sm:$0xff]
  %v2464 = vld [vmem:[#allocation2 + $0x80] sm:$0xff]
  %v2465 = vld [vmem:[#allocation2 + $0x88] sm:$0xff]
  %v2466 = vld [vmem:[#allocation2 + $0x90] sm:$0xff]
  %v2467 = vld [vmem:[#allocation2 + $0x98] sm:$0xff]
  %v2468 = vld [vmem:[#allocation2 + $0xa0] sm:$0xff]
  %v2469 = vld [vmem:[#allocation2 + $0xa8] sm:$0xff]
  %v2470 = vld [vmem:[#allocation2 + $0xb0] sm:$0xff]
  %v2471 = vld [vmem:[#allocation2 + $0xb8] sm:$0xff]
  %v2472 = vld [vmem:[#allocation2 + $0xc0] sm:$0xff]
  %v2473 = vld [vmem:[#allocation2 + $0xc8] sm:$0xff]
  %v2474 = vld [vmem:[#allocation2 + $0xd0] sm:$0xff]
  %2499 = vrot.lane.b32.xlu0 %v2451, 100
  %v2500 = vpop.permute.xlu0 %2499
  %2501 = vrot.lane.b32.xlu0 %v2452, 100
  %v2502 = vpop.permute.xlu0 %2501
  %2503 = vrot.lane.b32.xlu0 %v2453, 100
  %v2504 = vpop.permute.xlu0 %2503
  %2505 = vrot.lane.b32.xlu0 %v2454, 100
  %v2506 = vpop.permute.xlu0 %2505
  %2507 = vrot.lane.b32.xlu0 %v2455, 100
  %v2508 = vpop.permute.xlu0 %2507
  %2509 = vrot.lane.b32.xlu0 %v2456, 100
  %v2510 = vpop.permute.xlu0 %2509
  %2511 = vrot.lane.b32.xlu0 %v2457, 100
  %v2512 = vpop.permute.xlu0 %2511
  %2513 = vrot.lane.b32.xlu0 %v2458, 100
  %v2514 = vpop.permute.xlu0 %2513
  %2515 = vrot.lane.b32.xlu0 %v2459, 100
  %v2516 = vpop.permute.xlu0 %2515
  %2517 = vrot.lane.b32.xlu0 %v2460, 100
  %v2518 = vpop.permute.xlu0 %2517
  %2519 = vrot.lane.b32.xlu0 %v2461, 100
  %v2520 = vpop.permute.xlu0 %2519
  %2521 = vrot.lane.b32.xlu0 %v2462, 100
  %v2522 = vpop.permute.xlu0 %2521
  %2523 = vrot.lane.b32.xlu0 %v2463, 100
  %v2524 = vpop.permute.xlu0 %2523
  %2525 = vrot.lane.b32.xlu0 %v2464, 100
  %v2526 = vpop.permute.xlu0 %2525
  %2527 = vrot.lane.b32.xlu0 %v2465, 100
  %v2528 = vpop.permute.xlu0 %2527
  %2529 = vrot.lane.b32.xlu0 %v2466, 100
  %v2530 = vpop.permute.xlu0 %2529
  %2531 = vrot.lane.b32.xlu0 %v2467, 100
  %v2532 = vpop.permute.xlu0 %2531
  %2533 = vrot.lane.b32.xlu0 %v2468, 100
  %v2534 = vpop.permute.xlu0 %2533
  %2535 = vrot.lane.b32.xlu0 %v2469, 100
  %v2536 = vpop.permute.xlu0 %2535
  %2537 = vrot.lane.b32.xlu0 %v2470, 100
  %v2538 = vpop.permute.xlu0 %2537
  %2539 = vrot.lane.b32.xlu0 %v2471, 100
  %v2540 = vpop.permute.xlu0 %2539
  %2541 = vrot.lane.b32.xlu0 %v2472, 100
  %v2542 = vpop.permute.xlu0 %2541
  %2543 = vrot.lane.b32.xlu0 %v2473, 100
  %v2544 = vpop.permute.xlu0 %2543
  %2545 = vrot.lane.b32.xlu0 %v2474, 100
  %v2546 = vpop.permute.xlu0 %2545
  %vm2571 = vcmask 982816
  %2572 = vst.msk [vmem:[#allocation3] sm:$0xff] %vm2571, %v2500
  %2573 = vst.msk [vmem:[#allocation3 + $0x20] sm:$0xff] %vm2571, %v2502
  %2574 = vst.msk [vmem:[#allocation3 + $0x40] sm:$0xff] %vm2571, %v2504
  %2575 = vst.msk [vmem:[#allocation3 + $0x60] sm:$0xff] %vm2571, %v2506
  %2576 = vst.msk [vmem:[#allocation3 + $0x80] sm:$0xff] %vm2571, %v2508
  %2577 = vst.msk [vmem:[#allocation3 + $0xa0] sm:$0xff] %vm2571, %v2510
  %2578 = vst.msk [vmem:[#allocation3 + $0xc0] sm:$0xff] %vm2571, %v2512
  %2579 = vst.msk [vmem:[#allocation3 + $0xe0] sm:$0xff] %vm2571, %v2514
  %2580 = vst.msk [vmem:[#allocation3 + $0x100] sm:$0xff] %vm2571, %v2516
  %2581 = vst.msk [vmem:[#allocation3 + $0x120] sm:$0xff] %vm2571, %v2518
  %2582 = vst.msk [vmem:[#allocation3 + $0x140] sm:$0xff] %vm2571, %v2520
  %2583 = vst.msk [vmem:[#allocation3 + $0x160] sm:$0xff] %vm2571, %v2522
  %2584 = vst.msk [vmem:[#allocation3 + $0x180] sm:$0xff] %vm2571, %v2524
  %2585 = vst.msk [vmem:[#allocation3 + $0x1a0] sm:$0xff] %vm2571, %v2526
  %2586 = vst.msk [vmem:[#allocation3 + $0x1c0] sm:$0xff] %vm2571, %v2528
  %2587 = vst.msk [vmem:[#allocation3 + $0x1e0] sm:$0xff] %vm2571, %v2530
  %2588 = vst.msk [vmem:[#allocation3 + $0x200] sm:$0xff] %vm2571, %v2532
  %2589 = vst.msk [vmem:[#allocation3 + $0x220] sm:$0xff] %vm2571, %v2534
  %2590 = vst.msk [vmem:[#allocation3 + $0x240] sm:$0xff] %vm2571, %v2536
  %2591 = vst.msk [vmem:[#allocation3 + $0x260] sm:$0xff] %vm2571, %v2538
  %2592 = vst.msk [vmem:[#allocation3 + $0x280] sm:$0xff] %vm2571, %v2540
  %2593 = vst.msk [vmem:[#allocation3 + $0x2a0] sm:$0xff] %vm2571, %v2542
  %2594 = vst.msk [vmem:[#allocation3 + $0x2c0] sm:$0xff] %vm2571, %v2544
  %2595 = vst.msk [vmem:[#allocation3 + $0x2e0] sm:$0xff] %vm2571, %v2546
  %v2596 = vld [vmem:[#allocation2 + $0x1a] sm:$0xff]
  %v2597 = vld [vmem:[#allocation2 + $0x22] sm:$0xff]
  %v2598 = vld [vmem:[#allocation2 + $0x2a] sm:$0xff]
  %v2599 = vld [vmem:[#allocation2 + $0x32] sm:$0xff]
  %v2600 = vld [vmem:[#allocation2 + $0x3a] sm:$0xff]
  %v2601 = vld [vmem:[#allocation2 + $0x42] sm:$0xff]
  %v2602 = vld [vmem:[#allocation2 + $0x4a] sm:$0xff]
  %v2603 = vld [vmem:[#allocation2 + $0x52] sm:$0xff]
  %v2604 = vld [vmem:[#allocation2 + $0x5a] sm:$0xff]
  %v2605 = vld [vmem:[#allocation2 + $0x62] sm:$0xff]
  %v2606 = vld [vmem:[#allocation2 + $0x6a] sm:$0xff]
  %v2607 = vld [vmem:[#allocation2 + $0x72] sm:$0xff]
  %v2608 = vld [vmem:[#allocation2 + $0x7a] sm:$0xff]
  %v2609 = vld [vmem:[#allocation2 + $0x82] sm:$0xff]
  %v2610 = vld [vmem:[#allocation2 + $0x8a] sm:$0xff]
  %v2611 = vld [vmem:[#allocation2 + $0x92] sm:$0xff]
  %v2612 = vld [vmem:[#allocation2 + $0x9a] sm:$0xff]
  %v2613 = vld [vmem:[#allocation2 + $0xa2] sm:$0xff]
  %v2614 = vld [vmem:[#allocation2 + $0xaa] sm:$0xff]
  %v2615 = vld [vmem:[#allocation2 + $0xb2] sm:$0xff]
  %v2616 = vld [vmem:[#allocation2 + $0xba] sm:$0xff]
  %v2617 = vld [vmem:[#allocation2 + $0xc2] sm:$0xff]
  %v2618 = vld [vmem:[#allocation2 + $0xca] sm:$0xff]
  %v2619 = vld [vmem:[#allocation2 + $0xd2] sm:$0xff]
  %2644 = vrot.lane.b32.xlu0 %v2596, 120
  %v2645 = vpop.permute.xlu0 %2644
  %2646 = vrot.lane.b32.xlu0 %v2597, 120
  %v2647 = vpop.permute.xlu0 %2646
  %2648 = vrot.lane.b32.xlu0 %v2598, 120
  %v2649 = vpop.permute.xlu0 %2648
  %2650 = vrot.lane.b32.xlu0 %v2599, 120
  %v2651 = vpop.permute.xlu0 %2650
  %2652 = vrot.lane.b32.xlu0 %v2600, 120
  %v2653 = vpop.permute.xlu0 %2652
  %2654 = vrot.lane.b32.xlu0 %v2601, 120
  %v2655 = vpop.permute.xlu0 %2654
  %2656 = vrot.lane.b32.xlu0 %v2602, 120
  %v2657 = vpop.permute.xlu0 %2656
  %2658 = vrot.lane.b32.xlu0 %v2603, 120
  %v2659 = vpop.permute.xlu0 %2658
  %2660 = vrot.lane.b32.xlu0 %v2604, 120
  %v2661 = vpop.permute.xlu0 %2660
  %2662 = vrot.lane.b32.xlu0 %v2605, 120
  %v2663 = vpop.permute.xlu0 %2662
  %2664 = vrot.lane.b32.xlu0 %v2606, 120
  %v2665 = vpop.permute.xlu0 %2664
  %2666 = vrot.lane.b32.xlu0 %v2607, 120
  %v2667 = vpop.permute.xlu0 %2666
  %2668 = vrot.lane.b32.xlu0 %v2608, 120
  %v2669 = vpop.permute.xlu0 %2668
  %2670 = vrot.lane.b32.xlu0 %v2609, 120
  %v2671 = vpop.permute.xlu0 %2670
  %2672 = vrot.lane.b32.xlu0 %v2610, 120
  %v2673 = vpop.permute.xlu0 %2672
  %2674 = vrot.lane.b32.xlu0 %v2611, 120
  %v2675 = vpop.permute.xlu0 %2674
  %2676 = vrot.lane.b32.xlu0 %v2612, 120
  %v2677 = vpop.permute.xlu0 %2676
  %2678 = vrot.lane.b32.xlu0 %v2613, 120
  %v2679 = vpop.permute.xlu0 %2678
  %2680 = vrot.lane.b32.xlu0 %v2614, 120
  %v2681 = vpop.permute.xlu0 %2680
  %2682 = vrot.lane.b32.xlu0 %v2615, 120
  %v2683 = vpop.permute.xlu0 %2682
  %2684 = vrot.lane.b32.xlu0 %v2616, 120
  %v2685 = vpop.permute.xlu0 %2684
  %2686 = vrot.lane.b32.xlu0 %v2617, 120
  %v2687 = vpop.permute.xlu0 %2686
  %2688 = vrot.lane.b32.xlu0 %v2618, 120
  %v2689 = vpop.permute.xlu0 %2688
  %2690 = vrot.lane.b32.xlu0 %v2619, 120
  %v2691 = vpop.permute.xlu0 %2690
  %vm2716 = vcmask 1048512
  %2717 = vst.msk [vmem:[#allocation3] sm:$0xff] %vm2716, %v2645
  %vm2718 = vcmask 97280
  %2719 = vst.msk [vmem:[#allocation3 + $0x8] sm:$0xff] %vm2718, %v2645
  %2720 = vst.msk [vmem:[#allocation3 + $0x20] sm:$0xff] %vm2716, %v2647
  %2721 = vst.msk [vmem:[#allocation3 + $0x28] sm:$0xff] %vm2718, %v2647
  %2722 = vst.msk [vmem:[#allocation3 + $0x40] sm:$0xff] %vm2716, %v2649
  %2723 = vst.msk [vmem:[#allocation3 + $0x48] sm:$0xff] %vm2718, %v2649
  %2724 = vst.msk [vmem:[#allocation3 + $0x60] sm:$0xff] %vm2716, %v2651
  %2725 = vst.msk [vmem:[#allocation3 + $0x68] sm:$0xff] %vm2718, %v2651
  %2726 = vst.msk [vmem:[#allocation3 + $0x80] sm:$0xff] %vm2716, %v2653
  %2727 = vst.msk [vmem:[#allocation3 + $0x88] sm:$0xff] %vm2718, %v2653
  %2728 = vst.msk [vmem:[#allocation3 + $0xa0] sm:$0xff] %vm2716, %v2655
  %2729 = vst.msk [vmem:[#allocation3 + $0xa8] sm:$0xff] %vm2718, %v2655
  %2730 = vst.msk [vmem:[#allocation3 + $0xc0] sm:$0xff] %vm2716, %v2657
  %2731 = vst.msk [vmem:[#allocation3 + $0xc8] sm:$0xff] %vm2718, %v2657
  %2732 = vst.msk [vmem:[#allocation3 + $0xe0] sm:$0xff] %vm2716, %v2659
  %2733 = vst.msk [vmem:[#allocation3 + $0xe8] sm:$0xff] %vm2718, %v2659
  %2734 = vst.msk [vmem:[#allocation3 + $0x100] sm:$0xff] %vm2716, %v2661
  %2735 = vst.msk [vmem:[#allocation3 + $0x108] sm:$0xff] %vm2718, %v2661
  %2736 = vst.msk [vmem:[#allocation3 + $0x120] sm:$0xff] %vm2716, %v2663
  %2737 = vst.msk [vmem:[#allocation3 + $0x128] sm:$0xff] %vm2718, %v2663
  %2738 = vst.msk [vmem:[#allocation3 + $0x140] sm:$0xff] %vm2716, %v2665
  %2739 = vst.msk [vmem:[#allocation3 + $0x148] sm:$0xff] %vm2718, %v2665
  %2740 = vst.msk [vmem:[#allocation3 + $0x160] sm:$0xff] %vm2716, %v2667
  %2741 = vst.msk [vmem:[#allocation3 + $0x168] sm:$0xff] %vm2718, %v2667
  %2742 = vst.msk [vmem:[#allocation3 + $0x180] sm:$0xff] %vm2716, %v2669
  %2743 = vst.msk [vmem:[#allocation3 + $0x188] sm:$0xff] %vm2718, %v2669
  %2744 = vst.msk [vmem:[#allocation3 + $0x1a0] sm:$0xff] %vm2716, %v2671
  %2745 = vst.msk [vmem:[#allocation3 + $0x1a8] sm:$0xff] %vm2718, %v2671
  %2746 = vst.msk [vmem:[#allocation3 + $0x1c0] sm:$0xff] %vm2716, %v2673
  %2747 = vst.msk [vmem:[#allocation3 + $0x1c8] sm:$0xff] %vm2718, %v2673
  %2748 = vst.msk [vmem:[#allocation3 + $0x1e0] sm:$0xff] %vm2716, %v2675
  %2749 = vst.msk [vmem:[#allocation3 + $0x1e8] sm:$0xff] %vm2718, %v2675
  %2750 = vst.msk [vmem:[#allocation3 + $0x200] sm:$0xff] %vm2716, %v2677
  %2751 = vst.msk [vmem:[#allocation3 + $0x208] sm:$0xff] %vm2718, %v2677
  %2752 = vst.msk [vmem:[#allocation3 + $0x220] sm:$0xff] %vm2716, %v2679
  %2753 = vst.msk [vmem:[#allocation3 + $0x228] sm:$0xff] %vm2718, %v2679
  %2754 = vst.msk [vmem:[#allocation3 + $0x240] sm:$0xff] %vm2716, %v2681
  %2755 = vst.msk [vmem:[#allocation3 + $0x248] sm:$0xff] %vm2718, %v2681
  %2756 = vst.msk [vmem:[#allocation3 + $0x260] sm:$0xff] %vm2716, %v2683
  %2757 = vst.msk [vmem:[#allocation3 + $0x268] sm:$0xff] %vm2718, %v2683
  %2758 = vst.msk [vmem:[#allocation3 + $0x280] sm:$0xff] %vm2716, %v2685
  %2759 = vst.msk [vmem:[#allocation3 + $0x288] sm:$0xff] %vm2718, %v2685
  %2760 = vst.msk [vmem:[#allocation3 + $0x2a0] sm:$0xff] %vm2716, %v2687
  %2761 = vst.msk [vmem:[#allocation3 + $0x2a8] sm:$0xff] %vm2718, %v2687
  %2762 = vst.msk [vmem:[#allocation3 + $0x2c0] sm:$0xff] %vm2716, %v2689
  %2763 = vst.msk [vmem:[#allocation3 + $0x2c8] sm:$0xff] %vm2718, %v2689
  %2764 = vst.msk [vmem:[#allocation3 + $0x2e0] sm:$0xff] %vm2716, %v2691
  %2765 = vst.msk [vmem:[#allocation3 + $0x2e8] sm:$0xff] %vm2718, %v2691
  %v2766 = vld [vmem:[#allocation2 + $0x1c] sm:$0xff]
  %v2767 = vld [vmem:[#allocation2 + $0x24] sm:$0xff]
  %v2768 = vld [vmem:[#allocation2 + $0x2c] sm:$0xff]
  %v2769 = vld [vmem:[#allocation2 + $0x34] sm:$0xff]
  %v2770 = vld [vmem:[#allocation2 + $0x3c] sm:$0xff]
  %v2771 = vld [vmem:[#allocation2 + $0x44] sm:$0xff]
  %v2772 = vld [vmem:[#allocation2 + $0x4c] sm:$0xff]
  %v2773 = vld [vmem:[#allocation2 + $0x54] sm:$0xff]
  %v2774 = vld [vmem:[#allocation2 + $0x5c] sm:$0xff]
  %v2775 = vld [vmem:[#allocation2 + $0x64] sm:$0xff]
  %v2776 = vld [vmem:[#allocation2 + $0x6c] sm:$0xff]
  %v2777 = vld [vmem:[#allocation2 + $0x74] sm:$0xff]
  %v2778 = vld [vmem:[#allocation2 + $0x7c] sm:$0xff]
  %v2779 = vld [vmem:[#allocation2 + $0x84] sm:$0xff]
  %v2780 = vld [vmem:[#allocation2 + $0x8c] sm:$0xff]
  %v2781 = vld [vmem:[#allocation2 + $0x94] sm:$0xff]
  %v2782 = vld [vmem:[#allocation2 + $0x9c] sm:$0xff]
  %v2783 = vld [vmem:[#allocation2 + $0xa4] sm:$0xff]
  %v2784 = vld [vmem:[#allocation2 + $0xac] sm:$0xff]
  %v2785 = vld [vmem:[#allocation2 + $0xb4] sm:$0xff]
  %v2786 = vld [vmem:[#allocation2 + $0xbc] sm:$0xff]
  %v2787 = vld [vmem:[#allocation2 + $0xc4] sm:$0xff]
  %v2788 = vld [vmem:[#allocation2 + $0xcc] sm:$0xff]
  %v2789 = vld [vmem:[#allocation2 + $0xd4] sm:$0xff]
  %2814 = vrot.lane.b32.xlu0 %v2766, 12
  %v2815 = vpop.permute.xlu0 %2814
  %2816 = vrot.lane.b32.xlu0 %v2767, 12
  %v2817 = vpop.permute.xlu0 %2816
  %2818 = vrot.lane.b32.xlu0 %v2768, 12
  %v2819 = vpop.permute.xlu0 %2818
  %2820 = vrot.lane.b32.xlu0 %v2769, 12
  %v2821 = vpop.permute.xlu0 %2820
  %2822 = vrot.lane.b32.xlu0 %v2770, 12
  %v2823 = vpop.permute.xlu0 %2822
  %2824 = vrot.lane.b32.xlu0 %v2771, 12
  %v2825 = vpop.permute.xlu0 %2824
  %2826 = vrot.lane.b32.xlu0 %v2772, 12
  %v2827 = vpop.permute.xlu0 %2826
  %2828 = vrot.lane.b32.xlu0 %v2773, 12
  %v2829 = vpop.permute.xlu0 %2828
  %2830 = vrot.lane.b32.xlu0 %v2774, 12
  %v2831 = vpop.permute.xlu0 %2830
  %2832 = vrot.lane.b32.xlu0 %v2775, 12
  %v2833 = vpop.permute.xlu0 %2832
  %2834 = vrot.lane.b32.xlu0 %v2776, 12
  %v2835 = vpop.permute.xlu0 %2834
  %2836 = vrot.lane.b32.xlu0 %v2777, 12
  %v2837 = vpop.permute.xlu0 %2836
  %2838 = vrot.lane.b32.xlu0 %v2778, 12
  %v2839 = vpop.permute.xlu0 %2838
  %2840 = vrot.lane.b32.xlu0 %v2779, 12
  %v2841 = vpop.permute.xlu0 %2840
  %2842 = vrot.lane.b32.xlu0 %v2780, 12
  %v2843 = vpop.permute.xlu0 %2842
  %2844 = vrot.lane.b32.xlu0 %v2781, 12
  %v2845 = vpop.permute.xlu0 %2844
  %2846 = vrot.lane.b32.xlu0 %v2782, 12
  %v2847 = vpop.permute.xlu0 %2846
  %2848 = vrot.lane.b32.xlu0 %v2783, 12
  %v2849 = vpop.permute.xlu0 %2848
  %2850 = vrot.lane.b32.xlu0 %v2784, 12
  %v2851 = vpop.permute.xlu0 %2850
  %2852 = vrot.lane.b32.xlu0 %v2785, 12
  %v2853 = vpop.permute.xlu0 %2852
  %2854 = vrot.lane.b32.xlu0 %v2786, 12
  %v2855 = vpop.permute.xlu0 %2854
  %2856 = vrot.lane.b32.xlu0 %v2787, 12
  %v2857 = vpop.permute.xlu0 %2856
  %2858 = vrot.lane.b32.xlu0 %v2788, 12
  %v2859 = vpop.permute.xlu0 %2858
  %2860 = vrot.lane.b32.xlu0 %v2789, 12
  %v2861 = vpop.permute.xlu0 %2860
  %vm2886 = vcmask 261216
  %2887 = vst.msk [vmem:[#allocation3 + $0x8] sm:$0xff] %vm2886, %v2815
  %2888 = vst.msk [vmem:[#allocation3 + $0x28] sm:$0xff] %vm2886, %v2817
  %2889 = vst.msk [vmem:[#allocation3 + $0x48] sm:$0xff] %vm2886, %v2819
  %2890 = vst.msk [vmem:[#allocation3 + $0x68] sm:$0xff] %vm2886, %v2821
  %2891 = vst.msk [vmem:[#allocation3 + $0x88] sm:$0xff] %vm2886, %v2823
  %2892 = vst.msk [vmem:[#allocation3 + $0xa8] sm:$0xff] %vm2886, %v2825
  %2893 = vst.msk [vmem:[#allocation3 + $0xc8] sm:$0xff] %vm2886, %v2827
  %2894 = vst.msk [vmem:[#allocation3 + $0xe8] sm:$0xff] %vm2886, %v2829
  %2895 = vst.msk [vmem:[#allocation3 + $0x108] sm:$0xff] %vm2886, %v2831
  %2896 = vst.msk [vmem:[#allocation3 + $0x128] sm:$0xff] %vm2886, %v2833
  %2897 = vst.msk [vmem:[#allocation3 + $0x148] sm:$0xff] %vm2886, %v2835
  %2898 = vst.msk [vmem:[#allocation3 + $0x168] sm:$0xff] %vm2886, %v2837
  %2899 = vst.msk [vmem:[#allocation3 + $0x188] sm:$0xff] %vm2886, %v2839
  %2900 = vst.msk [vmem:[#allocation3 + $0x1a8] sm:$0xff] %vm2886, %v2841
  %2901 = vst.msk [vmem:[#allocation3 + $0x1c8] sm:$0xff] %vm2886, %v2843
  %2902 = vst.msk [vmem:[#allocation3 + $0x1e8] sm:$0xff] %vm2886, %v2845
  %2903 = vst.msk [vmem:[#allocation3 + $0x208] sm:$0xff] %vm2886, %v2847
  %2904 = vst.msk [vmem:[#allocation3 + $0x228] sm:$0xff] %vm2886, %v2849
  %2905 = vst.msk [vmem:[#allocation3 + $0x248] sm:$0xff] %vm2886, %v2851
  %2906 = vst.msk [vmem:[#allocation3 + $0x268] sm:$0xff] %vm2886, %v2853
  %2907 = vst.msk [vmem:[#allocation3 + $0x288] sm:$0xff] %vm2886, %v2855
  %2908 = vst.msk [vmem:[#allocation3 + $0x2a8] sm:$0xff] %vm2886, %v2857
  %2909 = vst.msk [vmem:[#allocation3 + $0x2c8] sm:$0xff] %vm2886, %v2859
  %2910 = vst.msk [vmem:[#allocation3 + $0x2e8] sm:$0xff] %vm2886, %v2861
  %v2911 = vld [vmem:[#allocation2 + $0x1e] sm:$0xff]
  %v2912 = vld [vmem:[#allocation2 + $0x26] sm:$0xff]
  %v2913 = vld [vmem:[#allocation2 + $0x2e] sm:$0xff]
  %v2914 = vld [vmem:[#allocation2 + $0x36] sm:$0xff]
  %v2915 = vld [vmem:[#allocation2 + $0x3e] sm:$0xff]
  %v2916 = vld [vmem:[#allocation2 + $0x46] sm:$0xff]
  %v2917 = vld [vmem:[#allocation2 + $0x4e] sm:$0xff]
  %v2918 = vld [vmem:[#allocation2 + $0x56] sm:$0xff]
  %v2919 = vld [vmem:[#allocation2 + $0x5e] sm:$0xff]
  %v2920 = vld [vmem:[#allocation2 + $0x66] sm:$0xff]
  %v2921 = vld [vmem:[#allocation2 + $0x6e] sm:$0xff]
  %v2922 = vld [vmem:[#allocation2 + $0x76] sm:$0xff]
  %v2923 = vld [vmem:[#allocation2 + $0x7e] sm:$0xff]
  %v2924 = vld [vmem:[#allocation2 + $0x86] sm:$0xff]
  %v2925 = vld [vmem:[#allocation2 + $0x8e] sm:$0xff]
  %v2926 = vld [vmem:[#allocation2 + $0x96] sm:$0xff]
  %v2927 = vld [vmem:[#allocation2 + $0x9e] sm:$0xff]
  %v2928 = vld [vmem:[#allocation2 + $0xa6] sm:$0xff]
  %v2929 = vld [vmem:[#allocation2 + $0xae] sm:$0xff]
  %v2930 = vld [vmem:[#allocation2 + $0xb6] sm:$0xff]
  %v2931 = vld [vmem:[#allocation2 + $0xbe] sm:$0xff]
  %v2932 = vld [vmem:[#allocation2 + $0xc6] sm:$0xff]
  %v2933 = vld [vmem:[#allocation2 + $0xce] sm:$0xff]
  %v2934 = vld [vmem:[#allocation2 + $0xd6] sm:$0xff]
  %2959 = vrot.lane.b32.xlu0 %v2911, 32
  %v2960 = vpop.permute.xlu0 %2959
  %2961 = vrot.lane.b32.xlu0 %v2912, 32
  %v2962 = vpop.permute.xlu0 %2961
  %2963 = vrot.lane.b32.xlu0 %v2913, 32
  %v2964 = vpop.permute.xlu0 %2963
  %2965 = vrot.lane.b32.xlu0 %v2914, 32
  %v2966 = vpop.permute.xlu0 %2965
  %2967 = vrot.lane.b32.xlu0 %v2915, 32
  %v2968 = vpop.permute.xlu0 %2967
  %2969 = vrot.lane.b32.xlu0 %v2916, 32
  %v2970 = vpop.permute.xlu0 %2969
  %2971 = vrot.lane.b32.xlu0 %v2917, 32
  %v2972 = vpop.permute.xlu0 %2971
  %2973 = vrot.lane.b32.xlu0 %v2918, 32
  %v2974 = vpop.permute.xlu0 %2973
  %2975 = vrot.lane.b32.xlu0 %v2919, 32
  %v2976 = vpop.permute.xlu0 %2975
  %2977 = vrot.lane.b32.xlu0 %v2920, 32
  %v2978 = vpop.permute.xlu0 %2977
  %2979 = vrot.lane.b32.xlu0 %v2921, 32
  %v2980 = vpop.permute.xlu0 %2979
  %2981 = vrot.lane.b32.xlu0 %v2922, 32
  %v2982 = vpop.permute.xlu0 %2981
  %2983 = vrot.lane.b32.xlu0 %v2923, 32
  %v2984 = vpop.permute.xlu0 %2983
  %2985 = vrot.lane.b32.xlu0 %v2924, 32
  %v2986 = vpop.permute.xlu0 %2985
  %2987 = vrot.lane.b32.xlu0 %v2925, 32
  %v2988 = vpop.permute.xlu0 %2987
  %2989 = vrot.lane.b32.xlu0 %v2926, 32
  %v2990 = vpop.permute.xlu0 %2989
  %2991 = vrot.lane.b32.xlu0 %v2927, 32
  %v2992 = vpop.permute.xlu0 %2991
  %2993 = vrot.lane.b32.xlu0 %v2928, 32
  %v2994 = vpop.permute.xlu0 %2993
  %2995 = vrot.lane.b32.xlu0 %v2929, 32
  %v2996 = vpop.permute.xlu0 %2995
  %2997 = vrot.lane.b32.xlu0 %v2930, 32
  %v2998 = vpop.permute.xlu0 %2997
  %2999 = vrot.lane.b32.xlu0 %v2931, 32
  %v3000 = vpop.permute.xlu0 %2999
  %3001 = vrot.lane.b32.xlu0 %v2932, 32
  %v3002 = vpop.permute.xlu0 %3001
  %3003 = vrot.lane.b32.xlu0 %v2933, 32
  %v3004 = vpop.permute.xlu0 %3003
  %3005 = vrot.lane.b32.xlu0 %v2934, 32
  %v3006 = vpop.permute.xlu0 %3005
  %vm3031 = vcmask 425216
  %3032 = vst.msk [vmem:[#allocation3 + $0x8] sm:$0xff] %vm3031, %v2960
  %3033 = vst.msk [vmem:[#allocation3 + $0x28] sm:$0xff] %vm3031, %v2962
  %3034 = vst.msk [vmem:[#allocation3 + $0x48] sm:$0xff] %vm3031, %v2964
  %3035 = vst.msk [vmem:[#allocation3 + $0x68] sm:$0xff] %vm3031, %v2966
  %3036 = vst.msk [vmem:[#allocation3 + $0x88] sm:$0xff] %vm3031, %v2968
  %3037 = vst.msk [vmem:[#allocation3 + $0xa8] sm:$0xff] %vm3031, %v2970
  %3038 = vst.msk [vmem:[#allocation3 + $0xc8] sm:$0xff] %vm3031, %v2972
  %3039 = vst.msk [vmem:[#allocation3 + $0xe8] sm:$0xff] %vm3031, %v2974
  %3040 = vst.msk [vmem:[#allocation3 + $0x108] sm:$0xff] %vm3031, %v2976
  %3041 = vst.msk [vmem:[#allocation3 + $0x128] sm:$0xff] %vm3031, %v2978
  %3042 = vst.msk [vmem:[#allocation3 + $0x148] sm:$0xff] %vm3031, %v2980
  %3043 = vst.msk [vmem:[#allocation3 + $0x168] sm:$0xff] %vm3031, %v2982
  %3044 = vst.msk [vmem:[#allocation3 + $0x188] sm:$0xff] %vm3031, %v2984
  %3045 = vst.msk [vmem:[#allocation3 + $0x1a8] sm:$0xff] %vm3031, %v2986
  %3046 = vst.msk [vmem:[#allocation3 + $0x1c8] sm:$0xff] %vm3031, %v2988
  %3047 = vst.msk [vmem:[#allocation3 + $0x1e8] sm:$0xff] %vm3031, %v2990
  %3048 = vst.msk [vmem:[#allocation3 + $0x208] sm:$0xff] %vm3031, %v2992
  %3049 = vst.msk [vmem:[#allocation3 + $0x228] sm:$0xff] %vm3031, %v2994
  %3050 = vst.msk [vmem:[#allocation3 + $0x248] sm:$0xff] %vm3031, %v2996
  %3051 = vst.msk [vmem:[#allocation3 + $0x268] sm:$0xff] %vm3031, %v2998
  %3052 = vst.msk [vmem:[#allocation3 + $0x288] sm:$0xff] %vm3031, %v3000
  %3053 = vst.msk [vmem:[#allocation3 + $0x2a8] sm:$0xff] %vm3031, %v3002
  %3054 = vst.msk [vmem:[#allocation3 + $0x2c8] sm:$0xff] %vm3031, %v3004
  %3055 = vst.msk [vmem:[#allocation3 + $0x2e8] sm:$0xff] %vm3031, %v3006
  %v3056 = vld [vmem:[#allocation2 + $0x20] sm:$0xff]
  %v3057 = vld [vmem:[#allocation2 + $0x28] sm:$0xff]
  %v3058 = vld [vmem:[#allocation2 + $0x30] sm:$0xff]
  %v3059 = vld [vmem:[#allocation2 + $0x38] sm:$0xff]
  %v3060 = vld [vmem:[#allocation2 + $0x40] sm:$0xff]
  %v3061 = vld [vmem:[#allocation2 + $0x48] sm:$0xff]
  %v3062 = vld [vmem:[#allocation2 + $0x50] sm:$0xff]
  %v3063 = vld [vmem:[#allocation2 + $0x58] sm:$0xff]
  %v3064 = vld [vmem:[#allocation2 + $0x60] sm:$0xff]
  %v3065 = vld [vmem:[#allocation2 + $0x68] sm:$0xff]
  %v3066 = vld [vmem:[#allocation2 + $0x70] sm:$0xff]
  %v3067 = vld [vmem:[#allocation2 + $0x78] sm:$0xff]
  %v3068 = vld [vmem:[#allocation2 + $0x80] sm:$0xff]
  %v3069 = vld [vmem:[#allocation2 + $0x88] sm:$0xff]
  %v3070 = vld [vmem:[#allocation2 + $0x90] sm:$0xff]
  %v3071 = vld [vmem:[#allocation2 + $0x98] sm:$0xff]
  %v3072 = vld [vmem:[#allocation2 + $0xa0] sm:$0xff]
  %v3073 = vld [vmem:[#allocation2 + $0xa8] sm:$0xff]
  %v3074 = vld [vmem:[#allocation2 + $0xb0] sm:$0xff]
  %v3075 = vld [vmem:[#allocation2 + $0xb8] sm:$0xff]
  %v3076 = vld [vmem:[#allocation2 + $0xc0] sm:$0xff]
  %v3077 = vld [vmem:[#allocation2 + $0xc8] sm:$0xff]
  %v3078 = vld [vmem:[#allocation2 + $0xd0] sm:$0xff]
  %v3079 = vld [vmem:[#allocation2 + $0xd8] sm:$0xff]
  %3104 = vrot.lane.b32.xlu0 %v3056, 52
  %v3105 = vpop.permute.xlu0 %3104
  %3106 = vrot.lane.b32.xlu0 %v3057, 52
  %v3107 = vpop.permute.xlu0 %3106
  %3108 = vrot.lane.b32.xlu0 %v3058, 52
  %v3109 = vpop.permute.xlu0 %3108
  %3110 = vrot.lane.b32.xlu0 %v3059, 52
  %v3111 = vpop.permute.xlu0 %3110
  %3112 = vrot.lane.b32.xlu0 %v3060, 52
  %v3113 = vpop.permute.xlu0 %3112
  %3114 = vrot.lane.b32.xlu0 %v3061, 52
  %v3115 = vpop.permute.xlu0 %3114
  %3116 = vrot.lane.b32.xlu0 %v3062, 52
  %v3117 = vpop.permute.xlu0 %3116
  %3118 = vrot.lane.b32.xlu0 %v3063, 52
  %v3119 = vpop.permute.xlu0 %3118
  %3120 = vrot.lane.b32.xlu0 %v3064, 52
  %v3121 = vpop.permute.xlu0 %3120
  %3122 = vrot.lane.b32.xlu0 %v3065, 52
  %v3123 = vpop.permute.xlu0 %3122
  %3124 = vrot.lane.b32.xlu0 %v3066, 52
  %v3125 = vpop.permute.xlu0 %3124
  %3126 = vrot.lane.b32.xlu0 %v3067, 52
  %v3127 = vpop.permute.xlu0 %3126
  %3128 = vrot.lane.b32.xlu0 %v3068, 52
  %v3129 = vpop.permute.xlu0 %3128
  %3130 = vrot.lane.b32.xlu0 %v3069, 52
  %v3131 = vpop.permute.xlu0 %3130
  %3132 = vrot.lane.b32.xlu0 %v3070, 52
  %v3133 = vpop.permute.xlu0 %3132
  %3134 = vrot.lane.b32.xlu0 %v3071, 52
  %v3135 = vpop.permute.xlu0 %3134
  %3136 = vrot.lane.b32.xlu0 %v3072, 52
  %v3137 = vpop.permute.xlu0 %3136
  %3138 = vrot.lane.b32.xlu0 %v3073, 52
  %v3139 = vpop.permute.xlu0 %3138
  %3140 = vrot.lane.b32.xlu0 %v3074, 52
  %v3141 = vpop.permute.xlu0 %3140
  %3142 = vrot.lane.b32.xlu0 %v3075, 52
  %v3143 = vpop.permute.xlu0 %3142
  %3144 = vrot.lane.b32.xlu0 %v3076, 52
  %v3145 = vpop.permute.xlu0 %3144
  %3146 = vrot.lane.b32.xlu0 %v3077, 52
  %v3147 = vpop.permute.xlu0 %3146
  %3148 = vrot.lane.b32.xlu0 %v3078, 52
  %v3149 = vpop.permute.xlu0 %3148
  %3150 = vrot.lane.b32.xlu0 %v3079, 52
  %v3151 = vpop.permute.xlu0 %3150
  %vm3176 = vcmask 589216
  %3177 = vst.msk [vmem:[#allocation3 + $0x8] sm:$0xff] %vm3176, %v3105
  %3178 = vst.msk [vmem:[#allocation3 + $0x28] sm:$0xff] %vm3176, %v3107
  %3179 = vst.msk [vmem:[#allocation3 + $0x48] sm:$0xff] %vm3176, %v3109
  %3180 = vst.msk [vmem:[#allocation3 + $0x68] sm:$0xff] %vm3176, %v3111
  %3181 = vst.msk [vmem:[#allocation3 + $0x88] sm:$0xff] %vm3176, %v3113
  %3182 = vst.msk [vmem:[#allocation3 + $0xa8] sm:$0xff] %vm3176, %v3115
  %3183 = vst.msk [vmem:[#allocation3 + $0xc8] sm:$0xff] %vm3176, %v3117
  %3184 = vst.msk [vmem:[#allocation3 + $0xe8] sm:$0xff] %vm3176, %v3119
  %3185 = vst.msk [vmem:[#allocation3 + $0x108] sm:$0xff] %vm3176, %v3121
  %3186 = vst.msk [vmem:[#allocation3 + $0x128] sm:$0xff] %vm3176, %v3123
  %3187 = vst.msk [vmem:[#allocation3 + $0x148] sm:$0xff] %vm3176, %v3125
  %3188 = vst.msk [vmem:[#allocation3 + $0x168] sm:$0xff] %vm3176, %v3127
  %3189 = vst.msk [vmem:[#allocation3 + $0x188] sm:$0xff] %vm3176, %v3129
  %3190 = vst.msk [vmem:[#allocation3 + $0x1a8] sm:$0xff] %vm3176, %v3131
  %3191 = vst.msk [vmem:[#allocation3 + $0x1c8] sm:$0xff] %vm3176, %v3133
  %3192 = vst.msk [vmem:[#allocation3 + $0x1e8] sm:$0xff] %vm3176, %v3135
  %3193 = vst.msk [vmem:[#allocation3 + $0x208] sm:$0xff] %vm3176, %v3137
  %3194 = vst.msk [vmem:[#allocation3 + $0x228] sm:$0xff] %vm3176, %v3139
  %3195 = vst.msk [vmem:[#allocation3 + $0x248] sm:$0xff] %vm3176, %v3141
  %3196 = vst.msk [vmem:[#allocation3 + $0x268] sm:$0xff] %vm3176, %v3143
  %3197 = vst.msk [vmem:[#allocation3 + $0x288] sm:$0xff] %vm3176, %v3145
  %3198 = vst.msk [vmem:[#allocation3 + $0x2a8] sm:$0xff] %vm3176, %v3147
  %3199 = vst.msk [vmem:[#allocation3 + $0x2c8] sm:$0xff] %vm3176, %v3149
  %3200 = vst.msk [vmem:[#allocation3 + $0x2e8] sm:$0xff] %vm3176, %v3151
  %v3201 = vld [vmem:[#allocation2 + $0x30] sm:$0xff]
  %v3202 = vld [vmem:[#allocation2 + $0x38] sm:$0xff]
  %v3203 = vld [vmem:[#allocation2 + $0x40] sm:$0xff]
  %v3204 = vld [vmem:[#allocation2 + $0x48] sm:$0xff]
  %v3205 = vld [vmem:[#allocation2 + $0x50] sm:$0xff]
  %v3206 = vld [vmem:[#allocation2 + $0x58] sm:$0xff]
  %v3207 = vld [vmem:[#allocation2 + $0x60] sm:$0xff]
  %v3208 = vld [vmem:[#allocation2 + $0x68] sm:$0xff]
  %v3209 = vld [vmem:[#allocation2 + $0x70] sm:$0xff]
  %v3210 = vld [vmem:[#allocation2 + $0x78] sm:$0xff]
  %v3211 = vld [vmem:[#allocation2 + $0x80] sm:$0xff]
  %v3212 = vld [vmem:[#allocation2 + $0x88] sm:$0xff]
  %v3213 = vld [vmem:[#allocation2 + $0x90] sm:$0xff]
  %v3214 = vld [vmem:[#allocation2 + $0x98] sm:$0xff]
  %v3215 = vld [vmem:[#allocation2 + $0xa0] sm:$0xff]
  %v3216 = vld [vmem:[#allocation2 + $0xa8] sm:$0xff]
  %v3217 = vld [vmem:[#allocation2 + $0xb0] sm:$0xff]
  %v3218 = vld [vmem:[#allocation2 + $0xb8] sm:$0xff]
  %v3219 = vld [vmem:[#allocation2 + $0xc0] sm:$0xff]
  %v3220 = vld [vmem:[#allocation2 + $0xc8] sm:$0xff]
  %v3221 = vld [vmem:[#allocation2 + $0xd0] sm:$0xff]
  %v3222 = vld [vmem:[#allocation2 + $0xd8] sm:$0xff]
  %v3223 = vld [vmem:[#allocation2 + $0xe0] sm:$0xff]
  %v3224 = vld [vmem:[#allocation2 + $0xe8] sm:$0xff]
  %3249 = vrot.lane.b32.xlu0 %v3201, 72
  %v3250 = vpop.permute.xlu0 %3249
  %3251 = vrot.lane.b32.xlu0 %v3202, 72
  %v3252 = vpop.permute.xlu0 %3251
  %3253 = vrot.lane.b32.xlu0 %v3203, 72
  %v3254 = vpop.permute.xlu0 %3253
  %3255 = vrot.lane.b32.xlu0 %v3204, 72
  %v3256 = vpop.permute.xlu0 %3255
  %3257 = vrot.lane.b32.xlu0 %v3205, 72
  %v3258 = vpop.permute.xlu0 %3257
  %3259 = vrot.lane.b32.xlu0 %v3206, 72
  %v3260 = vpop.permute.xlu0 %3259
  %3261 = vrot.lane.b32.xlu0 %v3207, 72
  %v3262 = vpop.permute.xlu0 %3261
  %3263 = vrot.lane.b32.xlu0 %v3208, 72
  %v3264 = vpop.permute.xlu0 %3263
  %3265 = vrot.lane.b32.xlu0 %v3209, 72
  %v3266 = vpop.permute.xlu0 %3265
  %3267 = vrot.lane.b32.xlu0 %v3210, 72
  %v3268 = vpop.permute.xlu0 %3267
  %3269 = vrot.lane.b32.xlu0 %v3211, 72
  %v3270 = vpop.permute.xlu0 %3269
  %3271 = vrot.lane.b32.xlu0 %v3212, 72
  %v3272 = vpop.permute.xlu0 %3271
  %3273 = vrot.lane.b32.xlu0 %v3213, 72
  %v3274 = vpop.permute.xlu0 %3273
  %3275 = vrot.lane.b32.xlu0 %v3214, 72
  %v3276 = vpop.permute.xlu0 %3275
  %3277 = vrot.lane.b32.xlu0 %v3215, 72
  %v3278 = vpop.permute.xlu0 %3277
  %3279 = vrot.lane.b32.xlu0 %v3216, 72
  %v3280 = vpop.permute.xlu0 %3279
  %3281 = vrot.lane.b32.xlu0 %v3217, 72
  %v3282 = vpop.permute.xlu0 %3281
  %3283 = vrot.lane.b32.xlu0 %v3218, 72
  %v3284 = vpop.permute.xlu0 %3283
  %3285 = vrot.lane.b32.xlu0 %v3219, 72
  %v3286 = vpop.permute.xlu0 %3285
  %3287 = vrot.lane.b32.xlu0 %v3220, 72
  %v3288 = vpop.permute.xlu0 %3287
  %3289 = vrot.lane.b32.xlu0 %v3221, 72
  %v3290 = vpop.permute.xlu0 %3289
  %3291 = vrot.lane.b32.xlu0 %v3222, 72
  %v3292 = vpop.permute.xlu0 %3291
  %3293 = vrot.lane.b32.xlu0 %v3223, 72
  %v3294 = vpop.permute.xlu0 %3293
  %3295 = vrot.lane.b32.xlu0 %v3224, 72
  %v3296 = vpop.permute.xlu0 %3295
  %vm3321 = vcmask 753216
  %3322 = vst.msk [vmem:[#allocation3 + $0x8] sm:$0xff] %vm3321, %v3250
  %3323 = vst.msk [vmem:[#allocation3 + $0x28] sm:$0xff] %vm3321, %v3252
  %3324 = vst.msk [vmem:[#allocation3 + $0x48] sm:$0xff] %vm3321, %v3254
  %3325 = vst.msk [vmem:[#allocation3 + $0x68] sm:$0xff] %vm3321, %v3256
  %3326 = vst.msk [vmem:[#allocation3 + $0x88] sm:$0xff] %vm3321, %v3258
  %3327 = vst.msk [vmem:[#allocation3 + $0xa8] sm:$0xff] %vm3321, %v3260
  %3328 = vst.msk [vmem:[#allocation3 + $0xc8] sm:$0xff] %vm3321, %v3262
  %3329 = vst.msk [vmem:[#allocation3 + $0xe8] sm:$0xff] %vm3321, %v3264
  %3330 = vst.msk [vmem:[#allocation3 + $0x108] sm:$0xff] %vm3321, %v3266
  %3331 = vst.msk [vmem:[#allocation3 + $0x128] sm:$0xff] %vm3321, %v3268
  %3332 = vst.msk [vmem:[#allocation3 + $0x148] sm:$0xff] %vm3321, %v3270
  %3333 = vst.msk [vmem:[#allocation3 + $0x168] sm:$0xff] %vm3321, %v3272
  %3334 = vst.msk [vmem:[#allocation3 + $0x188] sm:$0xff] %vm3321, %v3274
  %3335 = vst.msk [vmem:[#allocation3 + $0x1a8] sm:$0xff] %vm3321, %v3276
  %3336 = vst.msk [vmem:[#allocation3 + $0x1c8] sm:$0xff] %vm3321, %v3278
  %3337 = vst.msk [vmem:[#allocation3 + $0x1e8] sm:$0xff] %vm3321, %v3280
  %3338 = vst.msk [vmem:[#allocation3 + $0x208] sm:$0xff] %vm3321, %v3282
  %3339 = vst.msk [vmem:[#allocation3 + $0x228] sm:$0xff] %vm3321, %v3284
  %3340 = vst.msk [vmem:[#allocation3 + $0x248] sm:$0xff] %vm3321, %v3286
  %3341 = vst.msk [vmem:[#allocation3 + $0x268] sm:$0xff] %vm3321, %v3288
  %3342 = vst.msk [vmem:[#allocation3 + $0x288] sm:$0xff] %vm3321, %v3290
  %3343 = vst.msk [vmem:[#allocation3 + $0x2a8] sm:$0xff] %vm3321, %v3292
  %3344 = vst.msk [vmem:[#allocation3 + $0x2c8] sm:$0xff] %vm3321, %v3294
  %3345 = vst.msk [vmem:[#allocation3 + $0x2e8] sm:$0xff] %vm3321, %v3296
  %v3346 = vld [vmem:[#allocation2 + $0x32] sm:$0xff]
  %v3347 = vld [vmem:[#allocation2 + $0x3a] sm:$0xff]
  %v3348 = vld [vmem:[#allocation2 + $0x42] sm:$0xff]
  %v3349 = vld [vmem:[#allocation2 + $0x4a] sm:$0xff]
  %v3350 = vld [vmem:[#allocation2 + $0x52] sm:$0xff]
  %v3351 = vld [vmem:[#allocation2 + $0x5a] sm:$0xff]
  %v3352 = vld [vmem:[#allocation2 + $0x62] sm:$0xff]
  %v3353 = vld [vmem:[#allocation2 + $0x6a] sm:$0xff]
  %v3354 = vld [vmem:[#allocation2 + $0x72] sm:$0xff]
  %v3355 = vld [vmem:[#allocation2 + $0x7a] sm:$0xff]
  %v3356 = vld [vmem:[#allocation2 + $0x82] sm:$0xff]
  %v3357 = vld [vmem:[#allocation2 + $0x8a] sm:$0xff]
  %v3358 = vld [vmem:[#allocation2 + $0x92] sm:$0xff]
  %v3359 = vld [vmem:[#allocation2 + $0x9a] sm:$0xff]
  %v3360 = vld [vmem:[#allocation2 + $0xa2] sm:$0xff]
  %v3361 = vld [vmem:[#allocation2 + $0xaa] sm:$0xff]
  %v3362 = vld [vmem:[#allocation2 + $0xb2] sm:$0xff]
  %v3363 = vld [vmem:[#allocation2 + $0xba] sm:$0xff]
  %v3364 = vld [vmem:[#allocation2 + $0xc2] sm:$0xff]
  %v3365 = vld [vmem:[#allocation2 + $0xca] sm:$0xff]
  %v3366 = vld [vmem:[#allocation2 + $0xd2] sm:$0xff]
  %v3367 = vld [vmem:[#allocation2 + $0xda] sm:$0xff]
  %v3368 = vld [vmem:[#allocation2 + $0xe2] sm:$0xff]
  %v3369 = vld [vmem:[#allocation2 + $0xea] sm:$0xff]
  %3394 = vrot.lane.b32.xlu0 %v3346, 92
  %v3395 = vpop.permute.xlu0 %3394
  %3396 = vrot.lane.b32.xlu0 %v3347, 92
  %v3397 = vpop.permute.xlu0 %3396
  %3398 = vrot.lane.b32.xlu0 %v3348, 92
  %v3399 = vpop.permute.xlu0 %3398
  %3400 = vrot.lane.b32.xlu0 %v3349, 92
  %v3401 = vpop.permute.xlu0 %3400
  %3402 = vrot.lane.b32.xlu0 %v3350, 92
  %v3403 = vpop.permute.xlu0 %3402
  %3404 = vrot.lane.b32.xlu0 %v3351, 92
  %v3405 = vpop.permute.xlu0 %3404
  %3406 = vrot.lane.b32.xlu0 %v3352, 92
  %v3407 = vpop.permute.xlu0 %3406
  %3408 = vrot.lane.b32.xlu0 %v3353, 92
  %v3409 = vpop.permute.xlu0 %3408
  %3410 = vrot.lane.b32.xlu0 %v3354, 92
  %v3411 = vpop.permute.xlu0 %3410
  %3412 = vrot.lane.b32.xlu0 %v3355, 92
  %v3413 = vpop.permute.xlu0 %3412
  %3414 = vrot.lane.b32.xlu0 %v3356, 92
  %v3415 = vpop.permute.xlu0 %3414
  %3416 = vrot.lane.b32.xlu0 %v3357, 92
  %v3417 = vpop.permute.xlu0 %3416
  %3418 = vrot.lane.b32.xlu0 %v3358, 92
  %v3419 = vpop.permute.xlu0 %3418
  %3420 = vrot.lane.b32.xlu0 %v3359, 92
  %v3421 = vpop.permute.xlu0 %3420
  %3422 = vrot.lane.b32.xlu0 %v3360, 92
  %v3423 = vpop.permute.xlu0 %3422
  %3424 = vrot.lane.b32.xlu0 %v3361, 92
  %v3425 = vpop.permute.xlu0 %3424
  %3426 = vrot.lane.b32.xlu0 %v3362, 92
  %v3427 = vpop.permute.xlu0 %3426
  %3428 = vrot.lane.b32.xlu0 %v3363, 92
  %v3429 = vpop.permute.xlu0 %3428
  %3430 = vrot.lane.b32.xlu0 %v3364, 92
  %v3431 = vpop.permute.xlu0 %3430
  %3432 = vrot.lane.b32.xlu0 %v3365, 92
  %v3433 = vpop.permute.xlu0 %3432
  %3434 = vrot.lane.b32.xlu0 %v3366, 92
  %v3435 = vpop.permute.xlu0 %3434
  %3436 = vrot.lane.b32.xlu0 %v3367, 92
  %v3437 = vpop.permute.xlu0 %3436
  %3438 = vrot.lane.b32.xlu0 %v3368, 92
  %v3439 = vpop.permute.xlu0 %3438
  %3440 = vrot.lane.b32.xlu0 %v3369, 92
  %v3441 = vpop.permute.xlu0 %3440
  %vm3466 = vcmask 917216
  %3467 = vst.msk [vmem:[#allocation3 + $0x8] sm:$0xff] %vm3466, %v3395
  %3468 = vst.msk [vmem:[#allocation3 + $0x28] sm:$0xff] %vm3466, %v3397
  %3469 = vst.msk [vmem:[#allocation3 + $0x48] sm:$0xff] %vm3466, %v3399
  %3470 = vst.msk [vmem:[#allocation3 + $0x68] sm:$0xff] %vm3466, %v3401
  %3471 = vst.msk [vmem:[#allocation3 + $0x88] sm:$0xff] %vm3466, %v3403
  %3472 = vst.msk [vmem:[#allocation3 + $0xa8] sm:$0xff] %vm3466, %v3405
  %3473 = vst.msk [vmem:[#allocation3 + $0xc8] sm:$0xff] %vm3466, %v3407
  %3474 = vst.msk [vmem:[#allocation3 + $0xe8] sm:$0xff] %vm3466, %v3409
  %3475 = vst.msk [vmem:[#allocation3 + $0x108] sm:$0xff] %vm3466, %v3411
  %3476 = vst.msk [vmem:[#allocation3 + $0x128] sm:$0xff] %vm3466, %v3413
  %3477 = vst.msk [vmem:[#allocation3 + $0x148] sm:$0xff] %vm3466, %v3415
  %3478 = vst.msk [vmem:[#allocation3 + $0x168] sm:$0xff] %vm3466, %v3417
  %3479 = vst.msk [vmem:[#allocation3 + $0x188] sm:$0xff] %vm3466, %v3419
  %3480 = vst.msk [vmem:[#allocation3 + $0x1a8] sm:$0xff] %vm3466, %v3421
  %3481 = vst.msk [vmem:[#allocation3 + $0x1c8] sm:$0xff] %vm3466, %v3423
  %3482 = vst.msk [vmem:[#allocation3 + $0x1e8] sm:$0xff] %vm3466, %v3425
  %3483 = vst.msk [vmem:[#allocation3 + $0x208] sm:$0xff] %vm3466, %v3427
  %3484 = vst.msk [vmem:[#allocation3 + $0x228] sm:$0xff] %vm3466, %v3429
  %3485 = vst.msk [vmem:[#allocation3 + $0x248] sm:$0xff] %vm3466, %v3431
  %3486 = vst.msk [vmem:[#allocation3 + $0x268] sm:$0xff] %vm3466, %v3433
  %3487 = vst.msk [vmem:[#allocation3 + $0x288] sm:$0xff] %vm3466, %v3435
  %3488 = vst.msk [vmem:[#allocation3 + $0x2a8] sm:$0xff] %vm3466, %v3437
  %3489 = vst.msk [vmem:[#allocation3 + $0x2c8] sm:$0xff] %vm3466, %v3439
  %3490 = vst.msk [vmem:[#allocation3 + $0x2e8] sm:$0xff] %vm3466, %v3441
  %v3491 = vld [vmem:[#allocation2 + $0x34] sm:$0xff]
  %v3492 = vld [vmem:[#allocation2 + $0x3c] sm:$0xff]
  %v3493 = vld [vmem:[#allocation2 + $0x44] sm:$0xff]
  %v3494 = vld [vmem:[#allocation2 + $0x4c] sm:$0xff]
  %v3495 = vld [vmem:[#allocation2 + $0x54] sm:$0xff]
  %v3496 = vld [vmem:[#allocation2 + $0x5c] sm:$0xff]
  %v3497 = vld [vmem:[#allocation2 + $0x64] sm:$0xff]
  %v3498 = vld [vmem:[#allocation2 + $0x6c] sm:$0xff]
  %v3499 = vld [vmem:[#allocation2 + $0x74] sm:$0xff]
  %v3500 = vld [vmem:[#allocation2 + $0x7c] sm:$0xff]
  %v3501 = vld [vmem:[#allocation2 + $0x84] sm:$0xff]
  %v3502 = vld [vmem:[#allocation2 + $0x8c] sm:$0xff]
  %v3503 = vld [vmem:[#allocation2 + $0x94] sm:$0xff]
  %v3504 = vld [vmem:[#allocation2 + $0x9c] sm:$0xff]
  %v3505 = vld [vmem:[#allocation2 + $0xa4] sm:$0xff]
  %v3506 = vld [vmem:[#allocation2 + $0xac] sm:$0xff]
  %v3507 = vld [vmem:[#allocation2 + $0xb4] sm:$0xff]
  %v3508 = vld [vmem:[#allocation2 + $0xbc] sm:$0xff]
  %v3509 = vld [vmem:[#allocation2 + $0xc4] sm:$0xff]
  %v3510 = vld [vmem:[#allocation2 + $0xcc] sm:$0xff]
  %v3511 = vld [vmem:[#allocation2 + $0xd4] sm:$0xff]
  %v3512 = vld [vmem:[#allocation2 + $0xdc] sm:$0xff]
  %v3513 = vld [vmem:[#allocation2 + $0xe4] sm:$0xff]
  %v3514 = vld [vmem:[#allocation2 + $0xec] sm:$0xff]
  %3539 = vrot.lane.b32.xlu0 %v3491, 112
  %v3540 = vpop.permute.xlu0 %3539
  %3541 = vrot.lane.b32.xlu0 %v3492, 112
  %v3542 = vpop.permute.xlu0 %3541
  %3543 = vrot.lane.b32.xlu0 %v3493, 112
  %v3544 = vpop.permute.xlu0 %3543
  %3545 = vrot.lane.b32.xlu0 %v3494, 112
  %v3546 = vpop.permute.xlu0 %3545
  %3547 = vrot.lane.b32.xlu0 %v3495, 112
  %v3548 = vpop.permute.xlu0 %3547
  %3549 = vrot.lane.b32.xlu0 %v3496, 112
  %v3550 = vpop.permute.xlu0 %3549
  %3551 = vrot.lane.b32.xlu0 %v3497, 112
  %v3552 = vpop.permute.xlu0 %3551
  %3553 = vrot.lane.b32.xlu0 %v3498, 112
  %v3554 = vpop.permute.xlu0 %3553
  %3555 = vrot.lane.b32.xlu0 %v3499, 112
  %v3556 = vpop.permute.xlu0 %3555
  %3557 = vrot.lane.b32.xlu0 %v3500, 112
  %v3558 = vpop.permute.xlu0 %3557
  %3559 = vrot.lane.b32.xlu0 %v3501, 112
  %v3560 = vpop.permute.xlu0 %3559
  %3561 = vrot.lane.b32.xlu0 %v3502, 112
  %v3562 = vpop.permute.xlu0 %3561
  %3563 = vrot.lane.b32.xlu0 %v3503, 112
  %v3564 = vpop.permute.xlu0 %3563
  %3565 = vrot.lane.b32.xlu0 %v3504, 112
  %v3566 = vpop.permute.xlu0 %3565
  %3567 = vrot.lane.b32.xlu0 %v3505, 112
  %v3568 = vpop.permute.xlu0 %3567
  %3569 = vrot.lane.b32.xlu0 %v3506, 112
  %v3570 = vpop.permute.xlu0 %3569
  %3571 = vrot.lane.b32.xlu0 %v3507, 112
  %v3572 = vpop.permute.xlu0 %3571
  %3573 = vrot.lane.b32.xlu0 %v3508, 112
  %v3574 = vpop.permute.xlu0 %3573
  %3575 = vrot.lane.b32.xlu0 %v3509, 112
  %v3576 = vpop.permute.xlu0 %3575
  %3577 = vrot.lane.b32.xlu0 %v3510, 112
  %v3578 = vpop.permute.xlu0 %3577
  %3579 = vrot.lane.b32.xlu0 %v3511, 112
  %v3580 = vpop.permute.xlu0 %3579
  %3581 = vrot.lane.b32.xlu0 %v3512, 112
  %v3582 = vpop.permute.xlu0 %3581
  %3583 = vrot.lane.b32.xlu0 %v3513, 112
  %v3584 = vpop.permute.xlu0 %3583
  %3585 = vrot.lane.b32.xlu0 %v3514, 112
  %v3586 = vpop.permute.xlu0 %3585
  %vm3611 = vcmask 1048448
  %3612 = vst.msk [vmem:[#allocation3 + $0x8] sm:$0xff] %vm3611, %v3540
  %vm3613 = vcmask 31744
  %3614 = vst.msk [vmem:[#allocation3 + $0x10] sm:$0xff] %vm3613, %v3540
  %3615 = vst.msk [vmem:[#allocation3 + $0x28] sm:$0xff] %vm3611, %v3542
  %3616 = vst.msk [vmem:[#allocation3 + $0x30] sm:$0xff] %vm3613, %v3542
  %3617 = vst.msk [vmem:[#allocation3 + $0x48] sm:$0xff] %vm3611, %v3544
  %3618 = vst.msk [vmem:[#allocation3 + $0x50] sm:$0xff] %vm3613, %v3544
  %3619 = vst.msk [vmem:[#allocation3 + $0x68] sm:$0xff] %vm3611, %v3546
  %3620 = vst.msk [vmem:[#allocation3 + $0x70] sm:$0xff] %vm3613, %v3546
  %3621 = vst.msk [vmem:[#allocation3 + $0x88] sm:$0xff] %vm3611, %v3548
  %3622 = vst.msk [vmem:[#allocation3 + $0x90] sm:$0xff] %vm3613, %v3548
  %3623 = vst.msk [vmem:[#allocation3 + $0xa8] sm:$0xff] %vm3611, %v3550
  %3624 = vst.msk [vmem:[#allocation3 + $0xb0] sm:$0xff] %vm3613, %v3550
  %3625 = vst.msk [vmem:[#allocation3 + $0xc8] sm:$0xff] %vm3611, %v3552
  %3626 = vst.msk [vmem:[#allocation3 + $0xd0] sm:$0xff] %vm3613, %v3552
  %3627 = vst.msk [vmem:[#allocation3 + $0xe8] sm:$0xff] %vm3611, %v3554
  %3628 = vst.msk [vmem:[#allocation3 + $0xf0] sm:$0xff] %vm3613, %v3554
  %3629 = vst.msk [vmem:[#allocation3 + $0x108] sm:$0xff] %vm3611, %v3556
  %3630 = vst.msk [vmem:[#allocation3 + $0x110] sm:$0xff] %vm3613, %v3556
  %3631 = vst.msk [vmem:[#allocation3 + $0x128] sm:$0xff] %vm3611, %v3558
  %3632 = vst.msk [vmem:[#allocation3 + $0x130] sm:$0xff] %vm3613, %v3558
  %3633 = vst.msk [vmem:[#allocation3 + $0x148] sm:$0xff] %vm3611, %v3560
  %3634 = vst.msk [vmem:[#allocation3 + $0x150] sm:$0xff] %vm3613, %v3560
  %3635 = vst.msk [vmem:[#allocation3 + $0x168] sm:$0xff] %vm3611, %v3562
  %3636 = vst.msk [vmem:[#allocation3 + $0x170] sm:$0xff] %vm3613, %v3562
  %3637 = vst.msk [vmem:[#allocation3 + $0x188] sm:$0xff] %vm3611, %v3564
  %3638 = vst.msk [vmem:[#allocation3 + $0x190] sm:$0xff] %vm3613, %v3564
  %3639 = vst.msk [vmem:[#allocation3 + $0x1a8] sm:$0xff] %vm3611, %v3566
  %3640 = vst.msk [vmem:[#allocation3 + $0x1b0] sm:$0xff] %vm3613, %v3566
  %3641 = vst.msk [vmem:[#allocation3 + $0x1c8] sm:$0xff] %vm3611, %v3568
  %3642 = vst.msk [vmem:[#allocation3 + $0x1d0] sm:$0xff] %vm3613, %v3568
  %3643 = vst.msk [vmem:[#allocation3 + $0x1e8] sm:$0xff] %vm3611, %v3570
  %3644 = vst.msk [vmem:[#allocation3 + $0x1f0] sm:$0xff] %vm3613, %v3570
  %3645 = vst.msk [vmem:[#allocation3 + $0x208] sm:$0xff] %vm3611, %v3572
  %3646 = vst.msk [vmem:[#allocation3 + $0x210] sm:$0xff] %vm3613, %v3572
  %3647 = vst.msk [vmem:[#allocation3 + $0x228] sm:$0xff] %vm3611, %v3574
  %3648 = vst.msk [vmem:[#allocation3 + $0x230] sm:$0xff] %vm3613, %v3574
  %3649 = vst.msk [vmem:[#allocation3 + $0x248] sm:$0xff] %vm3611, %v3576
  %3650 = vst.msk [vmem:[#allocation3 + $0x250] sm:$0xff] %vm3613, %v3576
  %3651 = vst.msk [vmem:[#allocation3 + $0x268] sm:$0xff] %vm3611, %v3578
  %3652 = vst.msk [vmem:[#allocation3 + $0x270] sm:$0xff] %vm3613, %v3578
  %3653 = vst.msk [vmem:[#allocation3 + $0x288] sm:$0xff] %vm3611, %v3580
  %3654 = vst.msk [vmem:[#allocation3 + $0x290] sm:$0xff] %vm3613, %v3580
  %3655 = vst.msk [vmem:[#allocation3 + $0x2a8] sm:$0xff] %vm3611, %v3582
  %3656 = vst.msk [vmem:[#allocation3 + $0x2b0] sm:$0xff] %vm3613, %v3582
  %3657 = vst.msk [vmem:[#allocation3 + $0x2c8] sm:$0xff] %vm3611, %v3584
  %3658 = vst.msk [vmem:[#allocation3 + $0x2d0] sm:$0xff] %vm3613, %v3584
  %3659 = vst.msk [vmem:[#allocation3 + $0x2e8] sm:$0xff] %vm3611, %v3586
  %3660 = vst.msk [vmem:[#allocation3 + $0x2f0] sm:$0xff] %vm3613, %v3586
  %v3661 = vld [vmem:[#allocation2 + $0x36] sm:$0xff]
  %v3662 = vld [vmem:[#allocation2 + $0x3e] sm:$0xff]
  %v3663 = vld [vmem:[#allocation2 + $0x46] sm:$0xff]
  %v3664 = vld [vmem:[#allocation2 + $0x4e] sm:$0xff]
  %v3665 = vld [vmem:[#allocation2 + $0x56] sm:$0xff]
  %v3666 = vld [vmem:[#allocation2 + $0x5e] sm:$0xff]
  %v3667 = vld [vmem:[#allocation2 + $0x66] sm:$0xff]
  %v3668 = vld [vmem:[#allocation2 + $0x6e] sm:$0xff]
  %v3669 = vld [vmem:[#allocation2 + $0x76] sm:$0xff]
  %v3670 = vld [vmem:[#allocation2 + $0x7e] sm:$0xff]
  %v3671 = vld [vmem:[#allocation2 + $0x86] sm:$0xff]
  %v3672 = vld [vmem:[#allocation2 + $0x8e] sm:$0xff]
  %v3673 = vld [vmem:[#allocation2 + $0x96] sm:$0xff]
  %v3674 = vld [vmem:[#allocation2 + $0x9e] sm:$0xff]
  %v3675 = vld [vmem:[#allocation2 + $0xa6] sm:$0xff]
  %v3676 = vld [vmem:[#allocation2 + $0xae] sm:$0xff]
  %v3677 = vld [vmem:[#allocation2 + $0xb6] sm:$0xff]
  %v3678 = vld [vmem:[#allocation2 + $0xbe] sm:$0xff]
  %v3679 = vld [vmem:[#allocation2 + $0xc6] sm:$0xff]
  %v3680 = vld [vmem:[#allocation2 + $0xce] sm:$0xff]
  %v3681 = vld [vmem:[#allocation2 + $0xd6] sm:$0xff]
  %v3682 = vld [vmem:[#allocation2 + $0xde] sm:$0xff]
  %v3683 = vld [vmem:[#allocation2 + $0xe6] sm:$0xff]
  %v3684 = vld [vmem:[#allocation2 + $0xee] sm:$0xff]
  %3709 = vrot.lane.b32.xlu0 %v3661, 4
  %v3710 = vpop.permute.xlu0 %3709
  %3711 = vrot.lane.b32.xlu0 %v3662, 4
  %v3712 = vpop.permute.xlu0 %3711
  %3713 = vrot.lane.b32.xlu0 %v3663, 4
  %v3714 = vpop.permute.xlu0 %3713
  %3715 = vrot.lane.b32.xlu0 %v3664, 4
  %v3716 = vpop.permute.xlu0 %3715
  %3717 = vrot.lane.b32.xlu0 %v3665, 4
  %v3718 = vpop.permute.xlu0 %3717
  %3719 = vrot.lane.b32.xlu0 %v3666, 4
  %v3720 = vpop.permute.xlu0 %3719
  %3721 = vrot.lane.b32.xlu0 %v3667, 4
  %v3722 = vpop.permute.xlu0 %3721
  %3723 = vrot.lane.b32.xlu0 %v3668, 4
  %v3724 = vpop.permute.xlu0 %3723
  %3725 = vrot.lane.b32.xlu0 %v3669, 4
  %v3726 = vpop.permute.xlu0 %3725
  %3727 = vrot.lane.b32.xlu0 %v3670, 4
  %v3728 = vpop.permute.xlu0 %3727
  %3729 = vrot.lane.b32.xlu0 %v3671, 4
  %v3730 = vpop.permute.xlu0 %3729
  %3731 = vrot.lane.b32.xlu0 %v3672, 4
  %v3732 = vpop.permute.xlu0 %3731
  %3733 = vrot.lane.b32.xlu0 %v3673, 4
  %v3734 = vpop.permute.xlu0 %3733
  %3735 = vrot.lane.b32.xlu0 %v3674, 4
  %v3736 = vpop.permute.xlu0 %3735
  %3737 = vrot.lane.b32.xlu0 %v3675, 4
  %v3738 = vpop.permute.xlu0 %3737
  %3739 = vrot.lane.b32.xlu0 %v3676, 4
  %v3740 = vpop.permute.xlu0 %3739
  %3741 = vrot.lane.b32.xlu0 %v3677, 4
  %v3742 = vpop.permute.xlu0 %3741
  %3743 = vrot.lane.b32.xlu0 %v3678, 4
  %v3744 = vpop.permute.xlu0 %3743
  %3745 = vrot.lane.b32.xlu0 %v3679, 4
  %v3746 = vpop.permute.xlu0 %3745
  %3747 = vrot.lane.b32.xlu0 %v3680, 4
  %v3748 = vpop.permute.xlu0 %3747
  %3749 = vrot.lane.b32.xlu0 %v3681, 4
  %v3750 = vpop.permute.xlu0 %3749
  %3751 = vrot.lane.b32.xlu0 %v3682, 4
  %v3752 = vpop.permute.xlu0 %3751
  %3753 = vrot.lane.b32.xlu0 %v3683, 4
  %v3754 = vpop.permute.xlu0 %3753
  %3755 = vrot.lane.b32.xlu0 %v3684, 4
  %v3756 = vpop.permute.xlu0 %3755
  %vm3781 = vcmask 195616
  %3782 = vst.msk [vmem:[#allocation3 + $0x10] sm:$0xff] %vm3781, %v3710
  %3783 = vst.msk [vmem:[#allocation3 + $0x30] sm:$0xff] %vm3781, %v3712
  %3784 = vst.msk [vmem:[#allocation3 + $0x50] sm:$0xff] %vm3781, %v3714
  %3785 = vst.msk [vmem:[#allocation3 + $0x70] sm:$0xff] %vm3781, %v3716
  %3786 = vst.msk [vmem:[#allocation3 + $0x90] sm:$0xff] %vm3781, %v3718
  %3787 = vst.msk [vmem:[#allocation3 + $0xb0] sm:$0xff] %vm3781, %v3720
  %3788 = vst.msk [vmem:[#allocation3 + $0xd0] sm:$0xff] %vm3781, %v3722
  %3789 = vst.msk [vmem:[#allocation3 + $0xf0] sm:$0xff] %vm3781, %v3724
  %3790 = vst.msk [vmem:[#allocation3 + $0x110] sm:$0xff] %vm3781, %v3726
  %3791 = vst.msk [vmem:[#allocation3 + $0x130] sm:$0xff] %vm3781, %v3728
  %3792 = vst.msk [vmem:[#allocation3 + $0x150] sm:$0xff] %vm3781, %v3730
  %3793 = vst.msk [vmem:[#allocation3 + $0x170] sm:$0xff] %vm3781, %v3732
  %3794 = vst.msk [vmem:[#allocation3 + $0x190] sm:$0xff] %vm3781, %v3734
  %3795 = vst.msk [vmem:[#allocation3 + $0x1b0] sm:$0xff] %vm3781, %v3736
  %3796 = vst.msk [vmem:[#allocation3 + $0x1d0] sm:$0xff] %vm3781, %v3738
  %3797 = vst.msk [vmem:[#allocation3 + $0x1f0] sm:$0xff] %vm3781, %v3740
  %3798 = vst.msk [vmem:[#allocation3 + $0x210] sm:$0xff] %vm3781, %v3742
  %3799 = vst.msk [vmem:[#allocation3 + $0x230] sm:$0xff] %vm3781, %v3744
  %3800 = vst.msk [vmem:[#allocation3 + $0x250] sm:$0xff] %vm3781, %v3746
  %3801 = vst.msk [vmem:[#allocation3 + $0x270] sm:$0xff] %vm3781, %v3748
  %3802 = vst.msk [vmem:[#allocation3 + $0x290] sm:$0xff] %vm3781, %v3750
  %3803 = vst.msk [vmem:[#allocation3 + $0x2b0] sm:$0xff] %vm3781, %v3752
  %3804 = vst.msk [vmem:[#allocation3 + $0x2d0] sm:$0xff] %vm3781, %v3754
  %3805 = vst.msk [vmem:[#allocation3 + $0x2f0] sm:$0xff] %vm3781, %v3756
  %v3806 = vld [vmem:[#allocation2 + $0x38] sm:$0xff]
  %v3807 = vld [vmem:[#allocation2 + $0x40] sm:$0xff]
  %v3808 = vld [vmem:[#allocation2 + $0x48] sm:$0xff]
  %v3809 = vld [vmem:[#allocation2 + $0x50] sm:$0xff]
  %v3810 = vld [vmem:[#allocation2 + $0x58] sm:$0xff]
  %v3811 = vld [vmem:[#allocation2 + $0x60] sm:$0xff]
  %v3812 = vld [vmem:[#allocation2 + $0x68] sm:$0xff]
  %v3813 = vld [vmem:[#allocation2 + $0x70] sm:$0xff]
  %v3814 = vld [vmem:[#allocation2 + $0x78] sm:$0xff]
  %v3815 = vld [vmem:[#allocation2 + $0x80] sm:$0xff]
  %v3816 = vld [vmem:[#allocation2 + $0x88] sm:$0xff]
  %v3817 = vld [vmem:[#allocation2 + $0x90] sm:$0xff]
  %v3818 = vld [vmem:[#allocation2 + $0x98] sm:$0xff]
  %v3819 = vld [vmem:[#allocation2 + $0xa0] sm:$0xff]
  %v3820 = vld [vmem:[#allocation2 + $0xa8] sm:$0xff]
  %v3821 = vld [vmem:[#allocation2 + $0xb0] sm:$0xff]
  %v3822 = vld [vmem:[#allocation2 + $0xb8] sm:$0xff]
  %v3823 = vld [vmem:[#allocation2 + $0xc0] sm:$0xff]
  %v3824 = vld [vmem:[#allocation2 + $0xc8] sm:$0xff]
  %v3825 = vld [vmem:[#allocation2 + $0xd0] sm:$0xff]
  %v3826 = vld [vmem:[#allocation2 + $0xd8] sm:$0xff]
  %v3827 = vld [vmem:[#allocation2 + $0xe0] sm:$0xff]
  %v3828 = vld [vmem:[#allocation2 + $0xe8] sm:$0xff]
  %v3829 = vld [vmem:[#allocation2 + $0xf0] sm:$0xff]
  %3854 = vrot.lane.b32.xlu0 %v3806, 24
  %v3855 = vpop.permute.xlu0 %3854
  %3856 = vrot.lane.b32.xlu0 %v3807, 24
  %v3857 = vpop.permute.xlu0 %3856
  %3858 = vrot.lane.b32.xlu0 %v3808, 24
  %v3859 = vpop.permute.xlu0 %3858
  %3860 = vrot.lane.b32.xlu0 %v3809, 24
  %v3861 = vpop.permute.xlu0 %3860
  %3862 = vrot.lane.b32.xlu0 %v3810, 24
  %v3863 = vpop.permute.xlu0 %3862
  %3864 = vrot.lane.b32.xlu0 %v3811, 24
  %v3865 = vpop.permute.xlu0 %3864
  %3866 = vrot.lane.b32.xlu0 %v3812, 24
  %v3867 = vpop.permute.xlu0 %3866
  %3868 = vrot.lane.b32.xlu0 %v3813, 24
  %v3869 = vpop.permute.xlu0 %3868
  %3870 = vrot.lane.b32.xlu0 %v3814, 24
  %v3871 = vpop.permute.xlu0 %3870
  %3872 = vrot.lane.b32.xlu0 %v3815, 24
  %v3873 = vpop.permute.xlu0 %3872
  %3874 = vrot.lane.b32.xlu0 %v3816, 24
  %v3875 = vpop.permute.xlu0 %3874
  %3876 = vrot.lane.b32.xlu0 %v3817, 24
  %v3877 = vpop.permute.xlu0 %3876
  %3878 = vrot.lane.b32.xlu0 %v3818, 24
  %v3879 = vpop.permute.xlu0 %3878
  %3880 = vrot.lane.b32.xlu0 %v3819, 24
  %v3881 = vpop.permute.xlu0 %3880
  %3882 = vrot.lane.b32.xlu0 %v3820, 24
  %v3883 = vpop.permute.xlu0 %3882
  %3884 = vrot.lane.b32.xlu0 %v3821, 24
  %v3885 = vpop.permute.xlu0 %3884
  %3886 = vrot.lane.b32.xlu0 %v3822, 24
  %v3887 = vpop.permute.xlu0 %3886
  %3888 = vrot.lane.b32.xlu0 %v3823, 24
  %v3889 = vpop.permute.xlu0 %3888
  %3890 = vrot.lane.b32.xlu0 %v3824, 24
  %v3891 = vpop.permute.xlu0 %3890
  %3892 = vrot.lane.b32.xlu0 %v3825, 24
  %v3893 = vpop.permute.xlu0 %3892
  %3894 = vrot.lane.b32.xlu0 %v3826, 24
  %v3895 = vpop.permute.xlu0 %3894
  %3896 = vrot.lane.b32.xlu0 %v3827, 24
  %v3897 = vpop.permute.xlu0 %3896
  %3898 = vrot.lane.b32.xlu0 %v3828, 24
  %v3899 = vpop.permute.xlu0 %3898
  %3900 = vrot.lane.b32.xlu0 %v3829, 24
  %v3901 = vpop.permute.xlu0 %3900
  %vm3926 = vcmask 359616
  %3927 = vst.msk [vmem:[#allocation3 + $0x10] sm:$0xff] %vm3926, %v3855
  %3928 = vst.msk [vmem:[#allocation3 + $0x30] sm:$0xff] %vm3926, %v3857
  %3929 = vst.msk [vmem:[#allocation3 + $0x50] sm:$0xff] %vm3926, %v3859
  %3930 = vst.msk [vmem:[#allocation3 + $0x70] sm:$0xff] %vm3926, %v3861
  %3931 = vst.msk [vmem:[#allocation3 + $0x90] sm:$0xff] %vm3926, %v3863
  %3932 = vst.msk [vmem:[#allocation3 + $0xb0] sm:$0xff] %vm3926, %v3865
  %3933 = vst.msk [vmem:[#allocation3 + $0xd0] sm:$0xff] %vm3926, %v3867
  %3934 = vst.msk [vmem:[#allocation3 + $0xf0] sm:$0xff] %vm3926, %v3869
  %3935 = vst.msk [vmem:[#allocation3 + $0x110] sm:$0xff] %vm3926, %v3871
  %3936 = vst.msk [vmem:[#allocation3 + $0x130] sm:$0xff] %vm3926, %v3873
  %3937 = vst.msk [vmem:[#allocation3 + $0x150] sm:$0xff] %vm3926, %v3875
  %3938 = vst.msk [vmem:[#allocation3 + $0x170] sm:$0xff] %vm3926, %v3877
  %3939 = vst.msk [vmem:[#allocation3 + $0x190] sm:$0xff] %vm3926, %v3879
  %3940 = vst.msk [vmem:[#allocation3 + $0x1b0] sm:$0xff] %vm3926, %v3881
  %3941 = vst.msk [vmem:[#allocation3 + $0x1d0] sm:$0xff] %vm3926, %v3883
  %3942 = vst.msk [vmem:[#allocation3 + $0x1f0] sm:$0xff] %vm3926, %v3885
  %3943 = vst.msk [vmem:[#allocation3 + $0x210] sm:$0xff] %vm3926, %v3887
  %3944 = vst.msk [vmem:[#allocation3 + $0x230] sm:$0xff] %vm3926, %v3889
  %3945 = vst.msk [vmem:[#allocation3 + $0x250] sm:$0xff] %vm3926, %v3891
  %3946 = vst.msk [vmem:[#allocation3 + $0x270] sm:$0xff] %vm3926, %v3893
  %3947 = vst.msk [vmem:[#allocation3 + $0x290] sm:$0xff] %vm3926, %v3895
  %3948 = vst.msk [vmem:[#allocation3 + $0x2b0] sm:$0xff] %vm3926, %v3897
  %3949 = vst.msk [vmem:[#allocation3 + $0x2d0] sm:$0xff] %vm3926, %v3899
  %3950 = vst.msk [vmem:[#allocation3 + $0x2f0] sm:$0xff] %vm3926, %v3901
  %v3951 = vld [vmem:[#allocation2 + $0x48] sm:$0xff]
  %v3952 = vld [vmem:[#allocation2 + $0x50] sm:$0xff]
  %v3953 = vld [vmem:[#allocation2 + $0x58] sm:$0xff]
  %v3954 = vld [vmem:[#allocation2 + $0x60] sm:$0xff]
  %v3955 = vld [vmem:[#allocation2 + $0x68] sm:$0xff]
  %v3956 = vld [vmem:[#allocation2 + $0x70] sm:$0xff]
  %v3957 = vld [vmem:[#allocation2 + $0x78] sm:$0xff]
  %v3958 = vld [vmem:[#allocation2 + $0x80] sm:$0xff]
  %v3959 = vld [vmem:[#allocation2 + $0x88] sm:$0xff]
  %v3960 = vld [vmem:[#allocation2 + $0x90] sm:$0xff]
  %v3961 = vld [vmem:[#allocation2 + $0x98] sm:$0xff]
  %v3962 = vld [vmem:[#allocation2 + $0xa0] sm:$0xff]
  %v3963 = vld [vmem:[#allocation2 + $0xa8] sm:$0xff]
  %v3964 = vld [vmem:[#allocation2 + $0xb0] sm:$0xff]
  %v3965 = vld [vmem:[#allocation2 + $0xb8] sm:$0xff]
  %v3966 = vld [vmem:[#allocation2 + $0xc0] sm:$0xff]
  %v3967 = vld [vmem:[#allocation2 + $0xc8] sm:$0xff]
  %v3968 = vld [vmem:[#allocation2 + $0xd0] sm:$0xff]
  %v3969 = vld [vmem:[#allocation2 + $0xd8] sm:$0xff]
  %v3970 = vld [vmem:[#allocation2 + $0xe0] sm:$0xff]
  %v3971 = vld [vmem:[#allocation2 + $0xe8] sm:$0xff]
  %v3972 = vld [vmem:[#allocation2 + $0xf0] sm:$0xff]
  %v3973 = vld [vmem:[#allocation2 + $0xf8] sm:$0xff]
  %v3974 = vld [vmem:[#allocation2 + $0x100] sm:$0xff]
  %3999 = vrot.lane.b32.xlu0 %v3951, 44
  %v4000 = vpop.permute.xlu0 %3999
  %4001 = vrot.lane.b32.xlu0 %v3952, 44
  %v4002 = vpop.permute.xlu0 %4001
  %4003 = vrot.lane.b32.xlu0 %v3953, 44
  %v4004 = vpop.permute.xlu0 %4003
  %4005 = vrot.lane.b32.xlu0 %v3954, 44
  %v4006 = vpop.permute.xlu0 %4005
  %4007 = vrot.lane.b32.xlu0 %v3955, 44
  %v4008 = vpop.permute.xlu0 %4007
  %4009 = vrot.lane.b32.xlu0 %v3956, 44
  %v4010 = vpop.permute.xlu0 %4009
  %4011 = vrot.lane.b32.xlu0 %v3957, 44
  %v4012 = vpop.permute.xlu0 %4011
  %4013 = vrot.lane.b32.xlu0 %v3958, 44
  %v4014 = vpop.permute.xlu0 %4013
  %4015 = vrot.lane.b32.xlu0 %v3959, 44
  %v4016 = vpop.permute.xlu0 %4015
  %4017 = vrot.lane.b32.xlu0 %v3960, 44
  %v4018 = vpop.permute.xlu0 %4017
  %4019 = vrot.lane.b32.xlu0 %v3961, 44
  %v4020 = vpop.permute.xlu0 %4019
  %4021 = vrot.lane.b32.xlu0 %v3962, 44
  %v4022 = vpop.permute.xlu0 %4021
  %4023 = vrot.lane.b32.xlu0 %v3963, 44
  %v4024 = vpop.permute.xlu0 %4023
  %4025 = vrot.lane.b32.xlu0 %v3964, 44
  %v4026 = vpop.permute.xlu0 %4025
  %4027 = vrot.lane.b32.xlu0 %v3965, 44
  %v4028 = vpop.permute.xlu0 %4027
  %4029 = vrot.lane.b32.xlu0 %v3966, 44
  %v4030 = vpop.permute.xlu0 %4029
  %4031 = vrot.lane.b32.xlu0 %v3967, 44
  %v4032 = vpop.permute.xlu0 %4031
  %4033 = vrot.lane.b32.xlu0 %v3968, 44
  %v4034 = vpop.permute.xlu0 %4033
  %4035 = vrot.lane.b32.xlu0 %v3969, 44
  %v4036 = vpop.permute.xlu0 %4035
  %4037 = vrot.lane.b32.xlu0 %v3970, 44
  %v4038 = vpop.permute.xlu0 %4037
  %4039 = vrot.lane.b32.xlu0 %v3971, 44
  %v4040 = vpop.permute.xlu0 %4039
  %4041 = vrot.lane.b32.xlu0 %v3972, 44
  %v4042 = vpop.permute.xlu0 %4041
  %4043 = vrot.lane.b32.xlu0 %v3973, 44
  %v4044 = vpop.permute.xlu0 %4043
  %4045 = vrot.lane.b32.xlu0 %v3974, 44
  %v4046 = vpop.permute.xlu0 %4045
  %vm4071 = vcmask 523616
  %4072 = vst.msk [vmem:[#allocation3 + $0x10] sm:$0xff] %vm4071, %v4000
  %4073 = vst.msk [vmem:[#allocation3 + $0x30] sm:$0xff] %vm4071, %v4002
  %4074 = vst.msk [vmem:[#allocation3 + $0x50] sm:$0xff] %vm4071, %v4004
  %4075 = vst.msk [vmem:[#allocation3 + $0x70] sm:$0xff] %vm4071, %v4006
  %4076 = vst.msk [vmem:[#allocation3 + $0x90] sm:$0xff] %vm4071, %v4008
  %4077 = vst.msk [vmem:[#allocation3 + $0xb0] sm:$0xff] %vm4071, %v4010
  %4078 = vst.msk [vmem:[#allocation3 + $0xd0] sm:$0xff] %vm4071, %v4012
  %4079 = vst.msk [vmem:[#allocation3 + $0xf0] sm:$0xff] %vm4071, %v4014
  %4080 = vst.msk [vmem:[#allocation3 + $0x110] sm:$0xff] %vm4071, %v4016
  %4081 = vst.msk [vmem:[#allocation3 + $0x130] sm:$0xff] %vm4071, %v4018
  %4082 = vst.msk [vmem:[#allocation3 + $0x150] sm:$0xff] %vm4071, %v4020
  %4083 = vst.msk [vmem:[#allocation3 + $0x170] sm:$0xff] %vm4071, %v4022
  %4084 = vst.msk [vmem:[#allocation3 + $0x190] sm:$0xff] %vm4071, %v4024
  %4085 = vst.msk [vmem:[#allocation3 + $0x1b0] sm:$0xff] %vm4071, %v4026
  %4086 = vst.msk [vmem:[#allocation3 + $0x1d0] sm:$0xff] %vm4071, %v4028
  %4087 = vst.msk [vmem:[#allocation3 + $0x1f0] sm:$0xff] %vm4071, %v4030
  %4088 = vst.msk [vmem:[#allocation3 + $0x210] sm:$0xff] %vm4071, %v4032
  %4089 = vst.msk [vmem:[#allocation3 + $0x230] sm:$0xff] %vm4071, %v4034
  %4090 = vst.msk [vmem:[#allocation3 + $0x250] sm:$0xff] %vm4071, %v4036
  %4091 = vst.msk [vmem:[#allocation3 + $0x270] sm:$0xff] %vm4071, %v4038
  %4092 = vst.msk [vmem:[#allocation3 + $0x290] sm:$0xff] %vm4071, %v4040
  %4093 = vst.msk [vmem:[#allocation3 + $0x2b0] sm:$0xff] %vm4071, %v4042
  %4094 = vst.msk [vmem:[#allocation3 + $0x2d0] sm:$0xff] %vm4071, %v4044
  %4095 = vst.msk [vmem:[#allocation3 + $0x2f0] sm:$0xff] %vm4071, %v4046
  %v4096 = vld [vmem:[#allocation2 + $0x4a] sm:$0xff]
  %v4097 = vld [vmem:[#allocation2 + $0x52] sm:$0xff]
  %v4098 = vld [vmem:[#allocation2 + $0x5a] sm:$0xff]
  %v4099 = vld [vmem:[#allocation2 + $0x62] sm:$0xff]
  %v4100 = vld [vmem:[#allocation2 + $0x6a] sm:$0xff]
  %v4101 = vld [vmem:[#allocation2 + $0x72] sm:$0xff]
  %v4102 = vld [vmem:[#allocation2 + $0x7a] sm:$0xff]
  %v4103 = vld [vmem:[#allocation2 + $0x82] sm:$0xff]
  %v4104 = vld [vmem:[#allocation2 + $0x8a] sm:$0xff]
  %v4105 = vld [vmem:[#allocation2 + $0x92] sm:$0xff]
  %v4106 = vld [vmem:[#allocation2 + $0x9a] sm:$0xff]
  %v4107 = vld [vmem:[#allocation2 + $0xa2] sm:$0xff]
  %v4108 = vld [vmem:[#allocation2 + $0xaa] sm:$0xff]
  %v4109 = vld [vmem:[#allocation2 + $0xb2] sm:$0xff]
  %v4110 = vld [vmem:[#allocation2 + $0xba] sm:$0xff]
  %v4111 = vld [vmem:[#allocation2 + $0xc2] sm:$0xff]
  %v4112 = vld [vmem:[#allocation2 + $0xca] sm:$0xff]
  %v4113 = vld [vmem:[#allocation2 + $0xd2] sm:$0xff]
  %v4114 = vld [vmem:[#allocation2 + $0xda] sm:$0xff]
  %v4115 = vld [vmem:[#allocation2 + $0xe2] sm:$0xff]
  %v4116 = vld [vmem:[#allocation2 + $0xea] sm:$0xff]
  %v4117 = vld [vmem:[#allocation2 + $0xf2] sm:$0xff]
  %v4118 = vld [vmem:[#allocation2 + $0xfa] sm:$0xff]
  %v4119 = vld [vmem:[#allocation2 + $0x102] sm:$0xff]
  %4144 = vrot.lane.b32.xlu0 %v4096, 64
  %v4145 = vpop.permute.xlu0 %4144
  %4146 = vrot.lane.b32.xlu0 %v4097, 64
  %v4147 = vpop.permute.xlu0 %4146
  %4148 = vrot.lane.b32.xlu0 %v4098, 64
  %v4149 = vpop.permute.xlu0 %4148
  %4150 = vrot.lane.b32.xlu0 %v4099, 64
  %v4151 = vpop.permute.xlu0 %4150
  %4152 = vrot.lane.b32.xlu0 %v4100, 64
  %v4153 = vpop.permute.xlu0 %4152
  %4154 = vrot.lane.b32.xlu0 %v4101, 64
  %v4155 = vpop.permute.xlu0 %4154
  %4156 = vrot.lane.b32.xlu0 %v4102, 64
  %v4157 = vpop.permute.xlu0 %4156
  %4158 = vrot.lane.b32.xlu0 %v4103, 64
  %v4159 = vpop.permute.xlu0 %4158
  %4160 = vrot.lane.b32.xlu0 %v4104, 64
  %v4161 = vpop.permute.xlu0 %4160
  %4162 = vrot.lane.b32.xlu0 %v4105, 64
  %v4163 = vpop.permute.xlu0 %4162
  %4164 = vrot.lane.b32.xlu0 %v4106, 64
  %v4165 = vpop.permute.xlu0 %4164
  %4166 = vrot.lane.b32.xlu0 %v4107, 64
  %v4167 = vpop.permute.xlu0 %4166
  %4168 = vrot.lane.b32.xlu0 %v4108, 64
  %v4169 = vpop.permute.xlu0 %4168
  %4170 = vrot.lane.b32.xlu0 %v4109, 64
  %v4171 = vpop.permute.xlu0 %4170
  %4172 = vrot.lane.b32.xlu0 %v4110, 64
  %v4173 = vpop.permute.xlu0 %4172
  %4174 = vrot.lane.b32.xlu0 %v4111, 64
  %v4175 = vpop.permute.xlu0 %4174
  %4176 = vrot.lane.b32.xlu0 %v4112, 64
  %v4177 = vpop.permute.xlu0 %4176
  %4178 = vrot.lane.b32.xlu0 %v4113, 64
  %v4179 = vpop.permute.xlu0 %4178
  %4180 = vrot.lane.b32.xlu0 %v4114, 64
  %v4181 = vpop.permute.xlu0 %4180
  %4182 = vrot.lane.b32.xlu0 %v4115, 64
  %v4183 = vpop.permute.xlu0 %4182
  %4184 = vrot.lane.b32.xlu0 %v4116, 64
  %v4185 = vpop.permute.xlu0 %4184
  %4186 = vrot.lane.b32.xlu0 %v4117, 64
  %v4187 = vpop.permute.xlu0 %4186
  %4188 = vrot.lane.b32.xlu0 %v4118, 64
  %v4189 = vpop.permute.xlu0 %4188
  %4190 = vrot.lane.b32.xlu0 %v4119, 64
  %v4191 = vpop.permute.xlu0 %4190
  %vm4216 = vcmask 687616
  %4217 = vst.msk [vmem:[#allocation3 + $0x10] sm:$0xff] %vm4216, %v4145
  %4218 = vst.msk [vmem:[#allocation3 + $0x30] sm:$0xff] %vm4216, %v4147
  %4219 = vst.msk [vmem:[#allocation3 + $0x50] sm:$0xff] %vm4216, %v4149
  %4220 = vst.msk [vmem:[#allocation3 + $0x70] sm:$0xff] %vm4216, %v4151
  %4221 = vst.msk [vmem:[#allocation3 + $0x90] sm:$0xff] %vm4216, %v4153
  %4222 = vst.msk [vmem:[#allocation3 + $0xb0] sm:$0xff] %vm4216, %v4155
  %4223 = vst.msk [vmem:[#allocation3 + $0xd0] sm:$0xff] %vm4216, %v4157
  %4224 = vst.msk [vmem:[#allocation3 + $0xf0] sm:$0xff] %vm4216, %v4159
  %4225 = vst.msk [vmem:[#allocation3 + $0x110] sm:$0xff] %vm4216, %v4161
  %4226 = vst.msk [vmem:[#allocation3 + $0x130] sm:$0xff] %vm4216, %v4163
  %4227 = vst.msk [vmem:[#allocation3 + $0x150] sm:$0xff] %vm4216, %v4165
  %4228 = vst.msk [vmem:[#allocation3 + $0x170] sm:$0xff] %vm4216, %v4167
  %4229 = vst.msk [vmem:[#allocation3 + $0x190] sm:$0xff] %vm4216, %v4169
  %4230 = vst.msk [vmem:[#allocation3 + $0x1b0] sm:$0xff] %vm4216, %v4171
  %4231 = vst.msk [vmem:[#allocation3 + $0x1d0] sm:$0xff] %vm4216, %v4173
  %4232 = vst.msk [vmem:[#allocation3 + $0x1f0] sm:$0xff] %vm4216, %v4175
  %4233 = vst.msk [vmem:[#allocation3 + $0x210] sm:$0xff] %vm4216, %v4177
  %4234 = vst.msk [vmem:[#allocation3 + $0x230] sm:$0xff] %vm4216, %v4179
  %4235 = vst.msk [vmem:[#allocation3 + $0x250] sm:$0xff] %vm4216, %v4181
  %4236 = vst.msk [vmem:[#allocation3 + $0x270] sm:$0xff] %vm4216, %v4183
  %4237 = vst.msk [vmem:[#allocation3 + $0x290] sm:$0xff] %vm4216, %v4185
  %4238 = vst.msk [vmem:[#allocation3 + $0x2b0] sm:$0xff] %vm4216, %v4187
  %4239 = vst.msk [vmem:[#allocation3 + $0x2d0] sm:$0xff] %vm4216, %v4189
  %4240 = vst.msk [vmem:[#allocation3 + $0x2f0] sm:$0xff] %vm4216, %v4191
  %v4241 = vld [vmem:[#allocation2 + $0x4c] sm:$0xff]
  %v4242 = vld [vmem:[#allocation2 + $0x54] sm:$0xff]
  %v4243 = vld [vmem:[#allocation2 + $0x5c] sm:$0xff]
  %v4244 = vld [vmem:[#allocation2 + $0x64] sm:$0xff]
  %v4245 = vld [vmem:[#allocation2 + $0x6c] sm:$0xff]
  %v4246 = vld [vmem:[#allocation2 + $0x74] sm:$0xff]
  %v4247 = vld [vmem:[#allocation2 + $0x7c] sm:$0xff]
  %v4248 = vld [vmem:[#allocation2 + $0x84] sm:$0xff]
  %v4249 = vld [vmem:[#allocation2 + $0x8c] sm:$0xff]
  %v4250 = vld [vmem:[#allocation2 + $0x94] sm:$0xff]
  %v4251 = vld [vmem:[#allocation2 + $0x9c] sm:$0xff]
  %v4252 = vld [vmem:[#allocation2 + $0xa4] sm:$0xff]
  %v4253 = vld [vmem:[#allocation2 + $0xac] sm:$0xff]
  %v4254 = vld [vmem:[#allocation2 + $0xb4] sm:$0xff]
  %v4255 = vld [vmem:[#allocation2 + $0xbc] sm:$0xff]
  %v4256 = vld [vmem:[#allocation2 + $0xc4] sm:$0xff]
  %v4257 = vld [vmem:[#allocation2 + $0xcc] sm:$0xff]
  %v4258 = vld [vmem:[#allocation2 + $0xd4] sm:$0xff]
  %v4259 = vld [vmem:[#allocation2 + $0xdc] sm:$0xff]
  %v4260 = vld [vmem:[#allocation2 + $0xe4] sm:$0xff]
  %v4261 = vld [vmem:[#allocation2 + $0xec] sm:$0xff]
  %v4262 = vld [vmem:[#allocation2 + $0xf4] sm:$0xff]
  %v4263 = vld [vmem:[#allocation2 + $0xfc] sm:$0xff]
  %v4264 = vld [vmem:[#allocation2 + $0x104] sm:$0xff]
  %4289 = vrot.lane.b32.xlu0 %v4241, 84
  %v4290 = vpop.permute.xlu0 %4289
  %4291 = vrot.lane.b32.xlu0 %v4242, 84
  %v4292 = vpop.permute.xlu0 %4291
  %4293 = vrot.lane.b32.xlu0 %v4243, 84
  %v4294 = vpop.permute.xlu0 %4293
  %4295 = vrot.lane.b32.xlu0 %v4244, 84
  %v4296 = vpop.permute.xlu0 %4295
  %4297 = vrot.lane.b32.xlu0 %v4245, 84
  %v4298 = vpop.permute.xlu0 %4297
  %4299 = vrot.lane.b32.xlu0 %v4246, 84
  %v4300 = vpop.permute.xlu0 %4299
  %4301 = vrot.lane.b32.xlu0 %v4247, 84
  %v4302 = vpop.permute.xlu0 %4301
  %4303 = vrot.lane.b32.xlu0 %v4248, 84
  %v4304 = vpop.permute.xlu0 %4303
  %4305 = vrot.lane.b32.xlu0 %v4249, 84
  %v4306 = vpop.permute.xlu0 %4305
  %4307 = vrot.lane.b32.xlu0 %v4250, 84
  %v4308 = vpop.permute.xlu0 %4307
  %4309 = vrot.lane.b32.xlu0 %v4251, 84
  %v4310 = vpop.permute.xlu0 %4309
  %4311 = vrot.lane.b32.xlu0 %v4252, 84
  %v4312 = vpop.permute.xlu0 %4311
  %4313 = vrot.lane.b32.xlu0 %v4253, 84
  %v4314 = vpop.permute.xlu0 %4313
  %4315 = vrot.lane.b32.xlu0 %v4254, 84
  %v4316 = vpop.permute.xlu0 %4315
  %4317 = vrot.lane.b32.xlu0 %v4255, 84
  %v4318 = vpop.permute.xlu0 %4317
  %4319 = vrot.lane.b32.xlu0 %v4256, 84
  %v4320 = vpop.permute.xlu0 %4319
  %4321 = vrot.lane.b32.xlu0 %v4257, 84
  %v4322 = vpop.permute.xlu0 %4321
  %4323 = vrot.lane.b32.xlu0 %v4258, 84
  %v4324 = vpop.permute.xlu0 %4323
  %4325 = vrot.lane.b32.xlu0 %v4259, 84
  %v4326 = vpop.permute.xlu0 %4325
  %4327 = vrot.lane.b32.xlu0 %v4260, 84
  %v4328 = vpop.permute.xlu0 %4327
  %4329 = vrot.lane.b32.xlu0 %v4261, 84
  %v4330 = vpop.permute.xlu0 %4329
  %4331 = vrot.lane.b32.xlu0 %v4262, 84
  %v4332 = vpop.permute.xlu0 %4331
  %4333 = vrot.lane.b32.xlu0 %v4263, 84
  %v4334 = vpop.permute.xlu0 %4333
  %4335 = vrot.lane.b32.xlu0 %v4264, 84
  %v4336 = vpop.permute.xlu0 %4335
  %vm4361 = vcmask 851616
  %4362 = vst.msk [vmem:[#allocation3 + $0x10] sm:$0xff] %vm4361, %v4290
  %4363 = vst.msk [vmem:[#allocation3 + $0x30] sm:$0xff] %vm4361, %v4292
  %4364 = vst.msk [vmem:[#allocation3 + $0x50] sm:$0xff] %vm4361, %v4294
  %4365 = vst.msk [vmem:[#allocation3 + $0x70] sm:$0xff] %vm4361, %v4296
  %4366 = vst.msk [vmem:[#allocation3 + $0x90] sm:$0xff] %vm4361, %v4298
  %4367 = vst.msk [vmem:[#allocation3 + $0xb0] sm:$0xff] %vm4361, %v4300
  %4368 = vst.msk [vmem:[#allocation3 + $0xd0] sm:$0xff] %vm4361, %v4302
  %4369 = vst.msk [vmem:[#allocation3 + $0xf0] sm:$0xff] %vm4361, %v4304
  %4370 = vst.msk [vmem:[#allocation3 + $0x110] sm:$0xff] %vm4361, %v4306
  %4371 = vst.msk [vmem:[#allocation3 + $0x130] sm:$0xff] %vm4361, %v4308
  %4372 = vst.msk [vmem:[#allocation3 + $0x150] sm:$0xff] %vm4361, %v4310
  %4373 = vst.msk [vmem:[#allocation3 + $0x170] sm:$0xff] %vm4361, %v4312
  %4374 = vst.msk [vmem:[#allocation3 + $0x190] sm:$0xff] %vm4361, %v4314
  %4375 = vst.msk [vmem:[#allocation3 + $0x1b0] sm:$0xff] %vm4361, %v4316
  %4376 = vst.msk [vmem:[#allocation3 + $0x1d0] sm:$0xff] %vm4361, %v4318
  %4377 = vst.msk [vmem:[#allocation3 + $0x1f0] sm:$0xff] %vm4361, %v4320
  %4378 = vst.msk [vmem:[#allocation3 + $0x210] sm:$0xff] %vm4361, %v4322
  %4379 = vst.msk [vmem:[#allocation3 + $0x230] sm:$0xff] %vm4361, %v4324
  %4380 = vst.msk [vmem:[#allocation3 + $0x250] sm:$0xff] %vm4361, %v4326
  %4381 = vst.msk [vmem:[#allocation3 + $0x270] sm:$0xff] %vm4361, %v4328
  %4382 = vst.msk [vmem:[#allocation3 + $0x290] sm:$0xff] %vm4361, %v4330
  %4383 = vst.msk [vmem:[#allocation3 + $0x2b0] sm:$0xff] %vm4361, %v4332
  %4384 = vst.msk [vmem:[#allocation3 + $0x2d0] sm:$0xff] %vm4361, %v4334
  %4385 = vst.msk [vmem:[#allocation3 + $0x2f0] sm:$0xff] %vm4361, %v4336
  %v4386 = vld [vmem:[#allocation2 + $0x4e] sm:$0xff]
  %v4387 = vld [vmem:[#allocation2 + $0x56] sm:$0xff]
  %v4388 = vld [vmem:[#allocation2 + $0x5e] sm:$0xff]
  %v4389 = vld [vmem:[#allocation2 + $0x66] sm:$0xff]
  %v4390 = vld [vmem:[#allocation2 + $0x6e] sm:$0xff]
  %v4391 = vld [vmem:[#allocation2 + $0x76] sm:$0xff]
  %v4392 = vld [vmem:[#allocation2 + $0x7e] sm:$0xff]
  %v4393 = vld [vmem:[#allocation2 + $0x86] sm:$0xff]
  %v4394 = vld [vmem:[#allocation2 + $0x8e] sm:$0xff]
  %v4395 = vld [vmem:[#allocation2 + $0x96] sm:$0xff]
  %v4396 = vld [vmem:[#allocation2 + $0x9e] sm:$0xff]
  %v4397 = vld [vmem:[#allocation2 + $0xa6] sm:$0xff]
  %v4398 = vld [vmem:[#allocation2 + $0xae] sm:$0xff]
  %v4399 = vld [vmem:[#allocation2 + $0xb6] sm:$0xff]
  %v4400 = vld [vmem:[#allocation2 + $0xbe] sm:$0xff]
  %v4401 = vld [vmem:[#allocation2 + $0xc6] sm:$0xff]
  %v4402 = vld [vmem:[#allocation2 + $0xce] sm:$0xff]
  %v4403 = vld [vmem:[#allocation2 + $0xd6] sm:$0xff]
  %v4404 = vld [vmem:[#allocation2 + $0xde] sm:$0xff]
  %v4405 = vld [vmem:[#allocation2 + $0xe6] sm:$0xff]
  %v4406 = vld [vmem:[#allocation2 + $0xee] sm:$0xff]
  %v4407 = vld [vmem:[#allocation2 + $0xf6] sm:$0xff]
  %v4408 = vld [vmem:[#allocation2 + $0xfe] sm:$0xff]
  %v4409 = vld [vmem:[#allocation2 + $0x106] sm:$0xff]
  %4434 = vrot.lane.b32.xlu0 %v4386, 104
  %v4435 = vpop.permute.xlu0 %4434
  %4436 = vrot.lane.b32.xlu0 %v4387, 104
  %v4437 = vpop.permute.xlu0 %4436
  %4438 = vrot.lane.b32.xlu0 %v4388, 104
  %v4439 = vpop.permute.xlu0 %4438
  %4440 = vrot.lane.b32.xlu0 %v4389, 104
  %v4441 = vpop.permute.xlu0 %4440
  %4442 = vrot.lane.b32.xlu0 %v4390, 104
  %v4443 = vpop.permute.xlu0 %4442
  %4444 = vrot.lane.b32.xlu0 %v4391, 104
  %v4445 = vpop.permute.xlu0 %4444
  %4446 = vrot.lane.b32.xlu0 %v4392, 104
  %v4447 = vpop.permute.xlu0 %4446
  %4448 = vrot.lane.b32.xlu0 %v4393, 104
  %v4449 = vpop.permute.xlu0 %4448
  %4450 = vrot.lane.b32.xlu0 %v4394, 104
  %v4451 = vpop.permute.xlu0 %4450
  %4452 = vrot.lane.b32.xlu0 %v4395, 104
  %v4453 = vpop.permute.xlu0 %4452
  %4454 = vrot.lane.b32.xlu0 %v4396, 104
  %v4455 = vpop.permute.xlu0 %4454
  %4456 = vrot.lane.b32.xlu0 %v4397, 104
  %v4457 = vpop.permute.xlu0 %4456
  %4458 = vrot.lane.b32.xlu0 %v4398, 104
  %v4459 = vpop.permute.xlu0 %4458
  %4460 = vrot.lane.b32.xlu0 %v4399, 104
  %v4461 = vpop.permute.xlu0 %4460
  %4462 = vrot.lane.b32.xlu0 %v4400, 104
  %v4463 = vpop.permute.xlu0 %4462
  %4464 = vrot.lane.b32.xlu0 %v4401, 104
  %v4465 = vpop.permute.xlu0 %4464
  %4466 = vrot.lane.b32.xlu0 %v4402, 104
  %v4467 = vpop.permute.xlu0 %4466
  %4468 = vrot.lane.b32.xlu0 %v4403, 104
  %v4469 = vpop.permute.xlu0 %4468
  %4470 = vrot.lane.b32.xlu0 %v4404, 104
  %v4471 = vpop.permute.xlu0 %4470
  %4472 = vrot.lane.b32.xlu0 %v4405, 104
  %v4473 = vpop.permute.xlu0 %4472
  %4474 = vrot.lane.b32.xlu0 %v4406, 104
  %v4475 = vpop.permute.xlu0 %4474
  %4476 = vrot.lane.b32.xlu0 %v4407, 104
  %v4477 = vpop.permute.xlu0 %4476
  %4478 = vrot.lane.b32.xlu0 %v4408, 104
  %v4479 = vpop.permute.xlu0 %4478
  %4480 = vrot.lane.b32.xlu0 %v4409, 104
  %v4481 = vpop.permute.xlu0 %4480
  %vm4506 = vcmask 1015616
  %4507 = vst.msk [vmem:[#allocation3 + $0x10] sm:$0xff] %vm4506, %v4435
  %4508 = vst.msk [vmem:[#allocation3 + $0x30] sm:$0xff] %vm4506, %v4437
  %4509 = vst.msk [vmem:[#allocation3 + $0x50] sm:$0xff] %vm4506, %v4439
  %4510 = vst.msk [vmem:[#allocation3 + $0x70] sm:$0xff] %vm4506, %v4441
  %4511 = vst.msk [vmem:[#allocation3 + $0x90] sm:$0xff] %vm4506, %v4443
  %4512 = vst.msk [vmem:[#allocation3 + $0xb0] sm:$0xff] %vm4506, %v4445
  %4513 = vst.msk [vmem:[#allocation3 + $0xd0] sm:$0xff] %vm4506, %v4447
  %4514 = vst.msk [vmem:[#allocation3 + $0xf0] sm:$0xff] %vm4506, %v4449
  %4515 = vst.msk [vmem:[#allocation3 + $0x110] sm:$0xff] %vm4506, %v4451
  %4516 = vst.msk [vmem:[#allocation3 + $0x130] sm:$0xff] %vm4506, %v4453
  %4517 = vst.msk [vmem:[#allocation3 + $0x150] sm:$0xff] %vm4506, %v4455
  %4518 = vst.msk [vmem:[#allocation3 + $0x170] sm:$0xff] %vm4506, %v4457
  %4519 = vst.msk [vmem:[#allocation3 + $0x190] sm:$0xff] %vm4506, %v4459
  %4520 = vst.msk [vmem:[#allocation3 + $0x1b0] sm:$0xff] %vm4506, %v4461
  %4521 = vst.msk [vmem:[#allocation3 + $0x1d0] sm:$0xff] %vm4506, %v4463
  %4522 = vst.msk [vmem:[#allocation3 + $0x1f0] sm:$0xff] %vm4506, %v4465
  %4523 = vst.msk [vmem:[#allocation3 + $0x210] sm:$0xff] %vm4506, %v4467
  %4524 = vst.msk [vmem:[#allocation3 + $0x230] sm:$0xff] %vm4506, %v4469
  %4525 = vst.msk [vmem:[#allocation3 + $0x250] sm:$0xff] %vm4506, %v4471
  %4526 = vst.msk [vmem:[#allocation3 + $0x270] sm:$0xff] %vm4506, %v4473
  %4527 = vst.msk [vmem:[#allocation3 + $0x290] sm:$0xff] %vm4506, %v4475
  %4528 = vst.msk [vmem:[#allocation3 + $0x2b0] sm:$0xff] %vm4506, %v4477
  %4529 = vst.msk [vmem:[#allocation3 + $0x2d0] sm:$0xff] %vm4506, %v4479
  %4530 = vst.msk [vmem:[#allocation3 + $0x2f0] sm:$0xff] %vm4506, %v4481
  %v4531 = vld [vmem:[#allocation2 + $0x50] sm:$0xff]
  %v4532 = vld [vmem:[#allocation2 + $0x58] sm:$0xff]
  %v4533 = vld [vmem:[#allocation2 + $0x60] sm:$0xff]
  %v4534 = vld [vmem:[#allocation2 + $0x68] sm:$0xff]
  %v4535 = vld [vmem:[#allocation2 + $0x70] sm:$0xff]
  %v4536 = vld [vmem:[#allocation2 + $0x78] sm:$0xff]
  %v4537 = vld [vmem:[#allocation2 + $0x80] sm:$0xff]
  %v4538 = vld [vmem:[#allocation2 + $0x88] sm:$0xff]
  %v4539 = vld [vmem:[#allocation2 + $0x90] sm:$0xff]
  %v4540 = vld [vmem:[#allocation2 + $0x98] sm:$0xff]
  %v4541 = vld [vmem:[#allocation2 + $0xa0] sm:$0xff]
  %v4542 = vld [vmem:[#allocation2 + $0xa8] sm:$0xff]
  %v4543 = vld [vmem:[#allocation2 + $0xb0] sm:$0xff]
  %v4544 = vld [vmem:[#allocation2 + $0xb8] sm:$0xff]
  %v4545 = vld [vmem:[#allocation2 + $0xc0] sm:$0xff]
  %v4546 = vld [vmem:[#allocation2 + $0xc8] sm:$0xff]
  %v4547 = vld [vmem:[#allocation2 + $0xd0] sm:$0xff]
  %v4548 = vld [vmem:[#allocation2 + $0xd8] sm:$0xff]
  %v4549 = vld [vmem:[#allocation2 + $0xe0] sm:$0xff]
  %v4550 = vld [vmem:[#allocation2 + $0xe8] sm:$0xff]
  %v4551 = vld [vmem:[#allocation2 + $0xf0] sm:$0xff]
  %v4552 = vld [vmem:[#allocation2 + $0xf8] sm:$0xff]
  %v4553 = vld [vmem:[#allocation2 + $0x100] sm:$0xff]
  %v4554 = vld [vmem:[#allocation2 + $0x108] sm:$0xff]
  %4579 = vrot.lane.b32.xlu0 %v4531, 124
  %v4580 = vpop.permute.xlu0 %4579
  %4581 = vrot.lane.b32.xlu0 %v4532, 124
  %v4582 = vpop.permute.xlu0 %4581
  %4583 = vrot.lane.b32.xlu0 %v4533, 124
  %v4584 = vpop.permute.xlu0 %4583
  %4585 = vrot.lane.b32.xlu0 %v4534, 124
  %v4586 = vpop.permute.xlu0 %4585
  %4587 = vrot.lane.b32.xlu0 %v4535, 124
  %v4588 = vpop.permute.xlu0 %4587
  %4589 = vrot.lane.b32.xlu0 %v4536, 124
  %v4590 = vpop.permute.xlu0 %4589
  %4591 = vrot.lane.b32.xlu0 %v4537, 124
  %v4592 = vpop.permute.xlu0 %4591
  %4593 = vrot.lane.b32.xlu0 %v4538, 124
  %v4594 = vpop.permute.xlu0 %4593
  %4595 = vrot.lane.b32.xlu0 %v4539, 124
  %v4596 = vpop.permute.xlu0 %4595
  %4597 = vrot.lane.b32.xlu0 %v4540, 124
  %v4598 = vpop.permute.xlu0 %4597
  %4599 = vrot.lane.b32.xlu0 %v4541, 124
  %v4600 = vpop.permute.xlu0 %4599
  %4601 = vrot.lane.b32.xlu0 %v4542, 124
  %v4602 = vpop.permute.xlu0 %4601
  %4603 = vrot.lane.b32.xlu0 %v4543, 124
  %v4604 = vpop.permute.xlu0 %4603
  %4605 = vrot.lane.b32.xlu0 %v4544, 124
  %v4606 = vpop.permute.xlu0 %4605
  %4607 = vrot.lane.b32.xlu0 %v4545, 124
  %v4608 = vpop.permute.xlu0 %4607
  %4609 = vrot.lane.b32.xlu0 %v4546, 124
  %v4610 = vpop.permute.xlu0 %4609
  %4611 = vrot.lane.b32.xlu0 %v4547, 124
  %v4612 = vpop.permute.xlu0 %4611
  %4613 = vrot.lane.b32.xlu0 %v4548, 124
  %v4614 = vpop.permute.xlu0 %4613
  %4615 = vrot.lane.b32.xlu0 %v4549, 124
  %v4616 = vpop.permute.xlu0 %4615
  %4617 = vrot.lane.b32.xlu0 %v4550, 124
  %v4618 = vpop.permute.xlu0 %4617
  %4619 = vrot.lane.b32.xlu0 %v4551, 124
  %v4620 = vpop.permute.xlu0 %4619
  %4621 = vrot.lane.b32.xlu0 %v4552, 124
  %v4622 = vpop.permute.xlu0 %4621
  %4623 = vrot.lane.b32.xlu0 %v4553, 124
  %v4624 = vpop.permute.xlu0 %4623
  %4625 = vrot.lane.b32.xlu0 %v4554, 124
  %v4626 = vpop.permute.xlu0 %4625
  %vm4651 = vcmask 1048544
  %4652 = vst.msk [vmem:[#allocation3 + $0x10] sm:$0xff] %vm4651, %v4580
  %vm4653 = vcmask 130048
  %4654 = vst.msk [vmem:[#allocation3 + $0x18] sm:$0xff] %vm4653, %v4580
  %4655 = vst.msk [vmem:[#allocation3 + $0x30] sm:$0xff] %vm4651, %v4582
  %4656 = vst.msk [vmem:[#allocation3 + $0x38] sm:$0xff] %vm4653, %v4582
  %4657 = vst.msk [vmem:[#allocation3 + $0x50] sm:$0xff] %vm4651, %v4584
  %4658 = vst.msk [vmem:[#allocation3 + $0x58] sm:$0xff] %vm4653, %v4584
  %4659 = vst.msk [vmem:[#allocation3 + $0x70] sm:$0xff] %vm4651, %v4586
  %4660 = vst.msk [vmem:[#allocation3 + $0x78] sm:$0xff] %vm4653, %v4586
  %4661 = vst.msk [vmem:[#allocation3 + $0x90] sm:$0xff] %vm4651, %v4588
  %4662 = vst.msk [vmem:[#allocation3 + $0x98] sm:$0xff] %vm4653, %v4588
  %4663 = vst.msk [vmem:[#allocation3 + $0xb0] sm:$0xff] %vm4651, %v4590
  %4664 = vst.msk [vmem:[#allocation3 + $0xb8] sm:$0xff] %vm4653, %v4590
  %4665 = vst.msk [vmem:[#allocation3 + $0xd0] sm:$0xff] %vm4651, %v4592
  %4666 = vst.msk [vmem:[#allocation3 + $0xd8] sm:$0xff] %vm4653, %v4592
  %4667 = vst.msk [vmem:[#allocation3 + $0xf0] sm:$0xff] %vm4651, %v4594
  %4668 = vst.msk [vmem:[#allocation3 + $0xf8] sm:$0xff] %vm4653, %v4594
  %4669 = vst.msk [vmem:[#allocation3 + $0x110] sm:$0xff] %vm4651, %v4596
  %4670 = vst.msk [vmem:[#allocation3 + $0x118] sm:$0xff] %vm4653, %v4596
  %4671 = vst.msk [vmem:[#allocation3 + $0x130] sm:$0xff] %vm4651, %v4598
  %4672 = vst.msk [vmem:[#allocation3 + $0x138] sm:$0xff] %vm4653, %v4598
  %4673 = vst.msk [vmem:[#allocation3 + $0x150] sm:$0xff] %vm4651, %v4600
  %4674 = vst.msk [vmem:[#allocation3 + $0x158] sm:$0xff] %vm4653, %v4600
  %4675 = vst.msk [vmem:[#allocation3 + $0x170] sm:$0xff] %vm4651, %v4602
  %4676 = vst.msk [vmem:[#allocation3 + $0x178] sm:$0xff] %vm4653, %v4602
  %4677 = vst.msk [vmem:[#allocation3 + $0x190] sm:$0xff] %vm4651, %v4604
  %4678 = vst.msk [vmem:[#allocation3 + $0x198] sm:$0xff] %vm4653, %v4604
  %4679 = vst.msk [vmem:[#allocation3 + $0x1b0] sm:$0xff] %vm4651, %v4606
  %4680 = vst.msk [vmem:[#allocation3 + $0x1b8] sm:$0xff] %vm4653, %v4606
  %4681 = vst.msk [vmem:[#allocation3 + $0x1d0] sm:$0xff] %vm4651, %v4608
  %4682 = vst.msk [vmem:[#allocation3 + $0x1d8] sm:$0xff] %vm4653, %v4608
  %4683 = vst.msk [vmem:[#allocation3 + $0x1f0] sm:$0xff] %vm4651, %v4610
  %4684 = vst.msk [vmem:[#allocation3 + $0x1f8] sm:$0xff] %vm4653, %v4610
  %4685 = vst.msk [vmem:[#allocation3 + $0x210] sm:$0xff] %vm4651, %v4612
  %4686 = vst.msk [vmem:[#allocation3 + $0x218] sm:$0xff] %vm4653, %v4612
  %4687 = vst.msk [vmem:[#allocation3 + $0x230] sm:$0xff] %vm4651, %v4614
  %4688 = vst.msk [vmem:[#allocation3 + $0x238] sm:$0xff] %vm4653, %v4614
  %4689 = vst.msk [vmem:[#allocation3 + $0x250] sm:$0xff] %vm4651, %v4616
  %4690 = vst.msk [vmem:[#allocation3 + $0x258] sm:$0xff] %vm4653, %v4616
  %4691 = vst.msk [vmem:[#allocation3 + $0x270] sm:$0xff] %vm4651, %v4618
  %4692 = vst.msk [vmem:[#allocation3 + $0x278] sm:$0xff] %vm4653, %v4618
  %4693 = vst.msk [vmem:[#allocation3 + $0x290] sm:$0xff] %vm4651, %v4620
  %4694 = vst.msk [vmem:[#allocation3 + $0x298] sm:$0xff] %vm4653, %v4620
  %4695 = vst.msk [vmem:[#allocation3 + $0x2b0] sm:$0xff] %vm4651, %v4622
  %4696 = vst.msk [vmem:[#allocation3 + $0x2b8] sm:$0xff] %vm4653, %v4622
  %4697 = vst.msk [vmem:[#allocation3 + $0x2d0] sm:$0xff] %vm4651, %v4624
  %4698 = vst.msk [vmem:[#allocation3 + $0x2d8] sm:$0xff] %vm4653, %v4624
  %4699 = vst.msk [vmem:[#allocation3 + $0x2f0] sm:$0xff] %vm4651, %v4626
  %4700 = vst.msk [vmem:[#allocation3 + $0x2f8] sm:$0xff] %vm4653, %v4626
  %v4701 = vld [vmem:[#allocation2 + $0x60] sm:$0xff]
  %v4702 = vld [vmem:[#allocation2 + $0x68] sm:$0xff]
  %v4703 = vld [vmem:[#allocation2 + $0x70] sm:$0xff]
  %v4704 = vld [vmem:[#allocation2 + $0x78] sm:$0xff]
  %v4705 = vld [vmem:[#allocation2 + $0x80] sm:$0xff]
  %v4706 = vld [vmem:[#allocation2 + $0x88] sm:$0xff]
  %v4707 = vld [vmem:[#allocation2 + $0x90] sm:$0xff]
  %v4708 = vld [vmem:[#allocation2 + $0x98] sm:$0xff]
  %v4709 = vld [vmem:[#allocation2 + $0xa0] sm:$0xff]
  %v4710 = vld [vmem:[#allocation2 + $0xa8] sm:$0xff]
  %v4711 = vld [vmem:[#allocation2 + $0xb0] sm:$0xff]
  %v4712 = vld [vmem:[#allocation2 + $0xb8] sm:$0xff]
  %v4713 = vld [vmem:[#allocation2 + $0xc0] sm:$0xff]
  %v4714 = vld [vmem:[#allocation2 + $0xc8] sm:$0xff]
  %v4715 = vld [vmem:[#allocation2 + $0xd0] sm:$0xff]
  %v4716 = vld [vmem:[#allocation2 + $0xd8] sm:$0xff]
  %v4717 = vld [vmem:[#allocation2 + $0xe0] sm:$0xff]
  %v4718 = vld [vmem:[#allocation2 + $0xe8] sm:$0xff]
  %v4719 = vld [vmem:[#allocation2 + $0xf0] sm:$0xff]
  %v4720 = vld [vmem:[#allocation2 + $0xf8] sm:$0xff]
  %v4721 = vld [vmem:[#allocation2 + $0x100] sm:$0xff]
  %v4722 = vld [vmem:[#allocation2 + $0x108] sm:$0xff]
  %v4723 = vld [vmem:[#allocation2 + $0x110] sm:$0xff]
  %v4724 = vld [vmem:[#allocation2 + $0x118] sm:$0xff]
  %4749 = vrot.lane.b32.xlu0 %v4701, 16
  %v4750 = vpop.permute.xlu0 %4749
  %4751 = vrot.lane.b32.xlu0 %v4702, 16
  %v4752 = vpop.permute.xlu0 %4751
  %4753 = vrot.lane.b32.xlu0 %v4703, 16
  %v4754 = vpop.permute.xlu0 %4753
  %4755 = vrot.lane.b32.xlu0 %v4704, 16
  %v4756 = vpop.permute.xlu0 %4755
  %4757 = vrot.lane.b32.xlu0 %v4705, 16
  %v4758 = vpop.permute.xlu0 %4757
  %4759 = vrot.lane.b32.xlu0 %v4706, 16
  %v4760 = vpop.permute.xlu0 %4759
  %4761 = vrot.lane.b32.xlu0 %v4707, 16
  %v4762 = vpop.permute.xlu0 %4761
  %4763 = vrot.lane.b32.xlu0 %v4708, 16
  %v4764 = vpop.permute.xlu0 %4763
  %4765 = vrot.lane.b32.xlu0 %v4709, 16
  %v4766 = vpop.permute.xlu0 %4765
  %4767 = vrot.lane.b32.xlu0 %v4710, 16
  %v4768 = vpop.permute.xlu0 %4767
  %4769 = vrot.lane.b32.xlu0 %v4711, 16
  %v4770 = vpop.permute.xlu0 %4769
  %4771 = vrot.lane.b32.xlu0 %v4712, 16
  %v4772 = vpop.permute.xlu0 %4771
  %4773 = vrot.lane.b32.xlu0 %v4713, 16
  %v4774 = vpop.permute.xlu0 %4773
  %4775 = vrot.lane.b32.xlu0 %v4714, 16
  %v4776 = vpop.permute.xlu0 %4775
  %4777 = vrot.lane.b32.xlu0 %v4715, 16
  %v4778 = vpop.permute.xlu0 %4777
  %4779 = vrot.lane.b32.xlu0 %v4716, 16
  %v4780 = vpop.permute.xlu0 %4779
  %4781 = vrot.lane.b32.xlu0 %v4717, 16
  %v4782 = vpop.permute.xlu0 %4781
  %4783 = vrot.lane.b32.xlu0 %v4718, 16
  %v4784 = vpop.permute.xlu0 %4783
  %4785 = vrot.lane.b32.xlu0 %v4719, 16
  %v4786 = vpop.permute.xlu0 %4785
  %4787 = vrot.lane.b32.xlu0 %v4720, 16
  %v4788 = vpop.permute.xlu0 %4787
  %4789 = vrot.lane.b32.xlu0 %v4721, 16
  %v4790 = vpop.permute.xlu0 %4789
  %4791 = vrot.lane.b32.xlu0 %v4722, 16
  %v4792 = vpop.permute.xlu0 %4791
  %4793 = vrot.lane.b32.xlu0 %v4723, 16
  %v4794 = vpop.permute.xlu0 %4793
  %4795 = vrot.lane.b32.xlu0 %v4724, 16
  %v4796 = vpop.permute.xlu0 %4795
  %vm4821 = vcmask 294016
  %4822 = vst.msk [vmem:[#allocation3 + $0x18] sm:$0xff] %vm4821, %v4750
  %4823 = vst.msk [vmem:[#allocation3 + $0x38] sm:$0xff] %vm4821, %v4752
  %4824 = vst.msk [vmem:[#allocation3 + $0x58] sm:$0xff] %vm4821, %v4754
  %4825 = vst.msk [vmem:[#allocation3 + $0x78] sm:$0xff] %vm4821, %v4756
  %4826 = vst.msk [vmem:[#allocation3 + $0x98] sm:$0xff] %vm4821, %v4758
  %4827 = vst.msk [vmem:[#allocation3 + $0xb8] sm:$0xff] %vm4821, %v4760
  %4828 = vst.msk [vmem:[#allocation3 + $0xd8] sm:$0xff] %vm4821, %v4762
  %4829 = vst.msk [vmem:[#allocation3 + $0xf8] sm:$0xff] %vm4821, %v4764
  %4830 = vst.msk [vmem:[#allocation3 + $0x118] sm:$0xff] %vm4821, %v4766
  %4831 = vst.msk [vmem:[#allocation3 + $0x138] sm:$0xff] %vm4821, %v4768
  %4832 = vst.msk [vmem:[#allocation3 + $0x158] sm:$0xff] %vm4821, %v4770
  %4833 = vst.msk [vmem:[#allocation3 + $0x178] sm:$0xff] %vm4821, %v4772
  %4834 = vst.msk [vmem:[#allocation3 + $0x198] sm:$0xff] %vm4821, %v4774
  %4835 = vst.msk [vmem:[#allocation3 + $0x1b8] sm:$0xff] %vm4821, %v4776
  %4836 = vst.msk [vmem:[#allocation3 + $0x1d8] sm:$0xff] %vm4821, %v4778
  %4837 = vst.msk [vmem:[#allocation3 + $0x1f8] sm:$0xff] %vm4821, %v4780
  %4838 = vst.msk [vmem:[#allocation3 + $0x218] sm:$0xff] %vm4821, %v4782
  %4839 = vst.msk [vmem:[#allocation3 + $0x238] sm:$0xff] %vm4821, %v4784
  %4840 = vst.msk [vmem:[#allocation3 + $0x258] sm:$0xff] %vm4821, %v4786
  %4841 = vst.msk [vmem:[#allocation3 + $0x278] sm:$0xff] %vm4821, %v4788
  %4842 = vst.msk [vmem:[#allocation3 + $0x298] sm:$0xff] %vm4821, %v4790
  %4843 = vst.msk [vmem:[#allocation3 + $0x2b8] sm:$0xff] %vm4821, %v4792
  %4844 = vst.msk [vmem:[#allocation3 + $0x2d8] sm:$0xff] %vm4821, %v4794
  %4845 = vst.msk [vmem:[#allocation3 + $0x2f8] sm:$0xff] %vm4821, %v4796
  %v4846 = vld [vmem:[#allocation2 + $0x62] sm:$0xff]
  %v4847 = vld [vmem:[#allocation2 + $0x6a] sm:$0xff]
  %v4848 = vld [vmem:[#allocation2 + $0x72] sm:$0xff]
  %v4849 = vld [vmem:[#allocation2 + $0x7a] sm:$0xff]
  %v4850 = vld [vmem:[#allocation2 + $0x82] sm:$0xff]
  %v4851 = vld [vmem:[#allocation2 + $0x8a] sm:$0xff]
  %v4852 = vld [vmem:[#allocation2 + $0x92] sm:$0xff]
  %v4853 = vld [vmem:[#allocation2 + $0x9a] sm:$0xff]
  %v4854 = vld [vmem:[#allocation2 + $0xa2] sm:$0xff]
  %v4855 = vld [vmem:[#allocation2 + $0xaa] sm:$0xff]
  %v4856 = vld [vmem:[#allocation2 + $0xb2] sm:$0xff]
  %v4857 = vld [vmem:[#allocation2 + $0xba] sm:$0xff]
  %v4858 = vld [vmem:[#allocation2 + $0xc2] sm:$0xff]
  %v4859 = vld [vmem:[#allocation2 + $0xca] sm:$0xff]
  %v4860 = vld [vmem:[#allocation2 + $0xd2] sm:$0xff]
  %v4861 = vld [vmem:[#allocation2 + $0xda] sm:$0xff]
  %v4862 = vld [vmem:[#allocation2 + $0xe2] sm:$0xff]
  %v4863 = vld [vmem:[#allocation2 + $0xea] sm:$0xff]
  %v4864 = vld [vmem:[#allocation2 + $0xf2] sm:$0xff]
  %v4865 = vld [vmem:[#allocation2 + $0xfa] sm:$0xff]
  %v4866 = vld [vmem:[#allocation2 + $0x102] sm:$0xff]
  %v4867 = vld [vmem:[#allocation2 + $0x10a] sm:$0xff]
  %v4868 = vld [vmem:[#allocation2 + $0x112] sm:$0xff]
  %v4869 = vld [vmem:[#allocation2 + $0x11a] sm:$0xff]
  %4894 = vrot.lane.b32.xlu0 %v4846, 36
  %v4895 = vpop.permute.xlu0 %4894
  %4896 = vrot.lane.b32.xlu0 %v4847, 36
  %v4897 = vpop.permute.xlu0 %4896
  %4898 = vrot.lane.b32.xlu0 %v4848, 36
  %v4899 = vpop.permute.xlu0 %4898
  %4900 = vrot.lane.b32.xlu0 %v4849, 36
  %v4901 = vpop.permute.xlu0 %4900
  %4902 = vrot.lane.b32.xlu0 %v4850, 36
  %v4903 = vpop.permute.xlu0 %4902
  %4904 = vrot.lane.b32.xlu0 %v4851, 36
  %v4905 = vpop.permute.xlu0 %4904
  %4906 = vrot.lane.b32.xlu0 %v4852, 36
  %v4907 = vpop.permute.xlu0 %4906
  %4908 = vrot.lane.b32.xlu0 %v4853, 36
  %v4909 = vpop.permute.xlu0 %4908
  %4910 = vrot.lane.b32.xlu0 %v4854, 36
  %v4911 = vpop.permute.xlu0 %4910
  %4912 = vrot.lane.b32.xlu0 %v4855, 36
  %v4913 = vpop.permute.xlu0 %4912
  %4914 = vrot.lane.b32.xlu0 %v4856, 36
  %v4915 = vpop.permute.xlu0 %4914
  %4916 = vrot.lane.b32.xlu0 %v4857, 36
  %v4917 = vpop.permute.xlu0 %4916
  %4918 = vrot.lane.b32.xlu0 %v4858, 36
  %v4919 = vpop.permute.xlu0 %4918
  %4920 = vrot.lane.b32.xlu0 %v4859, 36
  %v4921 = vpop.permute.xlu0 %4920
  %4922 = vrot.lane.b32.xlu0 %v4860, 36
  %v4923 = vpop.permute.xlu0 %4922
  %4924 = vrot.lane.b32.xlu0 %v4861, 36
  %v4925 = vpop.permute.xlu0 %4924
  %4926 = vrot.lane.b32.xlu0 %v4862, 36
  %v4927 = vpop.permute.xlu0 %4926
  %4928 = vrot.lane.b32.xlu0 %v4863, 36
  %v4929 = vpop.permute.xlu0 %4928
  %4930 = vrot.lane.b32.xlu0 %v4864, 36
  %v4931 = vpop.permute.xlu0 %4930
  %4932 = vrot.lane.b32.xlu0 %v4865, 36
  %v4933 = vpop.permute.xlu0 %4932
  %4934 = vrot.lane.b32.xlu0 %v4866, 36
  %v4935 = vpop.permute.xlu0 %4934
  %4936 = vrot.lane.b32.xlu0 %v4867, 36
  %v4937 = vpop.permute.xlu0 %4936
  %4938 = vrot.lane.b32.xlu0 %v4868, 36
  %v4939 = vpop.permute.xlu0 %4938
  %4940 = vrot.lane.b32.xlu0 %v4869, 36
  %v4941 = vpop.permute.xlu0 %4940
  %vm4966 = vcmask 458016
  %4967 = vst.msk [vmem:[#allocation3 + $0x18] sm:$0xff] %vm4966, %v4895
  %4968 = vst.msk [vmem:[#allocation3 + $0x38] sm:$0xff] %vm4966, %v4897
  %4969 = vst.msk [vmem:[#allocation3 + $0x58] sm:$0xff] %vm4966, %v4899
  %4970 = vst.msk [vmem:[#allocation3 + $0x78] sm:$0xff] %vm4966, %v4901
  %4971 = vst.msk [vmem:[#allocation3 + $0x98] sm:$0xff] %vm4966, %v4903
  %4972 = vst.msk [vmem:[#allocation3 + $0xb8] sm:$0xff] %vm4966, %v4905
  %4973 = vst.msk [vmem:[#allocation3 + $0xd8] sm:$0xff] %vm4966, %v4907
  %4974 = vst.msk [vmem:[#allocation3 + $0xf8] sm:$0xff] %vm4966, %v4909
  %4975 = vst.msk [vmem:[#allocation3 + $0x118] sm:$0xff] %vm4966, %v4911
  %4976 = vst.msk [vmem:[#allocation3 + $0x138] sm:$0xff] %vm4966, %v4913
  %4977 = vst.msk [vmem:[#allocation3 + $0x158] sm:$0xff] %vm4966, %v4915
  %4978 = vst.msk [vmem:[#allocation3 + $0x178] sm:$0xff] %vm4966, %v4917
  %4979 = vst.msk [vmem:[#allocation3 + $0x198] sm:$0xff] %vm4966, %v4919
  %4980 = vst.msk [vmem:[#allocation3 + $0x1b8] sm:$0xff] %vm4966, %v4921
  %4981 = vst.msk [vmem:[#allocation3 + $0x1d8] sm:$0xff] %vm4966, %v4923
  %4982 = vst.msk [vmem:[#allocation3 + $0x1f8] sm:$0xff] %vm4966, %v4925
  %4983 = vst.msk [vmem:[#allocation3 + $0x218] sm:$0xff] %vm4966, %v4927
  %4984 = vst.msk [vmem:[#allocation3 + $0x238] sm:$0xff] %vm4966, %v4929
  %4985 = vst.msk [vmem:[#allocation3 + $0x258] sm:$0xff] %vm4966, %v4931
  %4986 = vst.msk [vmem:[#allocation3 + $0x278] sm:$0xff] %vm4966, %v4933
  %4987 = vst.msk [vmem:[#allocation3 + $0x298] sm:$0xff] %vm4966, %v4935
  %4988 = vst.msk [vmem:[#allocation3 + $0x2b8] sm:$0xff] %vm4966, %v4937
  %4989 = vst.msk [vmem:[#allocation3 + $0x2d8] sm:$0xff] %vm4966, %v4939
  %4990 = vst.msk [vmem:[#allocation3 + $0x2f8] sm:$0xff] %vm4966, %v4941
  %v4991 = vld [vmem:[#allocation2 + $0x64] sm:$0xff]
  %v4992 = vld [vmem:[#allocation2 + $0x6c] sm:$0xff]
  %v4993 = vld [vmem:[#allocation2 + $0x74] sm:$0xff]
  %v4994 = vld [vmem:[#allocation2 + $0x7c] sm:$0xff]
  %v4995 = vld [vmem:[#allocation2 + $0x84] sm:$0xff]
  %v4996 = vld [vmem:[#allocation2 + $0x8c] sm:$0xff]
  %v4997 = vld [vmem:[#allocation2 + $0x94] sm:$0xff]
  %v4998 = vld [vmem:[#allocation2 + $0x9c] sm:$0xff]
  %v4999 = vld [vmem:[#allocation2 + $0xa4] sm:$0xff]
  %v5000 = vld [vmem:[#allocation2 + $0xac] sm:$0xff]
  %v5001 = vld [vmem:[#allocation2 + $0xb4] sm:$0xff]
  %v5002 = vld [vmem:[#allocation2 + $0xbc] sm:$0xff]
  %v5003 = vld [vmem:[#allocation2 + $0xc4] sm:$0xff]
  %v5004 = vld [vmem:[#allocation2 + $0xcc] sm:$0xff]
  %v5005 = vld [vmem:[#allocation2 + $0xd4] sm:$0xff]
  %v5006 = vld [vmem:[#allocation2 + $0xdc] sm:$0xff]
  %v5007 = vld [vmem:[#allocation2 + $0xe4] sm:$0xff]
  %v5008 = vld [vmem:[#allocation2 + $0xec] sm:$0xff]
  %v5009 = vld [vmem:[#allocation2 + $0xf4] sm:$0xff]
  %v5010 = vld [vmem:[#allocation2 + $0xfc] sm:$0xff]
  %v5011 = vld [vmem:[#allocation2 + $0x104] sm:$0xff]
  %v5012 = vld [vmem:[#allocation2 + $0x10c] sm:$0xff]
  %v5013 = vld [vmem:[#allocation2 + $0x114] sm:$0xff]
  %v5014 = vld [vmem:[#allocation2 + $0x11c] sm:$0xff]
  %5039 = vrot.lane.b32.xlu0 %v4991, 56
  %v5040 = vpop.permute.xlu0 %5039
  %5041 = vrot.lane.b32.xlu0 %v4992, 56
  %v5042 = vpop.permute.xlu0 %5041
  %5043 = vrot.lane.b32.xlu0 %v4993, 56
  %v5044 = vpop.permute.xlu0 %5043
  %5045 = vrot.lane.b32.xlu0 %v4994, 56
  %v5046 = vpop.permute.xlu0 %5045
  %5047 = vrot.lane.b32.xlu0 %v4995, 56
  %v5048 = vpop.permute.xlu0 %5047
  %5049 = vrot.lane.b32.xlu0 %v4996, 56
  %v5050 = vpop.permute.xlu0 %5049
  %5051 = vrot.lane.b32.xlu0 %v4997, 56
  %v5052 = vpop.permute.xlu0 %5051
  %5053 = vrot.lane.b32.xlu0 %v4998, 56
  %v5054 = vpop.permute.xlu0 %5053
  %5055 = vrot.lane.b32.xlu0 %v4999, 56
  %v5056 = vpop.permute.xlu0 %5055
  %5057 = vrot.lane.b32.xlu0 %v5000, 56
  %v5058 = vpop.permute.xlu0 %5057
  %5059 = vrot.lane.b32.xlu0 %v5001, 56
  %v5060 = vpop.permute.xlu0 %5059
  %5061 = vrot.lane.b32.xlu0 %v5002, 56
  %v5062 = vpop.permute.xlu0 %5061
  %5063 = vrot.lane.b32.xlu0 %v5003, 56
  %v5064 = vpop.permute.xlu0 %5063
  %5065 = vrot.lane.b32.xlu0 %v5004, 56
  %v5066 = vpop.permute.xlu0 %5065
  %5067 = vrot.lane.b32.xlu0 %v5005, 56
  %v5068 = vpop.permute.xlu0 %5067
  %5069 = vrot.lane.b32.xlu0 %v5006, 56
  %v5070 = vpop.permute.xlu0 %5069
  %5071 = vrot.lane.b32.xlu0 %v5007, 56
  %v5072 = vpop.permute.xlu0 %5071
  %5073 = vrot.lane.b32.xlu0 %v5008, 56
  %v5074 = vpop.permute.xlu0 %5073
  %5075 = vrot.lane.b32.xlu0 %v5009, 56
  %v5076 = vpop.permute.xlu0 %5075
  %5077 = vrot.lane.b32.xlu0 %v5010, 56
  %v5078 = vpop.permute.xlu0 %5077
  %5079 = vrot.lane.b32.xlu0 %v5011, 56
  %v5080 = vpop.permute.xlu0 %5079
  %5081 = vrot.lane.b32.xlu0 %v5012, 56
  %v5082 = vpop.permute.xlu0 %5081
  %5083 = vrot.lane.b32.xlu0 %v5013, 56
  %v5084 = vpop.permute.xlu0 %5083
  %5085 = vrot.lane.b32.xlu0 %v5014, 56
  %v5086 = vpop.permute.xlu0 %5085
  %vm5111 = vcmask 622016
  %5112 = vst.msk [vmem:[#allocation3 + $0x18] sm:$0xff] %vm5111, %v5040
  %5113 = vst.msk [vmem:[#allocation3 + $0x38] sm:$0xff] %vm5111, %v5042
  %5114 = vst.msk [vmem:[#allocation3 + $0x58] sm:$0xff] %vm5111, %v5044
  %5115 = vst.msk [vmem:[#allocation3 + $0x78] sm:$0xff] %vm5111, %v5046
  %5116 = vst.msk [vmem:[#allocation3 + $0x98] sm:$0xff] %vm5111, %v5048
  %5117 = vst.msk [vmem:[#allocation3 + $0xb8] sm:$0xff] %vm5111, %v5050
  %5118 = vst.msk [vmem:[#allocation3 + $0xd8] sm:$0xff] %vm5111, %v5052
  %5119 = vst.msk [vmem:[#allocation3 + $0xf8] sm:$0xff] %vm5111, %v5054
  %5120 = vst.msk [vmem:[#allocation3 + $0x118] sm:$0xff] %vm5111, %v5056
  %5121 = vst.msk [vmem:[#allocation3 + $0x138] sm:$0xff] %vm5111, %v5058
  %5122 = vst.msk [vmem:[#allocation3 + $0x158] sm:$0xff] %vm5111, %v5060
  %5123 = vst.msk [vmem:[#allocation3 + $0x178] sm:$0xff] %vm5111, %v5062
  %5124 = vst.msk [vmem:[#allocation3 + $0x198] sm:$0xff] %vm5111, %v5064
  %5125 = vst.msk [vmem:[#allocation3 + $0x1b8] sm:$0xff] %vm5111, %v5066
  %5126 = vst.msk [vmem:[#allocation3 + $0x1d8] sm:$0xff] %vm5111, %v5068
  %5127 = vst.msk [vmem:[#allocation3 + $0x1f8] sm:$0xff] %vm5111, %v5070
  %5128 = vst.msk [vmem:[#allocation3 + $0x218] sm:$0xff] %vm5111, %v5072
  %5129 = vst.msk [vmem:[#allocation3 + $0x238] sm:$0xff] %vm5111, %v5074
  %5130 = vst.msk [vmem:[#allocation3 + $0x258] sm:$0xff] %vm5111, %v5076
  %5131 = vst.msk [vmem:[#allocation3 + $0x278] sm:$0xff] %vm5111, %v5078
  %5132 = vst.msk [vmem:[#allocation3 + $0x298] sm:$0xff] %vm5111, %v5080
  %5133 = vst.msk [vmem:[#allocation3 + $0x2b8] sm:$0xff] %vm5111, %v5082
  %5134 = vst.msk [vmem:[#allocation3 + $0x2d8] sm:$0xff] %vm5111, %v5084
  %5135 = vst.msk [vmem:[#allocation3 + $0x2f8] sm:$0xff] %vm5111, %v5086
  %v5136 = vld [vmem:[#allocation2 + $0x66] sm:$0xff]
  %v5137 = vld [vmem:[#allocation2 + $0x6e] sm:$0xff]
  %v5138 = vld [vmem:[#allocation2 + $0x76] sm:$0xff]
  %v5139 = vld [vmem:[#allocation2 + $0x7e] sm:$0xff]
  %v5140 = vld [vmem:[#allocation2 + $0x86] sm:$0xff]
  %v5141 = vld [vmem:[#allocation2 + $0x8e] sm:$0xff]
  %v5142 = vld [vmem:[#allocation2 + $0x96] sm:$0xff]
  %v5143 = vld [vmem:[#allocation2 + $0x9e] sm:$0xff]
  %v5144 = vld [vmem:[#allocation2 + $0xa6] sm:$0xff]
  %v5145 = vld [vmem:[#allocation2 + $0xae] sm:$0xff]
  %v5146 = vld [vmem:[#allocation2 + $0xb6] sm:$0xff]
  %v5147 = vld [vmem:[#allocation2 + $0xbe] sm:$0xff]
  %v5148 = vld [vmem:[#allocation2 + $0xc6] sm:$0xff]
  %v5149 = vld [vmem:[#allocation2 + $0xce] sm:$0xff]
  %v5150 = vld [vmem:[#allocation2 + $0xd6] sm:$0xff]
  %v5151 = vld [vmem:[#allocation2 + $0xde] sm:$0xff]
  %v5152 = vld [vmem:[#allocation2 + $0xe6] sm:$0xff]
  %v5153 = vld [vmem:[#allocation2 + $0xee] sm:$0xff]
  %v5154 = vld [vmem:[#allocation2 + $0xf6] sm:$0xff]
  %v5155 = vld [vmem:[#allocation2 + $0xfe] sm:$0xff]
  %v5156 = vld [vmem:[#allocation2 + $0x106] sm:$0xff]
  %v5157 = vld [vmem:[#allocation2 + $0x10e] sm:$0xff]
  %v5158 = vld [vmem:[#allocation2 + $0x116] sm:$0xff]
  %v5159 = vld [vmem:[#allocation2 + $0x11e] sm:$0xff]
  %5184 = vrot.lane.b32.xlu0 %v5136, 76
  %v5185 = vpop.permute.xlu0 %5184
  %5186 = vrot.lane.b32.xlu0 %v5137, 76
  %v5187 = vpop.permute.xlu0 %5186
  %5188 = vrot.lane.b32.xlu0 %v5138, 76
  %v5189 = vpop.permute.xlu0 %5188
  %5190 = vrot.lane.b32.xlu0 %v5139, 76
  %v5191 = vpop.permute.xlu0 %5190
  %5192 = vrot.lane.b32.xlu0 %v5140, 76
  %v5193 = vpop.permute.xlu0 %5192
  %5194 = vrot.lane.b32.xlu0 %v5141, 76
  %v5195 = vpop.permute.xlu0 %5194
  %5196 = vrot.lane.b32.xlu0 %v5142, 76
  %v5197 = vpop.permute.xlu0 %5196
  %5198 = vrot.lane.b32.xlu0 %v5143, 76
  %v5199 = vpop.permute.xlu0 %5198
  %5200 = vrot.lane.b32.xlu0 %v5144, 76
  %v5201 = vpop.permute.xlu0 %5200
  %5202 = vrot.lane.b32.xlu0 %v5145, 76
  %v5203 = vpop.permute.xlu0 %5202
  %5204 = vrot.lane.b32.xlu0 %v5146, 76
  %v5205 = vpop.permute.xlu0 %5204
  %5206 = vrot.lane.b32.xlu0 %v5147, 76
  %v5207 = vpop.permute.xlu0 %5206
  %5208 = vrot.lane.b32.xlu0 %v5148, 76
  %v5209 = vpop.permute.xlu0 %5208
  %5210 = vrot.lane.b32.xlu0 %v5149, 76
  %v5211 = vpop.permute.xlu0 %5210
  %5212 = vrot.lane.b32.xlu0 %v5150, 76
  %v5213 = vpop.permute.xlu0 %5212
  %5214 = vrot.lane.b32.xlu0 %v5151, 76
  %v5215 = vpop.permute.xlu0 %5214
  %5216 = vrot.lane.b32.xlu0 %v5152, 76
  %v5217 = vpop.permute.xlu0 %5216
  %5218 = vrot.lane.b32.xlu0 %v5153, 76
  %v5219 = vpop.permute.xlu0 %5218
  %5220 = vrot.lane.b32.xlu0 %v5154, 76
  %v5221 = vpop.permute.xlu0 %5220
  %5222 = vrot.lane.b32.xlu0 %v5155, 76
  %v5223 = vpop.permute.xlu0 %5222
  %5224 = vrot.lane.b32.xlu0 %v5156, 76
  %v5225 = vpop.permute.xlu0 %5224
  %5226 = vrot.lane.b32.xlu0 %v5157, 76
  %v5227 = vpop.permute.xlu0 %5226
  %5228 = vrot.lane.b32.xlu0 %v5158, 76
  %v5229 = vpop.permute.xlu0 %5228
  %5230 = vrot.lane.b32.xlu0 %v5159, 76
  %v5231 = vpop.permute.xlu0 %5230
  %vm5256 = vcmask 786016
  %5257 = vst.msk [vmem:[#allocation3 + $0x18] sm:$0xff] %vm5256, %v5185
  %5258 = vst.msk [vmem:[#allocation3 + $0x38] sm:$0xff] %vm5256, %v5187
  %5259 = vst.msk [vmem:[#allocation3 + $0x58] sm:$0xff] %vm5256, %v5189
  %5260 = vst.msk [vmem:[#allocation3 + $0x78] sm:$0xff] %vm5256, %v5191
  %5261 = vst.msk [vmem:[#allocation3 + $0x98] sm:$0xff] %vm5256, %v5193
  %5262 = vst.msk [vmem:[#allocation3 + $0xb8] sm:$0xff] %vm5256, %v5195
  %5263 = vst.msk [vmem:[#allocation3 + $0xd8] sm:$0xff] %vm5256, %v5197
  %5264 = vst.msk [vmem:[#allocation3 + $0xf8] sm:$0xff] %vm5256, %v5199
  %5265 = vst.msk [vmem:[#allocation3 + $0x118] sm:$0xff] %vm5256, %v5201
  %5266 = vst.msk [vmem:[#allocation3 + $0x138] sm:$0xff] %vm5256, %v5203
  %5267 = vst.msk [vmem:[#allocation3 + $0x158] sm:$0xff] %vm5256, %v5205
  %5268 = vst.msk [vmem:[#allocation3 + $0x178] sm:$0xff] %vm5256, %v5207
  %5269 = vst.msk [vmem:[#allocation3 + $0x198] sm:$0xff] %vm5256, %v5209
  %5270 = vst.msk [vmem:[#allocation3 + $0x1b8] sm:$0xff] %vm5256, %v5211
  %5271 = vst.msk [vmem:[#allocation3 + $0x1d8] sm:$0xff] %vm5256, %v5213
  %5272 = vst.msk [vmem:[#allocation3 + $0x1f8] sm:$0xff] %vm5256, %v5215
  %5273 = vst.msk [vmem:[#allocation3 + $0x218] sm:$0xff] %vm5256, %v5217
  %5274 = vst.msk [vmem:[#allocation3 + $0x238] sm:$0xff] %vm5256, %v5219
  %5275 = vst.msk [vmem:[#allocation3 + $0x258] sm:$0xff] %vm5256, %v5221
  %5276 = vst.msk [vmem:[#allocation3 + $0x278] sm:$0xff] %vm5256, %v5223
  %5277 = vst.msk [vmem:[#allocation3 + $0x298] sm:$0xff] %vm5256, %v5225
  %5278 = vst.msk [vmem:[#allocation3 + $0x2b8] sm:$0xff] %vm5256, %v5227
  %5279 = vst.msk [vmem:[#allocation3 + $0x2d8] sm:$0xff] %vm5256, %v5229
  %5280 = vst.msk [vmem:[#allocation3 + $0x2f8] sm:$0xff] %vm5256, %v5231
  %v5281 = vld [vmem:[#allocation2 + $0x68] sm:$0xff]
  %v5282 = vld [vmem:[#allocation2 + $0x70] sm:$0xff]
  %v5283 = vld [vmem:[#allocation2 + $0x78] sm:$0xff]
  %v5284 = vld [vmem:[#allocation2 + $0x80] sm:$0xff]
  %v5285 = vld [vmem:[#allocation2 + $0x88] sm:$0xff]
  %v5286 = vld [vmem:[#allocation2 + $0x90] sm:$0xff]
  %v5287 = vld [vmem:[#allocation2 + $0x98] sm:$0xff]
  %v5288 = vld [vmem:[#allocation2 + $0xa0] sm:$0xff]
  %v5289 = vld [vmem:[#allocation2 + $0xa8] sm:$0xff]
  %v5290 = vld [vmem:[#allocation2 + $0xb0] sm:$0xff]
  %v5291 = vld [vmem:[#allocation2 + $0xb8] sm:$0xff]
  %v5292 = vld [vmem:[#allocation2 + $0xc0] sm:$0xff]
  %v5293 = vld [vmem:[#allocation2 + $0xc8] sm:$0xff]
  %v5294 = vld [vmem:[#allocation2 + $0xd0] sm:$0xff]
  %v5295 = vld [vmem:[#allocation2 + $0xd8] sm:$0xff]
  %v5296 = vld [vmem:[#allocation2 + $0xe0] sm:$0xff]
  %v5297 = vld [vmem:[#allocation2 + $0xe8] sm:$0xff]
  %v5298 = vld [vmem:[#allocation2 + $0xf0] sm:$0xff]
  %v5299 = vld [vmem:[#allocation2 + $0xf8] sm:$0xff]
  %v5300 = vld [vmem:[#allocation2 + $0x100] sm:$0xff]
  %v5301 = vld [vmem:[#allocation2 + $0x108] sm:$0xff]
  %v5302 = vld [vmem:[#allocation2 + $0x110] sm:$0xff]
  %v5303 = vld [vmem:[#allocation2 + $0x118] sm:$0xff]
  %v5304 = vld [vmem:[#allocation2 + $0x120] sm:$0xff]
  %5329 = vrot.lane.b32.xlu0 %v5281, 96
  %v5330 = vpop.permute.xlu0 %5329
  %5331 = vrot.lane.b32.xlu0 %v5282, 96
  %v5332 = vpop.permute.xlu0 %5331
  %5333 = vrot.lane.b32.xlu0 %v5283, 96
  %v5334 = vpop.permute.xlu0 %5333
  %5335 = vrot.lane.b32.xlu0 %v5284, 96
  %v5336 = vpop.permute.xlu0 %5335
  %5337 = vrot.lane.b32.xlu0 %v5285, 96
  %v5338 = vpop.permute.xlu0 %5337
  %5339 = vrot.lane.b32.xlu0 %v5286, 96
  %v5340 = vpop.permute.xlu0 %5339
  %5341 = vrot.lane.b32.xlu0 %v5287, 96
  %v5342 = vpop.permute.xlu0 %5341
  %5343 = vrot.lane.b32.xlu0 %v5288, 96
  %v5344 = vpop.permute.xlu0 %5343
  %5345 = vrot.lane.b32.xlu0 %v5289, 96
  %v5346 = vpop.permute.xlu0 %5345
  %5347 = vrot.lane.b32.xlu0 %v5290, 96
  %v5348 = vpop.permute.xlu0 %5347
  %5349 = vrot.lane.b32.xlu0 %v5291, 96
  %v5350 = vpop.permute.xlu0 %5349
  %5351 = vrot.lane.b32.xlu0 %v5292, 96
  %v5352 = vpop.permute.xlu0 %5351
  %5353 = vrot.lane.b32.xlu0 %v5293, 96
  %v5354 = vpop.permute.xlu0 %5353
  %5355 = vrot.lane.b32.xlu0 %v5294, 96
  %v5356 = vpop.permute.xlu0 %5355
  %5357 = vrot.lane.b32.xlu0 %v5295, 96
  %v5358 = vpop.permute.xlu0 %5357
  %5359 = vrot.lane.b32.xlu0 %v5296, 96
  %v5360 = vpop.permute.xlu0 %5359
  %5361 = vrot.lane.b32.xlu0 %v5297, 96
  %v5362 = vpop.permute.xlu0 %5361
  %5363 = vrot.lane.b32.xlu0 %v5298, 96
  %v5364 = vpop.permute.xlu0 %5363
  %5365 = vrot.lane.b32.xlu0 %v5299, 96
  %v5366 = vpop.permute.xlu0 %5365
  %5367 = vrot.lane.b32.xlu0 %v5300, 96
  %v5368 = vpop.permute.xlu0 %5367
  %5369 = vrot.lane.b32.xlu0 %v5301, 96
  %v5370 = vpop.permute.xlu0 %5369
  %5371 = vrot.lane.b32.xlu0 %v5302, 96
  %v5372 = vpop.permute.xlu0 %5371
  %5373 = vrot.lane.b32.xlu0 %v5303, 96
  %v5374 = vpop.permute.xlu0 %5373
  %5375 = vrot.lane.b32.xlu0 %v5304, 96
  %v5376 = vpop.permute.xlu0 %5375
  %vm5401 = vcmask 950016
  %5402 = vst.msk [vmem:[#allocation3 + $0x18] sm:$0xff] %vm5401, %v5330
  %5403 = vst.msk [vmem:[#allocation3 + $0x38] sm:$0xff] %vm5401, %v5332
  %5404 = vst.msk [vmem:[#allocation3 + $0x58] sm:$0xff] %vm5401, %v5334
  %5405 = vst.msk [vmem:[#allocation3 + $0x78] sm:$0xff] %vm5401, %v5336
  %5406 = vst.msk [vmem:[#allocation3 + $0x98] sm:$0xff] %vm5401, %v5338
  %5407 = vst.msk [vmem:[#allocation3 + $0xb8] sm:$0xff] %vm5401, %v5340
  %5408 = vst.msk [vmem:[#allocation3 + $0xd8] sm:$0xff] %vm5401, %v5342
  %5409 = vst.msk [vmem:[#allocation3 + $0xf8] sm:$0xff] %vm5401, %v5344
  %5410 = vst.msk [vmem:[#allocation3 + $0x118] sm:$0xff] %vm5401, %v5346
  %5411 = vst.msk [vmem:[#allocation3 + $0x138] sm:$0xff] %vm5401, %v5348
  %5412 = vst.msk [vmem:[#allocation3 + $0x158] sm:$0xff] %vm5401, %v5350
  %5413 = vst.msk [vmem:[#allocation3 + $0x178] sm:$0xff] %vm5401, %v5352
  %5414 = vst.msk [vmem:[#allocation3 + $0x198] sm:$0xff] %vm5401, %v5354
  %5415 = vst.msk [vmem:[#allocation3 + $0x1b8] sm:$0xff] %vm5401, %v5356
  %5416 = vst.msk [vmem:[#allocation3 + $0x1d8] sm:$0xff] %vm5401, %v5358
  %5417 = vst.msk [vmem:[#allocation3 + $0x1f8] sm:$0xff] %vm5401, %v5360
  %5418 = vst.msk [vmem:[#allocation3 + $0x218] sm:$0xff] %vm5401, %v5362
  %5419 = vst.msk [vmem:[#allocation3 + $0x238] sm:$0xff] %vm5401, %v5364
  %5420 = vst.msk [vmem:[#allocation3 + $0x258] sm:$0xff] %vm5401, %v5366
  %5421 = vst.msk [vmem:[#allocation3 + $0x278] sm:$0xff] %vm5401, %v5368
  %5422 = vst.msk [vmem:[#allocation3 + $0x298] sm:$0xff] %vm5401, %v5370
  %5423 = vst.msk [vmem:[#allocation3 + $0x2b8] sm:$0xff] %vm5401, %v5372
  %5424 = vst.msk [vmem:[#allocation3 + $0x2d8] sm:$0xff] %vm5401, %v5374
  %5425 = vst.msk [vmem:[#allocation3 + $0x2f8] sm:$0xff] %vm5401, %v5376
  %v5426 = vld [vmem:[#allocation3] sm:$0xff]
  %v5427 = vld [vmem:[#allocation3 + $0x8] sm:$0xff]
  %v5428 = vld [vmem:[#allocation3 + $0x10] sm:$0xff]
  %v5429 = vld [vmem:[#allocation3 + $0x18] sm:$0xff]
  %v5430 = vld [vmem:[#allocation3 + $0x20] sm:$0xff]
  %v5431 = vld [vmem:[#allocation3 + $0x28] sm:$0xff]
  %v5432 = vld [vmem:[#allocation3 + $0x30] sm:$0xff]
  %v5433 = vld [vmem:[#allocation3 + $0x38] sm:$0xff]
  %v5434 = vld [vmem:[#allocation3 + $0x40] sm:$0xff]
  %v5435 = vld [vmem:[#allocation3 + $0x48] sm:$0xff]
  %v5436 = vld [vmem:[#allocation3 + $0x50] sm:$0xff]
  %v5437 = vld [vmem:[#allocation3 + $0x58] sm:$0xff]
  %v5438 = vld [vmem:[#allocation3 + $0x60] sm:$0xff]
  %v5439 = vld [vmem:[#allocation3 + $0x68] sm:$0xff]
  %v5440 = vld [vmem:[#allocation3 + $0x70] sm:$0xff]
  %v5441 = vld [vmem:[#allocation3 + $0x78] sm:$0xff]
  %v5442 = vld [vmem:[#allocation3 + $0x80] sm:$0xff]
  %v5443 = vld [vmem:[#allocation3 + $0x88] sm:$0xff]
  %v5444 = vld [vmem:[#allocation3 + $0x90] sm:$0xff]
  %v5445 = vld [vmem:[#allocation3 + $0x98] sm:$0xff]
  %v5446 = vld [vmem:[#allocation3 + $0xa0] sm:$0xff]
  %v5447 = vld [vmem:[#allocation3 + $0xa8] sm:$0xff]
  %v5448 = vld [vmem:[#allocation3 + $0xb0] sm:$0xff]
  %v5449 = vld [vmem:[#allocation3 + $0xb8] sm:$0xff]
  %v5450 = vld [vmem:[#allocation3 + $0xc0] sm:$0xff]
  %v5451 = vld [vmem:[#allocation3 + $0xc8] sm:$0xff]
  %v5452 = vld [vmem:[#allocation3 + $0xd0] sm:$0xff]
  %v5453 = vld [vmem:[#allocation3 + $0xd8] sm:$0xff]
  %v5454 = vld [vmem:[#allocation3 + $0xe0] sm:$0xff]
  %v5455 = vld [vmem:[#allocation3 + $0xe8] sm:$0xff]
  %v5456 = vld [vmem:[#allocation3 + $0xf0] sm:$0xff]
  %v5457 = vld [vmem:[#allocation3 + $0xf8] sm:$0xff]
  %v5458 = vld [vmem:[#allocation3 + $0x100] sm:$0xff]
  %v5459 = vld [vmem:[#allocation3 + $0x108] sm:$0xff]
  %v5460 = vld [vmem:[#allocation3 + $0x110] sm:$0xff]
  %v5461 = vld [vmem:[#allocation3 + $0x118] sm:$0xff]
  %v5462 = vld [vmem:[#allocation3 + $0x120] sm:$0xff]
  %v5463 = vld [vmem:[#allocation3 + $0x128] sm:$0xff]
  %v5464 = vld [vmem:[#allocation3 + $0x130] sm:$0xff]
  %v5465 = vld [vmem:[#allocation3 + $0x138] sm:$0xff]
  %v5466 = vld [vmem:[#allocation3 + $0x140] sm:$0xff]
  %v5467 = vld [vmem:[#allocation3 + $0x148] sm:$0xff]
  %v5468 = vld [vmem:[#allocation3 + $0x150] sm:$0xff]
  %v5469 = vld [vmem:[#allocation3 + $0x158] sm:$0xff]
  %v5470 = vld [vmem:[#allocation3 + $0x160] sm:$0xff]
  %v5471 = vld [vmem:[#allocation3 + $0x168] sm:$0xff]
  %v5472 = vld [vmem:[#allocation3 + $0x170] sm:$0xff]
  %v5473 = vld [vmem:[#allocation3 + $0x178] sm:$0xff]
  %v5474 = vld [vmem:[#allocation3 + $0x180] sm:$0xff]
  %v5475 = vld [vmem:[#allocation3 + $0x188] sm:$0xff]
  %v5476 = vld [vmem:[#allocation3 + $0x190] sm:$0xff]
  %v5477 = vld [vmem:[#allocation3 + $0x198] sm:$0xff]
  %v5478 = vld [vmem:[#allocation3 + $0x1a0] sm:$0xff]
  %v5479 = vld [vmem:[#allocation3 + $0x1a8] sm:$0xff]
  %v5480 = vld [vmem:[#allocation3 + $0x1b0] sm:$0xff]
  %v5481 = vld [vmem:[#allocation3 + $0x1b8] sm:$0xff]
  %v5482 = vld [vmem:[#allocation3 + $0x1c0] sm:$0xff]
  %v5483 = vld [vmem:[#allocation3 + $0x1c8] sm:$0xff]
  %v5484 = vld [vmem:[#allocation3 + $0x1d0] sm:$0xff]
  %v5485 = vld [vmem:[#allocation3 + $0x1d8] sm:$0xff]
  %v5486 = vld [vmem:[#allocation3 + $0x1e0] sm:$0xff]
  %v5487 = vld [vmem:[#allocation3 + $0x1e8] sm:$0xff]
  %v5488 = vld [vmem:[#allocation3 + $0x1f0] sm:$0xff]
  %v5489 = vld [vmem:[#allocation3 + $0x1f8] sm:$0xff]
  %v5490 = vld [vmem:[#allocation3 + $0x200] sm:$0xff]
  %v5491 = vld [vmem:[#allocation3 + $0x208] sm:$0xff]
  %v5492 = vld [vmem:[#allocation3 + $0x210] sm:$0xff]
  %v5493 = vld [vmem:[#allocation3 + $0x218] sm:$0xff]
  %v5494 = vld [vmem:[#allocation3 + $0x220] sm:$0xff]
  %v5495 = vld [vmem:[#allocation3 + $0x228] sm:$0xff]
  %v5496 = vld [vmem:[#allocation3 + $0x230] sm:$0xff]
  %v5497 = vld [vmem:[#allocation3 + $0x238] sm:$0xff]
  %v5498 = vld [vmem:[#allocation3 + $0x240] sm:$0xff]
  %v5499 = vld [vmem:[#allocation3 + $0x248] sm:$0xff]
  %v5500 = vld [vmem:[#allocation3 + $0x250] sm:$0xff]
  %v5501 = vld [vmem:[#allocation3 + $0x258] sm:$0xff]
  %v5502 = vld [vmem:[#allocation3 + $0x260] sm:$0xff]
  %v5503 = vld [vmem:[#allocation3 + $0x268] sm:$0xff]
  %v5504 = vld [vmem:[#allocation3 + $0x270] sm:$0xff]
  %v5505 = vld [vmem:[#allocation3 + $0x278] sm:$0xff]
  %v5506 = vld [vmem:[#allocation3 + $0x280] sm:$0xff]
  %v5507 = vld [vmem:[#allocation3 + $0x288] sm:$0xff]
  %v5508 = vld [vmem:[#allocation3 + $0x290] sm:$0xff]
  %v5509 = vld [vmem:[#allocation3 + $0x298] sm:$0xff]
  %v5510 = vld [vmem:[#allocation3 + $0x2a0] sm:$0xff]
  %v5511 = vld [vmem:[#allocation3 + $0x2a8] sm:$0xff]
  %v5512 = vld [vmem:[#allocation3 + $0x2b0] sm:$0xff]
  %v5513 = vld [vmem:[#allocation3 + $0x2b8] sm:$0xff]
  %v5514 = vld [vmem:[#allocation3 + $0x2c0] sm:$0xff]
  %v5515 = vld [vmem:[#allocation3 + $0x2c8] sm:$0xff]
  %v5516 = vld [vmem:[#allocation3 + $0x2d0] sm:$0xff]
  %v5517 = vld [vmem:[#allocation3 + $0x2d8] sm:$0xff]
  %v5518 = vld [vmem:[#allocation3 + $0x2e0] sm:$0xff]
  %v5519 = vld [vmem:[#allocation3 + $0x2e8] sm:$0xff]
  %v5520 = vld [vmem:[#allocation3 + $0x2f0] sm:$0xff]
  %v5521 = vld [vmem:[#allocation3 + $0x2f8] sm:$0xff]
  %v5522 = vld [vmem:[%s4] sm:$0xff]
  %v5523 = vld [vmem:[%s4 + $0x8] sm:$0xff]
  %v5524 = vld [vmem:[%s4 + $0x10] sm:$0xff]
  %v5525 = vld [vmem:[%s4 + $0x18] sm:$0xff]
  %v5526 = vld [vmem:[%s4 + $0x20] sm:$0xff]
  %v5527 = vld [vmem:[%s4 + $0x28] sm:$0xff]
  %v5528 = vld [vmem:[%s4 + $0x30] sm:$0xff]
  %v5529 = vld [vmem:[%s4 + $0x38] sm:$0xff]
  %v5530 = vld [vmem:[%s4 + $0x40] sm:$0xff]
  %v5531 = vld [vmem:[%s4 + $0x48] sm:$0xff]
  %v5532 = vld [vmem:[%s4 + $0x50] sm:$0xff]
  %v5533 = vld [vmem:[%s4 + $0x58] sm:$0xff]
  %v5534 = vld [vmem:[%s4 + $0x60] sm:$0xff]
  %v5535 = vld [vmem:[%s4 + $0x68] sm:$0xff]
  %v5536 = vld [vmem:[%s4 + $0x70] sm:$0xff]
  %v5537 = vld [vmem:[%s4 + $0x78] sm:$0xff]
  %v5538 = vld [vmem:[%s4 + $0x80] sm:$0xff]
  %v5539 = vld [vmem:[%s4 + $0x88] sm:$0xff]
  %v5540 = vld [vmem:[%s4 + $0x90] sm:$0xff]
  %v5541 = vld [vmem:[%s4 + $0x98] sm:$0xff]
  %v5542 = vld [vmem:[%s4 + $0xa0] sm:$0xff]
  %v5543 = vld [vmem:[%s4 + $0xa8] sm:$0xff]
  %v5544 = vld [vmem:[%s4 + $0xb0] sm:$0xff]
  %v5545 = vld [vmem:[%s4 + $0xb8] sm:$0xff]
  %v5546 = vld [vmem:[%s4 + $0xc0] sm:$0xff]
  %v5547 = vld [vmem:[%s4 + $0xc8] sm:$0xff]
  %v5548 = vld [vmem:[%s4 + $0xd0] sm:$0xff]
  %v5549 = vld [vmem:[%s4 + $0xd8] sm:$0xff]
  %v5550 = vld [vmem:[%s4 + $0xe0] sm:$0xff]
  %v5551 = vld [vmem:[%s4 + $0xe8] sm:$0xff]
  %v5552 = vld [vmem:[%s4 + $0xf0] sm:$0xff]
  %v5553 = vld [vmem:[%s4 + $0xf8] sm:$0xff]
  %v5554 = vld [vmem:[%s4 + $0x100] sm:$0xff]
  %v5555 = vld [vmem:[%s4 + $0x108] sm:$0xff]
  %v5556 = vld [vmem:[%s4 + $0x110] sm:$0xff]
  %v5557 = vld [vmem:[%s4 + $0x118] sm:$0xff]
  %v5558 = vld [vmem:[%s4 + $0x120] sm:$0xff]
  %v5559 = vld [vmem:[%s4 + $0x128] sm:$0xff]
  %v5560 = vld [vmem:[%s4 + $0x130] sm:$0xff]
  %v5561 = vld [vmem:[%s4 + $0x138] sm:$0xff]
  %v5562 = vld [vmem:[%s4 + $0x140] sm:$0xff]
  %v5563 = vld [vmem:[%s4 + $0x148] sm:$0xff]
  %v5564 = vld [vmem:[%s4 + $0x150] sm:$0xff]
  %v5565 = vld [vmem:[%s4 + $0x158] sm:$0xff]
  %v5566 = vld [vmem:[%s4 + $0x160] sm:$0xff]
  %v5567 = vld [vmem:[%s4 + $0x168] sm:$0xff]
  %v5568 = vld [vmem:[%s4 + $0x170] sm:$0xff]
  %v5569 = vld [vmem:[%s4 + $0x178] sm:$0xff]
  %v5570 = vld [vmem:[%s4 + $0x180] sm:$0xff]
  %v5571 = vld [vmem:[%s4 + $0x188] sm:$0xff]
  %v5572 = vld [vmem:[%s4 + $0x190] sm:$0xff]
  %v5573 = vld [vmem:[%s4 + $0x198] sm:$0xff]
  %v5574 = vld [vmem:[%s4 + $0x1a0] sm:$0xff]
  %v5575 = vld [vmem:[%s4 + $0x1a8] sm:$0xff]
  %v5576 = vld [vmem:[%s4 + $0x1b0] sm:$0xff]
  %v5577 = vld [vmem:[%s4 + $0x1b8] sm:$0xff]
  %v5578 = vld [vmem:[%s4 + $0x1c0] sm:$0xff]
  %v5579 = vld [vmem:[%s4 + $0x1c8] sm:$0xff]
  %v5580 = vld [vmem:[%s4 + $0x1d0] sm:$0xff]
  %v5581 = vld [vmem:[%s4 + $0x1d8] sm:$0xff]
  %v5582 = vld [vmem:[%s4 + $0x1e0] sm:$0xff]
  %v5583 = vld [vmem:[%s4 + $0x1e8] sm:$0xff]
  %v5584 = vld [vmem:[%s4 + $0x1f0] sm:$0xf]
  %v5585 = vld [vmem:[%s8 + $0x1] sm:$0x1]
  %v5587 = vlaneseq
  %v5588 = vshrl.u32 %v5587, 7
  %v5589 = vsub.s32 0, %v5588
  %v5590 = vrot.slane %v5585, %v5589
  %vm5592 = vcmask 949248
  %v5594 = vsel %vm5592, %v5429, 0
  %v5597 = vsel %vm5592, %v5433, 0
  %v5600 = vsel %vm5592, %v5437, 0
  %v5603 = vsel %vm5592, %v5441, 0
  %v5606 = vsel %vm5592, %v5445, 0
  %v5609 = vsel %vm5592, %v5449, 0
  %v5612 = vsel %vm5592, %v5453, 0
  %v5615 = vsel %vm5592, %v5457, 0
  %v5618 = vsel %vm5592, %v5461, 0
  %v5621 = vsel %vm5592, %v5465, 0
  %v5624 = vsel %vm5592, %v5469, 0
  %v5627 = vsel %vm5592, %v5473, 0
  %v5630 = vsel %vm5592, %v5477, 0
  %v5633 = vsel %vm5592, %v5481, 0
  %v5636 = vsel %vm5592, %v5485, 0
  %v5639 = vsel %vm5592, %v5489, 0
  %v5642 = vsel %vm5592, %v5493, 0
  %v5645 = vsel %vm5592, %v5497, 0
  %v5648 = vsel %vm5592, %v5501, 0
  %v5651 = vsel %vm5592, %v5505, 0
  %v5654 = vsel %vm5592, %v5509, 0
  %v5657 = vsel %vm5592, %v5513, 0
  %v5660 = vsel %vm5592, %v5517, 0
  %v5663 = vsel %vm5592, %v5521, 0
  %vm5665 = vcmask 1043456
  %v5667 = vsel %vm5665, %v5584, 0
  %5669 = vmatprep.subr.mxu0 0.0
  %5670 = vmatpush1.msra.mxu0 %v5537
  %5671 = vmatprep.subr.mxu0 0.0
  %5672 = vmatpush1.msra.mxu0 %v5536
  %5673 = vmatprep.subr.mxu0 0.0
  %5674 = vmatpush1.msra.mxu0 %v5535
  %5675 = vmatprep.subr.mxu0 0.0
  %5676 = vmatpush1.msra.mxu0 %v5534
  %5677 = vmatprep.subr.mxu0 0.0
  %5678 = vmatpush1.msra.mxu0 %v5533
  %5679 = vmatprep.subr.mxu0 0.0
  %5680 = vmatpush1.msra.mxu0 %v5532
  %5681 = vmatprep.subr.mxu0 0.0
  %5682 = vmatpush1.msra.mxu0 %v5531
  %5683 = vmatprep.subr.mxu0 0.0
  %5684 = vmatpush1.msra.mxu0 %v5530
  %5685 = vmatprep.subr.mxu0 0.0
  %5686 = vmatpush1.msra.mxu0 %v5529
  %5687 = vmatprep.subr.mxu0 0.0
  %5688 = vmatpush1.msra.mxu0 %v5528
  %5689 = vmatprep.subr.mxu0 0.0
  %5690 = vmatpush1.msra.mxu0 %v5527
  %5691 = vmatprep.subr.mxu0 0.0
  %5692 = vmatpush1.msra.mxu0 %v5526
  %5693 = vmatprep.subr.mxu0 0.0
  %5694 = vmatpush1.msra.mxu0 %v5525
  %5695 = vmatprep.subr.mxu0 0.0
  %5696 = vmatpush1.msra.mxu0 %v5524
  %5697 = vmatprep.subr.mxu0 0.0
  %5698 = vmatpush1.msra.mxu0 %v5523
  %5699 = vmatprep.subr.mxu0 0.0
  %5700 = vmatpush1.msra.mxu0 %v5522
  %5701 = vmatprep.subr.mxu0 0.0
  %5702 = vmatpush2.msra.mxu0 %v5553
  %5703 = vmatprep.subr.mxu0 0.0
  %5704 = vmatpush2.msra.mxu0 %v5552
  %5705 = vmatprep.subr.mxu0 0.0
  %5706 = vmatpush2.msra.mxu0 %v5551
  %5707 = vmatprep.subr.mxu0 0.0
  %5708 = vmatpush2.msra.mxu0 %v5550
  %5709 = vmatprep.subr.mxu0 0.0
  %5710 = vmatpush2.msra.mxu0 %v5549
  %5711 = vmatprep.subr.mxu0 0.0
  %5712 = vmatpush2.msra.mxu0 %v5548
  %5713 = vmatprep.subr.mxu0 0.0
  %5714 = vmatpush2.msra.mxu0 %v5547
  %5715 = vmatprep.subr.mxu0 0.0
  %5716 = vmatpush2.msra.mxu0 %v5546
  %5717 = vmatprep.subr.mxu0 0.0
  %5718 = vmatpush2.msra.mxu0 %v5545
  %5719 = vmatprep.subr.mxu0 0.0
  %5720 = vmatpush2.msra.mxu0 %v5544
  %5721 = vmatprep.subr.mxu0 0.0
  %5722 = vmatpush2.msra.mxu0 %v5543
  %5723 = vmatprep.subr.mxu0 0.0
  %5724 = vmatpush2.msra.mxu0 %v5542
  %5725 = vmatprep.subr.mxu0 0.0
  %5726 = vmatpush2.msra.mxu0 %v5541
  %5727 = vmatprep.subr.mxu0 0.0
  %5728 = vmatpush2.msra.mxu0 %v5540
  %5729 = vmatprep.subr.mxu0 0.0
  %5730 = vmatpush2.msra.mxu0 %v5539
  %5731 = vmatprep.subr.mxu0 0.0
  %5732 = vmatpush2.msra.mxu0 %v5538
  %5733 = vmatprep.mubr.f32.mxu0 %v5427
  %5734 = vmatmul.mubr.f32.gmra.mxu0 %v5426
  %v5735 = vpop.f32.mrf.mxu0
  %v5736 = vadd.f32 %v5590, %v5735
  %v5737 = vpop.f32.mrf.mxu0
  %5738 = vmatprep.mubr.f32.mxu0 %v5431
  %5739 = vmatmul.mubr.f32.gmra.mxu0 %v5430
  %v5740 = vpop.f32.mrf.mxu0
  %v5741 = vadd.f32 %v5590, %v5740
  %v5742 = vpop.f32.mrf.mxu0
  %5743 = vmatprep.mubr.f32.mxu0 %v5435
  %5744 = vmatmul.mubr.f32.gmra.mxu0 %v5434
  %v5745 = vpop.f32.mrf.mxu0
  %v5746 = vadd.f32 %v5590, %v5745
  %v5747 = vpop.f32.mrf.mxu0
  %5748 = vmatprep.mubr.f32.mxu0 %v5439
  %5749 = vmatmul.mubr.f32.gmra.mxu0 %v5438
  %v5750 = vpop.f32.mrf.mxu0
  %v5751 = vadd.f32 %v5590, %v5750
  %v5752 = vpop.f32.mrf.mxu0
  %5753 = vmatprep.mubr.f32.mxu0 %v5443
  %5754 = vmatmul.mubr.f32.gmra.mxu0 %v5442
  %v5755 = vpop.f32.mrf.mxu0
  %v5756 = vadd.f32 %v5590, %v5755
  %v5757 = vpop.f32.mrf.mxu0
  %5758 = vmatprep.mubr.f32.mxu0 %v5447
  %5759 = vmatmul.mubr.f32.gmra.mxu0 %v5446
  %v5760 = vpop.f32.mrf.mxu0
  %v5761 = vadd.f32 %v5590, %v5760
  %v5762 = vpop.f32.mrf.mxu0
  %5763 = vmatprep.mubr.f32.mxu0 %v5451
  %5764 = vmatmul.mubr.f32.gmra.mxu0 %v5450
  %v5765 = vpop.f32.mrf.mxu0
  %v5766 = vadd.f32 %v5590, %v5765
  %v5767 = vpop.f32.mrf.mxu0
  %5768 = vmatprep.mubr.f32.mxu0 %v5455
  %5769 = vmatmul.mubr.f32.gmra.mxu0 %v5454
  %v5770 = vpop.f32.mrf.mxu0
  %v5771 = vadd.f32 %v5590, %v5770
  %v5772 = vpop.f32.mrf.mxu0
  %5773 = vmatprep.mubr.f32.mxu0 %v5459
  %5774 = vmatmul.mubr.f32.gmra.mxu0 %v5458
  %v5775 = vpop.f32.mrf.mxu0
  %v5776 = vadd.f32 %v5590, %v5775
  %v5777 = vpop.f32.mrf.mxu0
  %5778 = vmatprep.mubr.f32.mxu0 %v5463
  %5779 = vmatmul.mubr.f32.gmra.mxu0 %v5462
  %v5780 = vpop.f32.mrf.mxu0
  %v5781 = vadd.f32 %v5590, %v5780
  %v5782 = vpop.f32.mrf.mxu0
  %5783 = vmatprep.mubr.f32.mxu0 %v5467
  %5784 = vmatmul.mubr.f32.gmra.mxu0 %v5466
  %v5785 = vpop.f32.mrf.mxu0
  %v5786 = vadd.f32 %v5590, %v5785
  %v5787 = vpop.f32.mrf.mxu0
  %5788 = vmatprep.mubr.f32.mxu0 %v5471
  %5789 = vmatmul.mubr.f32.gmra.mxu0 %v5470
  %v5790 = vpop.f32.mrf.mxu0
  %v5791 = vadd.f32 %v5590, %v5790
  %v5792 = vpop.f32.mrf.mxu0
  %5793 = vmatprep.mubr.f32.mxu0 %v5475
  %5794 = vmatmul.mubr.f32.gmra.mxu0 %v5474
  %v5795 = vpop.f32.mrf.mxu0
  %v5796 = vadd.f32 %v5590, %v5795
  %v5797 = vpop.f32.mrf.mxu0
  %5798 = vmatprep.mubr.f32.mxu0 %v5479
  %5799 = vmatmul.mubr.f32.gmra.mxu0 %v5478
  %v5800 = vpop.f32.mrf.mxu0
  %v5801 = vadd.f32 %v5590, %v5800
  %v5802 = vpop.f32.mrf.mxu0
  %5803 = vmatprep.mubr.f32.mxu0 %v5483
  %5804 = vmatmul.mubr.f32.gmra.mxu0 %v5482
  %v5805 = vpop.f32.mrf.mxu0
  %v5806 = vadd.f32 %v5590, %v5805
  %v5807 = vpop.f32.mrf.mxu0
  %5808 = vmatprep.mubr.f32.mxu0 %v5487
  %5809 = vmatmul.mubr.f32.gmra.mxu0 %v5486
  %v5810 = vpop.f32.mrf.mxu0
  %v5811 = vadd.f32 %v5590, %v5810
  %v5812 = vpop.f32.mrf.mxu0
  %5813 = vmatprep.mubr.f32.mxu0 %v5491
  %5814 = vmatmul.mubr.f32.gmra.mxu0 %v5490
  %v5815 = vpop.f32.mrf.mxu0
  %v5816 = vadd.f32 %v5590, %v5815
  %v5817 = vpop.f32.mrf.mxu0
  %5818 = vmatprep.mubr.f32.mxu0 %v5495
  %5819 = vmatmul.mubr.f32.gmra.mxu0 %v5494
  %v5820 = vpop.f32.mrf.mxu0
  %v5821 = vadd.f32 %v5590, %v5820
  %v5822 = vpop.f32.mrf.mxu0
  %5823 = vmatprep.mubr.f32.mxu0 %v5499
  %5824 = vmatmul.mubr.f32.gmra.mxu0 %v5498
  %v5825 = vpop.f32.mrf.mxu0
  %v5826 = vadd.f32 %v5590, %v5825
  %v5827 = vpop.f32.mrf.mxu0
  %5828 = vmatprep.mubr.f32.mxu0 %v5503
  %5829 = vmatmul.mubr.f32.gmra.mxu0 %v5502
  %v5830 = vpop.f32.mrf.mxu0
  %v5831 = vadd.f32 %v5590, %v5830
  %v5832 = vpop.f32.mrf.mxu0
  %5833 = vmatprep.mubr.f32.mxu0 %v5507
  %5834 = vmatmul.mubr.f32.gmra.mxu0 %v5506
  %v5835 = vpop.f32.mrf.mxu0
  %v5836 = vadd.f32 %v5590, %v5835
  %v5837 = vpop.f32.mrf.mxu0
  %5838 = vmatprep.mubr.f32.mxu0 %v5511
  %5839 = vmatmul.mubr.f32.gmra.mxu0 %v5510
  %v5840 = vpop.f32.mrf.mxu0
  %v5841 = vadd.f32 %v5590, %v5840
  %v5842 = vpop.f32.mrf.mxu0
  %5843 = vmatprep.mubr.f32.mxu0 %v5515
  %5844 = vmatmul.mubr.f32.gmra.mxu0 %v5514
  %v5845 = vpop.f32.mrf.mxu0
  %v5846 = vadd.f32 %v5590, %v5845
  %v5847 = vpop.f32.mrf.mxu0
  %5848 = vmatprep.mubr.f32.mxu0 %v5519
  %5849 = vmatmul.mubr.f32.gmra.mxu0 %v5518
  %v5850 = vpop.f32.mrf.mxu0
  %v5851 = vadd.f32 %v5590, %v5850
  %v5852 = vpop.f32.mrf.mxu0
  %5853 = vdwg.mxu0
  %5854 = vmatprep.subr.mxu0 0.0
  %5855 = vmatpush1.msra.mxu0 %v5569
  %5856 = vmatprep.subr.mxu0 0.0
  %5857 = vmatpush1.msra.mxu0 %v5568
  %5858 = vmatprep.subr.mxu0 0.0
  %5859 = vmatpush1.msra.mxu0 %v5567
  %5860 = vmatprep.subr.mxu0 0.0
  %5861 = vmatpush1.msra.mxu0 %v5566
  %5862 = vmatprep.subr.mxu0 0.0
  %5863 = vmatpush1.msra.mxu0 %v5565
  %5864 = vmatprep.subr.mxu0 0.0
  %5865 = vmatpush1.msra.mxu0 %v5564
  %5866 = vmatprep.subr.mxu0 0.0
  %5867 = vmatpush1.msra.mxu0 %v5563
  %5868 = vmatprep.subr.mxu0 0.0
  %5869 = vmatpush1.msra.mxu0 %v5562
  %5870 = vmatprep.subr.mxu0 0.0
  %5871 = vmatpush1.msra.mxu0 %v5561
  %5872 = vmatprep.subr.mxu0 0.0
  %5873 = vmatpush1.msra.mxu0 %v5560
  %5874 = vmatprep.subr.mxu0 0.0
  %5875 = vmatpush1.msra.mxu0 %v5559
  %5876 = vmatprep.subr.mxu0 0.0
  %5877 = vmatpush1.msra.mxu0 %v5558
  %5878 = vmatprep.subr.mxu0 0.0
  %5879 = vmatpush1.msra.mxu0 %v5557
  %5880 = vmatprep.subr.mxu0 0.0
  %5881 = vmatpush1.msra.mxu0 %v5556
  %5882 = vmatprep.subr.mxu0 0.0
  %5883 = vmatpush1.msra.mxu0 %v5555
  %5884 = vmatprep.subr.mxu0 0.0
  %5885 = vmatpush1.msra.mxu0 %v5554
  %5886 = vmatprep.subr.mxu0 0.0
  %5887 = vmatpush2.msra.mxu0 0.0
  %5888 = vmatprep.subr.mxu0 0.0
  %5889 = vmatpush2.msra.mxu0 %v5667
  %5890 = vmatprep.subr.mxu0 0.0
  %5891 = vmatpush2.msra.mxu0 %v5583
  %5892 = vmatprep.subr.mxu0 0.0
  %5893 = vmatpush2.msra.mxu0 %v5582
  %5894 = vmatprep.subr.mxu0 0.0
  %5895 = vmatpush2.msra.mxu0 %v5581
  %5896 = vmatprep.subr.mxu0 0.0
  %5897 = vmatpush2.msra.mxu0 %v5580
  %5898 = vmatprep.subr.mxu0 0.0
  %5899 = vmatpush2.msra.mxu0 %v5579
  %5900 = vmatprep.subr.mxu0 0.0
  %5901 = vmatpush2.msra.mxu0 %v5578
  %5902 = vmatprep.subr.mxu0 0.0
  %5903 = vmatpush2.msra.mxu0 %v5577
  %5904 = vmatprep.subr.mxu0 0.0
  %5905 = vmatpush2.msra.mxu0 %v5576
  %5906 = vmatprep.subr.mxu0 0.0
  %5907 = vmatpush2.msra.mxu0 %v5575
  %5908 = vmatprep.subr.mxu0 0.0
  %5909 = vmatpush2.msra.mxu0 %v5574
  %5910 = vmatprep.subr.mxu0 0.0
  %5911 = vmatpush2.msra.mxu0 %v5573
  %5912 = vmatprep.subr.mxu0 0.0
  %5913 = vmatpush2.msra.mxu0 %v5572
  %5914 = vmatprep.subr.mxu0 0.0
  %5915 = vmatpush2.msra.mxu0 %v5571
  %5916 = vmatprep.subr.mxu0 0.0
  %5917 = vmatpush2.msra.mxu0 %v5570
  %5918 = vmatprep.mubr.f32.mxu0 %v5594
  %5919 = vmatmul.mubr.f32.gmra.mxu0 %v5428
  %v5920 = vpop.f32.mrf.mxu0
  %v5921 = vadd.f32 %v5736, %v5920
  %v5922 = vpop.f32.mrf.mxu0
  %5923 = vmatprep.mubr.f32.mxu0 %v5597
  %5924 = vmatmul.mubr.f32.gmra.mxu0 %v5432
  %v5925 = vpop.f32.mrf.mxu0
  %v5926 = vadd.f32 %v5741, %v5925
  %v5927 = vpop.f32.mrf.mxu0
  %5928 = vmatprep.mubr.f32.mxu0 %v5600
  %5929 = vmatmul.mubr.f32.gmra.mxu0 %v5436
  %v5930 = vpop.f32.mrf.mxu0
  %v5931 = vadd.f32 %v5746, %v5930
  %v5932 = vpop.f32.mrf.mxu0
  %5933 = vmatprep.mubr.f32.mxu0 %v5603
  %5934 = vmatmul.mubr.f32.gmra.mxu0 %v5440
  %v5935 = vpop.f32.mrf.mxu0
  %v5936 = vadd.f32 %v5751, %v5935
  %v5937 = vpop.f32.mrf.mxu0
  %5938 = vmatprep.mubr.f32.mxu0 %v5606
  %5939 = vmatmul.mubr.f32.gmra.mxu0 %v5444
  %v5940 = vpop.f32.mrf.mxu0
  %v5941 = vadd.f32 %v5756, %v5940
  %v5942 = vpop.f32.mrf.mxu0
  %5943 = vmatprep.mubr.f32.mxu0 %v5609
  %5944 = vmatmul.mubr.f32.gmra.mxu0 %v5448
  %v5945 = vpop.f32.mrf.mxu0
  %v5946 = vadd.f32 %v5761, %v5945
  %v5947 = vpop.f32.mrf.mxu0
  %5948 = vmatprep.mubr.f32.mxu0 %v5612
  %5949 = vmatmul.mubr.f32.gmra.mxu0 %v5452
  %v5950 = vpop.f32.mrf.mxu0
  %v5951 = vadd.f32 %v5766, %v5950
  %v5952 = vpop.f32.mrf.mxu0
  %5953 = vmatprep.mubr.f32.mxu0 %v5615
  %5954 = vmatmul.mubr.f32.gmra.mxu0 %v5456
  %v5955 = vpop.f32.mrf.mxu0
  %v5956 = vadd.f32 %v5771, %v5955
  %v5957 = vpop.f32.mrf.mxu0
  %5958 = vmatprep.mubr.f32.mxu0 %v5618
  %5959 = vmatmul.mubr.f32.gmra.mxu0 %v5460
  %v5960 = vpop.f32.mrf.mxu0
  %v5961 = vadd.f32 %v5776, %v5960
  %v5962 = vpop.f32.mrf.mxu0
  %5963 = vmatprep.mubr.f32.mxu0 %v5621
  %5964 = vmatmul.mubr.f32.gmra.mxu0 %v5464
  %v5965 = vpop.f32.mrf.mxu0
  %v5966 = vadd.f32 %v5781, %v5965
  %v5967 = vpop.f32.mrf.mxu0
  %5968 = vmatprep.mubr.f32.mxu0 %v5624
  %5969 = vmatmul.mubr.f32.gmra.mxu0 %v5468
  %v5970 = vpop.f32.mrf.mxu0
  %v5971 = vadd.f32 %v5786, %v5970
  %v5972 = vpop.f32.mrf.mxu0
  %5973 = vmatprep.mubr.f32.mxu0 %v5627
  %5974 = vmatmul.mubr.f32.gmra.mxu0 %v5472
  %v5975 = vpop.f32.mrf.mxu0
  %v5976 = vadd.f32 %v5791, %v5975
  %v5977 = vpop.f32.mrf.mxu0
  %5978 = vmatprep.mubr.f32.mxu0 %v5630
  %5979 = vmatmul.mubr.f32.gmra.mxu0 %v5476
  %v5980 = vpop.f32.mrf.mxu0
  %v5981 = vadd.f32 %v5796, %v5980
  %v5982 = vpop.f32.mrf.mxu0
  %5983 = vmatprep.mubr.f32.mxu0 %v5633
  %5984 = vmatmul.mubr.f32.gmra.mxu0 %v5480
  %v5985 = vpop.f32.mrf.mxu0
  %v5986 = vadd.f32 %v5801, %v5985
  %v5987 = vpop.f32.mrf.mxu0
  %5988 = vmatprep.mubr.f32.mxu0 %v5636
  %5989 = vmatmul.mubr.f32.gmra.mxu0 %v5484
  %v5990 = vpop.f32.mrf.mxu0
  %v5991 = vadd.f32 %v5806, %v5990
  %v5992 = vpop.f32.mrf.mxu0
  %5993 = vmatprep.mubr.f32.mxu0 %v5639
  %5994 = vmatmul.mubr.f32.gmra.mxu0 %v5488
  %v5995 = vpop.f32.mrf.mxu0
  %v5996 = vadd.f32 %v5811, %v5995
  %v5997 = vpop.f32.mrf.mxu0
  %5998 = vmatprep.mubr.f32.mxu0 %v5642
  %5999 = vmatmul.mubr.f32.gmra.mxu0 %v5492
  %v6000 = vpop.f32.mrf.mxu0
  %v6001 = vadd.f32 %v5816, %v6000
  %v6002 = vpop.f32.mrf.mxu0
  %6003 = vmatprep.mubr.f32.mxu0 %v5645
  %6004 = vmatmul.mubr.f32.gmra.mxu0 %v5496
  %v6005 = vpop.f32.mrf.mxu0
  %v6006 = vadd.f32 %v5821, %v6005
  %v6007 = vpop.f32.mrf.mxu0
  %6008 = vmatprep.mubr.f32.mxu0 %v5648
  %6009 = vmatmul.mubr.f32.gmra.mxu0 %v5500
  %v6010 = vpop.f32.mrf.mxu0
  %v6011 = vadd.f32 %v5826, %v6010
  %v6012 = vpop.f32.mrf.mxu0
  %6013 = vmatprep.mubr.f32.mxu0 %v5651
  %6014 = vmatmul.mubr.f32.gmra.mxu0 %v5504
  %v6015 = vpop.f32.mrf.mxu0
  %v6016 = vadd.f32 %v5831, %v6015
  %v6017 = vpop.f32.mrf.mxu0
  %6018 = vmatprep.mubr.f32.mxu0 %v5654
  %6019 = vmatmul.mubr.f32.gmra.mxu0 %v5508
  %v6020 = vpop.f32.mrf.mxu0
  %v6021 = vadd.f32 %v5836, %v6020
  %v6022 = vpop.f32.mrf.mxu0
  %6023 = vmatprep.mubr.f32.mxu0 %v5657
  %6024 = vmatmul.mubr.f32.gmra.mxu0 %v5512
  %v6025 = vpop.f32.mrf.mxu0
  %v6026 = vadd.f32 %v5841, %v6025
  %v6027 = vpop.f32.mrf.mxu0
  %6028 = vmatprep.mubr.f32.mxu0 %v5660
  %6029 = vmatmul.mubr.f32.gmra.mxu0 %v5516
  %v6030 = vpop.f32.mrf.mxu0
  %v6031 = vadd.f32 %v5846, %v6030
  %v6032 = vpop.f32.mrf.mxu0
  %6033 = vmatprep.mubr.f32.mxu0 %v5663
  %6034 = vmatmul.mubr.f32.gmra.mxu0 %v5520
  %v6035 = vpop.f32.mrf.mxu0
  %v6036 = vadd.f32 %v5851, %v6035
  %v6037 = vpop.f32.mrf.mxu0
  %6038 = vdwg.mxu0
  %vm6039 = vcmask 408576
  %6040 = vst.msk [vmem:[#allocation4] sm:$0xff] %vm6039, %v5921
  %6041 = vst.msk [vmem:[#allocation4 + $0x8] sm:$0xff] %vm6039, %v5926
  %6042 = vst.msk [vmem:[#allocation4 + $0x10] sm:$0xff] %vm6039, %v5931
  %6043 = vst.msk [vmem:[#allocation4 + $0x18] sm:$0xff] %vm6039, %v5936
  %6044 = vst.msk [vmem:[#allocation4 + $0x20] sm:$0xff] %vm6039, %v5941
  %6045 = vst.msk [vmem:[#allocation4 + $0x28] sm:$0xff] %vm6039, %v5946
  %6046 = vst.msk [vmem:[#allocation4 + $0x30] sm:$0xff] %vm6039, %v5951
  %6047 = vst.msk [vmem:[#allocation4 + $0x38] sm:$0xff] %vm6039, %v5956
  %6048 = vst.msk [vmem:[#allocation4 + $0x40] sm:$0xff] %vm6039, %v5961
  %6049 = vst.msk [vmem:[#allocation4 + $0x48] sm:$0xff] %vm6039, %v5966
  %6050 = vst.msk [vmem:[#allocation4 + $0x50] sm:$0xff] %vm6039, %v5971
  %6051 = vst.msk [vmem:[#allocation4 + $0x58] sm:$0xff] %vm6039, %v5976
  %6052 = vst.msk [vmem:[#allocation4 + $0x60] sm:$0xff] %vm6039, %v5981
  %6053 = vst.msk [vmem:[#allocation4 + $0x68] sm:$0xff] %vm6039, %v5986
  %6054 = vst.msk [vmem:[#allocation4 + $0x70] sm:$0xff] %vm6039, %v5991
  %6055 = vst.msk [vmem:[#allocation4 + $0x78] sm:$0xff] %vm6039, %v5996
  %6056 = vst.msk [vmem:[#allocation4 + $0x80] sm:$0xff] %vm6039, %v6001
  %6057 = vst.msk [vmem:[#allocation4 + $0x88] sm:$0xff] %vm6039, %v6006
  %6058 = vst.msk [vmem:[#allocation4 + $0x90] sm:$0xff] %vm6039, %v6011
  %6059 = vst.msk [vmem:[#allocation4 + $0x98] sm:$0xff] %vm6039, %v6016
  %6060 = vst.msk [vmem:[#allocation4 + $0xa0] sm:$0xff] %vm6039, %v6021
  %6061 = vst.msk [vmem:[#allocation4 + $0xa8] sm:$0xff] %vm6039, %v6026
  %6062 = vst.msk [vmem:[#allocation4 + $0xb0] sm:$0xff] %vm6039, %v6031
  %6063 = vst.msk [vmem:[#allocation4 + $0xb8] sm:$0xff] %vm6039, %v6036
  %v6064 = vld [vmem:[#allocation4] sm:$0x3]
  %v6065 = vld [vmem:[#allocation4 + $0x2] sm:$0x3]
  %v6066 = vmax.f32 %v6064, %v6065
  %v6067 = vld [vmem:[#allocation4 + $0x18] sm:$0x3]
  %v6068 = vld [vmem:[#allocation4 + $0x1a] sm:$0x3]
  %v6069 = vmax.f32 %v6067, %v6068
  %v6070 = vmax.f32 %v6066, %v6069
  %v6071 = vmax.f32 %v6070, 0.0
  %vm6072 = vcmask 402432
  %6073 = vst.msk [vmem:[#allocation5] sm:$0x3] %vm6072, %v6071
  %v6074 = vld [vmem:[#allocation4 + $0x4] sm:$0x3]
  %v6075 = vld [vmem:[#allocation4 + $0x6] sm:$0x3]
  %v6076 = vmax.f32 %v6074, %v6075
  %v6077 = vld [vmem:[#allocation4 + $0x1c] sm:$0x3]
  %v6078 = vld [vmem:[#allocation4 + $0x1e] sm:$0x3]
  %v6079 = vmax.f32 %v6077, %v6078
  %v6080 = vmax.f32 %v6076, %v6079
  %v6081 = vmax.f32 %v6080, 0.0
  %v6084 = vunpack.c.l.s4 1983009808
  %v6085 = vunpack.c.0.s8 %v6084
  %v6086 = vlaneseq
  %v6087 = vshrl.u32 %v6086, 7
  %v6088 = vsub.s32 %v6085, %v6087
  %v6089 = vrot.slane %v6081, %v6088
  %6090 = vrot.lane.b32.xlu0 %v6089, 50
  %v6091 = vpop.permute.xlu0 %6090
  %vm6093 = vcmask 812432
  %6094 = vst.msk [vmem:[#allocation5] sm:$0x3] %vm6093, %v6091
  %v6095 = vld [vmem:[#allocation4 + $0x8] sm:$0x3]
  %v6096 = vld [vmem:[#allocation4 + $0xa] sm:$0x3]
  %v6097 = vmax.f32 %v6095, %v6096
  %v6098 = vld [vmem:[#allocation4 + $0x20] sm:$0x3]
  %v6099 = vld [vmem:[#allocation4 + $0x22] sm:$0x3]
  %v6100 = vmax.f32 %v6098, %v6099
  %v6101 = vmax.f32 %v6097, %v6100
  %v6102 = vmax.f32 %v6101, 0.0
  %v6105 = vunpack.c.l.s4 1983009808
  %v6106 = vunpack.c.0.s8 %v6105
  %v6107 = vlaneseq
  %v6108 = vshrl.u32 %v6107, 7
  %v6109 = vsub.s32 %v6106, %v6108
  %v6110 = vrot.slane %v6102, %v6109
  %6111 = vrot.lane.b32.xlu0 %v6110, 100
  %v6112 = vpop.permute.xlu0 %6111
  %v6113 = vrot.slane %v6112, 6
  %vm6114 = vcmask 818176
  %v6115 = vsel %vm6114, %v6113, %v6112
  %vm6117 = vcmask 1042208
  %vm6118 = vcmask 175106
  %vm6119 = vmor %vm6118, %vm6117
  %6120 = vst.msk [vmem:[#allocation5] sm:$0xf] %vm6119, %v6115
  %v6121 = vld [vmem:[#allocation4 + $0xc] sm:$0x3]
  %v6122 = vld [vmem:[#allocation4 + $0xe] sm:$0x3]
  %v6123 = vmax.f32 %v6121, %v6122
  %v6124 = vld [vmem:[#allocation4 + $0x24] sm:$0x3]
  %v6125 = vld [vmem:[#allocation4 + $0x26] sm:$0x3]
  %v6126 = vmax.f32 %v6124, %v6125
  %v6127 = vmax.f32 %v6123, %v6126
  %v6128 = vmax.f32 %v6127, 0.0
  %v6131 = vunpack.c.l.s4 1983009808
  %v6132 = vunpack.c.0.s8 %v6131
  %v6133 = vlaneseq
  %v6134 = vshrl.u32 %v6133, 7
  %v6135 = vsub.s32 %v6132, %v6134
  %v6136 = vrot.slane %v6128, %v6135
  %6137 = vrot.lane.b32.xlu0 %v6136, 22
  %v6138 = vpop.permute.xlu0 %6137
  %vm6140 = vcmask 582832
  %6141 = vst.msk [vmem:[#allocation5 + $0x2] sm:$0x3] %vm6140, %v6138
  %v6142 = vld [vmem:[#allocation4 + $0x30] sm:$0x3]
  %v6143 = vld [vmem:[#allocation4 + $0x32] sm:$0x3]
  %v6144 = vmax.f32 %v6142, %v6143
  %v6145 = vld [vmem:[#allocation4 + $0x48] sm:$0x3]
  %v6146 = vld [vmem:[#allocation4 + $0x4a] sm:$0x3]
  %v6147 = vmax.f32 %v6145, %v6146
  %v6148 = vmax.f32 %v6144, %v6147
  %v6149 = vmax.f32 %v6148, 0.0
  %v6152 = vunpack.c.l.s4 1983009808
  %v6153 = vunpack.c.0.s8 %v6152
  %v6154 = vlaneseq
  %v6155 = vshrl.u32 %v6154, 7
  %v6156 = vsub.s32 %v6153, %v6155
  %v6157 = vrot.slane %v6149, %v6156
  %6158 = vrot.lane.b32.xlu0 %v6157, 72
  %v6159 = vpop.permute.xlu0 %6158
  %vm6161 = vcmask 992832
  %6162 = vst.msk [vmem:[#allocation5 + $0x2] sm:$0x3] %vm6161, %v6159
  %v6163 = vld [vmem:[#allocation4 + $0x34] sm:$0x3]
  %v6164 = vld [vmem:[#allocation4 + $0x36] sm:$0x3]
  %v6165 = vmax.f32 %v6163, %v6164
  %v6166 = vld [vmem:[#allocation4 + $0x4c] sm:$0x3]
  %v6167 = vld [vmem:[#allocation4 + $0x4e] sm:$0x3]
  %v6168 = vmax.f32 %v6166, %v6167
  %v6169 = vmax.f32 %v6165, %v6168
  %v6170 = vmax.f32 %v6169, 0.0
  %v6173 = vunpack.c.l.s4 1983009808
  %v6174 = vunpack.c.0.s8 %v6173
  %v6175 = vlaneseq
  %v6176 = vshrl.u32 %v6175, 7
  %v6177 = vsub.s32 %v6174, %v6176
  %v6178 = vrot.slane %v6170, %v6177
  %6179 = vrot.lane.b32.xlu0 %v6178, 122
  %v6180 = vpop.permute.xlu0 %6179
  %v6181 = vrot.slane %v6180, 6
  %vm6182 = vcmask 998400
  %v6183 = vsel %vm6182, %v6181, %v6180
  %vm6185 = vcmask 1042384
  %vm6186 = vcmask 355330
  %vm6187 = vmor %vm6186, %vm6185
  %6188 = vst.msk [vmem:[#allocation5 + $0x2] sm:$0xf] %vm6187, %v6183
  %v6189 = vld [vmem:[#allocation4 + $0x38] sm:$0x3]
  %v6190 = vld [vmem:[#allocation4 + $0x3a] sm:$0x3]
  %v6191 = vmax.f32 %v6189, %v6190
  %v6192 = vld [vmem:[#allocation4 + $0x50] sm:$0x3]
  %v6193 = vld [vmem:[#allocation4 + $0x52] sm:$0x3]
  %v6194 = vmax.f32 %v6192, %v6193
  %v6195 = vmax.f32 %v6191, %v6194
  %v6196 = vmax.f32 %v6195, 0.0
  %v6199 = vunpack.c.l.s4 1983009808
  %v6200 = vunpack.c.0.s8 %v6199
  %v6201 = vlaneseq
  %v6202 = vshrl.u32 %v6201, 7
  %v6203 = vsub.s32 %v6200, %v6202
  %v6204 = vrot.slane %v6196, %v6203
  %6205 = vrot.lane.b32.xlu0 %v6204, 44
  %v6206 = vpop.permute.xlu0 %6205
  %vm6208 = vcmask 763232
  %6209 = vst.msk [vmem:[#allocation5 + $0x4] sm:$0x3] %vm6208, %v6206
  %v6210 = vld [vmem:[#allocation4 + $0x3c] sm:$0x3]
  %v6211 = vld [vmem:[#allocation4 + $0x3e] sm:$0x3]
  %v6212 = vmax.f32 %v6210, %v6211
  %v6213 = vld [vmem:[#allocation4 + $0x54] sm:$0x3]
  %v6214 = vld [vmem:[#allocation4 + $0x56] sm:$0x3]
  %v6215 = vmax.f32 %v6213, %v6214
  %v6216 = vmax.f32 %v6212, %v6215
  %v6217 = vmax.f32 %v6216, 0.0
  %v6220 = vunpack.c.l.s4 1983009808
  %v6221 = vunpack.c.0.s8 %v6220
  %v6222 = vlaneseq
  %v6223 = vshrl.u32 %v6222, 7
  %v6224 = vsub.s32 %v6221, %v6223
  %v6225 = vrot.slane %v6217, %v6224
  %6226 = vrot.lane.b32.xlu0 %v6225, 94
  %v6227 = vpop.permute.xlu0 %6226
  %v6228 = vrot.slane %v6227, 6
  %vm6229 = vcmask 769024
  %v6230 = vsel %vm6229, %v6228, %v6227
  %vm6232 = vcmask 1042160
  %vm6233 = vcmask 125954
  %vm6234 = vmor %vm6233, %vm6232
  %6235 = vst.msk [vmem:[#allocation5 + $0x4] sm:$0xf] %vm6234, %v6230
  %v6236 = vld [vmem:[#allocation4 + $0x60] sm:$0x3]
  %v6237 = vld [vmem:[#allocation4 + $0x62] sm:$0x3]
  %v6238 = vmax.f32 %v6236, %v6237
  %v6239 = vld [vmem:[#allocation4 + $0x78] sm:$0x3]
  %v6240 = vld [vmem:[#allocation4 + $0x7a] sm:$0x3]
  %v6241 = vmax.f32 %v6239, %v6240
  %v6242 = vmax.f32 %v6238, %v6241
  %v6243 = vmax.f32 %v6242, 0.0
  %v6246 = vunpack.c.l.s4 1983009808
  %v6247 = vunpack.c.0.s8 %v6246
  %v6248 = vlaneseq
  %v6249 = vshrl.u32 %v6248, 7
  %v6250 = vsub.s32 %v6247, %v6249
  %v6251 = vrot.slane %v6243, %v6250
  %6252 = vrot.lane.b32.xlu0 %v6251, 16
  %v6253 = vpop.permute.xlu0 %6252
  %vm6255 = vcmask 533632
  %6256 = vst.msk [vmem:[#allocation5 + $0x6] sm:$0x3] %vm6255, %v6253
  %v6257 = vld [vmem:[#allocation4 + $0x64] sm:$0x3]
  %v6258 = vld [vmem:[#allocation4 + $0x66] sm:$0x3]
  %v6259 = vmax.f32 %v6257, %v6258
  %v6260 = vld [vmem:[#allocation4 + $0x7c] sm:$0x3]
  %v6261 = vld [vmem:[#allocation4 + $0x7e] sm:$0x3]
  %v6262 = vmax.f32 %v6260, %v6261
  %v6263 = vmax.f32 %v6259, %v6262
  %v6264 = vmax.f32 %v6263, 0.0
  %v6267 = vunpack.c.l.s4 1983009808
  %v6268 = vunpack.c.0.s8 %v6267
  %v6269 = vlaneseq
  %v6270 = vshrl.u32 %v6269, 7
  %v6271 = vsub.s32 %v6268, %v6270
  %v6272 = vrot.slane %v6264, %v6271
  %6273 = vrot.lane.b32.xlu0 %v6272, 66
  %v6274 = vpop.permute.xlu0 %6273
  %vm6276 = vcmask 943632
  %6277 = vst.msk [vmem:[#allocation5 + $0x6] sm:$0x3] %vm6276, %v6274
  %v6278 = vld [vmem:[#allocation4 + $0x68] sm:$0x3]
  %v6279 = vld [vmem:[#allocation4 + $0x6a] sm:$0x3]
  %v6280 = vmax.f32 %v6278, %v6279
  %v6281 = vld [vmem:[#allocation4 + $0x80] sm:$0x3]
  %v6282 = vld [vmem:[#allocation4 + $0x82] sm:$0x3]
  %v6283 = vmax.f32 %v6281, %v6282
  %v6284 = vmax.f32 %v6280, %v6283
  %v6285 = vmax.f32 %v6284, 0.0
  %v6288 = vunpack.c.l.s4 1983009808
  %v6289 = vunpack.c.0.s8 %v6288
  %v6290 = vlaneseq
  %v6291 = vshrl.u32 %v6290, 7
  %v6292 = vsub.s32 %v6289, %v6291
  %v6293 = vrot.slane %v6285, %v6292
  %6294 = vrot.lane.b32.xlu0 %v6293, 116
  %v6295 = vpop.permute.xlu0 %6294
  %v6296 = vrot.slane %v6295, 6
  %v6297 = vsel %vm5592, %v6296, %v6295
  %vm6299 = vcmask 1042336
  %vm6300 = vcmask 306178
  %vm6301 = vmor %vm6300, %vm6299
  %6302 = vst.msk [vmem:[#allocation5 + $0x6] sm:$0xf] %vm6301, %v6297
  %v6303 = vld [vmem:[#allocation4 + $0x6c] sm:$0x3]
  %v6304 = vld [vmem:[#allocation4 + $0x6e] sm:$0x3]
  %v6305 = vmax.f32 %v6303, %v6304
  %v6306 = vld [vmem:[#allocation4 + $0x84] sm:$0x3]
  %v6307 = vld [vmem:[#allocation4 + $0x86] sm:$0x3]
  %v6308 = vmax.f32 %v6306, %v6307
  %v6309 = vmax.f32 %v6305, %v6308
  %v6310 = vmax.f32 %v6309, 0.0
  %v6313 = vunpack.c.l.s4 1983009808
  %v6314 = vunpack.c.0.s8 %v6313
  %v6315 = vlaneseq
  %v6316 = vshrl.u32 %v6315, 7
  %v6317 = vsub.s32 %v6314, %v6316
  %v6318 = vrot.slane %v6310, %v6317
  %6319 = vrot.lane.b32.xlu0 %v6318, 38
  %v6320 = vpop.permute.xlu0 %6319
  %vm6322 = vcmask 714032
  %6323 = vst.msk [vmem:[#allocation5 + $0x8] sm:$0x3] %vm6322, %v6320
  %v6324 = vld [vmem:[#allocation4 + $0x90] sm:$0x3]
  %v6325 = vld [vmem:[#allocation4 + $0x92] sm:$0x3]
  %v6326 = vmax.f32 %v6324, %v6325
  %v6327 = vld [vmem:[#allocation4 + $0xa8] sm:$0x3]
  %v6328 = vld [vmem:[#allocation4 + $0xaa] sm:$0x3]
  %v6329 = vmax.f32 %v6327, %v6328
  %v6330 = vmax.f32 %v6326, %v6329
  %v6331 = vmax.f32 %v6330, 0.0
  %v6334 = vunpack.c.l.s4 1983009808
  %v6335 = vunpack.c.0.s8 %v6334
  %v6336 = vlaneseq
  %v6337 = vshrl.u32 %v6336, 7
  %v6338 = vsub.s32 %v6335, %v6337
  %v6339 = vrot.slane %v6331, %v6338
  %6340 = vrot.lane.b32.xlu0 %v6339, 88
  %v6341 = vpop.permute.xlu0 %6340
  %v6342 = vrot.slane %v6341, 6
  %vm6343 = vcmask 719872
  %v6344 = vsel %vm6343, %v6342, %v6341
  %vm6346 = vcmask 1042112
  %vm6347 = vcmask 76802
  %vm6348 = vmor %vm6347, %vm6346
  %6349 = vst.msk [vmem:[#allocation5 + $0x8] sm:$0xf] %vm6348, %v6344
  %v6350 = vld [vmem:[#allocation4 + $0x94] sm:$0x3]
  %v6351 = vld [vmem:[#allocation4 + $0x96] sm:$0x3]
  %v6352 = vmax.f32 %v6350, %v6351
  %v6353 = vld [vmem:[#allocation4 + $0xac] sm:$0x3]
  %v6354 = vld [vmem:[#allocation4 + $0xae] sm:$0x3]
  %v6355 = vmax.f32 %v6353, %v6354
  %v6356 = vmax.f32 %v6352, %v6355
  %v6357 = vmax.f32 %v6356, 0.0
  %v6360 = vunpack.c.l.s4 1983009808
  %v6361 = vunpack.c.0.s8 %v6360
  %v6362 = vlaneseq
  %v6363 = vshrl.u32 %v6362, 7
  %v6364 = vsub.s32 %v6361, %v6363
  %v6365 = vrot.slane %v6357, %v6364
  %6366 = vrot.lane.b32.xlu0 %v6365, 10
  %v6367 = vpop.permute.xlu0 %6366
  %vm6369 = vcmask 484432
  %6370 = vst.msk [vmem:[#allocation5 + $0xa] sm:$0x3] %vm6369, %v6367
  %v6371 = vld [vmem:[#allocation4 + $0x98] sm:$0x3]
  %v6372 = vld [vmem:[#allocation4 + $0x9a] sm:$0x3]
  %v6373 = vmax.f32 %v6371, %v6372
  %v6374 = vld [vmem:[#allocation4 + $0xb0] sm:$0x3]
  %v6375 = vld [vmem:[#allocation4 + $0xb2] sm:$0x3]
  %v6376 = vmax.f32 %v6374, %v6375
  %v6377 = vmax.f32 %v6373, %v6376
  %v6378 = vmax.f32 %v6377, 0.0
  %v6381 = vunpack.c.l.s4 1983009808
  %v6382 = vunpack.c.0.s8 %v6381
  %v6383 = vlaneseq
  %v6384 = vshrl.u32 %v6383, 7
  %v6385 = vsub.s32 %v6382, %v6384
  %v6386 = vrot.slane %v6378, %v6385
  %6387 = vrot.lane.b32.xlu0 %v6386, 60
  %v6388 = vpop.permute.xlu0 %6387
  %vm6390 = vcmask 894432
  %6391 = vst.msk [vmem:[#allocation5 + $0xa] sm:$0x3] %vm6390, %v6388
  %v6392 = vld [vmem:[#allocation4 + $0x9c] sm:$0x3]
  %v6393 = vld [vmem:[#allocation4 + $0x9e] sm:$0x3]
  %v6394 = vmax.f32 %v6392, %v6393
  %v6395 = vld [vmem:[#allocation4 + $0xb4] sm:$0x3]
  %v6396 = vld [vmem:[#allocation4 + $0xb6] sm:$0x3]
  %v6397 = vmax.f32 %v6395, %v6396
  %v6398 = vmax.f32 %v6394, %v6397
  %v6399 = vmax.f32 %v6398, 0.0
  %v6402 = vunpack.c.l.s4 1983009808
  %v6403 = vunpack.c.0.s8 %v6402
  %v6404 = vlaneseq
  %v6405 = vshrl.u32 %v6404, 7
  %v6406 = vsub.s32 %v6403, %v6405
  %v6407 = vrot.slane %v6399, %v6406
  %6408 = vrot.lane.b32.xlu0 %v6407, 110
  %v6409 = vpop.permute.xlu0 %6408
  %v6410 = vrot.slane %v6409, 6
  %vm6411 = vcmask 900096
  %v6412 = vsel %vm6411, %v6410, %v6409
  %vm6414 = vcmask 1042288
  %vm6415 = vcmask 257026
  %vm6416 = vmor %vm6415, %vm6414
  %6417 = vst.msk [vmem:[#allocation5 + $0xa] sm:$0xf] %vm6416, %v6412
  %v6418 = vld [vmem:[#allocation5] sm:$0xff]
  %v6419 = vld [vmem:[#allocation5 + $0x8] sm:$0x3f]
  %v6420 = vld [vmem:[%s5] sm:$0xff]
  %v6421 = vld [vmem:[%s5 + $0x8] sm:$0xff]
  %v6422 = vld [vmem:[%s5 + $0x10] sm:$0xff]
  %v6423 = vld [vmem:[%s5 + $0x18] sm:$0xff]
  %v6424 = vld [vmem:[%s5 + $0x20] sm:$0xff]
  %v6425 = vld [vmem:[%s5 + $0x28] sm:$0xff]
  %v6426 = vld [vmem:[%s5 + $0x30] sm:$0xff]
  %v6427 = vld [vmem:[%s5 + $0x38] sm:$0xff]
  %v6428 = vld [vmem:[%s5 + $0x40] sm:$0xff]
  %v6429 = vld [vmem:[%s5 + $0x48] sm:$0xff]
  %v6430 = vld [vmem:[%s5 + $0x50] sm:$0xff]
  %v6431 = vld [vmem:[%s5 + $0x58] sm:$0xff]
  %v6432 = vld [vmem:[%s5 + $0x60] sm:$0xff]
  %v6433 = vld [vmem:[%s5 + $0x68] sm:$0xff]
  %v6434 = vld [vmem:[%s5 + $0x70] sm:$0xff]
  %v6435 = vld [vmem:[%s5 + $0x78] sm:$0xff]
  %v6436 = vld [vmem:[%s5 + $0x80] sm:$0xff]
  %v6437 = vld [vmem:[%s5 + $0x88] sm:$0xff]
  %v6438 = vld [vmem:[%s5 + $0x90] sm:$0xff]
  %v6439 = vld [vmem:[%s5 + $0x98] sm:$0xff]
  %v6440 = vld [vmem:[%s5 + $0xa0] sm:$0xff]
  %v6441 = vld [vmem:[%s5 + $0xa8] sm:$0xff]
  %v6442 = vld [vmem:[%s5 + $0xb0] sm:$0xff]
  %v6443 = vld [vmem:[%s5 + $0xb8] sm:$0xff]
  %v6444 = vld [vmem:[%s5 + $0xc0] sm:$0xff]
  %v6445 = vld [vmem:[%s5 + $0xc8] sm:$0xff]
  %v6446 = vld [vmem:[%s5 + $0xd0] sm:$0xff]
  %v6447 = vld [vmem:[%s5 + $0xd8] sm:$0xff]
  %v6448 = vld [vmem:[%s5 + $0xe0] sm:$0xff]
  %v6449 = vld [vmem:[%s5 + $0xe8] sm:$0xff]
  %v6450 = vld [vmem:[%s5 + $0xf0] sm:$0xff]
  %v6451 = vld [vmem:[%s5 + $0xf8] sm:$0xff]
  %v6452 = vld [vmem:[%s5 + $0x100] sm:$0xff]
  %v6453 = vld [vmem:[%s5 + $0x108] sm:$0xff]
  %v6454 = vld [vmem:[%s5 + $0x110] sm:$0xff]
  %v6455 = vld [vmem:[%s5 + $0x118] sm:$0xff]
  %v6456 = vld [vmem:[%s5 + $0x120] sm:$0xff]
  %v6457 = vld [vmem:[%s5 + $0x128] sm:$0xff]
  %v6458 = vld [vmem:[%s5 + $0x130] sm:$0xff]
  %v6459 = vld [vmem:[%s5 + $0x138] sm:$0xff]
  %v6460 = vld [vmem:[%s5 + $0x140] sm:$0xff]
  %v6461 = vld [vmem:[%s5 + $0x148] sm:$0xff]
  %v6462 = vld [vmem:[%s5 + $0x150] sm:$0xff]
  %v6463 = vld [vmem:[%s5 + $0x158] sm:$0xff]
  %v6464 = vld [vmem:[%s5 + $0x160] sm:$0xff]
  %v6465 = vld [vmem:[%s5 + $0x168] sm:$0xff]
  %v6466 = vld [vmem:[%s5 + $0x170] sm:$0xff]
  %v6467 = vld [vmem:[%s5 + $0x178] sm:$0xff]
  %v6468 = vld [vmem:[%s5 + $0x180] sm:$0xff]
  %v6469 = vld [vmem:[%s5 + $0x188] sm:$0xff]
  %v6470 = vld [vmem:[%s5 + $0x190] sm:$0xff]
  %v6471 = vld [vmem:[%s5 + $0x198] sm:$0xff]
  %v6472 = vld [vmem:[%s5 + $0x1a0] sm:$0xff]
  %v6473 = vld [vmem:[%s5 + $0x1a8] sm:$0xff]
  %v6474 = vld [vmem:[%s5 + $0x1b0] sm:$0xff]
  %v6475 = vld [vmem:[%s5 + $0x1b8] sm:$0xff]
  %v6476 = vld [vmem:[%s5 + $0x1c0] sm:$0xff]
  %v6477 = vld [vmem:[%s5 + $0x1c8] sm:$0xff]
  %v6478 = vld [vmem:[%s5 + $0x1d0] sm:$0xff]
  %v6479 = vld [vmem:[%s5 + $0x1d8] sm:$0xff]
  %v6480 = vld [vmem:[%s5 + $0x1e0] sm:$0xff]
  %v6481 = vld [vmem:[%s5 + $0x1e8] sm:$0xff]
  %v6482 = vld [vmem:[%s5 + $0x1f0] sm:$0xff]
  %v6483 = vld [vmem:[%s5 + $0x1f8] sm:$0xff]
  %v6484 = vld [vmem:[%s5 + $0x200] sm:$0xff]
  %v6485 = vld [vmem:[%s5 + $0x208] sm:$0xff]
  %v6486 = vld [vmem:[%s5 + $0x210] sm:$0xff]
  %v6487 = vld [vmem:[%s5 + $0x218] sm:$0xff]
  %v6488 = vld [vmem:[%s5 + $0x220] sm:$0xff]
  %v6489 = vld [vmem:[%s5 + $0x228] sm:$0xff]
  %v6490 = vld [vmem:[%s5 + $0x230] sm:$0xff]
  %v6491 = vld [vmem:[%s5 + $0x238] sm:$0xff]
  %v6492 = vld [vmem:[%s5 + $0x240] sm:$0xff]
  %v6493 = vld [vmem:[%s5 + $0x248] sm:$0xff]
  %v6494 = vld [vmem:[%s5 + $0x250] sm:$0xff]
  %v6495 = vld [vmem:[%s5 + $0x258] sm:$0xff]
  %v6496 = vld [vmem:[%s5 + $0x260] sm:$0xff]
  %v6497 = vld [vmem:[%s5 + $0x268] sm:$0xff]
  %v6498 = vld [vmem:[%s5 + $0x270] sm:$0xff]
  %v6499 = vld [vmem:[%s5 + $0x278] sm:$0xff]
  %v6500 = vld [vmem:[%s5 + $0x280] sm:$0xff]
  %v6501 = vld [vmem:[%s5 + $0x288] sm:$0xff]
  %v6502 = vld [vmem:[%s5 + $0x290] sm:$0xff]
  %v6503 = vld [vmem:[%s5 + $0x298] sm:$0xff]
  %v6504 = vld [vmem:[%s5 + $0x2a0] sm:$0xff]
  %v6505 = vld [vmem:[%s5 + $0x2a8] sm:$0xff]
  %v6506 = vld [vmem:[%s5 + $0x2b0] sm:$0xff]
  %v6507 = vld [vmem:[%s5 + $0x2b8] sm:$0xff]
  %v6508 = vld [vmem:[%s5 + $0x2c0] sm:$0xff]
  %v6509 = vld [vmem:[%s5 + $0x2c8] sm:$0xff]
  %v6510 = vld [vmem:[%s5 + $0x2d0] sm:$0xff]
  %v6511 = vld [vmem:[%s5 + $0x2d8] sm:$0xff]
  %v6512 = vld [vmem:[%s5 + $0x2e0] sm:$0xff]
  %v6513 = vld [vmem:[%s5 + $0x2e8] sm:$0xff]
  %v6514 = vld [vmem:[%s5 + $0x2f0] sm:$0xff]
  %v6515 = vld [vmem:[%s5 + $0x2f8] sm:$0xff]
  %v6516 = vld [vmem:[%s5 + $0x300] sm:$0xff]
  %v6517 = vld [vmem:[%s5 + $0x308] sm:$0xff]
  %v6518 = vld [vmem:[%s5 + $0x310] sm:$0xff]
  %v6519 = vld [vmem:[%s5 + $0x318] sm:$0xff]
  %v6520 = vld [vmem:[%s5 + $0x320] sm:$0xff]
  %v6521 = vld [vmem:[%s5 + $0x328] sm:$0xff]
  %v6522 = vld [vmem:[%s5 + $0x330] sm:$0xff]
  %v6523 = vld [vmem:[%s5 + $0x338] sm:$0xff]
  %v6524 = vld [vmem:[%s5 + $0x340] sm:$0xff]
  %v6525 = vld [vmem:[%s5 + $0x348] sm:$0xff]
  %v6526 = vld [vmem:[%s5 + $0x350] sm:$0xff]
  %v6527 = vld [vmem:[%s5 + $0x358] sm:$0xff]
  %v6528 = vld [vmem:[%s5 + $0x360] sm:$0xff]
  %v6529 = vld [vmem:[%s5 + $0x368] sm:$0xff]
  %v6530 = vld [vmem:[%s5 + $0x370] sm:$0xff]
  %v6531 = vld [vmem:[%s5 + $0x378] sm:$0xff]
  %v6532 = vld [vmem:[%s5 + $0x380] sm:$0xff]
  %v6533 = vld [vmem:[%s5 + $0x388] sm:$0xff]
  %v6534 = vld [vmem:[%s5 + $0x390] sm:$0xff]
  %v6535 = vld [vmem:[%s5 + $0x398] sm:$0xff]
  %v6536 = vld [vmem:[%s5 + $0x3a0] sm:$0xff]
  %v6537 = vld [vmem:[%s5 + $0x3a8] sm:$0xff]
  %v6538 = vld [vmem:[%s5 + $0x3b0] sm:$0xff]
  %v6539 = vld [vmem:[%s5 + $0x3b8] sm:$0xff]
  %v6540 = vld [vmem:[%s5 + $0x3c0] sm:$0xff]
  %v6541 = vld [vmem:[%s5 + $0x3c8] sm:$0xff]
  %v6542 = vld [vmem:[%s5 + $0x3d0] sm:$0xff]
  %v6543 = vld [vmem:[%s5 + $0x3d8] sm:$0xff]
  %v6544 = vld [vmem:[%s5 + $0x3e0] sm:$0xff]
  %v6545 = vld [vmem:[%s5 + $0x3e8] sm:$0xff]
  %v6546 = vld [vmem:[%s5 + $0x3f0] sm:$0xff]
  %v6547 = vld [vmem:[%s5 + $0x3f8] sm:$0xff]
  %v6548 = vld [vmem:[%s5 + $0x400] sm:$0xff]
  %v6549 = vld [vmem:[%s5 + $0x408] sm:$0xff]
  %v6550 = vld [vmem:[%s5 + $0x410] sm:$0xff]
  %v6551 = vld [vmem:[%s5 + $0x418] sm:$0xff]
  %v6552 = vld [vmem:[%s5 + $0x420] sm:$0xff]
  %v6553 = vld [vmem:[%s5 + $0x428] sm:$0xff]
  %v6554 = vld [vmem:[%s5 + $0x430] sm:$0xff]
  %v6555 = vld [vmem:[%s5 + $0x438] sm:$0xff]
  %v6556 = vld [vmem:[%s5 + $0x440] sm:$0xff]
  %v6557 = vld [vmem:[%s5 + $0x448] sm:$0xff]
  %v6558 = vld [vmem:[%s5 + $0x450] sm:$0xff]
  %v6559 = vld [vmem:[%s5 + $0x458] sm:$0xff]
  %v6560 = vld [vmem:[%s5 + $0x460] sm:$0xff]
  %v6561 = vld [vmem:[%s5 + $0x468] sm:$0xff]
  %v6562 = vld [vmem:[%s5 + $0x470] sm:$0xff]
  %v6563 = vld [vmem:[%s5 + $0x478] sm:$0xff]
  %v6564 = vld [vmem:[%s5 + $0x480] sm:$0xff]
  %v6565 = vld [vmem:[%s5 + $0x488] sm:$0xff]
  %v6566 = vld [vmem:[%s5 + $0x490] sm:$0xff]
  %v6567 = vld [vmem:[%s5 + $0x498] sm:$0xff]
  %v6568 = vld [vmem:[%s5 + $0x4a0] sm:$0xff]
  %v6569 = vld [vmem:[%s5 + $0x4a8] sm:$0xff]
  %v6570 = vld [vmem:[%s5 + $0x4b0] sm:$0xff]
  %v6571 = vld [vmem:[%s5 + $0x4b8] sm:$0xff]
  %v6572 = vld [vmem:[%s5 + $0x4c0] sm:$0xff]
  %v6573 = vld [vmem:[%s5 + $0x4c8] sm:$0xff]
  %v6574 = vld [vmem:[%s5 + $0x4d0] sm:$0xff]
  %v6575 = vld [vmem:[%s5 + $0x4d8] sm:$0xff]
  %v6576 = vld [vmem:[%s5 + $0x4e0] sm:$0xff]
  %v6577 = vld [vmem:[%s5 + $0x4e8] sm:$0xff]
  %v6578 = vld [vmem:[%s5 + $0x4f0] sm:$0xff]
  %v6579 = vld [vmem:[%s5 + $0x4f8] sm:$0xff]
  %v6580 = vld [vmem:[%s5 + $0x500] sm:$0xff]
  %v6581 = vld [vmem:[%s5 + $0x508] sm:$0xff]
  %v6582 = vld [vmem:[%s5 + $0x510] sm:$0xff]
  %v6583 = vld [vmem:[%s5 + $0x518] sm:$0xff]
  %v6584 = vld [vmem:[%s5 + $0x520] sm:$0xff]
  %v6585 = vld [vmem:[%s5 + $0x528] sm:$0xff]
  %v6586 = vld [vmem:[%s5 + $0x530] sm:$0xff]
  %v6587 = vld [vmem:[%s5 + $0x538] sm:$0xff]
  %v6588 = vld [vmem:[%s5 + $0x540] sm:$0xff]
  %v6589 = vld [vmem:[%s5 + $0x548] sm:$0xff]
  %v6590 = vld [vmem:[%s5 + $0x550] sm:$0xff]
  %v6591 = vld [vmem:[%s5 + $0x558] sm:$0xff]
  %v6592 = vld [vmem:[%s5 + $0x560] sm:$0xff]
  %v6593 = vld [vmem:[%s5 + $0x568] sm:$0xff]
  %v6594 = vld [vmem:[%s5 + $0x570] sm:$0xff]
  %v6595 = vld [vmem:[%s5 + $0x578] sm:$0xff]
  %v6596 = vld [vmem:[%s5 + $0x580] sm:$0xff]
  %v6597 = vld [vmem:[%s5 + $0x588] sm:$0xff]
  %v6598 = vld [vmem:[%s5 + $0x590] sm:$0xff]
  %v6599 = vld [vmem:[%s5 + $0x598] sm:$0xff]
  %v6600 = vld [vmem:[%s5 + $0x5a0] sm:$0xff]
  %v6601 = vld [vmem:[%s5 + $0x5a8] sm:$0xff]
  %v6602 = vld [vmem:[%s5 + $0x5b0] sm:$0xff]
  %v6603 = vld [vmem:[%s5 + $0x5b8] sm:$0xff]
  %v6604 = vld [vmem:[%s5 + $0x5c0] sm:$0xff]
  %v6605 = vld [vmem:[%s5 + $0x5c8] sm:$0xff]
  %v6606 = vld [vmem:[%s5 + $0x5d0] sm:$0xff]
  %v6607 = vld [vmem:[%s5 + $0x5d8] sm:$0xff]
  %v6608 = vld [vmem:[%s5 + $0x5e0] sm:$0xff]
  %v6609 = vld [vmem:[%s5 + $0x5e8] sm:$0xff]
  %v6610 = vld [vmem:[%s5 + $0x5f0] sm:$0xff]
  %v6611 = vld [vmem:[%s5 + $0x5f8] sm:$0xff]
  %v6612 = vld [vmem:[%s5 + $0x600] sm:$0xff]
  %v6613 = vld [vmem:[%s5 + $0x608] sm:$0xff]
  %v6614 = vld [vmem:[%s5 + $0x610] sm:$0xff]
  %v6615 = vld [vmem:[%s5 + $0x618] sm:$0xff]
  %v6616 = vld [vmem:[%s5 + $0x620] sm:$0xff]
  %v6617 = vld [vmem:[%s5 + $0x628] sm:$0xff]
  %v6618 = vld [vmem:[%s5 + $0x630] sm:$0xff]
  %v6619 = vld [vmem:[%s5 + $0x638] sm:$0xff]
  %v6620 = vld [vmem:[%s5 + $0x640] sm:$0xff]
  %v6621 = vld [vmem:[%s5 + $0x648] sm:$0xff]
  %v6622 = vld [vmem:[%s5 + $0x650] sm:$0xff]
  %v6623 = vld [vmem:[%s5 + $0x658] sm:$0xff]
  %v6624 = vld [vmem:[%s5 + $0x660] sm:$0xff]
  %v6625 = vld [vmem:[%s5 + $0x668] sm:$0xff]
  %v6626 = vld [vmem:[%s5 + $0x670] sm:$0xff]
  %v6627 = vld [vmem:[%s5 + $0x678] sm:$0xff]
  %v6628 = vld [vmem:[%s5 + $0x680] sm:$0xff]
  %v6629 = vld [vmem:[%s5 + $0x688] sm:$0xff]
  %v6630 = vld [vmem:[%s5 + $0x690] sm:$0xff]
  %v6631 = vld [vmem:[%s5 + $0x698] sm:$0xff]
  %v6632 = vld [vmem:[%s5 + $0x6a0] sm:$0xff]
  %v6633 = vld [vmem:[%s5 + $0x6a8] sm:$0xff]
  %v6634 = vld [vmem:[%s5 + $0x6b0] sm:$0xff]
  %v6635 = vld [vmem:[%s5 + $0x6b8] sm:$0xff]
  %v6636 = vld [vmem:[%s5 + $0x6c0] sm:$0xff]
  %v6637 = vld [vmem:[%s5 + $0x6c8] sm:$0xff]
  %v6638 = vld [vmem:[%s5 + $0x6d0] sm:$0xff]
  %v6639 = vld [vmem:[%s5 + $0x6d8] sm:$0xff]
  %v6640 = vld [vmem:[%s5 + $0x6e0] sm:$0xff]
  %v6641 = vld [vmem:[%s5 + $0x6e8] sm:$0xff]
  %v6642 = vld [vmem:[%s5 + $0x6f0] sm:$0xff]
  %v6643 = vld [vmem:[%s5 + $0x6f8] sm:$0xff]
  %v6644 = vld [vmem:[%s5 + $0x700] sm:$0xff]
  %v6645 = vld [vmem:[%s5 + $0x708] sm:$0xff]
  %v6646 = vld [vmem:[%s5 + $0x710] sm:$0xff]
  %v6647 = vld [vmem:[%s5 + $0x718] sm:$0xff]
  %v6648 = vld [vmem:[%s5 + $0x720] sm:$0xff]
  %v6649 = vld [vmem:[%s5 + $0x728] sm:$0xff]
  %v6650 = vld [vmem:[%s5 + $0x730] sm:$0xff]
  %v6651 = vld [vmem:[%s5 + $0x738] sm:$0xff]
  %v6652 = vld [vmem:[%s5 + $0x740] sm:$0xff]
  %v6653 = vld [vmem:[%s5 + $0x748] sm:$0xff]
  %v6654 = vld [vmem:[%s5 + $0x750] sm:$0xff]
  %v6655 = vld [vmem:[%s5 + $0x758] sm:$0xff]
  %v6656 = vld [vmem:[%s5 + $0x760] sm:$0xff]
  %v6657 = vld [vmem:[%s5 + $0x768] sm:$0xff]
  %v6658 = vld [vmem:[%s5 + $0x770] sm:$0xff]
  %v6659 = vld [vmem:[%s5 + $0x778] sm:$0xff]
  %v6660 = vld [vmem:[%s5 + $0x780] sm:$0xff]
  %v6661 = vld [vmem:[%s5 + $0x788] sm:$0xff]
  %v6662 = vld [vmem:[%s5 + $0x790] sm:$0xff]
  %v6663 = vld [vmem:[%s5 + $0x798] sm:$0xff]
  %v6664 = vld [vmem:[%s5 + $0x7a0] sm:$0xff]
  %v6665 = vld [vmem:[%s5 + $0x7a8] sm:$0xff]
  %v6666 = vld [vmem:[%s5 + $0x7b0] sm:$0xff]
  %v6667 = vld [vmem:[%s5 + $0x7b8] sm:$0xff]
  %v6668 = vld [vmem:[%s5 + $0x7c0] sm:$0xff]
  %v6669 = vld [vmem:[%s5 + $0x7c8] sm:$0xff]
  %v6670 = vld [vmem:[%s5 + $0x7d0] sm:$0xff]
  %v6671 = vld [vmem:[%s5 + $0x7d8] sm:$0xff]
  %v6672 = vld [vmem:[%s5 + $0x7e0] sm:$0xff]
  %v6673 = vld [vmem:[%s5 + $0x7e8] sm:$0xff]
  %v6674 = vld [vmem:[%s5 + $0x7f0] sm:$0xff]
  %v6675 = vld [vmem:[%s5 + $0x7f8] sm:$0xff]
  %v6676 = vld [vmem:[%s5 + $0x800] sm:$0xff]
  %v6677 = vld [vmem:[%s5 + $0x808] sm:$0xff]
  %v6678 = vld [vmem:[%s5 + $0x810] sm:$0xff]
  %v6679 = vld [vmem:[%s5 + $0x818] sm:$0xff]
  %v6680 = vld [vmem:[%s5 + $0x820] sm:$0xff]
  %v6681 = vld [vmem:[%s5 + $0x828] sm:$0xff]
  %v6682 = vld [vmem:[%s5 + $0x830] sm:$0xff]
  %v6683 = vld [vmem:[%s5 + $0x838] sm:$0xff]
  %v6684 = vld [vmem:[%s5 + $0x840] sm:$0xff]
  %v6685 = vld [vmem:[%s5 + $0x848] sm:$0xff]
  %v6686 = vld [vmem:[%s5 + $0x850] sm:$0xff]
  %v6687 = vld [vmem:[%s5 + $0x858] sm:$0xff]
  %v6688 = vld [vmem:[%s5 + $0x860] sm:$0xff]
  %v6689 = vld [vmem:[%s5 + $0x868] sm:$0xff]
  %v6690 = vld [vmem:[%s5 + $0x870] sm:$0xff]
  %v6691 = vld [vmem:[%s5 + $0x878] sm:$0xff]
  %v6692 = vld [vmem:[%s5 + $0x880] sm:$0xff]
  %v6693 = vld [vmem:[%s5 + $0x888] sm:$0xff]
  %v6694 = vld [vmem:[%s5 + $0x890] sm:$0xff]
  %v6695 = vld [vmem:[%s5 + $0x898] sm:$0xff]
  %v6696 = vld [vmem:[%s5 + $0x8a0] sm:$0xff]
  %v6697 = vld [vmem:[%s5 + $0x8a8] sm:$0xff]
  %v6698 = vld [vmem:[%s5 + $0x8b0] sm:$0xff]
  %v6699 = vld [vmem:[%s5 + $0x8b8] sm:$0xff]
  %v6700 = vld [vmem:[%s5 + $0x8c0] sm:$0xff]
  %v6701 = vld [vmem:[%s5 + $0x8c8] sm:$0xff]
  %v6702 = vld [vmem:[%s5 + $0x8d0] sm:$0xff]
  %v6703 = vld [vmem:[%s5 + $0x8d8] sm:$0xff]
  %v6704 = vld [vmem:[%s5 + $0x8e0] sm:$0xff]
  %v6705 = vld [vmem:[%s5 + $0x8e8] sm:$0xff]
  %v6706 = vld [vmem:[%s5 + $0x8f0] sm:$0xff]
  %v6707 = vld [vmem:[%s5 + $0x8f8] sm:$0xff]
  %v6708 = vld [vmem:[%s5 + $0x900] sm:$0xff]
  %v6709 = vld [vmem:[%s5 + $0x908] sm:$0xff]
  %v6710 = vld [vmem:[%s5 + $0x910] sm:$0xff]
  %v6711 = vld [vmem:[%s5 + $0x918] sm:$0xff]
  %v6712 = vld [vmem:[%s5 + $0x920] sm:$0xff]
  %v6713 = vld [vmem:[%s5 + $0x928] sm:$0xff]
  %v6714 = vld [vmem:[%s5 + $0x930] sm:$0xff]
  %v6715 = vld [vmem:[%s5 + $0x938] sm:$0xff]
  %v6716 = vld [vmem:[%s5 + $0x940] sm:$0xff]
  %v6717 = vld [vmem:[%s5 + $0x948] sm:$0xff]
  %v6718 = vld [vmem:[%s5 + $0x950] sm:$0xff]
  %v6719 = vld [vmem:[%s5 + $0x958] sm:$0xff]
  %v6720 = vld [vmem:[%s5 + $0x960] sm:$0xff]
  %v6721 = vld [vmem:[%s5 + $0x968] sm:$0xff]
  %v6722 = vld [vmem:[%s5 + $0x970] sm:$0xff]
  %v6723 = vld [vmem:[%s5 + $0x978] sm:$0xff]
  %v6724 = vld [vmem:[%s5 + $0x980] sm:$0xff]
  %v6725 = vld [vmem:[%s5 + $0x988] sm:$0xff]
  %v6726 = vld [vmem:[%s5 + $0x990] sm:$0xff]
  %v6727 = vld [vmem:[%s5 + $0x998] sm:$0xff]
  %v6728 = vld [vmem:[%s5 + $0x9a0] sm:$0xff]
  %v6729 = vld [vmem:[%s5 + $0x9a8] sm:$0xff]
  %v6730 = vld [vmem:[%s5 + $0x9b0] sm:$0xff]
  %v6731 = vld [vmem:[%s5 + $0x9b8] sm:$0xff]
  %v6732 = vld [vmem:[%s5 + $0x9c0] sm:$0xff]
  %v6733 = vld [vmem:[%s5 + $0x9c8] sm:$0xff]
  %v6734 = vld [vmem:[%s5 + $0x9d0] sm:$0xff]
  %v6735 = vld [vmem:[%s5 + $0x9d8] sm:$0xff]
  %v6736 = vld [vmem:[%s5 + $0x9e0] sm:$0xff]
  %v6737 = vld [vmem:[%s5 + $0x9e8] sm:$0xff]
  %v6738 = vld [vmem:[%s5 + $0x9f0] sm:$0xff]
  %v6739 = vld [vmem:[%s5 + $0x9f8] sm:$0xff]
  %v6740 = vld [vmem:[%s5 + $0xa00] sm:$0xff]
  %v6741 = vld [vmem:[%s5 + $0xa08] sm:$0xff]
  %v6742 = vld [vmem:[%s5 + $0xa10] sm:$0xff]
  %v6743 = vld [vmem:[%s5 + $0xa18] sm:$0xff]
  %v6744 = vld [vmem:[%s5 + $0xa20] sm:$0xff]
  %v6745 = vld [vmem:[%s5 + $0xa28] sm:$0xff]
  %v6746 = vld [vmem:[%s5 + $0xa30] sm:$0xff]
  %v6747 = vld [vmem:[%s5 + $0xa38] sm:$0xff]
  %v6748 = vld [vmem:[%s5 + $0xa40] sm:$0xff]
  %v6749 = vld [vmem:[%s5 + $0xa48] sm:$0xff]
  %v6750 = vld [vmem:[%s5 + $0xa50] sm:$0xff]
  %v6751 = vld [vmem:[%s5 + $0xa58] sm:$0xff]
  %v6752 = vld [vmem:[%s5 + $0xa60] sm:$0xff]
  %v6753 = vld [vmem:[%s5 + $0xa68] sm:$0xff]
  %v6754 = vld [vmem:[%s5 + $0xa70] sm:$0xff]
  %v6755 = vld [vmem:[%s5 + $0xa78] sm:$0xff]
  %v6756 = vld [vmem:[%s5 + $0xa80] sm:$0xff]
  %v6757 = vld [vmem:[%s5 + $0xa88] sm:$0xff]
  %v6758 = vld [vmem:[%s5 + $0xa90] sm:$0xff]
  %v6759 = vld [vmem:[%s5 + $0xa98] sm:$0xff]
  %v6760 = vld [vmem:[%s5 + $0xaa0] sm:$0xff]
  %v6761 = vld [vmem:[%s5 + $0xaa8] sm:$0xff]
  %v6762 = vld [vmem:[%s5 + $0xab0] sm:$0xff]
  %v6763 = vld [vmem:[%s5 + $0xab8] sm:$0xff]
  %v6764 = vld [vmem:[%s5 + $0xac0] sm:$0xff]
  %v6765 = vld [vmem:[%s5 + $0xac8] sm:$0xff]
  %v6766 = vld [vmem:[%s5 + $0xad0] sm:$0xff]
  %v6767 = vld [vmem:[%s5 + $0xad8] sm:$0xff]
  %v6768 = vld [vmem:[%s5 + $0xae0] sm:$0xff]
  %v6769 = vld [vmem:[%s5 + $0xae8] sm:$0xff]
  %v6770 = vld [vmem:[%s5 + $0xaf0] sm:$0xff]
  %v6771 = vld [vmem:[%s5 + $0xaf8] sm:$0xff]
  %v6772 = vld [vmem:[%s5 + $0xb00] sm:$0xff]
  %v6773 = vld [vmem:[%s5 + $0xb08] sm:$0xff]
  %v6774 = vld [vmem:[%s5 + $0xb10] sm:$0xff]
  %v6775 = vld [vmem:[%s5 + $0xb18] sm:$0xff]
  %v6776 = vld [vmem:[%s5 + $0xb20] sm:$0xff]
  %v6777 = vld [vmem:[%s5 + $0xb28] sm:$0xff]
  %v6778 = vld [vmem:[%s5 + $0xb30] sm:$0xff]
  %v6779 = vld [vmem:[%s5 + $0xb38] sm:$0xff]
  %v6780 = vld [vmem:[%s5 + $0xb40] sm:$0xff]
  %v6781 = vld [vmem:[%s5 + $0xb48] sm:$0xff]
  %v6782 = vld [vmem:[%s5 + $0xb50] sm:$0xff]
  %v6783 = vld [vmem:[%s5 + $0xb58] sm:$0xff]
  %v6784 = vld [vmem:[%s5 + $0xb60] sm:$0xff]
  %v6785 = vld [vmem:[%s5 + $0xb68] sm:$0xff]
  %v6786 = vld [vmem:[%s5 + $0xb70] sm:$0xff]
  %v6787 = vld [vmem:[%s5 + $0xb78] sm:$0xff]
  %v6788 = vld [vmem:[%s5 + $0xb80] sm:$0xff]
  %v6789 = vld [vmem:[%s5 + $0xb88] sm:$0xff]
  %v6790 = vld [vmem:[%s5 + $0xb90] sm:$0xff]
  %v6791 = vld [vmem:[%s5 + $0xb98] sm:$0xff]
  %v6792 = vld [vmem:[%s5 + $0xba0] sm:$0xff]
  %v6793 = vld [vmem:[%s5 + $0xba8] sm:$0xff]
  %v6794 = vld [vmem:[%s5 + $0xbb0] sm:$0xff]
  %v6795 = vld [vmem:[%s5 + $0xbb8] sm:$0xff]
  %v6796 = vld [vmem:[%s5 + $0xbc0] sm:$0xff]
  %v6797 = vld [vmem:[%s5 + $0xbc8] sm:$0xff]
  %v6798 = vld [vmem:[%s5 + $0xbd0] sm:$0xff]
  %v6799 = vld [vmem:[%s5 + $0xbd8] sm:$0xff]
  %v6800 = vld [vmem:[%s5 + $0xbe0] sm:$0xff]
  %v6801 = vld [vmem:[%s5 + $0xbe8] sm:$0xff]
  %v6802 = vld [vmem:[%s5 + $0xbf0] sm:$0xff]
  %v6803 = vld [vmem:[%s5 + $0xbf8] sm:$0xff]
  %v6804 = vld [vmem:[%s5 + $0xc00] sm:$0xff]
  %v6805 = vld [vmem:[%s5 + $0xc08] sm:$0xff]
  %v6806 = vld [vmem:[%s5 + $0xc10] sm:$0xff]
  %v6807 = vld [vmem:[%s5 + $0xc18] sm:$0xff]
  %v6808 = vld [vmem:[%s5 + $0xc20] sm:$0xff]
  %v6809 = vld [vmem:[%s5 + $0xc28] sm:$0xff]
  %v6810 = vld [vmem:[%s5 + $0xc30] sm:$0xff]
  %v6811 = vld [vmem:[%s5 + $0xc38] sm:$0xff]
  %v6812 = vld [vmem:[%s5 + $0xc40] sm:$0xff]
  %v6813 = vld [vmem:[%s5 + $0xc48] sm:$0xff]
  %v6814 = vld [vmem:[%s5 + $0xc50] sm:$0xff]
  %v6815 = vld [vmem:[%s5 + $0xc58] sm:$0xff]
  %v6816 = vld [vmem:[%s5 + $0xc60] sm:$0xff]
  %v6817 = vld [vmem:[%s5 + $0xc68] sm:$0xff]
  %v6818 = vld [vmem:[%s5 + $0xc70] sm:$0xff]
  %v6819 = vld [vmem:[%s5 + $0xc78] sm:$0xff]
  %v6820 = vld [vmem:[%s8 + $0x2] sm:$0xf]
  %v6822 = vlaneseq
  %v6823 = vshrl.u32 %v6822, 7
  %v6824 = vsub.s32 0, %v6823
  %v6825 = vrot.slane %v6820, %v6824
  %v6826 = vlaneseq
  %v6827 = vshrl.u32 %v6826, 7
  %v6828 = vsub.s32 1, %v6827
  %v6829 = vrot.slane %v6820, %v6828
  %v6830 = vlaneseq
  %v6831 = vshrl.u32 %v6830, 7
  %v6832 = vsub.s32 2, %v6831
  %v6833 = vrot.slane %v6820, %v6832
  %v6834 = vlaneseq
  %v6835 = vshrl.u32 %v6834, 7
  %v6836 = vsub.s32 3, %v6835
  %v6837 = vrot.slane %v6820, %v6836
  %v6844 = vcombine.high %v6418, %v6418
  %v6846 = vunpack.c.l.s4 1983009808
  %v6847 = vunpack.c.0.s8 %v6846
  %v6848 = vlaneseq
  %v6849 = vshrl.u32 %v6848, 7
  %v6850 = vsub.s32 %v6847, %v6849
  %v6851 = vrot.slane %v6418, %v6850
  %v6853 = vunpack.c.l.s4 1983009808
  %v6854 = vunpack.c.0.s8 %v6853
  %v6855 = vlaneseq
  %v6856 = vshrl.u32 %v6855, 7
  %v6857 = vsub.s32 %v6854, %v6856
  %v6858 = vrot.slane %v6844, %v6857
  %v6859 = vcombine.high %v6851, %v6851
  %v6860 = vcombine.high %v6858, %v6858
  %v6861 = vcombine.high %v6419, %v6419
  %v6863 = vunpack.c.l.s4 1983009808
  %v6864 = vunpack.c.0.s8 %v6863
  %v6865 = vlaneseq
  %v6866 = vshrl.u32 %v6865, 7
  %v6867 = vsub.s32 %v6864, %v6866
  %v6868 = vrot.slane %v6419, %v6867
  %v6870 = vunpack.c.l.s4 1983009808
  %v6871 = vunpack.c.0.s8 %v6870
  %v6872 = vlaneseq
  %v6873 = vshrl.u32 %v6872, 7
  %v6874 = vsub.s32 %v6871, %v6873
  %v6875 = vrot.slane %v6861, %v6874
  %v6876 = vcombine.high %v6868, %v6868
  %vm6883 = vcmask 261120
  %v6884 = vsel %vm6883, %v6875, 0
  %6886 = vmatprep.subr.mxu0 %v6481
  %6887 = vmatpush1.msra.mxu0 %v6480
  %6888 = vmatprep.subr.mxu0 %v6477
  %6889 = vmatpush1.msra.mxu0 %v6476
  %6890 = vmatprep.subr.mxu0 %v6473
  %6891 = vmatpush1.msra.mxu0 %v6472
  %6892 = vmatprep.subr.mxu0 %v6469
  %6893 = vmatpush1.msra.mxu0 %v6468
  %6894 = vmatprep.subr.mxu0 %v6465
  %6895 = vmatpush1.msra.mxu0 %v6464
  %6896 = vmatprep.subr.mxu0 %v6461
  %6897 = vmatpush1.msra.mxu0 %v6460
  %6898 = vmatprep.subr.mxu0 %v6457
  %6899 = vmatpush1.msra.mxu0 %v6456
  %6900 = vmatprep.subr.mxu0 %v6453
  %6901 = vmatpush1.msra.mxu0 %v6452
  %6902 = vmatprep.subr.mxu0 %v6449
  %6903 = vmatpush1.msra.mxu0 %v6448
  %6904 = vmatprep.subr.mxu0 %v6445
  %6905 = vmatpush1.msra.mxu0 %v6444
  %6906 = vmatprep.subr.mxu0 %v6441
  %6907 = vmatpush1.msra.mxu0 %v6440
  %6908 = vmatprep.subr.mxu0 %v6437
  %6909 = vmatpush1.msra.mxu0 %v6436
  %6910 = vmatprep.subr.mxu0 %v6433
  %6911 = vmatpush1.msra.mxu0 %v6432
  %6912 = vmatprep.subr.mxu0 %v6429
  %6913 = vmatpush1.msra.mxu0 %v6428
  %6914 = vmatprep.subr.mxu0 %v6425
  %6915 = vmatpush1.msra.mxu0 %v6424
  %6916 = vmatprep.subr.mxu0 %v6421
  %6917 = vmatpush1.msra.mxu0 %v6420
  %6918 = vmatprep.subr.mxu0 %v6545
  %6919 = vmatpush2.msra.mxu0 %v6544
  %6920 = vmatprep.subr.mxu0 %v6541
  %6921 = vmatpush2.msra.mxu0 %v6540
  %6922 = vmatprep.subr.mxu0 %v6537
  %6923 = vmatpush2.msra.mxu0 %v6536
  %6924 = vmatprep.subr.mxu0 %v6533
  %6925 = vmatpush2.msra.mxu0 %v6532
  %6926 = vmatprep.subr.mxu0 %v6529
  %6927 = vmatpush2.msra.mxu0 %v6528
  %6928 = vmatprep.subr.mxu0 %v6525
  %6929 = vmatpush2.msra.mxu0 %v6524
  %6930 = vmatprep.subr.mxu0 %v6521
  %6931 = vmatpush2.msra.mxu0 %v6520
  %6932 = vmatprep.subr.mxu0 %v6517
  %6933 = vmatpush2.msra.mxu0 %v6516
  %6934 = vmatprep.subr.mxu0 %v6513
  %6935 = vmatpush2.msra.mxu0 %v6512
  %6936 = vmatprep.subr.mxu0 %v6509
  %6937 = vmatpush2.msra.mxu0 %v6508
  %6938 = vmatprep.subr.mxu0 %v6505
  %6939 = vmatpush2.msra.mxu0 %v6504
  %6940 = vmatprep.subr.mxu0 %v6501
  %6941 = vmatpush2.msra.mxu0 %v6500
  %6942 = vmatprep.subr.mxu0 %v6497
  %6943 = vmatpush2.msra.mxu0 %v6496
  %6944 = vmatprep.subr.mxu0 %v6493
  %6945 = vmatpush2.msra.mxu0 %v6492
  %6946 = vmatprep.subr.mxu0 %v6489
  %6947 = vmatpush2.msra.mxu0 %v6488
  %6948 = vmatprep.subr.mxu0 %v6485
  %6949 = vmatpush2.msra.mxu0 %v6484
  %6950 = vmatprep.mubr.f32.mxu0 %v6859
  %6951 = vmatmul.mubr.f32.gmra.mxu0 %v6851
  %v6952 = vpop.f32.mrf.mxu0
  %v6953 = vadd.f32 %v6825, %v6952
  %v6954 = vpop.f32.mrf.mxu0
  %v6955 = vadd.f32 %v6829, %v6954
  %6956 = vdwg.mxu0
  %6957 = vmatprep.subr.mxu0 %v6609
  %6958 = vmatpush1.msra.mxu0 %v6608
  %6959 = vmatprep.subr.mxu0 %v6605
  %6960 = vmatpush1.msra.mxu0 %v6604
  %6961 = vmatprep.subr.mxu0 %v6601
  %6962 = vmatpush1.msra.mxu0 %v6600
  %6963 = vmatprep.subr.mxu0 %v6597
  %6964 = vmatpush1.msra.mxu0 %v6596
  %6965 = vmatprep.subr.mxu0 %v6593
  %6966 = vmatpush1.msra.mxu0 %v6592
  %6967 = vmatprep.subr.mxu0 %v6589
  %6968 = vmatpush1.msra.mxu0 %v6588
  %6969 = vmatprep.subr.mxu0 %v6585
  %6970 = vmatpush1.msra.mxu0 %v6584
  %6971 = vmatprep.subr.mxu0 %v6581
  %6972 = vmatpush1.msra.mxu0 %v6580
  %6973 = vmatprep.subr.mxu0 %v6577
  %6974 = vmatpush1.msra.mxu0 %v6576
  %6975 = vmatprep.subr.mxu0 %v6573
  %6976 = vmatpush1.msra.mxu0 %v6572
  %6977 = vmatprep.subr.mxu0 %v6569
  %6978 = vmatpush1.msra.mxu0 %v6568
  %6979 = vmatprep.subr.mxu0 %v6565
  %6980 = vmatpush1.msra.mxu0 %v6564
  %6981 = vmatprep.subr.mxu0 %v6561
  %6982 = vmatpush1.msra.mxu0 %v6560
  %6983 = vmatprep.subr.mxu0 %v6557
  %6984 = vmatpush1.msra.mxu0 %v6556
  %6985 = vmatprep.subr.mxu0 %v6553
  %6986 = vmatpush1.msra.mxu0 %v6552
  %6987 = vmatprep.subr.mxu0 %v6549
  %6988 = vmatpush1.msra.mxu0 %v6548
  %6989 = vmatprep.subr.mxu0 %v6673
  %6990 = vmatpush2.msra.mxu0 %v6672
  %6991 = vmatprep.subr.mxu0 %v6669
  %6992 = vmatpush2.msra.mxu0 %v6668
  %6993 = vmatprep.subr.mxu0 %v6665
  %6994 = vmatpush2.msra.mxu0 %v6664
  %6995 = vmatprep.subr.mxu0 %v6661
  %6996 = vmatpush2.msra.mxu0 %v6660
  %6997 = vmatprep.subr.mxu0 %v6657
  %6998 = vmatpush2.msra.mxu0 %v6656
  %6999 = vmatprep.subr.mxu0 %v6653
  %7000 = vmatpush2.msra.mxu0 %v6652
  %7001 = vmatprep.subr.mxu0 %v6649
  %7002 = vmatpush2.msra.mxu0 %v6648
  %7003 = vmatprep.subr.mxu0 %v6645
  %7004 = vmatpush2.msra.mxu0 %v6644
  %7005 = vmatprep.subr.mxu0 %v6641
  %7006 = vmatpush2.msra.mxu0 %v6640
  %7007 = vmatprep.subr.mxu0 %v6637
  %7008 = vmatpush2.msra.mxu0 %v6636
  %7009 = vmatprep.subr.mxu0 %v6633
  %7010 = vmatpush2.msra.mxu0 %v6632
  %7011 = vmatprep.subr.mxu0 %v6629
  %7012 = vmatpush2.msra.mxu0 %v6628
  %7013 = vmatprep.subr.mxu0 %v6625
  %7014 = vmatpush2.msra.mxu0 %v6624
  %7015 = vmatprep.subr.mxu0 %v6621
  %7016 = vmatpush2.msra.mxu0 %v6620
  %7017 = vmatprep.subr.mxu0 %v6617
  %7018 = vmatpush2.msra.mxu0 %v6616
  %7019 = vmatprep.subr.mxu0 %v6613
  %7020 = vmatpush2.msra.mxu0 %v6612
  %7021 = vmatprep.mubr.f32.mxu0 %v6860
  %7022 = vmatmul.mubr.f32.gmra.mxu0 %v6858
  %v7023 = vpop.f32.mrf.mxu0
  %v7024 = vadd.f32 %v6953, %v7023
  %v7025 = vpop.f32.mrf.mxu0
  %v7026 = vadd.f32 %v6955, %v7025
  %7027 = vdwg.mxu0
  %7028 = vmatprep.subr.mxu0 %v6737
  %7029 = vmatpush1.msra.mxu0 %v6736
  %7030 = vmatprep.subr.mxu0 %v6733
  %7031 = vmatpush1.msra.mxu0 %v6732
  %7032 = vmatprep.subr.mxu0 %v6729
  %7033 = vmatpush1.msra.mxu0 %v6728
  %7034 = vmatprep.subr.mxu0 %v6725
  %7035 = vmatpush1.msra.mxu0 %v6724
  %7036 = vmatprep.subr.mxu0 %v6721
  %7037 = vmatpush1.msra.mxu0 %v6720
  %7038 = vmatprep.subr.mxu0 %v6717
  %7039 = vmatpush1.msra.mxu0 %v6716
  %7040 = vmatprep.subr.mxu0 %v6713
  %7041 = vmatpush1.msra.mxu0 %v6712
  %7042 = vmatprep.subr.mxu0 %v6709
  %7043 = vmatpush1.msra.mxu0 %v6708
  %7044 = vmatprep.subr.mxu0 %v6705
  %7045 = vmatpush1.msra.mxu0 %v6704
  %7046 = vmatprep.subr.mxu0 %v6701
  %7047 = vmatpush1.msra.mxu0 %v6700
  %7048 = vmatprep.subr.mxu0 %v6697
  %7049 = vmatpush1.msra.mxu0 %v6696
  %7050 = vmatprep.subr.mxu0 %v6693
  %7051 = vmatpush1.msra.mxu0 %v6692
  %7052 = vmatprep.subr.mxu0 %v6689
  %7053 = vmatpush1.msra.mxu0 %v6688
  %7054 = vmatprep.subr.mxu0 %v6685
  %7055 = vmatpush1.msra.mxu0 %v6684
  %7056 = vmatprep.subr.mxu0 %v6681
  %7057 = vmatpush1.msra.mxu0 %v6680
  %7058 = vmatprep.subr.mxu0 %v6677
  %7059 = vmatpush1.msra.mxu0 %v6676
  %7060 = vmatprep.subr.mxu0 %v6801
  %7061 = vmatpush2.msra.mxu0 %v6800
  %7062 = vmatprep.subr.mxu0 %v6797
  %7063 = vmatpush2.msra.mxu0 %v6796
  %7064 = vmatprep.subr.mxu0 %v6793
  %7065 = vmatpush2.msra.mxu0 %v6792
  %7066 = vmatprep.subr.mxu0 %v6789
  %7067 = vmatpush2.msra.mxu0 %v6788
  %7068 = vmatprep.subr.mxu0 %v6785
  %7069 = vmatpush2.msra.mxu0 %v6784
  %7070 = vmatprep.subr.mxu0 %v6781
  %7071 = vmatpush2.msra.mxu0 %v6780
  %7072 = vmatprep.subr.mxu0 %v6777
  %7073 = vmatpush2.msra.mxu0 %v6776
  %7074 = vmatprep.subr.mxu0 %v6773
  %7075 = vmatpush2.msra.mxu0 %v6772
  %7076 = vmatprep.subr.mxu0 %v6769
  %7077 = vmatpush2.msra.mxu0 %v6768
  %7078 = vmatprep.subr.mxu0 %v6765
  %7079 = vmatpush2.msra.mxu0 %v6764
  %7080 = vmatprep.subr.mxu0 %v6761
  %7081 = vmatpush2.msra.mxu0 %v6760
  %7082 = vmatprep.subr.mxu0 %v6757
  %7083 = vmatpush2.msra.mxu0 %v6756
  %7084 = vmatprep.subr.mxu0 %v6753
  %7085 = vmatpush2.msra.mxu0 %v6752
  %7086 = vmatprep.subr.mxu0 %v6749
  %7087 = vmatpush2.msra.mxu0 %v6748
  %7088 = vmatprep.subr.mxu0 %v6745
  %7089 = vmatpush2.msra.mxu0 %v6744
  %7090 = vmatprep.subr.mxu0 %v6741
  %7091 = vmatpush2.msra.mxu0 %v6740
  %7092 = vmatprep.mubr.f32.mxu0 %v6876
  %7093 = vmatmul.mubr.f32.gmra.mxu0 %v6868
  %v7094 = vpop.f32.mrf.mxu0
  %v7095 = vadd.f32 %v7024, %v7094
  %v7096 = vpop.f32.mrf.mxu0
  %v7097 = vadd.f32 %v7026, %v7096
  %7098 = vdwg.mxu0
  %7099 = vmatprep.subr.mxu0 0.0
  %7100 = vmatpush1.msra.mxu0 0.0
  %7101 = vmatprep.subr.mxu0 0.0
  %7102 = vmatpush1.msra.mxu0 0.0
  %7103 = vmatprep.subr.mxu0 0.0
  %7104 = vmatpush1.msra.mxu0 0.0
  %7105 = vmatprep.subr.mxu0 0.0
  %7106 = vmatpush1.msra.mxu0 0.0
  %7107 = vmatprep.subr.mxu0 0.0
  %7108 = vmatpush1.msra.mxu0 0.0
  %7109 = vmatprep.subr.mxu0 0.0
  %7110 = vmatpush1.msra.mxu0 0.0
  %7111 = vmatprep.subr.mxu0 0.0
  %7112 = vmatpush1.msra.mxu0 0.0
  %7113 = vmatprep.subr.mxu0 0.0
  %7114 = vmatpush1.msra.mxu0 0.0
  %7115 = vmatprep.subr.mxu0 0.0
  %7116 = vmatpush1.msra.mxu0 0.0
  %7117 = vmatprep.subr.mxu0 0.0
  %7118 = vmatpush1.msra.mxu0 0.0
  %7119 = vmatprep.subr.mxu0 0.0
  %7120 = vmatpush1.msra.mxu0 0.0
  %7121 = vmatprep.subr.mxu0 0.0
  %7122 = vmatpush1.msra.mxu0 0.0
  %7123 = vmatprep.subr.mxu0 %v6817
  %7124 = vmatpush1.msra.mxu0 %v6816
  %7125 = vmatprep.subr.mxu0 %v6813
  %7126 = vmatpush1.msra.mxu0 %v6812
  %7127 = vmatprep.subr.mxu0 %v6809
  %7128 = vmatpush1.msra.mxu0 %v6808
  %7129 = vmatprep.subr.mxu0 %v6805
  %7130 = vmatpush1.msra.mxu0 %v6804
  %7131 = vmatprep.subr.mxu0 0.0
  %7132 = vmatpush2.msra.mxu0 0.0
  %7133 = vmatprep.subr.mxu0 0.0
  %7134 = vmatpush2.msra.mxu0 0.0
  %7135 = vmatprep.subr.mxu0 0.0
  %7136 = vmatpush2.msra.mxu0 0.0
  %7137 = vmatprep.subr.mxu0 0.0
  %7138 = vmatpush2.msra.mxu0 0.0
  %7139 = vmatprep.subr.mxu0 0.0
  %7140 = vmatpush2.msra.mxu0 0.0
  %7141 = vmatprep.subr.mxu0 0.0
  %7142 = vmatpush2.msra.mxu0 0.0
  %7143 = vmatprep.subr.mxu0 0.0
  %7144 = vmatpush2.msra.mxu0 0.0
  %7145 = vmatprep.subr.mxu0 0.0
  %7146 = vmatpush2.msra.mxu0 0.0
  %7147 = vmatprep.subr.mxu0 0.0
  %7148 = vmatpush2.msra.mxu0 0.0
  %7149 = vmatprep.subr.mxu0 0.0
  %7150 = vmatpush2.msra.mxu0 0.0
  %7151 = vmatprep.subr.mxu0 0.0
  %7152 = vmatpush2.msra.mxu0 0.0
  %7153 = vmatprep.subr.mxu0 0.0
  %7154 = vmatpush2.msra.mxu0 0.0
  %7155 = vmatprep.subr.mxu0 0.0
  %7156 = vmatpush2.msra.mxu0 0.0
  %7157 = vmatprep.subr.mxu0 0.0
  %7158 = vmatpush2.msra.mxu0 0.0
  %7159 = vmatprep.subr.mxu0 0.0
  %7160 = vmatpush2.msra.mxu0 0.0
  %7161 = vmatprep.subr.mxu0 0.0
  %7162 = vmatpush2.msra.mxu0 0.0
  %7163 = vmatprep.mubr.f32.mxu0 0.0
  %7164 = vmatmul.mubr.f32.gmra.mxu0 %v6884
  %v7165 = vpop.f32.mrf.mxu0
  %v7166 = vadd.f32 %v7095, %v7165
  %v7167 = vpop.f32.mrf.mxu0
  %v7168 = vadd.f32 %v7097, %v7167
  %7169 = vdwg.mxu0
  %7170 = vmatprep.subr.mxu0 %v6483
  %7171 = vmatpush1.msra.mxu0 %v6482
  %7172 = vmatprep.subr.mxu0 %v6479
  %7173 = vmatpush1.msra.mxu0 %v6478
  %7174 = vmatprep.subr.mxu0 %v6475
  %7175 = vmatpush1.msra.mxu0 %v6474
  %7176 = vmatprep.subr.mxu0 %v6471
  %7177 = vmatpush1.msra.mxu0 %v6470
  %7178 = vmatprep.subr.mxu0 %v6467
  %7179 = vmatpush1.msra.mxu0 %v6466
  %7180 = vmatprep.subr.mxu0 %v6463
  %7181 = vmatpush1.msra.mxu0 %v6462
  %7182 = vmatprep.subr.mxu0 %v6459
  %7183 = vmatpush1.msra.mxu0 %v6458
  %7184 = vmatprep.subr.mxu0 %v6455
  %7185 = vmatpush1.msra.mxu0 %v6454
  %7186 = vmatprep.subr.mxu0 %v6451
  %7187 = vmatpush1.msra.mxu0 %v6450
  %7188 = vmatprep.subr.mxu0 %v6447
  %7189 = vmatpush1.msra.mxu0 %v6446
  %7190 = vmatprep.subr.mxu0 %v6443
  %7191 = vmatpush1.msra.mxu0 %v6442
  %7192 = vmatprep.subr.mxu0 %v6439
  %7193 = vmatpush1.msra.mxu0 %v6438
  %7194 = vmatprep.subr.mxu0 %v6435
  %7195 = vmatpush1.msra.mxu0 %v6434
  %7196 = vmatprep.subr.mxu0 %v6431
  %7197 = vmatpush1.msra.mxu0 %v6430
  %7198 = vmatprep.subr.mxu0 %v6427
  %7199 = vmatpush1.msra.mxu0 %v6426
  %7200 = vmatprep.subr.mxu0 %v6423
  %7201 = vmatpush1.msra.mxu0 %v6422
  %7202 = vmatprep.subr.mxu0 %v6547
  %7203 = vmatpush2.msra.mxu0 %v6546
  %7204 = vmatprep.subr.mxu0 %v6543
  %7205 = vmatpush2.msra.mxu0 %v6542
  %7206 = vmatprep.subr.mxu0 %v6539
  %7207 = vmatpush2.msra.mxu0 %v6538
  %7208 = vmatprep.subr.mxu0 %v6535
  %7209 = vmatpush2.msra.mxu0 %v6534
  %7210 = vmatprep.subr.mxu0 %v6531
  %7211 = vmatpush2.msra.mxu0 %v6530
  %7212 = vmatprep.subr.mxu0 %v6527
  %7213 = vmatpush2.msra.mxu0 %v6526
  %7214 = vmatprep.subr.mxu0 %v6523
  %7215 = vmatpush2.msra.mxu0 %v6522
  %7216 = vmatprep.subr.mxu0 %v6519
  %7217 = vmatpush2.msra.mxu0 %v6518
  %7218 = vmatprep.subr.mxu0 %v6515
  %7219 = vmatpush2.msra.mxu0 %v6514
  %7220 = vmatprep.subr.mxu0 %v6511
  %7221 = vmatpush2.msra.mxu0 %v6510
  %7222 = vmatprep.subr.mxu0 %v6507
  %7223 = vmatpush2.msra.mxu0 %v6506
  %7224 = vmatprep.subr.mxu0 %v6503
  %7225 = vmatpush2.msra.mxu0 %v6502
  %7226 = vmatprep.subr.mxu0 %v6499
  %7227 = vmatpush2.msra.mxu0 %v6498
  %7228 = vmatprep.subr.mxu0 %v6495
  %7229 = vmatpush2.msra.mxu0 %v6494
  %7230 = vmatprep.subr.mxu0 %v6491
  %7231 = vmatpush2.msra.mxu0 %v6490
  %7232 = vmatprep.subr.mxu0 %v6487
  %7233 = vmatpush2.msra.mxu0 %v6486
  %7234 = vmatprep.mubr.f32.mxu0 %v6859
  %7235 = vmatmul.mubr.f32.gmra.mxu0 %v6851
  %v7236 = vpop.f32.mrf.mxu0
  %v7237 = vadd.f32 %v6833, %v7236
  %v7238 = vpop.f32.mrf.mxu0
  %v7239 = vadd.f32 %v6837, %v7238
  %7240 = vdwg.mxu0
  %7241 = vmatprep.subr.mxu0 %v6611
  %7242 = vmatpush1.msra.mxu0 %v6610
  %7243 = vmatprep.subr.mxu0 %v6607
  %7244 = vmatpush1.msra.mxu0 %v6606
  %7245 = vmatprep.subr.mxu0 %v6603
  %7246 = vmatpush1.msra.mxu0 %v6602
  %7247 = vmatprep.subr.mxu0 %v6599
  %7248 = vmatpush1.msra.mxu0 %v6598
  %7249 = vmatprep.subr.mxu0 %v6595
  %7250 = vmatpush1.msra.mxu0 %v6594
  %7251 = vmatprep.subr.mxu0 %v6591
  %7252 = vmatpush1.msra.mxu0 %v6590
  %7253 = vmatprep.subr.mxu0 %v6587
  %7254 = vmatpush1.msra.mxu0 %v6586
  %7255 = vmatprep.subr.mxu0 %v6583
  %7256 = vmatpush1.msra.mxu0 %v6582
  %7257 = vmatprep.subr.mxu0 %v6579
  %7258 = vmatpush1.msra.mxu0 %v6578
  %7259 = vmatprep.subr.mxu0 %v6575
  %7260 = vmatpush1.msra.mxu0 %v6574
  %7261 = vmatprep.subr.mxu0 %v6571
  %7262 = vmatpush1.msra.mxu0 %v6570
  %7263 = vmatprep.subr.mxu0 %v6567
  %7264 = vmatpush1.msra.mxu0 %v6566
  %7265 = vmatprep.subr.mxu0 %v6563
  %7266 = vmatpush1.msra.mxu0 %v6562
  %7267 = vmatprep.subr.mxu0 %v6559
  %7268 = vmatpush1.msra.mxu0 %v6558
  %7269 = vmatprep.subr.mxu0 %v6555
  %7270 = vmatpush1.msra.mxu0 %v6554
  %7271 = vmatprep.subr.mxu0 %v6551
  %7272 = vmatpush1.msra.mxu0 %v6550
  %7273 = vmatprep.subr.mxu0 %v6675
  %7274 = vmatpush2.msra.mxu0 %v6674
  %7275 = vmatprep.subr.mxu0 %v6671
  %7276 = vmatpush2.msra.mxu0 %v6670
  %7277 = vmatprep.subr.mxu0 %v6667
  %7278 = vmatpush2.msra.mxu0 %v6666
  %7279 = vmatprep.subr.mxu0 %v6663
  %7280 = vmatpush2.msra.mxu0 %v6662
  %7281 = vmatprep.subr.mxu0 %v6659
  %7282 = vmatpush2.msra.mxu0 %v6658
  %7283 = vmatprep.subr.mxu0 %v6655
  %7284 = vmatpush2.msra.mxu0 %v6654
  %7285 = vmatprep.subr.mxu0 %v6651
  %7286 = vmatpush2.msra.mxu0 %v6650
  %7287 = vmatprep.subr.mxu0 %v6647
  %7288 = vmatpush2.msra.mxu0 %v6646
  %7289 = vmatprep.subr.mxu0 %v6643
  %7290 = vmatpush2.msra.mxu0 %v6642
  %7291 = vmatprep.subr.mxu0 %v6639
  %7292 = vmatpush2.msra.mxu0 %v6638
  %7293 = vmatprep.subr.mxu0 %v6635
  %7294 = vmatpush2.msra.mxu0 %v6634
  %7295 = vmatprep.subr.mxu0 %v6631
  %7296 = vmatpush2.msra.mxu0 %v6630
  %7297 = vmatprep.subr.mxu0 %v6627
  %7298 = vmatpush2.msra.mxu0 %v6626
  %7299 = vmatprep.subr.mxu0 %v6623
  %7300 = vmatpush2.msra.mxu0 %v6622
  %7301 = vmatprep.subr.mxu0 %v6619
  %7302 = vmatpush2.msra.mxu0 %v6618
  %7303 = vmatprep.subr.mxu0 %v6615
  %7304 = vmatpush2.msra.mxu0 %v6614
  %7305 = vmatprep.mubr.f32.mxu0 %v6860
  %7306 = vmatmul.mubr.f32.gmra.mxu0 %v6858
  %v7307 = vpop.f32.mrf.mxu0
  %v7308 = vadd.f32 %v7237, %v7307
  %v7309 = vpop.f32.mrf.mxu0
  %v7310 = vadd.f32 %v7239, %v7309
  %7311 = vdwg.mxu0
  %7312 = vmatprep.subr.mxu0 %v6739
  %7313 = vmatpush1.msra.mxu0 %v6738
  %7314 = vmatprep.subr.mxu0 %v6735
  %7315 = vmatpush1.msra.mxu0 %v6734
  %7316 = vmatprep.subr.mxu0 %v6731
  %7317 = vmatpush1.msra.mxu0 %v6730
  %7318 = vmatprep.subr.mxu0 %v6727
  %7319 = vmatpush1.msra.mxu0 %v6726
  %7320 = vmatprep.subr.mxu0 %v6723
  %7321 = vmatpush1.msra.mxu0 %v6722
  %7322 = vmatprep.subr.mxu0 %v6719
  %7323 = vmatpush1.msra.mxu0 %v6718
  %7324 = vmatprep.subr.mxu0 %v6715
  %7325 = vmatpush1.msra.mxu0 %v6714
  %7326 = vmatprep.subr.mxu0 %v6711
  %7327 = vmatpush1.msra.mxu0 %v6710
  %7328 = vmatprep.subr.mxu0 %v6707
  %7329 = vmatpush1.msra.mxu0 %v6706
  %7330 = vmatprep.subr.mxu0 %v6703
  %7331 = vmatpush1.msra.mxu0 %v6702
  %7332 = vmatprep.subr.mxu0 %v6699
  %7333 = vmatpush1.msra.mxu0 %v6698
  %7334 = vmatprep.subr.mxu0 %v6695
  %7335 = vmatpush1.msra.mxu0 %v6694
  %7336 = vmatprep.subr.mxu0 %v6691
  %7337 = vmatpush1.msra.mxu0 %v6690
  %7338 = vmatprep.subr.mxu0 %v6687
  %7339 = vmatpush1.msra.mxu0 %v6686
  %7340 = vmatprep.subr.mxu0 %v6683
  %7341 = vmatpush1.msra.mxu0 %v6682
  %7342 = vmatprep.subr.mxu0 %v6679
  %7343 = vmatpush1.msra.mxu0 %v6678
  %7344 = vmatprep.subr.mxu0 %v6803
  %7345 = vmatpush2.msra.mxu0 %v6802
  %7346 = vmatprep.subr.mxu0 %v6799
  %7347 = vmatpush2.msra.mxu0 %v6798
  %7348 = vmatprep.subr.mxu0 %v6795
  %7349 = vmatpush2.msra.mxu0 %v6794
  %7350 = vmatprep.subr.mxu0 %v6791
  %7351 = vmatpush2.msra.mxu0 %v6790
  %7352 = vmatprep.subr.mxu0 %v6787
  %7353 = vmatpush2.msra.mxu0 %v6786
  %7354 = vmatprep.subr.mxu0 %v6783
  %7355 = vmatpush2.msra.mxu0 %v6782
  %7356 = vmatprep.subr.mxu0 %v6779
  %7357 = vmatpush2.msra.mxu0 %v6778
  %7358 = vmatprep.subr.mxu0 %v6775
  %7359 = vmatpush2.msra.mxu0 %v6774
  %7360 = vmatprep.subr.mxu0 %v6771
  %7361 = vmatpush2.msra.mxu0 %v6770
  %7362 = vmatprep.subr.mxu0 %v6767
  %7363 = vmatpush2.msra.mxu0 %v6766
  %7364 = vmatprep.subr.mxu0 %v6763
  %7365 = vmatpush2.msra.mxu0 %v6762
  %7366 = vmatprep.subr.mxu0 %v6759
  %7367 = vmatpush2.msra.mxu0 %v6758
  %7368 = vmatprep.subr.mxu0 %v6755
  %7369 = vmatpush2.msra.mxu0 %v6754
  %7370 = vmatprep.subr.mxu0 %v6751
  %7371 = vmatpush2.msra.mxu0 %v6750
  %7372 = vmatprep.subr.mxu0 %v6747
  %7373 = vmatpush2.msra.mxu0 %v6746
  %7374 = vmatprep.subr.mxu0 %v6743
  %7375 = vmatpush2.msra.mxu0 %v6742
  %7376 = vmatprep.mubr.f32.mxu0 %v6876
  %7377 = vmatmul.mubr.f32.gmra.mxu0 %v6868
  %v7378 = vpop.f32.mrf.mxu0
  %v7379 = vadd.f32 %v7308, %v7378
  %v7380 = vpop.f32.mrf.mxu0
  %v7381 = vadd.f32 %v7310, %v7380
  %7382 = vdwg.mxu0
  %7383 = vmatprep.subr.mxu0 0.0
  %7384 = vmatpush1.msra.mxu0 0.0
  %7385 = vmatprep.subr.mxu0 0.0
  %7386 = vmatpush1.msra.mxu0 0.0
  %7387 = vmatprep.subr.mxu0 0.0
  %7388 = vmatpush1.msra.mxu0 0.0
  %7389 = vmatprep.subr.mxu0 0.0
  %7390 = vmatpush1.msra.mxu0 0.0
  %7391 = vmatprep.subr.mxu0 0.0
  %7392 = vmatpush1.msra.mxu0 0.0
  %7393 = vmatprep.subr.mxu0 0.0
  %7394 = vmatpush1.msra.mxu0 0.0
  %7395 = vmatprep.subr.mxu0 0.0
  %7396 = vmatpush1.msra.mxu0 0.0
  %7397 = vmatprep.subr.mxu0 0.0
  %7398 = vmatpush1.msra.mxu0 0.0
  %7399 = vmatprep.subr.mxu0 0.0
  %7400 = vmatpush1.msra.mxu0 0.0
  %7401 = vmatprep.subr.mxu0 0.0
  %7402 = vmatpush1.msra.mxu0 0.0
  %7403 = vmatprep.subr.mxu0 0.0
  %7404 = vmatpush1.msra.mxu0 0.0
  %7405 = vmatprep.subr.mxu0 0.0
  %7406 = vmatpush1.msra.mxu0 0.0
  %7407 = vmatprep.subr.mxu0 %v6819
  %7408 = vmatpush1.msra.mxu0 %v6818
  %7409 = vmatprep.subr.mxu0 %v6815
  %7410 = vmatpush1.msra.mxu0 %v6814
  %7411 = vmatprep.subr.mxu0 %v6811
  %7412 = vmatpush1.msra.mxu0 %v6810
  %7413 = vmatprep.subr.mxu0 %v6807
  %7414 = vmatpush1.msra.mxu0 %v6806
  %7415 = vmatprep.subr.mxu0 0.0
  %7416 = vmatpush2.msra.mxu0 0.0
  %7417 = vmatprep.subr.mxu0 0.0
  %7418 = vmatpush2.msra.mxu0 0.0
  %7419 = vmatprep.subr.mxu0 0.0
  %7420 = vmatpush2.msra.mxu0 0.0
  %7421 = vmatprep.subr.mxu0 0.0
  %7422 = vmatpush2.msra.mxu0 0.0
  %7423 = vmatprep.subr.mxu0 0.0
  %7424 = vmatpush2.msra.mxu0 0.0
  %7425 = vmatprep.subr.mxu0 0.0
  %7426 = vmatpush2.msra.mxu0 0.0
  %7427 = vmatprep.subr.mxu0 0.0
  %7428 = vmatpush2.msra.mxu0 0.0
  %7429 = vmatprep.subr.mxu0 0.0
  %7430 = vmatpush2.msra.mxu0 0.0
  %7431 = vmatprep.subr.mxu0 0.0
  %7432 = vmatpush2.msra.mxu0 0.0
  %7433 = vmatprep.subr.mxu0 0.0
  %7434 = vmatpush2.msra.mxu0 0.0
  %7435 = vmatprep.subr.mxu0 0.0
  %7436 = vmatpush2.msra.mxu0 0.0
  %7437 = vmatprep.subr.mxu0 0.0
  %7438 = vmatpush2.msra.mxu0 0.0
  %7439 = vmatprep.subr.mxu0 0.0
  %7440 = vmatpush2.msra.mxu0 0.0
  %7441 = vmatprep.subr.mxu0 0.0
  %7442 = vmatpush2.msra.mxu0 0.0
  %7443 = vmatprep.subr.mxu0 0.0
  %7444 = vmatpush2.msra.mxu0 0.0
  %7445 = vmatprep.subr.mxu0 0.0
  %7446 = vmatpush2.msra.mxu0 0.0
  %7447 = vmatprep.mubr.f32.mxu0 0.0
  %7448 = vmatmul.mubr.f32.gmra.mxu0 %v6884
  %v7449 = vpop.f32.mrf.mxu0
  %v7450 = vadd.f32 %v7379, %v7449
  %v7451 = vpop.f32.mrf.mxu0
  %v7452 = vadd.f32 %v7381, %v7451
  %7453 = vdwg.mxu0
  %v7454 = vmax.f32 %v7166, 0.0
  %v7455 = vmax.f32 %v7168, 0.0
  %v7456 = vmax.f32 %v7450, 0.0
  %v7457 = vmax.f32 %v7452, 0.0
  %v7458 = vld [vmem:[%s6] sm:$0xff]
  %v7459 = vld [vmem:[%s6 + $0x8] sm:$0xff]
  %v7460 = vld [vmem:[%s6 + $0x10] sm:$0xff]
  %v7461 = vld [vmem:[%s6 + $0x18] sm:$0xff]
  %v7462 = vld [vmem:[%s6 + $0x20] sm:$0xff]
  %v7463 = vld [vmem:[%s6 + $0x28] sm:$0xff]
  %v7464 = vld [vmem:[%s6 + $0x30] sm:$0xff]
  %v7465 = vld [vmem:[%s6 + $0x38] sm:$0xff]
  %v7466 = vld [vmem:[%s6 + $0x40] sm:$0xff]
  %v7467 = vld [vmem:[%s6 + $0x48] sm:$0xff]
  %v7468 = vld [vmem:[%s6 + $0x50] sm:$0xff]
  %v7469 = vld [vmem:[%s6 + $0x58] sm:$0xff]
  %v7470 = vld [vmem:[%s6 + $0x60] sm:$0xff]
  %v7471 = vld [vmem:[%s6 + $0x68] sm:$0xff]
  %v7472 = vld [vmem:[%s6 + $0x70] sm:$0xff]
  %v7473 = vld [vmem:[%s6 + $0x78] sm:$0xff]
  %v7474 = vld [vmem:[%s6 + $0x80] sm:$0xff]
  %v7475 = vld [vmem:[%s6 + $0x88] sm:$0xff]
  %v7476 = vld [vmem:[%s6 + $0x90] sm:$0xff]
  %v7477 = vld [vmem:[%s6 + $0x98] sm:$0xff]
  %v7478 = vld [vmem:[%s6 + $0xa0] sm:$0xff]
  %v7479 = vld [vmem:[%s6 + $0xa8] sm:$0xff]
  %v7480 = vld [vmem:[%s6 + $0xb0] sm:$0xff]
  %v7481 = vld [vmem:[%s6 + $0xb8] sm:$0xff]
  %v7482 = vld [vmem:[%s6 + $0xc0] sm:$0xff]
  %v7483 = vld [vmem:[%s6 + $0xc8] sm:$0xff]
  %v7484 = vld [vmem:[%s6 + $0xd0] sm:$0xff]
  %v7485 = vld [vmem:[%s6 + $0xd8] sm:$0xff]
  %v7486 = vld [vmem:[%s6 + $0xe0] sm:$0xff]
  %v7487 = vld [vmem:[%s6 + $0xe8] sm:$0xff]
  %v7488 = vld [vmem:[%s6 + $0xf0] sm:$0xff]
  %v7489 = vld [vmem:[%s6 + $0xf8] sm:$0xff]
  %v7490 = vld [vmem:[%s6 + $0x100] sm:$0xff]
  %v7491 = vld [vmem:[%s6 + $0x108] sm:$0xff]
  %v7492 = vld [vmem:[%s6 + $0x110] sm:$0xff]
  %v7493 = vld [vmem:[%s6 + $0x118] sm:$0xff]
  %v7494 = vld [vmem:[%s6 + $0x120] sm:$0xff]
  %v7495 = vld [vmem:[%s6 + $0x128] sm:$0xff]
  %v7496 = vld [vmem:[%s6 + $0x130] sm:$0xff]
  %v7497 = vld [vmem:[%s6 + $0x138] sm:$0xff]
  %v7498 = vld [vmem:[%s6 + $0x140] sm:$0xff]
  %v7499 = vld [vmem:[%s6 + $0x148] sm:$0xff]
  %v7500 = vld [vmem:[%s6 + $0x150] sm:$0xff]
  %v7501 = vld [vmem:[%s6 + $0x158] sm:$0xff]
  %v7502 = vld [vmem:[%s6 + $0x160] sm:$0xff]
  %v7503 = vld [vmem:[%s6 + $0x168] sm:$0xff]
  %v7504 = vld [vmem:[%s6 + $0x170] sm:$0xff]
  %v7505 = vld [vmem:[%s6 + $0x178] sm:$0xff]
  %v7506 = vld [vmem:[%s6 + $0x180] sm:$0xff]
  %v7507 = vld [vmem:[%s6 + $0x188] sm:$0xff]
  %v7508 = vld [vmem:[%s6 + $0x190] sm:$0xff]
  %v7509 = vld [vmem:[%s6 + $0x198] sm:$0xff]
  %v7510 = vld [vmem:[%s6 + $0x1a0] sm:$0xff]
  %v7511 = vld [vmem:[%s6 + $0x1a8] sm:$0xff]
  %v7512 = vld [vmem:[%s6 + $0x1b0] sm:$0xff]
  %v7513 = vld [vmem:[%s6 + $0x1b8] sm:$0xff]
  %v7514 = vld [vmem:[%s6 + $0x1c0] sm:$0xff]
  %v7515 = vld [vmem:[%s6 + $0x1c8] sm:$0xff]
  %v7516 = vld [vmem:[%s6 + $0x1d0] sm:$0xff]
  %v7517 = vld [vmem:[%s6 + $0x1d8] sm:$0xff]
  %v7518 = vld [vmem:[%s6 + $0x1e0] sm:$0xff]
  %v7519 = vld [vmem:[%s6 + $0x1e8] sm:$0xff]
  %v7520 = vld [vmem:[%s6 + $0x1f0] sm:$0xf]
  %v7521 = vld [vmem:[%s8 + $0x6] sm:$0x1]
  %v7523 = vlaneseq
  %v7524 = vshrl.u32 %v7523, 7
  %v7525 = vsub.s32 0, %v7524
  %v7526 = vrot.slane %v7521, %v7525
  %v7529 = vsel %vm5592, %v7457, 0
  %v7532 = vsel %vm5665, %v7520, 0
  %7534 = vmatprep.subr.mxu0 0.0
  %7535 = vmatpush1.msra.mxu0 %v7473
  %7536 = vmatprep.subr.mxu0 0.0
  %7537 = vmatpush1.msra.mxu0 %v7472
  %7538 = vmatprep.subr.mxu0 0.0
  %7539 = vmatpush1.msra.mxu0 %v7471
  %7540 = vmatprep.subr.mxu0 0.0
  %7541 = vmatpush1.msra.mxu0 %v7470
  %7542 = vmatprep.subr.mxu0 0.0
  %7543 = vmatpush1.msra.mxu0 %v7469
  %7544 = vmatprep.subr.mxu0 0.0
  %7545 = vmatpush1.msra.mxu0 %v7468
  %7546 = vmatprep.subr.mxu0 0.0
  %7547 = vmatpush1.msra.mxu0 %v7467
  %7548 = vmatprep.subr.mxu0 0.0
  %7549 = vmatpush1.msra.mxu0 %v7466
  %7550 = vmatprep.subr.mxu0 0.0
  %7551 = vmatpush1.msra.mxu0 %v7465
  %7552 = vmatprep.subr.mxu0 0.0
  %7553 = vmatpush1.msra.mxu0 %v7464
  %7554 = vmatprep.subr.mxu0 0.0
  %7555 = vmatpush1.msra.mxu0 %v7463
  %7556 = vmatprep.subr.mxu0 0.0
  %7557 = vmatpush1.msra.mxu0 %v7462
  %7558 = vmatprep.subr.mxu0 0.0
  %7559 = vmatpush1.msra.mxu0 %v7461
  %7560 = vmatprep.subr.mxu0 0.0
  %7561 = vmatpush1.msra.mxu0 %v7460
  %7562 = vmatprep.subr.mxu0 0.0
  %7563 = vmatpush1.msra.mxu0 %v7459
  %7564 = vmatprep.subr.mxu0 0.0
  %7565 = vmatpush1.msra.mxu0 %v7458
  %7566 = vmatprep.subr.mxu0 0.0
  %7567 = vmatpush2.msra.mxu0 %v7489
  %7568 = vmatprep.subr.mxu0 0.0
  %7569 = vmatpush2.msra.mxu0 %v7488
  %7570 = vmatprep.subr.mxu0 0.0
  %7571 = vmatpush2.msra.mxu0 %v7487
  %7572 = vmatprep.subr.mxu0 0.0
  %7573 = vmatpush2.msra.mxu0 %v7486
  %7574 = vmatprep.subr.mxu0 0.0
  %7575 = vmatpush2.msra.mxu0 %v7485
  %7576 = vmatprep.subr.mxu0 0.0
  %7577 = vmatpush2.msra.mxu0 %v7484
  %7578 = vmatprep.subr.mxu0 0.0
  %7579 = vmatpush2.msra.mxu0 %v7483
  %7580 = vmatprep.subr.mxu0 0.0
  %7581 = vmatpush2.msra.mxu0 %v7482
  %7582 = vmatprep.subr.mxu0 0.0
  %7583 = vmatpush2.msra.mxu0 %v7481
  %7584 = vmatprep.subr.mxu0 0.0
  %7585 = vmatpush2.msra.mxu0 %v7480
  %7586 = vmatprep.subr.mxu0 0.0
  %7587 = vmatpush2.msra.mxu0 %v7479
  %7588 = vmatprep.subr.mxu0 0.0
  %7589 = vmatpush2.msra.mxu0 %v7478
  %7590 = vmatprep.subr.mxu0 0.0
  %7591 = vmatpush2.msra.mxu0 %v7477
  %7592 = vmatprep.subr.mxu0 0.0
  %7593 = vmatpush2.msra.mxu0 %v7476
  %7594 = vmatprep.subr.mxu0 0.0
  %7595 = vmatpush2.msra.mxu0 %v7475
  %7596 = vmatprep.subr.mxu0 0.0
  %7597 = vmatpush2.msra.mxu0 %v7474
  %7598 = vmatprep.mubr.f32.mxu0 %v7455
  %7599 = vmatmul.mubr.f32.gmra.mxu0 %v7454
  %v7600 = vpop.f32.mrf.mxu0
  %v7601 = vadd.f32 %v7526, %v7600
  %v7602 = vpop.f32.mrf.mxu0
  %7603 = vdwg.mxu0
  %7604 = vmatprep.subr.mxu0 0.0
  %7605 = vmatpush1.msra.mxu0 %v7505
  %7606 = vmatprep.subr.mxu0 0.0
  %7607 = vmatpush1.msra.mxu0 %v7504
  %7608 = vmatprep.subr.mxu0 0.0
  %7609 = vmatpush1.msra.mxu0 %v7503
  %7610 = vmatprep.subr.mxu0 0.0
  %7611 = vmatpush1.msra.mxu0 %v7502
  %7612 = vmatprep.subr.mxu0 0.0
  %7613 = vmatpush1.msra.mxu0 %v7501
  %7614 = vmatprep.subr.mxu0 0.0
  %7615 = vmatpush1.msra.mxu0 %v7500
  %7616 = vmatprep.subr.mxu0 0.0
  %7617 = vmatpush1.msra.mxu0 %v7499
  %7618 = vmatprep.subr.mxu0 0.0
  %7619 = vmatpush1.msra.mxu0 %v7498
  %7620 = vmatprep.subr.mxu0 0.0
  %7621 = vmatpush1.msra.mxu0 %v7497
  %7622 = vmatprep.subr.mxu0 0.0
  %7623 = vmatpush1.msra.mxu0 %v7496
  %7624 = vmatprep.subr.mxu0 0.0
  %7625 = vmatpush1.msra.mxu0 %v7495
  %7626 = vmatprep.subr.mxu0 0.0
  %7627 = vmatpush1.msra.mxu0 %v7494
  %7628 = vmatprep.subr.mxu0 0.0
  %7629 = vmatpush1.msra.mxu0 %v7493
  %7630 = vmatprep.subr.mxu0 0.0
  %7631 = vmatpush1.msra.mxu0 %v7492
  %7632 = vmatprep.subr.mxu0 0.0
  %7633 = vmatpush1.msra.mxu0 %v7491
  %7634 = vmatprep.subr.mxu0 0.0
  %7635 = vmatpush1.msra.mxu0 %v7490
  %7636 = vmatprep.subr.mxu0 0.0
  %7637 = vmatpush2.msra.mxu0 0.0
  %7638 = vmatprep.subr.mxu0 0.0
  %7639 = vmatpush2.msra.mxu0 %v7532
  %7640 = vmatprep.subr.mxu0 0.0
  %7641 = vmatpush2.msra.mxu0 %v7519
  %7642 = vmatprep.subr.mxu0 0.0
  %7643 = vmatpush2.msra.mxu0 %v7518
  %7644 = vmatprep.subr.mxu0 0.0
  %7645 = vmatpush2.msra.mxu0 %v7517
  %7646 = vmatprep.subr.mxu0 0.0
  %7647 = vmatpush2.msra.mxu0 %v7516
  %7648 = vmatprep.subr.mxu0 0.0
  %7649 = vmatpush2.msra.mxu0 %v7515
  %7650 = vmatprep.subr.mxu0 0.0
  %7651 = vmatpush2.msra.mxu0 %v7514
  %7652 = vmatprep.subr.mxu0 0.0
  %7653 = vmatpush2.msra.mxu0 %v7513
  %7654 = vmatprep.subr.mxu0 0.0
  %7655 = vmatpush2.msra.mxu0 %v7512
  %7656 = vmatprep.subr.mxu0 0.0
  %7657 = vmatpush2.msra.mxu0 %v7511
  %7658 = vmatprep.subr.mxu0 0.0
  %7659 = vmatpush2.msra.mxu0 %v7510
  %7660 = vmatprep.subr.mxu0 0.0
  %7661 = vmatpush2.msra.mxu0 %v7509
  %7662 = vmatprep.subr.mxu0 0.0
  %7663 = vmatpush2.msra.mxu0 %v7508
  %7664 = vmatprep.subr.mxu0 0.0
  %7665 = vmatpush2.msra.mxu0 %v7507
  %7666 = vmatprep.subr.mxu0 0.0
  %7667 = vmatpush2.msra.mxu0 %v7506
  %7668 = vmatprep.mubr.f32.mxu0 %v7529
  %7669 = vmatmul.mubr.f32.gmra.mxu0 %v7456
  %v7670 = vpop.f32.mrf.mxu0
  %v7671 = vadd.f32 %v7601, %v7670
  %v7672 = vpop.f32.mrf.mxu0
  %7673 = vdwg.mxu0
  %v7674 = vmax.f32 %v7671, 0.0
  %v7675 = vld [vmem:[%s7] sm:$0xff]
  %v7676 = vld [vmem:[%s7 + $0x8] sm:$0x3]
  %v7677 = vld [vmem:[%s1] sm:$0x3]
  %7680 = vrot.lane.b32.xlu0 %v7675, 118
  %v7681 = vpop.permute.xlu0 %7680
  %7682 = vrot.lane.b32.xlu0 %v7676, 118
  %v7683 = vpop.permute.xlu0 %7682
  %vm7685 = vcmask 80896
  %v7687 = vsel %vm7685, %v7677, 0
  %vm7689 = vcmask 1041408
  %v7690 = vsel %vm7689, %v7683, 0
  %7692 = vmatprep.subr.mxu0 0.0
  %7693 = vmatpush1.msra.mxu0 0.0
  %7694 = vmatprep.subr.mxu0 0.0
  %7695 = vmatpush1.msra.mxu0 0.0
  %7696 = vmatprep.subr.mxu0 0.0
  %7697 = vmatpush1.msra.mxu0 0.0
  %7698 = vmatprep.subr.mxu0 0.0
  %7699 = vmatpush1.msra.mxu0 0.0
  %7700 = vmatprep.subr.mxu0 0.0
  %7701 = vmatpush1.msra.mxu0 0.0
  %7702 = vmatprep.subr.mxu0 0.0
  %7703 = vmatpush1.msra.mxu0 0.0
  %7704 = vmatprep.subr.mxu0 0.0
  %7705 = vmatpush1.msra.mxu0 0.0
  %7706 = vmatprep.subr.mxu0 0.0
  %7707 = vmatpush1.msra.mxu0 0.0
  %7708 = vmatprep.subr.mxu0 0.0
  %7709 = vmatpush1.msra.mxu0 0.0
  %7710 = vmatprep.subr.mxu0 0.0
  %7711 = vmatpush1.msra.mxu0 0.0
  %7712 = vmatprep.subr.mxu0 0.0
  %7713 = vmatpush1.msra.mxu0 0.0
  %7714 = vmatprep.subr.mxu0 0.0
  %7715 = vmatpush1.msra.mxu0 0.0
  %7716 = vmatprep.subr.mxu0 0.0
  %7717 = vmatpush1.msra.mxu0 0.0
  %7718 = vmatprep.subr.mxu0 0.0
  %7719 = vmatpush1.msra.mxu0 0.0
  %7720 = vmatprep.subr.mxu0 0.0
  %7721 = vmatpush1.msra.mxu0 %v7690
  %7722 = vmatprep.subr.mxu0 0.0
  %7723 = vmatpush1.msra.mxu0 %v7681
  %7724 = vmatprep.subr.mxu0 0.0
  %7725 = vmatpush2.msra.mxu0 0.0
  %7726 = vmatprep.subr.mxu0 0.0
  %7727 = vmatpush2.msra.mxu0 0.0
  %7728 = vmatprep.subr.mxu0 0.0
  %7729 = vmatpush2.msra.mxu0 0.0
  %7730 = vmatprep.subr.mxu0 0.0
  %7731 = vmatpush2.msra.mxu0 0.0
  %7732 = vmatprep.subr.mxu0 0.0
  %7733 = vmatpush2.msra.mxu0 0.0
  %7734 = vmatprep.subr.mxu0 0.0
  %7735 = vmatpush2.msra.mxu0 0.0
  %7736 = vmatprep.subr.mxu0 0.0
  %7737 = vmatpush2.msra.mxu0 0.0
  %7738 = vmatprep.subr.mxu0 0.0
  %7739 = vmatpush2.msra.mxu0 0.0
  %7740 = vmatprep.subr.mxu0 0.0
  %7741 = vmatpush2.msra.mxu0 0.0
  %7742 = vmatprep.subr.mxu0 0.0
  %7743 = vmatpush2.msra.mxu0 0.0
  %7744 = vmatprep.subr.mxu0 0.0
  %7745 = vmatpush2.msra.mxu0 0.0
  %7746 = vmatprep.subr.mxu0 0.0
  %7747 = vmatpush2.msra.mxu0 0.0
  %7748 = vmatprep.subr.mxu0 0.0
  %7749 = vmatpush2.msra.mxu0 0.0
  %7750 = vmatprep.subr.mxu0 0.0
  %7751 = vmatpush2.msra.mxu0 0.0
  %7752 = vmatprep.subr.mxu0 0.0
  %7753 = vmatpush2.msra.mxu0 0.0
  %7754 = vmatprep.subr.mxu0 0.0
  %7755 = vmatpush2.msra.mxu0 0.0
  %7756 = vmatprep.mubr.f32.mxu0 0.0
  %7757 = vmatmul.mubr.f32.gmra.mxu0 %v7687
  %v7758 = vpop.f32.mrf.mxu0
  %v7759 = vadd.f32 0.0, %v7758
  %v7760 = vpop.f32.mrf.mxu0
  %7761 = vdwg.mxu0
  %v7763 = vsel %vm7685, %v7674, 0
  %v7765 = vsel %vm7689, %v7676, 0
  %7767 = vmatprep.subr.mxu0 0.0
  %7768 = vmatpush1.msra.mxu0 0.0
  %7769 = vmatprep.subr.mxu0 0.0
  %7770 = vmatpush1.msra.mxu0 0.0
  %7771 = vmatprep.subr.mxu0 0.0
  %7772 = vmatpush1.msra.mxu0 0.0
  %7773 = vmatprep.subr.mxu0 0.0
  %7774 = vmatpush1.msra.mxu0 0.0
  %7775 = vmatprep.subr.mxu0 0.0
  %7776 = vmatpush1.msra.mxu0 0.0
  %7777 = vmatprep.subr.mxu0 0.0
  %7778 = vmatpush1.msra.mxu0 0.0
  %7779 = vmatprep.subr.mxu0 0.0
  %7780 = vmatpush1.msra.mxu0 0.0
  %7781 = vmatprep.subr.mxu0 0.0
  %7782 = vmatpush1.msra.mxu0 0.0
  %7783 = vmatprep.subr.mxu0 0.0
  %7784 = vmatpush1.msra.mxu0 0.0
  %7785 = vmatprep.subr.mxu0 0.0
  %7786 = vmatpush1.msra.mxu0 0.0
  %7787 = vmatprep.subr.mxu0 0.0
  %7788 = vmatpush1.msra.mxu0 0.0
  %7789 = vmatprep.subr.mxu0 0.0
  %7790 = vmatpush1.msra.mxu0 0.0
  %7791 = vmatprep.subr.mxu0 0.0
  %7792 = vmatpush1.msra.mxu0 0.0
  %7793 = vmatprep.subr.mxu0 0.0
  %7794 = vmatpush1.msra.mxu0 0.0
  %7795 = vmatprep.subr.mxu0 0.0
  %7796 = vmatpush1.msra.mxu0 %v7765
  %7797 = vmatprep.subr.mxu0 0.0
  %7798 = vmatpush1.msra.mxu0 %v7675
  %7799 = vmatprep.subr.mxu0 0.0
  %7800 = vmatpush2.msra.mxu0 0.0
  %7801 = vmatprep.subr.mxu0 0.0
  %7802 = vmatpush2.msra.mxu0 0.0
  %7803 = vmatprep.subr.mxu0 0.0
  %7804 = vmatpush2.msra.mxu0 0.0
  %7805 = vmatprep.subr.mxu0 0.0
  %7806 = vmatpush2.msra.mxu0 0.0
  %7807 = vmatprep.subr.mxu0 0.0
  %7808 = vmatpush2.msra.mxu0 0.0
  %7809 = vmatprep.subr.mxu0 0.0
  %7810 = vmatpush2.msra.mxu0 0.0
  %7811 = vmatprep.subr.mxu0 0.0
  %7812 = vmatpush2.msra.mxu0 0.0
  %7813 = vmatprep.subr.mxu0 0.0
  %7814 = vmatpush2.msra.mxu0 0.0
  %7815 = vmatprep.subr.mxu0 0.0
  %7816 = vmatpush2.msra.mxu0 0.0
  %7817 = vmatprep.subr.mxu0 0.0
  %7818 = vmatpush2.msra.mxu0 0.0
  %7819 = vmatprep.subr.mxu0 0.0
  %7820 = vmatpush2.msra.mxu0 0.0
  %7821 = vmatprep.subr.mxu0 0.0
  %7822 = vmatpush2.msra.mxu0 0.0
  %7823 = vmatprep.subr.mxu0 0.0
  %7824 = vmatpush2.msra.mxu0 0.0
  %7825 = vmatprep.subr.mxu0 0.0
  %7826 = vmatpush2.msra.mxu0 0.0
  %7827 = vmatprep.subr.mxu0 0.0
  %7828 = vmatpush2.msra.mxu0 0.0
  %7829 = vmatprep.subr.mxu0 0.0
  %7830 = vmatpush2.msra.mxu0 0.0
  %7831 = vmatprep.mubr.f32.mxu0 0.0
  %7832 = vmatmul.mubr.f32.gmra.mxu0 %v7763
  %v7833 = vpop.f32.mrf.mxu0
  %v7834 = vadd.f32 %v7759, %v7833
  %v7835 = vpop.f32.mrf.mxu0
  %7836 = vdwg.mxu0
  %v7837 = vld [vmem:[%s8 + $0x7] sm:$0x1]
  %v7839 = vlaneseq
  %v7840 = vshrl.u32 %v7839, 7
  %v7841 = vsub.s32 0, %v7840
  %v7842 = vrot.slane %v7837, %v7841
  %v7844 = vadd.f32 %v7834, %v7842
  %v7845 = vmax.f32 %v7844, 0.0
  %v7846 = vld [vmem:[%s2] sm:$0x3]
  %7847 = vrot.lane.b32.xlu0 %v7675, 107
  %v7848 = vpop.permute.xlu0 %7847
  %7849 = vrot.lane.b32.xlu0 %v7676, 107
  %v7850 = vpop.permute.xlu0 %7849
  %v7853 = vsel %vm7685, %v7846, 0
  %v7855 = vsel %vm7689, %v7850, 0
  %7857 = vmatprep.subr.mxu0 0.0
  %7858 = vmatpush1.msra.mxu0 0.0
  %7859 = vmatprep.subr.mxu0 0.0
  %7860 = vmatpush1.msra.mxu0 0.0
  %7861 = vmatprep.subr.mxu0 0.0
  %7862 = vmatpush1.msra.mxu0 0.0
  %7863 = vmatprep.subr.mxu0 0.0
  %7864 = vmatpush1.msra.mxu0 0.0
  %7865 = vmatprep.subr.mxu0 0.0
  %7866 = vmatpush1.msra.mxu0 0.0
  %7867 = vmatprep.subr.mxu0 0.0
  %7868 = vmatpush1.msra.mxu0 0.0
  %7869 = vmatprep.subr.mxu0 0.0
  %7870 = vmatpush1.msra.mxu0 0.0
  %7871 = vmatprep.subr.mxu0 0.0
  %7872 = vmatpush1.msra.mxu0 0.0
  %7873 = vmatprep.subr.mxu0 0.0
  %7874 = vmatpush1.msra.mxu0 0.0
  %7875 = vmatprep.subr.mxu0 0.0
  %7876 = vmatpush1.msra.mxu0 0.0
  %7877 = vmatprep.subr.mxu0 0.0
  %7878 = vmatpush1.msra.mxu0 0.0
  %7879 = vmatprep.subr.mxu0 0.0
  %7880 = vmatpush1.msra.mxu0 0.0
  %7881 = vmatprep.subr.mxu0 0.0
  %7882 = vmatpush1.msra.mxu0 0.0
  %7883 = vmatprep.subr.mxu0 0.0
  %7884 = vmatpush1.msra.mxu0 0.0
  %7885 = vmatprep.subr.mxu0 0.0
  %7886 = vmatpush1.msra.mxu0 %v7855
  %7887 = vmatprep.subr.mxu0 0.0
  %7888 = vmatpush1.msra.mxu0 %v7848
  %7889 = vmatprep.subr.mxu0 0.0
  %7890 = vmatpush2.msra.mxu0 0.0
  %7891 = vmatprep.subr.mxu0 0.0
  %7892 = vmatpush2.msra.mxu0 0.0
  %7893 = vmatprep.subr.mxu0 0.0
  %7894 = vmatpush2.msra.mxu0 0.0
  %7895 = vmatprep.subr.mxu0 0.0
  %7896 = vmatpush2.msra.mxu0 0.0
  %7897 = vmatprep.subr.mxu0 0.0
  %7898 = vmatpush2.msra.mxu0 0.0
  %7899 = vmatprep.subr.mxu0 0.0
  %7900 = vmatpush2.msra.mxu0 0.0
  %7901 = vmatprep.subr.mxu0 0.0
  %7902 = vmatpush2.msra.mxu0 0.0
  %7903 = vmatprep.subr.mxu0 0.0
  %7904 = vmatpush2.msra.mxu0 0.0
  %7905 = vmatprep.subr.mxu0 0.0
  %7906 = vmatpush2.msra.mxu0 0.0
  %7907 = vmatprep.subr.mxu0 0.0
  %7908 = vmatpush2.msra.mxu0 0.0
  %7909 = vmatprep.subr.mxu0 0.0
  %7910 = vmatpush2.msra.mxu0 0.0
  %7911 = vmatprep.subr.mxu0 0.0
  %7912 = vmatpush2.msra.mxu0 0.0
  %7913 = vmatprep.subr.mxu0 0.0
  %7914 = vmatpush2.msra.mxu0 0.0
  %7915 = vmatprep.subr.mxu0 0.0
  %7916 = vmatpush2.msra.mxu0 0.0
  %7917 = vmatprep.subr.mxu0 0.0
  %7918 = vmatpush2.msra.mxu0 0.0
  %7919 = vmatprep.subr.mxu0 0.0
  %7920 = vmatpush2.msra.mxu0 0.0
  %7921 = vmatprep.mubr.f32.mxu0 0.0
  %7922 = vmatmul.mubr.f32.gmra.mxu0 %v7853
  %v7923 = vpop.f32.mrf.mxu0
  %v7924 = vadd.f32 0.0, %v7923
  %v7925 = vpop.f32.mrf.mxu0
  %7926 = vdwg.mxu0
  %7927 = vrot.lane.b32.xlu0 %v7675, 108
  %v7928 = vpop.permute.xlu0 %7927
  %7929 = vrot.lane.b32.xlu0 %v7676, 108
  %v7930 = vpop.permute.xlu0 %7929
  %v7933 = vsel %vm7685, %v7845, 0
  %v7935 = vsel %vm7689, %v7930, 0
  %7937 = vmatprep.subr.mxu0 0.0
  %7938 = vmatpush1.msra.mxu0 0.0
  %7939 = vmatprep.subr.mxu0 0.0
  %7940 = vmatpush1.msra.mxu0 0.0
  %7941 = vmatprep.subr.mxu0 0.0
  %7942 = vmatpush1.msra.mxu0 0.0
  %7943 = vmatprep.subr.mxu0 0.0
  %7944 = vmatpush1.msra.mxu0 0.0
  %7945 = vmatprep.subr.mxu0 0.0
  %7946 = vmatpush1.msra.mxu0 0.0
  %7947 = vmatprep.subr.mxu0 0.0
  %7948 = vmatpush1.msra.mxu0 0.0
  %7949 = vmatprep.subr.mxu0 0.0
  %7950 = vmatpush1.msra.mxu0 0.0
  %7951 = vmatprep.subr.mxu0 0.0
  %7952 = vmatpush1.msra.mxu0 0.0
  %7953 = vmatprep.subr.mxu0 0.0
  %7954 = vmatpush1.msra.mxu0 0.0
  %7955 = vmatprep.subr.mxu0 0.0
  %7956 = vmatpush1.msra.mxu0 0.0
  %7957 = vmatprep.subr.mxu0 0.0
  %7958 = vmatpush1.msra.mxu0 0.0
  %7959 = vmatprep.subr.mxu0 0.0
  %7960 = vmatpush1.msra.mxu0 0.0
  %7961 = vmatprep.subr.mxu0 0.0
  %7962 = vmatpush1.msra.mxu0 0.0
  %7963 = vmatprep.subr.mxu0 0.0
  %7964 = vmatpush1.msra.mxu0 0.0
  %7965 = vmatprep.subr.mxu0 0.0
  %7966 = vmatpush1.msra.mxu0 %v7935
  %7967 = vmatprep.subr.mxu0 0.0
  %7968 = vmatpush1.msra.mxu0 %v7928
  %7969 = vmatprep.subr.mxu0 0.0
  %7970 = vmatpush2.msra.mxu0 0.0
  %7971 = vmatprep.subr.mxu0 0.0
  %7972 = vmatpush2.msra.mxu0 0.0
  %7973 = vmatprep.subr.mxu0 0.0
  %7974 = vmatpush2.msra.mxu0 0.0
  %7975 = vmatprep.subr.mxu0 0.0
  %7976 = vmatpush2.msra.mxu0 0.0
  %7977 = vmatprep.subr.mxu0 0.0
  %7978 = vmatpush2.msra.mxu0 0.0
  %7979 = vmatprep.subr.mxu0 0.0
  %7980 = vmatpush2.msra.mxu0 0.0
  %7981 = vmatprep.subr.mxu0 0.0
  %7982 = vmatpush2.msra.mxu0 0.0
  %7983 = vmatprep.subr.mxu0 0.0
  %7984 = vmatpush2.msra.mxu0 0.0
  %7985 = vmatprep.subr.mxu0 0.0
  %7986 = vmatpush2.msra.mxu0 0.0
  %7987 = vmatprep.subr.mxu0 0.0
  %7988 = vmatpush2.msra.mxu0 0.0
  %7989 = vmatprep.subr.mxu0 0.0
  %7990 = vmatpush2.msra.mxu0 0.0
  %7991 = vmatprep.subr.mxu0 0.0
  %7992 = vmatpush2.msra.mxu0 0.0
  %7993 = vmatprep.subr.mxu0 0.0
  %7994 = vmatpush2.msra.mxu0 0.0
  %7995 = vmatprep.subr.mxu0 0.0
  %7996 = vmatpush2.msra.mxu0 0.0
  %7997 = vmatprep.subr.mxu0 0.0
  %7998 = vmatpush2.msra.mxu0 0.0
  %7999 = vmatprep.subr.mxu0 0.0
  %8000 = vmatpush2.msra.mxu0 0.0
  %8001 = vmatprep.mubr.f32.mxu0 0.0
  %8002 = vmatmul.mubr.f32.gmra.mxu0 %v7933
  %v8003 = vpop.f32.mrf.mxu0
  %v8004 = vadd.f32 %v7924, %v8003
  %v8005 = vpop.f32.mrf.mxu0
  %8006 = vdwg.mxu0
  %v8007 = vld [vmem:[%s8 + $0x8] sm:$0x1]
  %v8009 = vlaneseq
  %v8010 = vshrl.u32 %v8009, 7
  %v8011 = vsub.s32 0, %v8010
  %v8012 = vrot.slane %v8007, %v8011
  %v8014 = vadd.f32 %v8004, %v8012
  %v8015 = vxor.u32 %v8014, 2147483648
  %v8016 = vmul.f32 %v8015, 1.442695
  %v8017 = vpow.pop %v8016
  %v8018 = vadd.f32 %v8017, 1.0
  %v8019 = vrcp.pop %v8018
  %v8020 = vmul.f32 1.0, %v8019
  %vm8021 = vcmask 1024
  %8022 = vst.msk [vmem:[%s9] sm:$0x3] %vm8021, %v8020
  // Predicated region
  $region38: #{forward.1} parent=0 // pred_check
    _
  $region39: #{forward.1} parent=0 // pred_check_branch
    %8024 = sbr.rel (0) target = $region41
  $region40: #{forward.1} parent=0 // pred_region
    _
  $region41: #{forward.1} parent=0 // pred_fallthru
    _
  // Predicated region
  $region42: #{forward.1} parent=0 // pred_check
    _
  $region43: #{forward.1} parent=0 // pred_check_branch
    %8026 = sbr.rel (0) target = $region45
  $region44: #{forward.1} parent=0 // pred_region
    _
  $region45: #{forward.1} parent=0 // pred_fallthru
    _

</llo_original>
